<compile_context>
chip_gen: v6e
topology: v6e:2x2x1
jax: 0.10.0
libtpu: 0.0.40
codegen_flags: <defaults>
</compile_context>

<pallas_src>
import jax
import jax.numpy as jnp
from jax.experimental import pallas as pl
from jax.experimental.pallas import tpu as pltpu

_TB = 128  # batch tile == lane width


# ------------------------------ Pallas kernel -------------------------------

def _fused_net_kernel(x_ref, w1_ref, b1_ref, w2_ref, b2_ref,
                      wf1_ref, bf1_ref, wf2_ref, bf2_ref, wf3_ref, bf3_ref,
                      out_ref):
    f32 = jnp.float32
    bf16 = jnp.bfloat16

    # ---- conv1 (5x5, 1->6) + ReLU + 2x2 max pool, one row-pair at a time ----
    # w1_ref is a (192, 160) band matrix: rows = x*8 + c, cols = ky*32 + w.
    # RHS per row pair = 5 input rows x 2 pool rows, stacked (ky on sublanes,
    # pool row p on lanes) -> (160, 256); all pieces are whole aligned tiles.
    act1 = []                                             # 12 rows of (96, B) bf16
    for yo in range(12):
        rhs = jnp.concatenate(
            [jnp.concatenate([x_ref[2 * yo + p + ky] for p in range(2)], axis=1)
             for ky in range(5)], axis=0)                 # (160, 256) bf16
        rr = jnp.dot(w1_ref[...], rhs, preferred_element_type=f32)   # (192, 256)
        m = jnp.maximum(rr[:, 0:128], rr[:, 128:256])     # pool over rows (192,128)
        row = jnp.concatenate(                            # pool over cols -> xo*8+c
            [jnp.maximum(m[16 * xo:16 * xo + 8], m[16 * xo + 8:16 * xo + 16])
             for xo in range(12)], axis=0)                # (96, 128)
        act1.append(jnp.maximum(row + b1_ref[...], 0.0).astype(bf16))

    # ---- conv2 (5x5, 6->12) + ReLU + 2x2 max pool, one row-pair at a time ----
    # w2_ref is a (128, 480) band matrix: rows = xout*16 + co,
    # cols = ky*96 + xo*8 + ci (matching act1's row layout).
    b2 = b2_ref[...]
    feat_blocks = []                                      # 16 blocks of (16, B)
    for yo in range(4):
        rhs = jnp.concatenate(
            [jnp.concatenate([act1[2 * yo + p + ky] for p in range(2)], axis=1)
             for ky in range(5)], axis=0)                 # (480, 256) bf16
        rr = jnp.dot(w2_ref[...], rhs, preferred_element_type=f32)   # (128, 256)
        m = jnp.maximum(rr[:, 0:128], rr[:, 128:256])     # pool over rows (128,128)
        for xh in range(4):
            blk = jnp.maximum(m[32 * xh:32 * xh + 16],
                              m[32 * xh + 16:32 * xh + 32])           # (16, 128)
            feat_blocks.append(jnp.maximum(blk + b2, 0.0).astype(bf16))
    feats = jnp.concatenate(feat_blocks, axis=0)          # (256, B) bf16

    # ---- fc1 (192->120, one K=256 matmul), fc2 (120->60), out (60->10) ----
    h1 = jnp.maximum(jnp.dot(wf1_ref[...], feats, preferred_element_type=f32)
                     + bf1_ref[...], 0.0).astype(bf16)    # (128, B)
    h2 = jnp.maximum(jnp.dot(wf2_ref[...], h1, preferred_element_type=f32)
                     + bf2_ref[...], 0.0).astype(bf16)    # (128, B)
    out_ref[...] = jnp.dot(wf3_ref[...], h2,
                           preferred_element_type=f32) + bf3_ref[...]  # (16, B)


# --------------------------- host-side preparation --------------------------

def init_params(key):
    """Deterministic synthetic init, PyTorch default-style U(-1/sqrt(fan_in), .)."""
    def uniform(k, shape, fan_in):
        bound = 1.0 / (fan_in ** 0.5)
        return jax.random.uniform(k, shape, jnp.float32, -bound, bound)

    ks = jax.random.split(key, 10)
    return {
        "conv1_w": uniform(ks[0], (6, 1, 5, 5), 1 * 5 * 5),
        "conv1_b": uniform(ks[1], (6,), 1 * 5 * 5),
        "conv2_w": uniform(ks[2], (12, 6, 5, 5), 6 * 5 * 5),
        "conv2_b": uniform(ks[3], (12,), 6 * 5 * 5),
        "fc1_w":   uniform(ks[4], (120, 12 * 4 * 4), 12 * 4 * 4),
        "fc1_b":   uniform(ks[5], (120,), 12 * 4 * 4),
        "fc2_w":   uniform(ks[6], (60, 120), 120),
        "fc2_b":   uniform(ks[7], (60,), 120),
        "out_w":   uniform(ks[8], (10, 60), 60),
        "out_b":   uniform(ks[9], (10,), 60),
    }


def prepare_params(p):
    """One-time re-layout: band matrices for the convs, 128-padded bf16 FCs."""
    bf16, f32 = jnp.bfloat16, jnp.float32

    # conv1 band matrix (192, 160): [x*8 + c, ky*32 + w] = w1[c, 0, ky, w - x].
    w1 = p["conv1_w"].astype(f32)[:, 0]                               # (6, 5, 5)
    row0 = jnp.zeros((8, 5, 32), f32).at[:6, :, :5].set(w1).reshape(8, 160)
    w1m = jnp.concatenate([jnp.roll(row0, x, axis=1) for x in range(24)],
                          axis=0).astype(bf16)                        # (192, 160)
    b1v = jnp.tile(jnp.pad(p["conv1_b"], (0, 2)), 12).reshape(96, 1).astype(f32)

    # conv2 band matrix (128, 480): [xo*16 + co, ky*96 + w*8 + ci]
    #                              = w2[co, ci, ky, w - xo].
    w2 = jnp.transpose(p["conv2_w"].astype(f32), (0, 2, 3, 1))        # (co,ky,kx,ci)
    row0 = jnp.zeros((16, 5, 12, 8), f32).at[:12, :, :5, :6].set(w2).reshape(16, 480)
    w2m = jnp.concatenate([jnp.roll(row0, 8 * x, axis=1) for x in range(8)],
                          axis=0).astype(bf16)                        # (128, 480)
    b2v = jnp.pad(p["conv2_b"], (0, 4)).reshape(16, 1).astype(f32)

    # fc1 (128, 256): column (yo*4+xh)*16 + co = fc1_w[:, co*16 + yo*4 + xh]
    # (PyTorch NCHW flatten folded into the weight layout).
    wf1 = jnp.transpose(p["fc1_w"].reshape(120, 12, 4, 4), (0, 2, 3, 1))
    wf1 = jnp.pad(wf1, ((0, 8), (0, 0), (0, 0), (0, 4))).reshape(128, 256).astype(bf16)
    bf1 = jnp.pad(p["fc1_b"], (0, 8)).reshape(128, 1).astype(f32)

    wf2 = jnp.pad(p["fc2_w"], ((0, 68), (0, 8))).astype(bf16)         # (128, 128)
    bf2 = jnp.pad(p["fc2_b"], (0, 68)).reshape(128, 1).astype(f32)
    wf3 = jnp.pad(p["out_w"], ((0, 6), (0, 68))).astype(bf16)         # (16, 128)
    bf3 = jnp.pad(p["out_b"], (0, 6)).reshape(16, 1).astype(f32)

    return dict(w1m=w1m, b1v=b1v, w2m=w2m, b2v=b2v, wf1=wf1, bf1=bf1,
                wf2=wf2, bf2=bf2, wf3=wf3, bf3=bf3)


def network_forward(kp, t_nchw):
    """Forward pass of `Network`. t_nchw: (N, 1, 28, 28) float32 -> (N, 10)."""
    n = t_nchw.shape[0]
    npad = ((n + _TB - 1) // _TB) * _TB
    # NCHW -> (H, Wpad=32, B) bf16 with the batch on the lane axis.
    x = jnp.transpose(t_nchw[:, 0, :, :], (1, 2, 0))                  # (28, 28, N)
    x = jnp.pad(x, ((0, 0), (0, 4), (0, npad - n))).astype(jnp.bfloat16)

    weights = (kp["w1m"], kp["b1v"], kp["w2m"], kp["b2v"],
               kp["wf1"], kp["bf1"], kp["wf2"], kp["bf2"], kp["wf3"], kp["bf3"])

    flops = 2 * (25 * 24 * 24 * 6 + 25 * 8 * 8 * 6 * 12
                 + 192 * 120 + 120 * 60 + 60 * 10) * npad
    bytes_accessed = 28 * 32 * npad * 2 + 16 * npad * 4
    for a in weights:
        bytes_accessed += int(a.size) * a.dtype.itemsize

    grid_spec = pltpu.PrefetchScalarGridSpec(
        num_scalar_prefetch=0,
        grid=(npad // _TB,),
        in_specs=[
            pl.BlockSpec((28, 32, _TB), lambda i: (0, 0, i)),
            pl.BlockSpec((192, 160), lambda i: (0, 0)),
            pl.BlockSpec((96, 1), lambda i: (0, 0)),
            pl.BlockSpec((128, 480), lambda i: (0, 0)),
            pl.BlockSpec((16, 1), lambda i: (0, 0)),
            pl.BlockSpec((128, 256), lambda i: (0, 0)),
            pl.BlockSpec((128, 1), lambda i: (0, 0)),
            pl.BlockSpec((128, 128), lambda i: (0, 0)),
            pl.BlockSpec((128, 1), lambda i: (0, 0)),
            pl.BlockSpec((16, 128), lambda i: (0, 0)),
            pl.BlockSpec((16, 1), lambda i: (0, 0)),
        ],
        out_specs=pl.BlockSpec((16, _TB), lambda i: (0, i)),
    )
    out = pl.pallas_call(
        _fused_net_kernel,
        out_shape=jax.ShapeDtypeStruct((16, npad), jnp.float32),
        grid_spec=grid_spec,
        compiler_params=pltpu.CompilerParams(
            dimension_semantics=("parallel",),
            vmem_limit_bytes=32 * 1024 * 1024),
        cost_estimate=pl.CostEstimate(flops=flops, transcendentals=0,
                                      bytes_accessed=bytes_accessed),
    )(x, *weights)
    # (16, Npad) lane-dense slab -> (N, 10) logits
    return out[:10, :n].T


# ------------------------------ reference (JAX) ------------------------------

def _reference_forward(params, t_nchw):
    """Pure-JAX reference; bf16 operands / f32 accumulation like the kernel."""
    bf16, f32 = jnp.bfloat16, jnp.float32
    x = t_nchw.astype(bf16)
    dn = jax.lax.conv_dimension_numbers(x.shape, params["conv1_w"].shape,
                                        ("NCHW", "OIHW", "NCHW"))
    x = jax.lax.conv_general_dilated(x, params["conv1_w"].astype(bf16), (1, 1),
                                     "VALID", dimension_numbers=dn,
                                     preferred_element_type=f32)
    x = jax.nn.relu(x + params["conv1_b"][None, :, None, None])
    x = jax.lax.reduce_window(x, -jnp.inf, jax.lax.max,
                              (1, 1, 2, 2), (1, 1, 2, 2), "VALID")
    x = x.astype(bf16)
    dn = jax.lax.conv_dimension_numbers(x.shape, params["conv2_w"].shape,
                                        ("NCHW", "OIHW", "NCHW"))
    x = jax.lax.conv_general_dilated(x, params["conv2_w"].astype(bf16), (1, 1),
                                     "VALID", dimension_numbers=dn,
                                     preferred_element_type=f32)
    x = jax.nn.relu(x + params["conv2_b"][None, :, None, None])
    x = jax.lax.reduce_window(x, -jnp.inf, jax.lax.max,
                              (1, 1, 2, 2), (1, 1, 2, 2), "VALID")
    x = x.reshape(x.shape[0], 12 * 4 * 4)
    x = jax.nn.relu(jnp.dot(x.astype(bf16), params["fc1_w"].T.astype(bf16),
                            preferred_element_type=f32) + params["fc1_b"])
    x = jax.nn.relu(jnp.dot(x.astype(bf16), params["fc2_w"].T.astype(bf16),
                            preferred_element_type=f32) + params["fc2_b"])
    return jnp.dot(x.astype(bf16), params["out_w"].T.astype(bf16),
                   preferred_element_type=f32) + params["out_b"]


if __name__ == "__main__":
    key = jax.random.PRNGKey(0)
    k_param, k_in = jax.random.split(key)
    params = init_params(k_param)
    kparams = prepare_params(params)
    # Input implied by the module: 28x28 single-channel images (MNIST-style).
    x = jax.random.normal(k_in, (2, 1, 28, 28), jnp.float32)

    out = jax.block_until_ready(jax.jit(network_forward)(kparams, x))
    assert out.shape == (2, 10), out.shape

    ref = jax.block_until_ready(_reference_forward(params, x))
    max_err = float(jnp.max(jnp.abs(out - ref)))
    assert jnp.allclose(out, ref, atol=3e-2, rtol=3e-2), max_err

    print("KERNEL_OK")
</pallas_src>

<mosaic_0001>
module attributes {stable_mosaic.version = 11 : i64} {
  func.func @_fused_net_kernel(%arg0: i32, %arg1: memref<28x32x128xbf16, #tpu.memory_space<vmem>>, %arg2: memref<192x160xbf16, #tpu.memory_space<vmem>>, %arg3: memref<96x1xf32, #tpu.memory_space<vmem>>, %arg4: memref<128x480xbf16, #tpu.memory_space<vmem>>, %arg5: memref<16x1xf32, #tpu.memory_space<vmem>>, %arg6: memref<128x256xbf16, #tpu.memory_space<vmem>>, %arg7: memref<128x1xf32, #tpu.memory_space<vmem>>, %arg8: memref<128x128xbf16, #tpu.memory_space<vmem>>, %arg9: memref<128x1xf32, #tpu.memory_space<vmem>>, %arg10: memref<16x128xbf16, #tpu.memory_space<vmem>>, %arg11: memref<16x1xf32, #tpu.memory_space<vmem>>, %arg12: memref<16x128xf32, #tpu.memory_space<vmem>>) attributes {dimension_semantics = [#tpu.dimension_semantics<parallel>], iteration_bounds = array<i64: 1>, scalar_prefetch = 0 : i64, scratch_operands = 0 : i64, tpu.core_type = #tpu.core_type<tc>, window_params = [{transform_indices = @transform_0, window_bounds = array<i64: 28, 32, 128>}, {pipeline_mode = #tpu.pipeline_mode<synchronous>, transform_indices = @transform_1, window_bounds = array<i64: 192, 160>}, {pipeline_mode = #tpu.pipeline_mode<synchronous>, transform_indices = @transform_2, window_bounds = array<i64: 96, 1>}, {pipeline_mode = #tpu.pipeline_mode<synchronous>, transform_indices = @transform_3, window_bounds = array<i64: 128, 480>}, {pipeline_mode = #tpu.pipeline_mode<synchronous>, transform_indices = @transform_4, window_bounds = array<i64: 16, 1>}, {pipeline_mode = #tpu.pipeline_mode<synchronous>, transform_indices = @transform_5, window_bounds = array<i64: 128, 256>}, {pipeline_mode = #tpu.pipeline_mode<synchronous>, transform_indices = @transform_6, window_bounds = array<i64: 128, 1>}, {pipeline_mode = #tpu.pipeline_mode<synchronous>, transform_indices = @transform_7, window_bounds = array<i64: 128, 128>}, {pipeline_mode = #tpu.pipeline_mode<synchronous>, transform_indices = @transform_8, window_bounds = array<i64: 128, 1>}, {pipeline_mode = #tpu.pipeline_mode<synchronous>, transform_indices = @transform_9, window_bounds = array<i64: 16, 128>}, {pipeline_mode = #tpu.pipeline_mode<synchronous>, transform_indices = @transform_10, window_bounds = array<i64: 16, 1>}, {transform_indices = @transform_11, window_bounds = array<i64: 16, 128>}]} {
    %c0 = arith.constant 0 : index
    %c0_0 = arith.constant 0 : index
    %c0_1 = arith.constant 0 : index
    %0 = vector.load %arg1[%c0, %c0_0, %c0_1] : memref<28x32x128xbf16, #tpu.memory_space<vmem>>, vector<1x32x128xbf16>
    %1 = vector.shape_cast %0 : vector<1x32x128xbf16> to vector<32x128xbf16>
    %c1 = arith.constant 1 : index
    %c0_2 = arith.constant 0 : index
    %c0_3 = arith.constant 0 : index
    %2 = vector.load %arg1[%c1, %c0_2, %c0_3] : memref<28x32x128xbf16, #tpu.memory_space<vmem>>, vector<1x32x128xbf16>
    %3 = vector.shape_cast %2 : vector<1x32x128xbf16> to vector<32x128xbf16>
    %4 = tpu.concatenate %1, %3 in 1 : vector<32x128xbf16>, vector<32x128xbf16> -> vector<32x256xbf16>
    %c1_4 = arith.constant 1 : index
    %c0_5 = arith.constant 0 : index
    %c0_6 = arith.constant 0 : index
    %5 = vector.load %arg1[%c1_4, %c0_5, %c0_6] : memref<28x32x128xbf16, #tpu.memory_space<vmem>>, vector<1x32x128xbf16>
    %6 = vector.shape_cast %5 : vector<1x32x128xbf16> to vector<32x128xbf16>
    %c2 = arith.constant 2 : index
    %c0_7 = arith.constant 0 : index
    %c0_8 = arith.constant 0 : index
    %7 = vector.load %arg1[%c2, %c0_7, %c0_8] : memref<28x32x128xbf16, #tpu.memory_space<vmem>>, vector<1x32x128xbf16>
    %8 = vector.shape_cast %7 : vector<1x32x128xbf16> to vector<32x128xbf16>
    %9 = tpu.concatenate %6, %8 in 1 : vector<32x128xbf16>, vector<32x128xbf16> -> vector<32x256xbf16>
    %c2_9 = arith.constant 2 : index
    %c0_10 = arith.constant 0 : index
    %c0_11 = arith.constant 0 : index
    %10 = vector.load %arg1[%c2_9, %c0_10, %c0_11] : memref<28x32x128xbf16, #tpu.memory_space<vmem>>, vector<1x32x128xbf16>
    %11 = vector.shape_cast %10 : vector<1x32x128xbf16> to vector<32x128xbf16>
    %c3 = arith.constant 3 : index
    %c0_12 = arith.constant 0 : index
    %c0_13 = arith.constant 0 : index
    %12 = vector.load %arg1[%c3, %c0_12, %c0_13] : memref<28x32x128xbf16, #tpu.memory_space<vmem>>, vector<1x32x128xbf16>
    %13 = vector.shape_cast %12 : vector<1x32x128xbf16> to vector<32x128xbf16>
    %14 = tpu.concatenate %11, %13 in 1 : vector<32x128xbf16>, vector<32x128xbf16> -> vector<32x256xbf16>
    %c3_14 = arith.constant 3 : index
    %c0_15 = arith.constant 0 : index
    %c0_16 = arith.constant 0 : index
    %15 = vector.load %arg1[%c3_14, %c0_15, %c0_16] : memref<28x32x128xbf16, #tpu.memory_space<vmem>>, vector<1x32x128xbf16>
    %16 = vector.shape_cast %15 : vector<1x32x128xbf16> to vector<32x128xbf16>
    %c4 = arith.constant 4 : index
    %c0_17 = arith.constant 0 : index
    %c0_18 = arith.constant 0 : index
    %17 = vector.load %arg1[%c4, %c0_17, %c0_18] : memref<28x32x128xbf16, #tpu.memory_space<vmem>>, vector<1x32x128xbf16>
    %18 = vector.shape_cast %17 : vector<1x32x128xbf16> to vector<32x128xbf16>
    %19 = tpu.concatenate %16, %18 in 1 : vector<32x128xbf16>, vector<32x128xbf16> -> vector<32x256xbf16>
    %c4_19 = arith.constant 4 : index
    %c0_20 = arith.constant 0 : index
    %c0_21 = arith.constant 0 : index
    %20 = vector.load %arg1[%c4_19, %c0_20, %c0_21] : memref<28x32x128xbf16, #tpu.memory_space<vmem>>, vector<1x32x128xbf16>
    %21 = vector.shape_cast %20 : vector<1x32x128xbf16> to vector<32x128xbf16>
    %c5 = arith.constant 5 : index
    %c0_22 = arith.constant 0 : index
    %c0_23 = arith.constant 0 : index
    %22 = vector.load %arg1[%c5, %c0_22, %c0_23] : memref<28x32x128xbf16, #tpu.memory_space<vmem>>, vector<1x32x128xbf16>
    %23 = vector.shape_cast %22 : vector<1x32x128xbf16> to vector<32x128xbf16>
    %24 = tpu.concatenate %21, %23 in 1 : vector<32x128xbf16>, vector<32x128xbf16> -> vector<32x256xbf16>
    %25 = tpu.concatenate %4, %9, %14, %19, %24 in 0 : vector<32x256xbf16>, vector<32x256xbf16>, vector<32x256xbf16>, vector<32x256xbf16>, vector<32x256xbf16> -> vector<160x256xbf16>
    %c0_24 = arith.constant 0 : index
    %c0_25 = arith.constant 0 : index
    %26 = vector.load %arg2[%c0_24, %c0_25] : memref<192x160xbf16, #tpu.memory_space<vmem>>, vector<192x160xbf16>
    %cst = arith.constant dense<0.000000e+00> : vector<192x256xf32>
    %27 = tpu.matmul %26, %25, %cst {dimension_numbers = #tpu.dot_dimension_numbers<[1], [0], [0], [1], [0, 0, 1, 1], [], []>} : vector<192x160xbf16>, vector<160x256xbf16>, vector<192x256xf32> -> vector<192x256xf32>
    %28 = vector.extract_strided_slice %27 {offsets = [0, 0], sizes = [192, 128], strides = [1, 1]} : vector<192x256xf32> to vector<192x128xf32>
    %29 = vector.extract_strided_slice %27 {offsets = [0, 128], sizes = [192, 128], strides = [1, 1]} : vector<192x256xf32> to vector<192x128xf32>
    %30 = arith.maximumf %28, %29 : vector<192x128xf32>
    %31 = vector.extract_strided_slice %30 {offsets = [0, 0], sizes = [8, 128], strides = [1, 1]} : vector<192x128xf32> to vector<8x128xf32>
    %32 = vector.extract_strided_slice %30 {offsets = [8, 0], sizes = [8, 128], strides = [1, 1]} : vector<192x128xf32> to vector<8x128xf32>
    %33 = arith.maximumf %31, %32 : vector<8x128xf32>
    %34 = vector.extract_strided_slice %30 {offsets = [16, 0], sizes = [8, 128], strides = [1, 1]} : vector<192x128xf32> to vector<8x128xf32>
    %35 = vector.extract_strided_slice %30 {offsets = [24, 0], sizes = [8, 128], strides = [1, 1]} : vector<192x128xf32> to vector<8x128xf32>
    %36 = arith.maximumf %34, %35 : vector<8x128xf32>
    %37 = vector.extract_strided_slice %30 {offsets = [32, 0], sizes = [8, 128], strides = [1, 1]} : vector<192x128xf32> to vector<8x128xf32>
    %38 = vector.extract_strided_slice %30 {offsets = [40, 0], sizes = [8, 128], strides = [1, 1]} : vector<192x128xf32> to vector<8x128xf32>
    %39 = arith.maximumf %37, %38 : vector<8x128xf32>
    %40 = vector.extract_strided_slice %30 {offsets = [48, 0], sizes = [8, 128], strides = [1, 1]} : vector<192x128xf32> to vector<8x128xf32>
    %41 = vector.extract_strided_slice %30 {offsets = [56, 0], sizes = [8, 128], strides = [1, 1]} : vector<192x128xf32> to vector<8x128xf32>
    %42 = arith.maximumf %40, %41 : vector<8x128xf32>
    %43 = vector.extract_strided_slice %30 {offsets = [64, 0], sizes = [8, 128], strides = [1, 1]} : vector<192x128xf32> to vector<8x128xf32>
    %44 = vector.extract_strided_slice %30 {offsets = [72, 0], sizes = [8, 128], strides = [1, 1]} : vector<192x128xf32> to vector<8x128xf32>
    %45 = arith.maximumf %43, %44 : vector<8x128xf32>
    %46 = vector.extract_strided_slice %30 {offsets = [80, 0], sizes = [8, 128], strides = [1, 1]} : vector<192x128xf32> to vector<8x128xf32>
    %47 = vector.extract_strided_slice %30 {offsets = [88, 0], sizes = [8, 128], strides = [1, 1]} : vector<192x128xf32> to vector<8x128xf32>
    %48 = arith.maximumf %46, %47 : vector<8x128xf32>
    %49 = vector.extract_strided_slice %30 {offsets = [96, 0], sizes = [8, 128], strides = [1, 1]} : vector<192x128xf32> to vector<8x128xf32>
    %50 = vector.extract_strided_slice %30 {offsets = [104, 0], sizes = [8, 128], strides = [1, 1]} : vector<192x128xf32> to vector<8x128xf32>
    %51 = arith.maximumf %49, %50 : vector<8x128xf32>
    %52 = vector.extract_strided_slice %30 {offsets = [112, 0], sizes = [8, 128], strides = [1, 1]} : vector<192x128xf32> to vector<8x128xf32>
    %53 = vector.extract_strided_slice %30 {offsets = [120, 0], sizes = [8, 128], strides = [1, 1]} : vector<192x128xf32> to vector<8x128xf32>
    %54 = arith.maximumf %52, %53 : vector<8x128xf32>
    %55 = vector.extract_strided_slice %30 {offsets = [128, 0], sizes = [8, 128], strides = [1, 1]} : vector<192x128xf32> to vector<8x128xf32>
    %56 = vector.extract_strided_slice %30 {offsets = [136, 0], sizes = [8, 128], strides = [1, 1]} : vector<192x128xf32> to vector<8x128xf32>
    %57 = arith.maximumf %55, %56 : vector<8x128xf32>
    %58 = vector.extract_strided_slice %30 {offsets = [144, 0], sizes = [8, 128], strides = [1, 1]} : vector<192x128xf32> to vector<8x128xf32>
    %59 = vector.extract_strided_slice %30 {offsets = [152, 0], sizes = [8, 128], strides = [1, 1]} : vector<192x128xf32> to vector<8x128xf32>
    %60 = arith.maximumf %58, %59 : vector<8x128xf32>
    %61 = vector.extract_strided_slice %30 {offsets = [160, 0], sizes = [8, 128], strides = [1, 1]} : vector<192x128xf32> to vector<8x128xf32>
    %62 = vector.extract_strided_slice %30 {offsets = [168, 0], sizes = [8, 128], strides = [1, 1]} : vector<192x128xf32> to vector<8x128xf32>
    %63 = arith.maximumf %61, %62 : vector<8x128xf32>
    %64 = vector.extract_strided_slice %30 {offsets = [176, 0], sizes = [8, 128], strides = [1, 1]} : vector<192x128xf32> to vector<8x128xf32>
    %65 = vector.extract_strided_slice %30 {offsets = [184, 0], sizes = [8, 128], strides = [1, 1]} : vector<192x128xf32> to vector<8x128xf32>
    %66 = arith.maximumf %64, %65 : vector<8x128xf32>
    %67 = tpu.concatenate %33, %36, %39, %42, %45, %48, %51, %54, %57, %60, %63, %66 in 0 : vector<8x128xf32>, vector<8x128xf32>, vector<8x128xf32>, vector<8x128xf32>, vector<8x128xf32>, vector<8x128xf32>, vector<8x128xf32>, vector<8x128xf32>, vector<8x128xf32>, vector<8x128xf32>, vector<8x128xf32>, vector<8x128xf32> -> vector<96x128xf32>
    %c0_26 = arith.constant 0 : index
    %c0_27 = arith.constant 0 : index
    %68 = vector.load %arg3[%c0_26, %c0_27] : memref<96x1xf32, #tpu.memory_space<vmem>>, vector<96x1xf32>
    %69 = vector.broadcast %68 : vector<96x1xf32> to vector<96x128xf32>
    %70 = arith.addf %67, %69 : vector<96x128xf32>
    %cst_28 = arith.constant 0.000000e+00 : f32
    %71 = vector.broadcast %cst_28 : f32 to vector<96x128xf32>
    %72 = arith.maximumf %70, %71 : vector<96x128xf32>
    %73 = arith.truncf %72 : vector<96x128xf32> to vector<96x128xbf16>
    %c2_29 = arith.constant 2 : index
    %c0_30 = arith.constant 0 : index
    %c0_31 = arith.constant 0 : index
    %74 = vector.load %arg1[%c2_29, %c0_30, %c0_31] : memref<28x32x128xbf16, #tpu.memory_space<vmem>>, vector<1x32x128xbf16>
    %75 = vector.shape_cast %74 : vector<1x32x128xbf16> to vector<32x128xbf16>
    %c3_32 = arith.constant 3 : index
    %c0_33 = arith.constant 0 : index
    %c0_34 = arith.constant 0 : index
    %76 = vector.load %arg1[%c3_32, %c0_33, %c0_34] : memref<28x32x128xbf16, #tpu.memory_space<vmem>>, vector<1x32x128xbf16>
    %77 = vector.shape_cast %76 : vector<1x32x128xbf16> to vector<32x128xbf16>
    %78 = tpu.concatenate %75, %77 in 1 : vector<32x128xbf16>, vector<32x128xbf16> -> vector<32x256xbf16>
    %c3_35 = arith.constant 3 : index
    %c0_36 = arith.constant 0 : index
    %c0_37 = arith.constant 0 : index
    %79 = vector.load %arg1[%c3_35, %c0_36, %c0_37] : memref<28x32x128xbf16, #tpu.memory_space<vmem>>, vector<1x32x128xbf16>
    %80 = vector.shape_cast %79 : vector<1x32x128xbf16> to vector<32x128xbf16>
    %c4_38 = arith.constant 4 : index
    %c0_39 = arith.constant 0 : index
    %c0_40 = arith.constant 0 : index
    %81 = vector.load %arg1[%c4_38, %c0_39, %c0_40] : memref<28x32x128xbf16, #tpu.memory_space<vmem>>, vector<1x32x128xbf16>
    %82 = vector.shape_cast %81 : vector<1x32x128xbf16> to vector<32x128xbf16>
    %83 = tpu.concatenate %80, %82 in 1 : vector<32x128xbf16>, vector<32x128xbf16> -> vector<32x256xbf16>
    %c4_41 = arith.constant 4 : index
    %c0_42 = arith.constant 0 : index
    %c0_43 = arith.constant 0 : index
    %84 = vector.load %arg1[%c4_41, %c0_42, %c0_43] : memref<28x32x128xbf16, #tpu.memory_space<vmem>>, vector<1x32x128xbf16>
    %85 = vector.shape_cast %84 : vector<1x32x128xbf16> to vector<32x128xbf16>
    %c5_44 = arith.constant 5 : index
    %c0_45 = arith.constant 0 : index
    %c0_46 = arith.constant 0 : index
    %86 = vector.load %arg1[%c5_44, %c0_45, %c0_46] : memref<28x32x128xbf16, #tpu.memory_space<vmem>>, vector<1x32x128xbf16>
    %87 = vector.shape_cast %86 : vector<1x32x128xbf16> to vector<32x128xbf16>
    %88 = tpu.concatenate %85, %87 in 1 : vector<32x128xbf16>, vector<32x128xbf16> -> vector<32x256xbf16>
    %c5_47 = arith.constant 5 : index
    %c0_48 = arith.constant 0 : index
    %c0_49 = arith.constant 0 : index
    %89 = vector.load %arg1[%c5_47, %c0_48, %c0_49] : memref<28x32x128xbf16, #tpu.memory_space<vmem>>, vector<1x32x128xbf16>
    %90 = vector.shape_cast %89 : vector<1x32x128xbf16> to vector<32x128xbf16>
    %c6 = arith.constant 6 : index
    %c0_50 = arith.constant 0 : index
    %c0_51 = arith.constant 0 : index
    %91 = vector.load %arg1[%c6, %c0_50, %c0_51] : memref<28x32x128xbf16, #tpu.memory_space<vmem>>, vector<1x32x128xbf16>
    %92 = vector.shape_cast %91 : vector<1x32x128xbf16> to vector<32x128xbf16>
    %93 = tpu.concatenate %90, %92 in 1 : vector<32x128xbf16>, vector<32x128xbf16> -> vector<32x256xbf16>
    %c6_52 = arith.constant 6 : index
    %c0_53 = arith.constant 0 : index
    %c0_54 = arith.constant 0 : index
    %94 = vector.load %arg1[%c6_52, %c0_53, %c0_54] : memref<28x32x128xbf16, #tpu.memory_space<vmem>>, vector<1x32x128xbf16>
    %95 = vector.shape_cast %94 : vector<1x32x128xbf16> to vector<32x128xbf16>
    %c7 = arith.constant 7 : index
    %c0_55 = arith.constant 0 : index
    %c0_56 = arith.constant 0 : index
    %96 = vector.load %arg1[%c7, %c0_55, %c0_56] : memref<28x32x128xbf16, #tpu.memory_space<vmem>>, vector<1x32x128xbf16>
    %97 = vector.shape_cast %96 : vector<1x32x128xbf16> to vector<32x128xbf16>
    %98 = tpu.concatenate %95, %97 in 1 : vector<32x128xbf16>, vector<32x128xbf16> -> vector<32x256xbf16>
    %99 = tpu.concatenate %78, %83, %88, %93, %98 in 0 : vector<32x256xbf16>, vector<32x256xbf16>, vector<32x256xbf16>, vector<32x256xbf16>, vector<32x256xbf16> -> vector<160x256xbf16>
    %c0_57 = arith.constant 0 : index
    %c0_58 = arith.constant 0 : index
    %100 = vector.load %arg2[%c0_57, %c0_58] : memref<192x160xbf16, #tpu.memory_space<vmem>>, vector<192x160xbf16>
    %cst_59 = arith.constant dense<0.000000e+00> : vector<192x256xf32>
    %101 = tpu.matmul %100, %99, %cst_59 {dimension_numbers = #tpu.dot_dimension_numbers<[1], [0], [0], [1], [0, 0, 1, 1], [], []>} : vector<192x160xbf16>, vector<160x256xbf16>, vector<192x256xf32> -> vector<192x256xf32>
    %102 = vector.extract_strided_slice %101 {offsets = [0, 0], sizes = [192, 128], strides = [1, 1]} : vector<192x256xf32> to vector<192x128xf32>
    %103 = vector.extract_strided_slice %101 {offsets = [0, 128], sizes = [192, 128], strides = [1, 1]} : vector<192x256xf32> to vector<192x128xf32>
    %104 = arith.maximumf %102, %103 : vector<192x128xf32>
    %105 = vector.extract_strided_slice %104 {offsets = [0, 0], sizes = [8, 128], strides = [1, 1]} : vector<192x128xf32> to vector<8x128xf32>
    %106 = vector.extract_strided_slice %104 {offsets = [8, 0], sizes = [8, 128], strides = [1, 1]} : vector<192x128xf32> to vector<8x128xf32>
    %107 = arith.maximumf %105, %106 : vector<8x128xf32>
    %108 = vector.extract_strided_slice %104 {offsets = [16, 0], sizes = [8, 128], strides = [1, 1]} : vector<192x128xf32> to vector<8x128xf32>
    %109 = vector.extract_strided_slice %104 {offsets = [24, 0], sizes = [8, 128], strides = [1, 1]} : vector<192x128xf32> to vector<8x128xf32>
    %110 = arith.maximumf %108, %109 : vector<8x128xf32>
    %111 = vector.extract_strided_slice %104 {offsets = [32, 0], sizes = [8, 128], strides = [1, 1]} : vector<192x128xf32> to vector<8x128xf32>
    %112 = vector.extract_strided_slice %104 {offsets = [40, 0], sizes = [8, 128], strides = [1, 1]} : vector<192x128xf32> to vector<8x128xf32>
    %113 = arith.maximumf %111, %112 : vector<8x128xf32>
    %114 = vector.extract_strided_slice %104 {offsets = [48, 0], sizes = [8, 128], strides = [1, 1]} : vector<192x128xf32> to vector<8x128xf32>
    %115 = vector.extract_strided_slice %104 {offsets = [56, 0], sizes = [8, 128], strides = [1, 1]} : vector<192x128xf32> to vector<8x128xf32>
    %116 = arith.maximumf %114, %115 : vector<8x128xf32>
    %117 = vector.extract_strided_slice %104 {offsets = [64, 0], sizes = [8, 128], strides = [1, 1]} : vector<192x128xf32> to vector<8x128xf32>
    %118 = vector.extract_strided_slice %104 {offsets = [72, 0], sizes = [8, 128], strides = [1, 1]} : vector<192x128xf32> to vector<8x128xf32>
    %119 = arith.maximumf %117, %118 : vector<8x128xf32>
    %120 = vector.extract_strided_slice %104 {offsets = [80, 0], sizes = [8, 128], strides = [1, 1]} : vector<192x128xf32> to vector<8x128xf32>
    %121 = vector.extract_strided_slice %104 {offsets = [88, 0], sizes = [8, 128], strides = [1, 1]} : vector<192x128xf32> to vector<8x128xf32>
    %122 = arith.maximumf %120, %121 : vector<8x128xf32>
    %123 = vector.extract_strided_slice %104 {offsets = [96, 0], sizes = [8, 128], strides = [1, 1]} : vector<192x128xf32> to vector<8x128xf32>
    %124 = vector.extract_strided_slice %104 {offsets = [104, 0], sizes = [8, 128], strides = [1, 1]} : vector<192x128xf32> to vector<8x128xf32>
    %125 = arith.maximumf %123, %124 : vector<8x128xf32>
    %126 = vector.extract_strided_slice %104 {offsets = [112, 0], sizes = [8, 128], strides = [1, 1]} : vector<192x128xf32> to vector<8x128xf32>
    %127 = vector.extract_strided_slice %104 {offsets = [120, 0], sizes = [8, 128], strides = [1, 1]} : vector<192x128xf32> to vector<8x128xf32>
    %128 = arith.maximumf %126, %127 : vector<8x128xf32>
    %129 = vector.extract_strided_slice %104 {offsets = [128, 0], sizes = [8, 128], strides = [1, 1]} : vector<192x128xf32> to vector<8x128xf32>
    %130 = vector.extract_strided_slice %104 {offsets = [136, 0], sizes = [8, 128], strides = [1, 1]} : vector<192x128xf32> to vector<8x128xf32>
    %131 = arith.maximumf %129, %130 : vector<8x128xf32>
    %132 = vector.extract_strided_slice %104 {offsets = [144, 0], sizes = [8, 128], strides = [1, 1]} : vector<192x128xf32> to vector<8x128xf32>
    %133 = vector.extract_strided_slice %104 {offsets = [152, 0], sizes = [8, 128], strides = [1, 1]} : vector<192x128xf32> to vector<8x128xf32>
    %134 = arith.maximumf %132, %133 : vector<8x128xf32>
    %135 = vector.extract_strided_slice %104 {offsets = [160, 0], sizes = [8, 128], strides = [1, 1]} : vector<192x128xf32> to vector<8x128xf32>
    %136 = vector.extract_strided_slice %104 {offsets = [168, 0], sizes = [8, 128], strides = [1, 1]} : vector<192x128xf32> to vector<8x128xf32>
    %137 = arith.maximumf %135, %136 : vector<8x128xf32>
    %138 = vector.extract_strided_slice %104 {offsets = [176, 0], sizes = [8, 128], strides = [1, 1]} : vector<192x128xf32> to vector<8x128xf32>
    %139 = vector.extract_strided_slice %104 {offsets = [184, 0], sizes = [8, 128], strides = [1, 1]} : vector<192x128xf32> to vector<8x128xf32>
    %140 = arith.maximumf %138, %139 : vector<8x128xf32>
    %141 = tpu.concatenate %107, %110, %113, %116, %119, %122, %125, %128, %131, %134, %137, %140 in 0 : vector<8x128xf32>, vector<8x128xf32>, vector<8x128xf32>, vector<8x128xf32>, vector<8x128xf32>, vector<8x128xf32>, vector<8x128xf32>, vector<8x128xf32>, vector<8x128xf32>, vector<8x128xf32>, vector<8x128xf32>, vector<8x128xf32> -> vector<96x128xf32>
    %c0_60 = arith.constant 0 : index
    %c0_61 = arith.constant 0 : index
    %142 = vector.load %arg3[%c0_60, %c0_61] : memref<96x1xf32, #tpu.memory_space<vmem>>, vector<96x1xf32>
    %143 = vector.broadcast %142 : vector<96x1xf32> to vector<96x128xf32>
    %144 = arith.addf %141, %143 : vector<96x128xf32>
    %cst_62 = arith.constant 0.000000e+00 : f32
    %145 = vector.broadcast %cst_62 : f32 to vector<96x128xf32>
    %146 = arith.maximumf %144, %145 : vector<96x128xf32>
    %147 = arith.truncf %146 : vector<96x128xf32> to vector<96x128xbf16>
    %c4_63 = arith.constant 4 : index
    %c0_64 = arith.constant 0 : index
    %c0_65 = arith.constant 0 : index
    %148 = vector.load %arg1[%c4_63, %c0_64, %c0_65] : memref<28x32x128xbf16, #tpu.memory_space<vmem>>, vector<1x32x128xbf16>
    %149 = vector.shape_cast %148 : vector<1x32x128xbf16> to vector<32x128xbf16>
    %c5_66 = arith.constant 5 : index
    %c0_67 = arith.constant 0 : index
    %c0_68 = arith.constant 0 : index
    %150 = vector.load %arg1[%c5_66, %c0_67, %c0_68] : memref<28x32x128xbf16, #tpu.memory_space<vmem>>, vector<1x32x128xbf16>
    %151 = vector.shape_cast %150 : vector<1x32x128xbf16> to vector<32x128xbf16>
    %152 = tpu.concatenate %149, %151 in 1 : vector<32x128xbf16>, vector<32x128xbf16> -> vector<32x256xbf16>
    %c5_69 = arith.constant 5 : index
    %c0_70 = arith.constant 0 : index
    %c0_71 = arith.constant 0 : index
    %153 = vector.load %arg1[%c5_69, %c0_70, %c0_71] : memref<28x32x128xbf16, #tpu.memory_space<vmem>>, vector<1x32x128xbf16>
    %154 = vector.shape_cast %153 : vector<1x32x128xbf16> to vector<32x128xbf16>
    %c6_72 = arith.constant 6 : index
    %c0_73 = arith.constant 0 : index
    %c0_74 = arith.constant 0 : index
    %155 = vector.load %arg1[%c6_72, %c0_73, %c0_74] : memref<28x32x128xbf16, #tpu.memory_space<vmem>>, vector<1x32x128xbf16>
    %156 = vector.shape_cast %155 : vector<1x32x128xbf16> to vector<32x128xbf16>
    %157 = tpu.concatenate %154, %156 in 1 : vector<32x128xbf16>, vector<32x128xbf16> -> vector<32x256xbf16>
    %c6_75 = arith.constant 6 : index
    %c0_76 = arith.constant 0 : index
    %c0_77 = arith.constant 0 : index
    %158 = vector.load %arg1[%c6_75, %c0_76, %c0_77] : memref<28x32x128xbf16, #tpu.memory_space<vmem>>, vector<1x32x128xbf16>
    %159 = vector.shape_cast %158 : vector<1x32x128xbf16> to vector<32x128xbf16>
    %c7_78 = arith.constant 7 : index
    %c0_79 = arith.constant 0 : index
    %c0_80 = arith.constant 0 : index
    %160 = vector.load %arg1[%c7_78, %c0_79, %c0_80] : memref<28x32x128xbf16, #tpu.memory_space<vmem>>, vector<1x32x128xbf16>
    %161 = vector.shape_cast %160 : vector<1x32x128xbf16> to vector<32x128xbf16>
    %162 = tpu.concatenate %159, %161 in 1 : vector<32x128xbf16>, vector<32x128xbf16> -> vector<32x256xbf16>
    %c7_81 = arith.constant 7 : index
    %c0_82 = arith.constant 0 : index
    %c0_83 = arith.constant 0 : index
    %163 = vector.load %arg1[%c7_81, %c0_82, %c0_83] : memref<28x32x128xbf16, #tpu.memory_space<vmem>>, vector<1x32x128xbf16>
    %164 = vector.shape_cast %163 : vector<1x32x128xbf16> to vector<32x128xbf16>
    %c8 = arith.constant 8 : index
    %c0_84 = arith.constant 0 : index
    %c0_85 = arith.constant 0 : index
    %165 = vector.load %arg1[%c8, %c0_84, %c0_85] : memref<28x32x128xbf16, #tpu.memory_space<vmem>>, vector<1x32x128xbf16>
    %166 = vector.shape_cast %165 : vector<1x32x128xbf16> to vector<32x128xbf16>
    %167 = tpu.concatenate %164, %166 in 1 : vector<32x128xbf16>, vector<32x128xbf16> -> vector<32x256xbf16>
    %c8_86 = arith.constant 8 : index
    %c0_87 = arith.constant 0 : index
    %c0_88 = arith.constant 0 : index
    %168 = vector.load %arg1[%c8_86, %c0_87, %c0_88] : memref<28x32x128xbf16, #tpu.memory_space<vmem>>, vector<1x32x128xbf16>
    %169 = vector.shape_cast %168 : vector<1x32x128xbf16> to vector<32x128xbf16>
    %c9 = arith.constant 9 : index
    %c0_89 = arith.constant 0 : index
    %c0_90 = arith.constant 0 : index
    %170 = vector.load %arg1[%c9, %c0_89, %c0_90] : memref<28x32x128xbf16, #tpu.memory_space<vmem>>, vector<1x32x128xbf16>
    %171 = vector.shape_cast %170 : vector<1x32x128xbf16> to vector<32x128xbf16>
    %172 = tpu.concatenate %169, %171 in 1 : vector<32x128xbf16>, vector<32x128xbf16> -> vector<32x256xbf16>
    %173 = tpu.concatenate %152, %157, %162, %167, %172 in 0 : vector<32x256xbf16>, vector<32x256xbf16>, vector<32x256xbf16>, vector<32x256xbf16>, vector<32x256xbf16> -> vector<160x256xbf16>
    %c0_91 = arith.constant 0 : index
    %c0_92 = arith.constant 0 : index
    %174 = vector.load %arg2[%c0_91, %c0_92] : memref<192x160xbf16, #tpu.memory_space<vmem>>, vector<192x160xbf16>
    %cst_93 = arith.constant dense<0.000000e+00> : vector<192x256xf32>
    %175 = tpu.matmul %174, %173, %cst_93 {dimension_numbers = #tpu.dot_dimension_numbers<[1], [0], [0], [1], [0, 0, 1, 1], [], []>} : vector<192x160xbf16>, vector<160x256xbf16>, vector<192x256xf32> -> vector<192x256xf32>
    %176 = vector.extract_strided_slice %175 {offsets = [0, 0], sizes = [192, 128], strides = [1, 1]} : vector<192x256xf32> to vector<192x128xf32>
    %177 = vector.extract_strided_slice %175 {offsets = [0, 128], sizes = [192, 128], strides = [1, 1]} : vector<192x256xf32> to vector<192x128xf32>
    %178 = arith.maximumf %176, %177 : vector<192x128xf32>
    %179 = vector.extract_strided_slice %178 {offsets = [0, 0], sizes = [8, 128], strides = [1, 1]} : vector<192x128xf32> to vector<8x128xf32>
    %180 = vector.extract_strided_slice %178 {offsets = [8, 0], sizes = [8, 128], strides = [1, 1]} : vector<192x128xf32> to vector<8x128xf32>
    %181 = arith.maximumf %179, %180 : vector<8x128xf32>
    %182 = vector.extract_strided_slice %178 {offsets = [16, 0], sizes = [8, 128], strides = [1, 1]} : vector<192x128xf32> to vector<8x128xf32>
    %183 = vector.extract_strided_slice %178 {offsets = [24, 0], sizes = [8, 128], strides = [1, 1]} : vector<192x128xf32> to vector<8x128xf32>
    %184 = arith.maximumf %182, %183 : vector<8x128xf32>
    %185 = vector.extract_strided_slice %178 {offsets = [32, 0], sizes = [8, 128], strides = [1, 1]} : vector<192x128xf32> to vector<8x128xf32>
    %186 = vector.extract_strided_slice %178 {offsets = [40, 0], sizes = [8, 128], strides = [1, 1]} : vector<192x128xf32> to vector<8x128xf32>
    %187 = arith.maximumf %185, %186 : vector<8x128xf32>
    %188 = vector.extract_strided_slice %178 {offsets = [48, 0], sizes = [8, 128], strides = [1, 1]} : vector<192x128xf32> to vector<8x128xf32>
    %189 = vector.extract_strided_slice %178 {offsets = [56, 0], sizes = [8, 128], strides = [1, 1]} : vector<192x128xf32> to vector<8x128xf32>
    %190 = arith.maximumf %188, %189 : vector<8x128xf32>
    %191 = vector.extract_strided_slice %178 {offsets = [64, 0], sizes = [8, 128], strides = [1, 1]} : vector<192x128xf32> to vector<8x128xf32>
    %192 = vector.extract_strided_slice %178 {offsets = [72, 0], sizes = [8, 128], strides = [1, 1]} : vector<192x128xf32> to vector<8x128xf32>
    %193 = arith.maximumf %191, %192 : vector<8x128xf32>
    %194 = vector.extract_strided_slice %178 {offsets = [80, 0], sizes = [8, 128], strides = [1, 1]} : vector<192x128xf32> to vector<8x128xf32>
    %195 = vector.extract_strided_slice %178 {offsets = [88, 0], sizes = [8, 128], strides = [1, 1]} : vector<192x128xf32> to vector<8x128xf32>
    %196 = arith.maximumf %194, %195 : vector<8x128xf32>
    %197 = vector.extract_strided_slice %178 {offsets = [96, 0], sizes = [8, 128], strides = [1, 1]} : vector<192x128xf32> to vector<8x128xf32>
    %198 = vector.extract_strided_slice %178 {offsets = [104, 0], sizes = [8, 128], strides = [1, 1]} : vector<192x128xf32> to vector<8x128xf32>
    %199 = arith.maximumf %197, %198 : vector<8x128xf32>
    %200 = vector.extract_strided_slice %178 {offsets = [112, 0], sizes = [8, 128], strides = [1, 1]} : vector<192x128xf32> to vector<8x128xf32>
    %201 = vector.extract_strided_slice %178 {offsets = [120, 0], sizes = [8, 128], strides = [1, 1]} : vector<192x128xf32> to vector<8x128xf32>
    %202 = arith.maximumf %200, %201 : vector<8x128xf32>
    %203 = vector.extract_strided_slice %178 {offsets = [128, 0], sizes = [8, 128], strides = [1, 1]} : vector<192x128xf32> to vector<8x128xf32>
    %204 = vector.extract_strided_slice %178 {offsets = [136, 0], sizes = [8, 128], strides = [1, 1]} : vector<192x128xf32> to vector<8x128xf32>
    %205 = arith.maximumf %203, %204 : vector<8x128xf32>
    %206 = vector.extract_strided_slice %178 {offsets = [144, 0], sizes = [8, 128], strides = [1, 1]} : vector<192x128xf32> to vector<8x128xf32>
    %207 = vector.extract_strided_slice %178 {offsets = [152, 0], sizes = [8, 128], strides = [1, 1]} : vector<192x128xf32> to vector<8x128xf32>
    %208 = arith.maximumf %206, %207 : vector<8x128xf32>
    %209 = vector.extract_strided_slice %178 {offsets = [160, 0], sizes = [8, 128], strides = [1, 1]} : vector<192x128xf32> to vector<8x128xf32>
    %210 = vector.extract_strided_slice %178 {offsets = [168, 0], sizes = [8, 128], strides = [1, 1]} : vector<192x128xf32> to vector<8x128xf32>
    %211 = arith.maximumf %209, %210 : vector<8x128xf32>
    %212 = vector.extract_strided_slice %178 {offsets = [176, 0], sizes = [8, 128], strides = [1, 1]} : vector<192x128xf32> to vector<8x128xf32>
    %213 = vector.extract_strided_slice %178 {offsets = [184, 0], sizes = [8, 128], strides = [1, 1]} : vector<192x128xf32> to vector<8x128xf32>
    %214 = arith.maximumf %212, %213 : vector<8x128xf32>
    %215 = tpu.concatenate %181, %184, %187, %190, %193, %196, %199, %202, %205, %208, %211, %214 in 0 : vector<8x128xf32>, vector<8x128xf32>, vector<8x128xf32>, vector<8x128xf32>, vector<8x128xf32>, vector<8x128xf32>, vector<8x128xf32>, vector<8x128xf32>, vector<8x128xf32>, vector<8x128xf32>, vector<8x128xf32>, vector<8x128xf32> -> vector<96x128xf32>
    %c0_94 = arith.constant 0 : index
    %c0_95 = arith.constant 0 : index
    %216 = vector.load %arg3[%c0_94, %c0_95] : memref<96x1xf32, #tpu.memory_space<vmem>>, vector<96x1xf32>
    %217 = vector.broadcast %216 : vector<96x1xf32> to vector<96x128xf32>
    %218 = arith.addf %215, %217 : vector<96x128xf32>
    %cst_96 = arith.constant 0.000000e+00 : f32
    %219 = vector.broadcast %cst_96 : f32 to vector<96x128xf32>
    %220 = arith.maximumf %218, %219 : vector<96x128xf32>
    %221 = arith.truncf %220 : vector<96x128xf32> to vector<96x128xbf16>
    %c6_97 = arith.constant 6 : index
    %c0_98 = arith.constant 0 : index
    %c0_99 = arith.constant 0 : index
    %222 = vector.load %arg1[%c6_97, %c0_98, %c0_99] : memref<28x32x128xbf16, #tpu.memory_space<vmem>>, vector<1x32x128xbf16>
    %223 = vector.shape_cast %222 : vector<1x32x128xbf16> to vector<32x128xbf16>
    %c7_100 = arith.constant 7 : index
    %c0_101 = arith.constant 0 : index
    %c0_102 = arith.constant 0 : index
    %224 = vector.load %arg1[%c7_100, %c0_101, %c0_102] : memref<28x32x128xbf16, #tpu.memory_space<vmem>>, vector<1x32x128xbf16>
    %225 = vector.shape_cast %224 : vector<1x32x128xbf16> to vector<32x128xbf16>
    %226 = tpu.concatenate %223, %225 in 1 : vector<32x128xbf16>, vector<32x128xbf16> -> vector<32x256xbf16>
    %c7_103 = arith.constant 7 : index
    %c0_104 = arith.constant 0 : index
    %c0_105 = arith.constant 0 : index
    %227 = vector.load %arg1[%c7_103, %c0_104, %c0_105] : memref<28x32x128xbf16, #tpu.memory_space<vmem>>, vector<1x32x128xbf16>
    %228 = vector.shape_cast %227 : vector<1x32x128xbf16> to vector<32x128xbf16>
    %c8_106 = arith.constant 8 : index
    %c0_107 = arith.constant 0 : index
    %c0_108 = arith.constant 0 : index
    %229 = vector.load %arg1[%c8_106, %c0_107, %c0_108] : memref<28x32x128xbf16, #tpu.memory_space<vmem>>, vector<1x32x128xbf16>
    %230 = vector.shape_cast %229 : vector<1x32x128xbf16> to vector<32x128xbf16>
    %231 = tpu.concatenate %228, %230 in 1 : vector<32x128xbf16>, vector<32x128xbf16> -> vector<32x256xbf16>
    %c8_109 = arith.constant 8 : index
    %c0_110 = arith.constant 0 : index
    %c0_111 = arith.constant 0 : index
    %232 = vector.load %arg1[%c8_109, %c0_110, %c0_111] : memref<28x32x128xbf16, #tpu.memory_space<vmem>>, vector<1x32x128xbf16>
    %233 = vector.shape_cast %232 : vector<1x32x128xbf16> to vector<32x128xbf16>
    %c9_112 = arith.constant 9 : index
    %c0_113 = arith.constant 0 : index
    %c0_114 = arith.constant 0 : index
    %234 = vector.load %arg1[%c9_112, %c0_113, %c0_114] : memref<28x32x128xbf16, #tpu.memory_space<vmem>>, vector<1x32x128xbf16>
    %235 = vector.shape_cast %234 : vector<1x32x128xbf16> to vector<32x128xbf16>
    %236 = tpu.concatenate %233, %235 in 1 : vector<32x128xbf16>, vector<32x128xbf16> -> vector<32x256xbf16>
    %c9_115 = arith.constant 9 : index
    %c0_116 = arith.constant 0 : index
    %c0_117 = arith.constant 0 : index
    %237 = vector.load %arg1[%c9_115, %c0_116, %c0_117] : memref<28x32x128xbf16, #tpu.memory_space<vmem>>, vector<1x32x128xbf16>
    %238 = vector.shape_cast %237 : vector<1x32x128xbf16> to vector<32x128xbf16>
    %c10 = arith.constant 10 : index
    %c0_118 = arith.constant 0 : index
    %c0_119 = arith.constant 0 : index
    %239 = vector.load %arg1[%c10, %c0_118, %c0_119] : memref<28x32x128xbf16, #tpu.memory_space<vmem>>, vector<1x32x128xbf16>
    %240 = vector.shape_cast %239 : vector<1x32x128xbf16> to vector<32x128xbf16>
    %241 = tpu.concatenate %238, %240 in 1 : vector<32x128xbf16>, vector<32x128xbf16> -> vector<32x256xbf16>
    %c10_120 = arith.constant 10 : index
    %c0_121 = arith.constant 0 : index
    %c0_122 = arith.constant 0 : index
    %242 = vector.load %arg1[%c10_120, %c0_121, %c0_122] : memref<28x32x128xbf16, #tpu.memory_space<vmem>>, vector<1x32x128xbf16>
    %243 = vector.shape_cast %242 : vector<1x32x128xbf16> to vector<32x128xbf16>
    %c11 = arith.constant 11 : index
    %c0_123 = arith.constant 0 : index
    %c0_124 = arith.constant 0 : index
    %244 = vector.load %arg1[%c11, %c0_123, %c0_124] : memref<28x32x128xbf16, #tpu.memory_space<vmem>>, vector<1x32x128xbf16>
    %245 = vector.shape_cast %244 : vector<1x32x128xbf16> to vector<32x128xbf16>
    %246 = tpu.concatenate %243, %245 in 1 : vector<32x128xbf16>, vector<32x128xbf16> -> vector<32x256xbf16>
    %247 = tpu.concatenate %226, %231, %236, %241, %246 in 0 : vector<32x256xbf16>, vector<32x256xbf16>, vector<32x256xbf16>, vector<32x256xbf16>, vector<32x256xbf16> -> vector<160x256xbf16>
    %c0_125 = arith.constant 0 : index
    %c0_126 = arith.constant 0 : index
    %248 = vector.load %arg2[%c0_125, %c0_126] : memref<192x160xbf16, #tpu.memory_space<vmem>>, vector<192x160xbf16>
    %cst_127 = arith.constant dense<0.000000e+00> : vector<192x256xf32>
    %249 = tpu.matmul %248, %247, %cst_127 {dimension_numbers = #tpu.dot_dimension_numbers<[1], [0], [0], [1], [0, 0, 1, 1], [], []>} : vector<192x160xbf16>, vector<160x256xbf16>, vector<192x256xf32> -> vector<192x256xf32>
    %250 = vector.extract_strided_slice %249 {offsets = [0, 0], sizes = [192, 128], strides = [1, 1]} : vector<192x256xf32> to vector<192x128xf32>
    %251 = vector.extract_strided_slice %249 {offsets = [0, 128], sizes = [192, 128], strides = [1, 1]} : vector<192x256xf32> to vector<192x128xf32>
    %252 = arith.maximumf %250, %251 : vector<192x128xf32>
    %253 = vector.extract_strided_slice %252 {offsets = [0, 0], sizes = [8, 128], strides = [1, 1]} : vector<192x128xf32> to vector<8x128xf32>
    %254 = vector.extract_strided_slice %252 {offsets = [8, 0], sizes = [8, 128], strides = [1, 1]} : vector<192x128xf32> to vector<8x128xf32>
    %255 = arith.maximumf %253, %254 : vector<8x128xf32>
    %256 = vector.extract_strided_slice %252 {offsets = [16, 0], sizes = [8, 128], strides = [1, 1]} : vector<192x128xf32> to vector<8x128xf32>
    %257 = vector.extract_strided_slice %252 {offsets = [24, 0], sizes = [8, 128], strides = [1, 1]} : vector<192x128xf32> to vector<8x128xf32>
    %258 = arith.maximumf %256, %257 : vector<8x128xf32>
    %259 = vector.extract_strided_slice %252 {offsets = [32, 0], sizes = [8, 128], strides = [1, 1]} : vector<192x128xf32> to vector<8x128xf32>
    %260 = vector.extract_strided_slice %252 {offsets = [40, 0], sizes = [8, 128], strides = [1, 1]} : vector<192x128xf32> to vector<8x128xf32>
    %261 = arith.maximumf %259, %260 : vector<8x128xf32>
    %262 = vector.extract_strided_slice %252 {offsets = [48, 0], sizes = [8, 128], strides = [1, 1]} : vector<192x128xf32> to vector<8x128xf32>
    %263 = vector.extract_strided_slice %252 {offsets = [56, 0], sizes = [8, 128], strides = [1, 1]} : vector<192x128xf32> to vector<8x128xf32>
    %264 = arith.maximumf %262, %263 : vector<8x128xf32>
    %265 = vector.extract_strided_slice %252 {offsets = [64, 0], sizes = [8, 128], strides = [1, 1]} : vector<192x128xf32> to vector<8x128xf32>
    %266 = vector.extract_strided_slice %252 {offsets = [72, 0], sizes = [8, 128], strides = [1, 1]} : vector<192x128xf32> to vector<8x128xf32>
    %267 = arith.maximumf %265, %266 : vector<8x128xf32>
    %268 = vector.extract_strided_slice %252 {offsets = [80, 0], sizes = [8, 128], strides = [1, 1]} : vector<192x128xf32> to vector<8x128xf32>
    %269 = vector.extract_strided_slice %252 {offsets = [88, 0], sizes = [8, 128], strides = [1, 1]} : vector<192x128xf32> to vector<8x128xf32>
    %270 = arith.maximumf %268, %269 : vector<8x128xf32>
    %271 = vector.extract_strided_slice %252 {offsets = [96, 0], sizes = [8, 128], strides = [1, 1]} : vector<192x128xf32> to vector<8x128xf32>
    %272 = vector.extract_strided_slice %252 {offsets = [104, 0], sizes = [8, 128], strides = [1, 1]} : vector<192x128xf32> to vector<8x128xf32>
    %273 = arith.maximumf %271, %272 : vector<8x128xf32>
    %274 = vector.extract_strided_slice %252 {offsets = [112, 0], sizes = [8, 128], strides = [1, 1]} : vector<192x128xf32> to vector<8x128xf32>
    %275 = vector.extract_strided_slice %252 {offsets = [120, 0], sizes = [8, 128], strides = [1, 1]} : vector<192x128xf32> to vector<8x128xf32>
    %276 = arith.maximumf %274, %275 : vector<8x128xf32>
    %277 = vector.extract_strided_slice %252 {offsets = [128, 0], sizes = [8, 128], strides = [1, 1]} : vector<192x128xf32> to vector<8x128xf32>
    %278 = vector.extract_strided_slice %252 {offsets = [136, 0], sizes = [8, 128], strides = [1, 1]} : vector<192x128xf32> to vector<8x128xf32>
    %279 = arith.maximumf %277, %278 : vector<8x128xf32>
    %280 = vector.extract_strided_slice %252 {offsets = [144, 0], sizes = [8, 128], strides = [1, 1]} : vector<192x128xf32> to vector<8x128xf32>
    %281 = vector.extract_strided_slice %252 {offsets = [152, 0], sizes = [8, 128], strides = [1, 1]} : vector<192x128xf32> to vector<8x128xf32>
    %282 = arith.maximumf %280, %281 : vector<8x128xf32>
    %283 = vector.extract_strided_slice %252 {offsets = [160, 0], sizes = [8, 128], strides = [1, 1]} : vector<192x128xf32> to vector<8x128xf32>
    %284 = vector.extract_strided_slice %252 {offsets = [168, 0], sizes = [8, 128], strides = [1, 1]} : vector<192x128xf32> to vector<8x128xf32>
    %285 = arith.maximumf %283, %284 : vector<8x128xf32>
    %286 = vector.extract_strided_slice %252 {offsets = [176, 0], sizes = [8, 128], strides = [1, 1]} : vector<192x128xf32> to vector<8x128xf32>
    %287 = vector.extract_strided_slice %252 {offsets = [184, 0], sizes = [8, 128], strides = [1, 1]} : vector<192x128xf32> to vector<8x128xf32>
    %288 = arith.maximumf %286, %287 : vector<8x128xf32>
    %289 = tpu.concatenate %255, %258, %261, %264, %267, %270, %273, %276, %279, %282, %285, %288 in 0 : vector<8x128xf32>, vector<8x128xf32>, vector<8x128xf32>, vector<8x128xf32>, vector<8x128xf32>, vector<8x128xf32>, vector<8x128xf32>, vector<8x128xf32>, vector<8x128xf32>, vector<8x128xf32>, vector<8x128xf32>, vector<8x128xf32> -> vector<96x128xf32>
    %c0_128 = arith.constant 0 : index
    %c0_129 = arith.constant 0 : index
    %290 = vector.load %arg3[%c0_128, %c0_129] : memref<96x1xf32, #tpu.memory_space<vmem>>, vector<96x1xf32>
    %291 = vector.broadcast %290 : vector<96x1xf32> to vector<96x128xf32>
    %292 = arith.addf %289, %291 : vector<96x128xf32>
    %cst_130 = arith.constant 0.000000e+00 : f32
    %293 = vector.broadcast %cst_130 : f32 to vector<96x128xf32>
    %294 = arith.maximumf %292, %293 : vector<96x128xf32>
    %295 = arith.truncf %294 : vector<96x128xf32> to vector<96x128xbf16>
    %c8_131 = arith.constant 8 : index
    %c0_132 = arith.constant 0 : index
    %c0_133 = arith.constant 0 : index
    %296 = vector.load %arg1[%c8_131, %c0_132, %c0_133] : memref<28x32x128xbf16, #tpu.memory_space<vmem>>, vector<1x32x128xbf16>
    %297 = vector.shape_cast %296 : vector<1x32x128xbf16> to vector<32x128xbf16>
    %c9_134 = arith.constant 9 : index
    %c0_135 = arith.constant 0 : index
    %c0_136 = arith.constant 0 : index
    %298 = vector.load %arg1[%c9_134, %c0_135, %c0_136] : memref<28x32x128xbf16, #tpu.memory_space<vmem>>, vector<1x32x128xbf16>
    %299 = vector.shape_cast %298 : vector<1x32x128xbf16> to vector<32x128xbf16>
    %300 = tpu.concatenate %297, %299 in 1 : vector<32x128xbf16>, vector<32x128xbf16> -> vector<32x256xbf16>
    %c9_137 = arith.constant 9 : index
    %c0_138 = arith.constant 0 : index
    %c0_139 = arith.constant 0 : index
    %301 = vector.load %arg1[%c9_137, %c0_138, %c0_139] : memref<28x32x128xbf16, #tpu.memory_space<vmem>>, vector<1x32x128xbf16>
    %302 = vector.shape_cast %301 : vector<1x32x128xbf16> to vector<32x128xbf16>
    %c10_140 = arith.constant 10 : index
    %c0_141 = arith.constant 0 : index
    %c0_142 = arith.constant 0 : index
    %303 = vector.load %arg1[%c10_140, %c0_141, %c0_142] : memref<28x32x128xbf16, #tpu.memory_space<vmem>>, vector<1x32x128xbf16>
    %304 = vector.shape_cast %303 : vector<1x32x128xbf16> to vector<32x128xbf16>
    %305 = tpu.concatenate %302, %304 in 1 : vector<32x128xbf16>, vector<32x128xbf16> -> vector<32x256xbf16>
    %c10_143 = arith.constant 10 : index
    %c0_144 = arith.constant 0 : index
    %c0_145 = arith.constant 0 : index
    %306 = vector.load %arg1[%c10_143, %c0_144, %c0_145] : memref<28x32x128xbf16, #tpu.memory_space<vmem>>, vector<1x32x128xbf16>
    %307 = vector.shape_cast %306 : vector<1x32x128xbf16> to vector<32x128xbf16>
    %c11_146 = arith.constant 11 : index
    %c0_147 = arith.constant 0 : index
    %c0_148 = arith.constant 0 : index
    %308 = vector.load %arg1[%c11_146, %c0_147, %c0_148] : memref<28x32x128xbf16, #tpu.memory_space<vmem>>, vector<1x32x128xbf16>
    %309 = vector.shape_cast %308 : vector<1x32x128xbf16> to vector<32x128xbf16>
    %310 = tpu.concatenate %307, %309 in 1 : vector<32x128xbf16>, vector<32x128xbf16> -> vector<32x256xbf16>
    %c11_149 = arith.constant 11 : index
    %c0_150 = arith.constant 0 : index
    %c0_151 = arith.constant 0 : index
    %311 = vector.load %arg1[%c11_149, %c0_150, %c0_151] : memref<28x32x128xbf16, #tpu.memory_space<vmem>>, vector<1x32x128xbf16>
    %312 = vector.shape_cast %311 : vector<1x32x128xbf16> to vector<32x128xbf16>
    %c12 = arith.constant 12 : index
    %c0_152 = arith.constant 0 : index
    %c0_153 = arith.constant 0 : index
    %313 = vector.load %arg1[%c12, %c0_152, %c0_153] : memref<28x32x128xbf16, #tpu.memory_space<vmem>>, vector<1x32x128xbf16>
    %314 = vector.shape_cast %313 : vector<1x32x128xbf16> to vector<32x128xbf16>
    %315 = tpu.concatenate %312, %314 in 1 : vector<32x128xbf16>, vector<32x128xbf16> -> vector<32x256xbf16>
    %c12_154 = arith.constant 12 : index
    %c0_155 = arith.constant 0 : index
    %c0_156 = arith.constant 0 : index
    %316 = vector.load %arg1[%c12_154, %c0_155, %c0_156] : memref<28x32x128xbf16, #tpu.memory_space<vmem>>, vector<1x32x128xbf16>
    %317 = vector.shape_cast %316 : vector<1x32x128xbf16> to vector<32x128xbf16>
    %c13 = arith.constant 13 : index
    %c0_157 = arith.constant 0 : index
    %c0_158 = arith.constant 0 : index
    %318 = vector.load %arg1[%c13, %c0_157, %c0_158] : memref<28x32x128xbf16, #tpu.memory_space<vmem>>, vector<1x32x128xbf16>
    %319 = vector.shape_cast %318 : vector<1x32x128xbf16> to vector<32x128xbf16>
    %320 = tpu.concatenate %317, %319 in 1 : vector<32x128xbf16>, vector<32x128xbf16> -> vector<32x256xbf16>
    %321 = tpu.concatenate %300, %305, %310, %315, %320 in 0 : vector<32x256xbf16>, vector<32x256xbf16>, vector<32x256xbf16>, vector<32x256xbf16>, vector<32x256xbf16> -> vector<160x256xbf16>
    %c0_159 = arith.constant 0 : index
    %c0_160 = arith.constant 0 : index
    %322 = vector.load %arg2[%c0_159, %c0_160] : memref<192x160xbf16, #tpu.memory_space<vmem>>, vector<192x160xbf16>
    %cst_161 = arith.constant dense<0.000000e+00> : vector<192x256xf32>
    %323 = tpu.matmul %322, %321, %cst_161 {dimension_numbers = #tpu.dot_dimension_numbers<[1], [0], [0], [1], [0, 0, 1, 1], [], []>} : vector<192x160xbf16>, vector<160x256xbf16>, vector<192x256xf32> -> vector<192x256xf32>
    %324 = vector.extract_strided_slice %323 {offsets = [0, 0], sizes = [192, 128], strides = [1, 1]} : vector<192x256xf32> to vector<192x128xf32>
    %325 = vector.extract_strided_slice %323 {offsets = [0, 128], sizes = [192, 128], strides = [1, 1]} : vector<192x256xf32> to vector<192x128xf32>
    %326 = arith.maximumf %324, %325 : vector<192x128xf32>
    %327 = vector.extract_strided_slice %326 {offsets = [0, 0], sizes = [8, 128], strides = [1, 1]} : vector<192x128xf32> to vector<8x128xf32>
    %328 = vector.extract_strided_slice %326 {offsets = [8, 0], sizes = [8, 128], strides = [1, 1]} : vector<192x128xf32> to vector<8x128xf32>
    %329 = arith.maximumf %327, %328 : vector<8x128xf32>
    %330 = vector.extract_strided_slice %326 {offsets = [16, 0], sizes = [8, 128], strides = [1, 1]} : vector<192x128xf32> to vector<8x128xf32>
    %331 = vector.extract_strided_slice %326 {offsets = [24, 0], sizes = [8, 128], strides = [1, 1]} : vector<192x128xf32> to vector<8x128xf32>
    %332 = arith.maximumf %330, %331 : vector<8x128xf32>
    %333 = vector.extract_strided_slice %326 {offsets = [32, 0], sizes = [8, 128], strides = [1, 1]} : vector<192x128xf32> to vector<8x128xf32>
    %334 = vector.extract_strided_slice %326 {offsets = [40, 0], sizes = [8, 128], strides = [1, 1]} : vector<192x128xf32> to vector<8x128xf32>
    %335 = arith.maximumf %333, %334 : vector<8x128xf32>
    %336 = vector.extract_strided_slice %326 {offsets = [48, 0], sizes = [8, 128], strides = [1, 1]} : vector<192x128xf32> to vector<8x128xf32>
    %337 = vector.extract_strided_slice %326 {offsets = [56, 0], sizes = [8, 128], strides = [1, 1]} : vector<192x128xf32> to vector<8x128xf32>
    %338 = arith.maximumf %336, %337 : vector<8x128xf32>
    %339 = vector.extract_strided_slice %326 {offsets = [64, 0], sizes = [8, 128], strides = [1, 1]} : vector<192x128xf32> to vector<8x128xf32>
    %340 = vector.extract_strided_slice %326 {offsets = [72, 0], sizes = [8, 128], strides = [1, 1]} : vector<192x128xf32> to vector<8x128xf32>
    %341 = arith.maximumf %339, %340 : vector<8x128xf32>
    %342 = vector.extract_strided_slice %326 {offsets = [80, 0], sizes = [8, 128], strides = [1, 1]} : vector<192x128xf32> to vector<8x128xf32>
    %343 = vector.extract_strided_slice %326 {offsets = [88, 0], sizes = [8, 128], strides = [1, 1]} : vector<192x128xf32> to vector<8x128xf32>
    %344 = arith.maximumf %342, %343 : vector<8x128xf32>
    %345 = vector.extract_strided_slice %326 {offsets = [96, 0], sizes = [8, 128], strides = [1, 1]} : vector<192x128xf32> to vector<8x128xf32>
    %346 = vector.extract_strided_slice %326 {offsets = [104, 0], sizes = [8, 128], strides = [1, 1]} : vector<192x128xf32> to vector<8x128xf32>
    %347 = arith.maximumf %345, %346 : vector<8x128xf32>
    %348 = vector.extract_strided_slice %326 {offsets = [112, 0], sizes = [8, 128], strides = [1, 1]} : vector<192x128xf32> to vector<8x128xf32>
    %349 = vector.extract_strided_slice %326 {offsets = [120, 0], sizes = [8, 128], strides = [1, 1]} : vector<192x128xf32> to vector<8x128xf32>
    %350 = arith.maximumf %348, %349 : vector<8x128xf32>
    %351 = vector.extract_strided_slice %326 {offsets = [128, 0], sizes = [8, 128], strides = [1, 1]} : vector<192x128xf32> to vector<8x128xf32>
    %352 = vector.extract_strided_slice %326 {offsets = [136, 0], sizes = [8, 128], strides = [1, 1]} : vector<192x128xf32> to vector<8x128xf32>
    %353 = arith.maximumf %351, %352 : vector<8x128xf32>
    %354 = vector.extract_strided_slice %326 {offsets = [144, 0], sizes = [8, 128], strides = [1, 1]} : vector<192x128xf32> to vector<8x128xf32>
    %355 = vector.extract_strided_slice %326 {offsets = [152, 0], sizes = [8, 128], strides = [1, 1]} : vector<192x128xf32> to vector<8x128xf32>
    %356 = arith.maximumf %354, %355 : vector<8x128xf32>
    %357 = vector.extract_strided_slice %326 {offsets = [160, 0], sizes = [8, 128], strides = [1, 1]} : vector<192x128xf32> to vector<8x128xf32>
    %358 = vector.extract_strided_slice %326 {offsets = [168, 0], sizes = [8, 128], strides = [1, 1]} : vector<192x128xf32> to vector<8x128xf32>
    %359 = arith.maximumf %357, %358 : vector<8x128xf32>
    %360 = vector.extract_strided_slice %326 {offsets = [176, 0], sizes = [8, 128], strides = [1, 1]} : vector<192x128xf32> to vector<8x128xf32>
    %361 = vector.extract_strided_slice %326 {offsets = [184, 0], sizes = [8, 128], strides = [1, 1]} : vector<192x128xf32> to vector<8x128xf32>
    %362 = arith.maximumf %360, %361 : vector<8x128xf32>
    %363 = tpu.concatenate %329, %332, %335, %338, %341, %344, %347, %350, %353, %356, %359, %362 in 0 : vector<8x128xf32>, vector<8x128xf32>, vector<8x128xf32>, vector<8x128xf32>, vector<8x128xf32>, vector<8x128xf32>, vector<8x128xf32>, vector<8x128xf32>, vector<8x128xf32>, vector<8x128xf32>, vector<8x128xf32>, vector<8x128xf32> -> vector<96x128xf32>
    %c0_162 = arith.constant 0 : index
    %c0_163 = arith.constant 0 : index
    %364 = vector.load %arg3[%c0_162, %c0_163] : memref<96x1xf32, #tpu.memory_space<vmem>>, vector<96x1xf32>
    %365 = vector.broadcast %364 : vector<96x1xf32> to vector<96x128xf32>
    %366 = arith.addf %363, %365 : vector<96x128xf32>
    %cst_164 = arith.constant 0.000000e+00 : f32
    %367 = vector.broadcast %cst_164 : f32 to vector<96x128xf32>
    %368 = arith.maximumf %366, %367 : vector<96x128xf32>
    %369 = arith.truncf %368 : vector<96x128xf32> to vector<96x128xbf16>
    %c10_165 = arith.constant 10 : index
    %c0_166 = arith.constant 0 : index
    %c0_167 = arith.constant 0 : index
    %370 = vector.load %arg1[%c10_165, %c0_166, %c0_167] : memref<28x32x128xbf16, #tpu.memory_space<vmem>>, vector<1x32x128xbf16>
    %371 = vector.shape_cast %370 : vector<1x32x128xbf16> to vector<32x128xbf16>
    %c11_168 = arith.constant 11 : index
    %c0_169 = arith.constant 0 : index
    %c0_170 = arith.constant 0 : index
    %372 = vector.load %arg1[%c11_168, %c0_169, %c0_170] : memref<28x32x128xbf16, #tpu.memory_space<vmem>>, vector<1x32x128xbf16>
    %373 = vector.shape_cast %372 : vector<1x32x128xbf16> to vector<32x128xbf16>
    %374 = tpu.concatenate %371, %373 in 1 : vector<32x128xbf16>, vector<32x128xbf16> -> vector<32x256xbf16>
    %c11_171 = arith.constant 11 : index
    %c0_172 = arith.constant 0 : index
    %c0_173 = arith.constant 0 : index
    %375 = vector.load %arg1[%c11_171, %c0_172, %c0_173] : memref<28x32x128xbf16, #tpu.memory_space<vmem>>, vector<1x32x128xbf16>
    %376 = vector.shape_cast %375 : vector<1x32x128xbf16> to vector<32x128xbf16>
    %c12_174 = arith.constant 12 : index
    %c0_175 = arith.constant 0 : index
    %c0_176 = arith.constant 0 : index
    %377 = vector.load %arg1[%c12_174, %c0_175, %c0_176] : memref<28x32x128xbf16, #tpu.memory_space<vmem>>, vector<1x32x128xbf16>
    %378 = vector.shape_cast %377 : vector<1x32x128xbf16> to vector<32x128xbf16>
    %379 = tpu.concatenate %376, %378 in 1 : vector<32x128xbf16>, vector<32x128xbf16> -> vector<32x256xbf16>
    %c12_177 = arith.constant 12 : index
    %c0_178 = arith.constant 0 : index
    %c0_179 = arith.constant 0 : index
    %380 = vector.load %arg1[%c12_177, %c0_178, %c0_179] : memref<28x32x128xbf16, #tpu.memory_space<vmem>>, vector<1x32x128xbf16>
    %381 = vector.shape_cast %380 : vector<1x32x128xbf16> to vector<32x128xbf16>
    %c13_180 = arith.constant 13 : index
    %c0_181 = arith.constant 0 : index
    %c0_182 = arith.constant 0 : index
    %382 = vector.load %arg1[%c13_180, %c0_181, %c0_182] : memref<28x32x128xbf16, #tpu.memory_space<vmem>>, vector<1x32x128xbf16>
    %383 = vector.shape_cast %382 : vector<1x32x128xbf16> to vector<32x128xbf16>
    %384 = tpu.concatenate %381, %383 in 1 : vector<32x128xbf16>, vector<32x128xbf16> -> vector<32x256xbf16>
    %c13_183 = arith.constant 13 : index
    %c0_184 = arith.constant 0 : index
    %c0_185 = arith.constant 0 : index
    %385 = vector.load %arg1[%c13_183, %c0_184, %c0_185] : memref<28x32x128xbf16, #tpu.memory_space<vmem>>, vector<1x32x128xbf16>
    %386 = vector.shape_cast %385 : vector<1x32x128xbf16> to vector<32x128xbf16>
    %c14 = arith.constant 14 : index
    %c0_186 = arith.constant 0 : index
    %c0_187 = arith.constant 0 : index
    %387 = vector.load %arg1[%c14, %c0_186, %c0_187] : memref<28x32x128xbf16, #tpu.memory_space<vmem>>, vector<1x32x128xbf16>
    %388 = vector.shape_cast %387 : vector<1x32x128xbf16> to vector<32x128xbf16>
    %389 = tpu.concatenate %386, %388 in 1 : vector<32x128xbf16>, vector<32x128xbf16> -> vector<32x256xbf16>
    %c14_188 = arith.constant 14 : index
    %c0_189 = arith.constant 0 : index
    %c0_190 = arith.constant 0 : index
    %390 = vector.load %arg1[%c14_188, %c0_189, %c0_190] : memref<28x32x128xbf16, #tpu.memory_space<vmem>>, vector<1x32x128xbf16>
    %391 = vector.shape_cast %390 : vector<1x32x128xbf16> to vector<32x128xbf16>
    %c15 = arith.constant 15 : index
    %c0_191 = arith.constant 0 : index
    %c0_192 = arith.constant 0 : index
    %392 = vector.load %arg1[%c15, %c0_191, %c0_192] : memref<28x32x128xbf16, #tpu.memory_space<vmem>>, vector<1x32x128xbf16>
    %393 = vector.shape_cast %392 : vector<1x32x128xbf16> to vector<32x128xbf16>
    %394 = tpu.concatenate %391, %393 in 1 : vector<32x128xbf16>, vector<32x128xbf16> -> vector<32x256xbf16>
    %395 = tpu.concatenate %374, %379, %384, %389, %394 in 0 : vector<32x256xbf16>, vector<32x256xbf16>, vector<32x256xbf16>, vector<32x256xbf16>, vector<32x256xbf16> -> vector<160x256xbf16>
    %c0_193 = arith.constant 0 : index
    %c0_194 = arith.constant 0 : index
    %396 = vector.load %arg2[%c0_193, %c0_194] : memref<192x160xbf16, #tpu.memory_space<vmem>>, vector<192x160xbf16>
    %cst_195 = arith.constant dense<0.000000e+00> : vector<192x256xf32>
    %397 = tpu.matmul %396, %395, %cst_195 {dimension_numbers = #tpu.dot_dimension_numbers<[1], [0], [0], [1], [0, 0, 1, 1], [], []>} : vector<192x160xbf16>, vector<160x256xbf16>, vector<192x256xf32> -> vector<192x256xf32>
    %398 = vector.extract_strided_slice %397 {offsets = [0, 0], sizes = [192, 128], strides = [1, 1]} : vector<192x256xf32> to vector<192x128xf32>
    %399 = vector.extract_strided_slice %397 {offsets = [0, 128], sizes = [192, 128], strides = [1, 1]} : vector<192x256xf32> to vector<192x128xf32>
    %400 = arith.maximumf %398, %399 : vector<192x128xf32>
    %401 = vector.extract_strided_slice %400 {offsets = [0, 0], sizes = [8, 128], strides = [1, 1]} : vector<192x128xf32> to vector<8x128xf32>
    %402 = vector.extract_strided_slice %400 {offsets = [8, 0], sizes = [8, 128], strides = [1, 1]} : vector<192x128xf32> to vector<8x128xf32>
    %403 = arith.maximumf %401, %402 : vector<8x128xf32>
    %404 = vector.extract_strided_slice %400 {offsets = [16, 0], sizes = [8, 128], strides = [1, 1]} : vector<192x128xf32> to vector<8x128xf32>
    %405 = vector.extract_strided_slice %400 {offsets = [24, 0], sizes = [8, 128], strides = [1, 1]} : vector<192x128xf32> to vector<8x128xf32>
    %406 = arith.maximumf %404, %405 : vector<8x128xf32>
    %407 = vector.extract_strided_slice %400 {offsets = [32, 0], sizes = [8, 128], strides = [1, 1]} : vector<192x128xf32> to vector<8x128xf32>
    %408 = vector.extract_strided_slice %400 {offsets = [40, 0], sizes = [8, 128], strides = [1, 1]} : vector<192x128xf32> to vector<8x128xf32>
    %409 = arith.maximumf %407, %408 : vector<8x128xf32>
    %410 = vector.extract_strided_slice %400 {offsets = [48, 0], sizes = [8, 128], strides = [1, 1]} : vector<192x128xf32> to vector<8x128xf32>
    %411 = vector.extract_strided_slice %400 {offsets = [56, 0], sizes = [8, 128], strides = [1, 1]} : vector<192x128xf32> to vector<8x128xf32>
    %412 = arith.maximumf %410, %411 : vector<8x128xf32>
    %413 = vector.extract_strided_slice %400 {offsets = [64, 0], sizes = [8, 128], strides = [1, 1]} : vector<192x128xf32> to vector<8x128xf32>
    %414 = vector.extract_strided_slice %400 {offsets = [72, 0], sizes = [8, 128], strides = [1, 1]} : vector<192x128xf32> to vector<8x128xf32>
    %415 = arith.maximumf %413, %414 : vector<8x128xf32>
    %416 = vector.extract_strided_slice %400 {offsets = [80, 0], sizes = [8, 128], strides = [1, 1]} : vector<192x128xf32> to vector<8x128xf32>
    %417 = vector.extract_strided_slice %400 {offsets = [88, 0], sizes = [8, 128], strides = [1, 1]} : vector<192x128xf32> to vector<8x128xf32>
    %418 = arith.maximumf %416, %417 : vector<8x128xf32>
    %419 = vector.extract_strided_slice %400 {offsets = [96, 0], sizes = [8, 128], strides = [1, 1]} : vector<192x128xf32> to vector<8x128xf32>
    %420 = vector.extract_strided_slice %400 {offsets = [104, 0], sizes = [8, 128], strides = [1, 1]} : vector<192x128xf32> to vector<8x128xf32>
    %421 = arith.maximumf %419, %420 : vector<8x128xf32>
    %422 = vector.extract_strided_slice %400 {offsets = [112, 0], sizes = [8, 128], strides = [1, 1]} : vector<192x128xf32> to vector<8x128xf32>
    %423 = vector.extract_strided_slice %400 {offsets = [120, 0], sizes = [8, 128], strides = [1, 1]} : vector<192x128xf32> to vector<8x128xf32>
    %424 = arith.maximumf %422, %423 : vector<8x128xf32>
    %425 = vector.extract_strided_slice %400 {offsets = [128, 0], sizes = [8, 128], strides = [1, 1]} : vector<192x128xf32> to vector<8x128xf32>
    %426 = vector.extract_strided_slice %400 {offsets = [136, 0], sizes = [8, 128], strides = [1, 1]} : vector<192x128xf32> to vector<8x128xf32>
    %427 = arith.maximumf %425, %426 : vector<8x128xf32>
    %428 = vector.extract_strided_slice %400 {offsets = [144, 0], sizes = [8, 128], strides = [1, 1]} : vector<192x128xf32> to vector<8x128xf32>
    %429 = vector.extract_strided_slice %400 {offsets = [152, 0], sizes = [8, 128], strides = [1, 1]} : vector<192x128xf32> to vector<8x128xf32>
    %430 = arith.maximumf %428, %429 : vector<8x128xf32>
    %431 = vector.extract_strided_slice %400 {offsets = [160, 0], sizes = [8, 128], strides = [1, 1]} : vector<192x128xf32> to vector<8x128xf32>
    %432 = vector.extract_strided_slice %400 {offsets = [168, 0], sizes = [8, 128], strides = [1, 1]} : vector<192x128xf32> to vector<8x128xf32>
    %433 = arith.maximumf %431, %432 : vector<8x128xf32>
    %434 = vector.extract_strided_slice %400 {offsets = [176, 0], sizes = [8, 128], strides = [1, 1]} : vector<192x128xf32> to vector<8x128xf32>
    %435 = vector.extract_strided_slice %400 {offsets = [184, 0], sizes = [8, 128], strides = [1, 1]} : vector<192x128xf32> to vector<8x128xf32>
    %436 = arith.maximumf %434, %435 : vector<8x128xf32>
    %437 = tpu.concatenate %403, %406, %409, %412, %415, %418, %421, %424, %427, %430, %433, %436 in 0 : vector<8x128xf32>, vector<8x128xf32>, vector<8x128xf32>, vector<8x128xf32>, vector<8x128xf32>, vector<8x128xf32>, vector<8x128xf32>, vector<8x128xf32>, vector<8x128xf32>, vector<8x128xf32>, vector<8x128xf32>, vector<8x128xf32> -> vector<96x128xf32>
    %c0_196 = arith.constant 0 : index
    %c0_197 = arith.constant 0 : index
    %438 = vector.load %arg3[%c0_196, %c0_197] : memref<96x1xf32, #tpu.memory_space<vmem>>, vector<96x1xf32>
    %439 = vector.broadcast %438 : vector<96x1xf32> to vector<96x128xf32>
    %440 = arith.addf %437, %439 : vector<96x128xf32>
    %cst_198 = arith.constant 0.000000e+00 : f32
    %441 = vector.broadcast %cst_198 : f32 to vector<96x128xf32>
    %442 = arith.maximumf %440, %441 : vector<96x128xf32>
    %443 = arith.truncf %442 : vector<96x128xf32> to vector<96x128xbf16>
    %c12_199 = arith.constant 12 : index
    %c0_200 = arith.constant 0 : index
    %c0_201 = arith.constant 0 : index
    %444 = vector.load %arg1[%c12_199, %c0_200, %c0_201] : memref<28x32x128xbf16, #tpu.memory_space<vmem>>, vector<1x32x128xbf16>
    %445 = vector.shape_cast %444 : vector<1x32x128xbf16> to vector<32x128xbf16>
    %c13_202 = arith.constant 13 : index
    %c0_203 = arith.constant 0 : index
    %c0_204 = arith.constant 0 : index
    %446 = vector.load %arg1[%c13_202, %c0_203, %c0_204] : memref<28x32x128xbf16, #tpu.memory_space<vmem>>, vector<1x32x128xbf16>
    %447 = vector.shape_cast %446 : vector<1x32x128xbf16> to vector<32x128xbf16>
    %448 = tpu.concatenate %445, %447 in 1 : vector<32x128xbf16>, vector<32x128xbf16> -> vector<32x256xbf16>
    %c13_205 = arith.constant 13 : index
    %c0_206 = arith.constant 0 : index
    %c0_207 = arith.constant 0 : index
    %449 = vector.load %arg1[%c13_205, %c0_206, %c0_207] : memref<28x32x128xbf16, #tpu.memory_space<vmem>>, vector<1x32x128xbf16>
    %450 = vector.shape_cast %449 : vector<1x32x128xbf16> to vector<32x128xbf16>
    %c14_208 = arith.constant 14 : index
    %c0_209 = arith.constant 0 : index
    %c0_210 = arith.constant 0 : index
    %451 = vector.load %arg1[%c14_208, %c0_209, %c0_210] : memref<28x32x128xbf16, #tpu.memory_space<vmem>>, vector<1x32x128xbf16>
    %452 = vector.shape_cast %451 : vector<1x32x128xbf16> to vector<32x128xbf16>
    %453 = tpu.concatenate %450, %452 in 1 : vector<32x128xbf16>, vector<32x128xbf16> -> vector<32x256xbf16>
    %c14_211 = arith.constant 14 : index
    %c0_212 = arith.constant 0 : index
    %c0_213 = arith.constant 0 : index
    %454 = vector.load %arg1[%c14_211, %c0_212, %c0_213] : memref<28x32x128xbf16, #tpu.memory_space<vmem>>, vector<1x32x128xbf16>
    %455 = vector.shape_cast %454 : vector<1x32x128xbf16> to vector<32x128xbf16>
    %c15_214 = arith.constant 15 : index
    %c0_215 = arith.constant 0 : index
    %c0_216 = arith.constant 0 : index
    %456 = vector.load %arg1[%c15_214, %c0_215, %c0_216] : memref<28x32x128xbf16, #tpu.memory_space<vmem>>, vector<1x32x128xbf16>
    %457 = vector.shape_cast %456 : vector<1x32x128xbf16> to vector<32x128xbf16>
    %458 = tpu.concatenate %455, %457 in 1 : vector<32x128xbf16>, vector<32x128xbf16> -> vector<32x256xbf16>
    %c15_217 = arith.constant 15 : index
    %c0_218 = arith.constant 0 : index
    %c0_219 = arith.constant 0 : index
    %459 = vector.load %arg1[%c15_217, %c0_218, %c0_219] : memref<28x32x128xbf16, #tpu.memory_space<vmem>>, vector<1x32x128xbf16>
    %460 = vector.shape_cast %459 : vector<1x32x128xbf16> to vector<32x128xbf16>
    %c16 = arith.constant 16 : index
    %c0_220 = arith.constant 0 : index
    %c0_221 = arith.constant 0 : index
    %461 = vector.load %arg1[%c16, %c0_220, %c0_221] : memref<28x32x128xbf16, #tpu.memory_space<vmem>>, vector<1x32x128xbf16>
    %462 = vector.shape_cast %461 : vector<1x32x128xbf16> to vector<32x128xbf16>
    %463 = tpu.concatenate %460, %462 in 1 : vector<32x128xbf16>, vector<32x128xbf16> -> vector<32x256xbf16>
    %c16_222 = arith.constant 16 : index
    %c0_223 = arith.constant 0 : index
    %c0_224 = arith.constant 0 : index
    %464 = vector.load %arg1[%c16_222, %c0_223, %c0_224] : memref<28x32x128xbf16, #tpu.memory_space<vmem>>, vector<1x32x128xbf16>
    %465 = vector.shape_cast %464 : vector<1x32x128xbf16> to vector<32x128xbf16>
    %c17 = arith.constant 17 : index
    %c0_225 = arith.constant 0 : index
    %c0_226 = arith.constant 0 : index
    %466 = vector.load %arg1[%c17, %c0_225, %c0_226] : memref<28x32x128xbf16, #tpu.memory_space<vmem>>, vector<1x32x128xbf16>
    %467 = vector.shape_cast %466 : vector<1x32x128xbf16> to vector<32x128xbf16>
    %468 = tpu.concatenate %465, %467 in 1 : vector<32x128xbf16>, vector<32x128xbf16> -> vector<32x256xbf16>
    %469 = tpu.concatenate %448, %453, %458, %463, %468 in 0 : vector<32x256xbf16>, vector<32x256xbf16>, vector<32x256xbf16>, vector<32x256xbf16>, vector<32x256xbf16> -> vector<160x256xbf16>
    %c0_227 = arith.constant 0 : index
    %c0_228 = arith.constant 0 : index
    %470 = vector.load %arg2[%c0_227, %c0_228] : memref<192x160xbf16, #tpu.memory_space<vmem>>, vector<192x160xbf16>
    %cst_229 = arith.constant dense<0.000000e+00> : vector<192x256xf32>
    %471 = tpu.matmul %470, %469, %cst_229 {dimension_numbers = #tpu.dot_dimension_numbers<[1], [0], [0], [1], [0, 0, 1, 1], [], []>} : vector<192x160xbf16>, vector<160x256xbf16>, vector<192x256xf32> -> vector<192x256xf32>
    %472 = vector.extract_strided_slice %471 {offsets = [0, 0], sizes = [192, 128], strides = [1, 1]} : vector<192x256xf32> to vector<192x128xf32>
    %473 = vector.extract_strided_slice %471 {offsets = [0, 128], sizes = [192, 128], strides = [1, 1]} : vector<192x256xf32> to vector<192x128xf32>
    %474 = arith.maximumf %472, %473 : vector<192x128xf32>
    %475 = vector.extract_strided_slice %474 {offsets = [0, 0], sizes = [8, 128], strides = [1, 1]} : vector<192x128xf32> to vector<8x128xf32>
    %476 = vector.extract_strided_slice %474 {offsets = [8, 0], sizes = [8, 128], strides = [1, 1]} : vector<192x128xf32> to vector<8x128xf32>
    %477 = arith.maximumf %475, %476 : vector<8x128xf32>
    %478 = vector.extract_strided_slice %474 {offsets = [16, 0], sizes = [8, 128], strides = [1, 1]} : vector<192x128xf32> to vector<8x128xf32>
    %479 = vector.extract_strided_slice %474 {offsets = [24, 0], sizes = [8, 128], strides = [1, 1]} : vector<192x128xf32> to vector<8x128xf32>
    %480 = arith.maximumf %478, %479 : vector<8x128xf32>
    %481 = vector.extract_strided_slice %474 {offsets = [32, 0], sizes = [8, 128], strides = [1, 1]} : vector<192x128xf32> to vector<8x128xf32>
    %482 = vector.extract_strided_slice %474 {offsets = [40, 0], sizes = [8, 128], strides = [1, 1]} : vector<192x128xf32> to vector<8x128xf32>
    %483 = arith.maximumf %481, %482 : vector<8x128xf32>
    %484 = vector.extract_strided_slice %474 {offsets = [48, 0], sizes = [8, 128], strides = [1, 1]} : vector<192x128xf32> to vector<8x128xf32>
    %485 = vector.extract_strided_slice %474 {offsets = [56, 0], sizes = [8, 128], strides = [1, 1]} : vector<192x128xf32> to vector<8x128xf32>
    %486 = arith.maximumf %484, %485 : vector<8x128xf32>
    %487 = vector.extract_strided_slice %474 {offsets = [64, 0], sizes = [8, 128], strides = [1, 1]} : vector<192x128xf32> to vector<8x128xf32>
    %488 = vector.extract_strided_slice %474 {offsets = [72, 0], sizes = [8, 128], strides = [1, 1]} : vector<192x128xf32> to vector<8x128xf32>
    %489 = arith.maximumf %487, %488 : vector<8x128xf32>
    %490 = vector.extract_strided_slice %474 {offsets = [80, 0], sizes = [8, 128], strides = [1, 1]} : vector<192x128xf32> to vector<8x128xf32>
    %491 = vector.extract_strided_slice %474 {offsets = [88, 0], sizes = [8, 128], strides = [1, 1]} : vector<192x128xf32> to vector<8x128xf32>
    %492 = arith.maximumf %490, %491 : vector<8x128xf32>
    %493 = vector.extract_strided_slice %474 {offsets = [96, 0], sizes = [8, 128], strides = [1, 1]} : vector<192x128xf32> to vector<8x128xf32>
    %494 = vector.extract_strided_slice %474 {offsets = [104, 0], sizes = [8, 128], strides = [1, 1]} : vector<192x128xf32> to vector<8x128xf32>
    %495 = arith.maximumf %493, %494 : vector<8x128xf32>
    %496 = vector.extract_strided_slice %474 {offsets = [112, 0], sizes = [8, 128], strides = [1, 1]} : vector<192x128xf32> to vector<8x128xf32>
    %497 = vector.extract_strided_slice %474 {offsets = [120, 0], sizes = [8, 128], strides = [1, 1]} : vector<192x128xf32> to vector<8x128xf32>
    %498 = arith.maximumf %496, %497 : vector<8x128xf32>
    %499 = vector.extract_strided_slice %474 {offsets = [128, 0], sizes = [8, 128], strides = [1, 1]} : vector<192x128xf32> to vector<8x128xf32>
    %500 = vector.extract_strided_slice %474 {offsets = [136, 0], sizes = [8, 128], strides = [1, 1]} : vector<192x128xf32> to vector<8x128xf32>
    %501 = arith.maximumf %499, %500 : vector<8x128xf32>
    %502 = vector.extract_strided_slice %474 {offsets = [144, 0], sizes = [8, 128], strides = [1, 1]} : vector<192x128xf32> to vector<8x128xf32>
    %503 = vector.extract_strided_slice %474 {offsets = [152, 0], sizes = [8, 128], strides = [1, 1]} : vector<192x128xf32> to vector<8x128xf32>
    %504 = arith.maximumf %502, %503 : vector<8x128xf32>
    %505 = vector.extract_strided_slice %474 {offsets = [160, 0], sizes = [8, 128], strides = [1, 1]} : vector<192x128xf32> to vector<8x128xf32>
    %506 = vector.extract_strided_slice %474 {offsets = [168, 0], sizes = [8, 128], strides = [1, 1]} : vector<192x128xf32> to vector<8x128xf32>
    %507 = arith.maximumf %505, %506 : vector<8x128xf32>
    %508 = vector.extract_strided_slice %474 {offsets = [176, 0], sizes = [8, 128], strides = [1, 1]} : vector<192x128xf32> to vector<8x128xf32>
    %509 = vector.extract_strided_slice %474 {offsets = [184, 0], sizes = [8, 128], strides = [1, 1]} : vector<192x128xf32> to vector<8x128xf32>
    %510 = arith.maximumf %508, %509 : vector<8x128xf32>
    %511 = tpu.concatenate %477, %480, %483, %486, %489, %492, %495, %498, %501, %504, %507, %510 in 0 : vector<8x128xf32>, vector<8x128xf32>, vector<8x128xf32>, vector<8x128xf32>, vector<8x128xf32>, vector<8x128xf32>, vector<8x128xf32>, vector<8x128xf32>, vector<8x128xf32>, vector<8x128xf32>, vector<8x128xf32>, vector<8x128xf32> -> vector<96x128xf32>
    %c0_230 = arith.constant 0 : index
    %c0_231 = arith.constant 0 : index
    %512 = vector.load %arg3[%c0_230, %c0_231] : memref<96x1xf32, #tpu.memory_space<vmem>>, vector<96x1xf32>
    %513 = vector.broadcast %512 : vector<96x1xf32> to vector<96x128xf32>
    %514 = arith.addf %511, %513 : vector<96x128xf32>
    %cst_232 = arith.constant 0.000000e+00 : f32
    %515 = vector.broadcast %cst_232 : f32 to vector<96x128xf32>
    %516 = arith.maximumf %514, %515 : vector<96x128xf32>
    %517 = arith.truncf %516 : vector<96x128xf32> to vector<96x128xbf16>
    %c14_233 = arith.constant 14 : index
    %c0_234 = arith.constant 0 : index
    %c0_235 = arith.constant 0 : index
    %518 = vector.load %arg1[%c14_233, %c0_234, %c0_235] : memref<28x32x128xbf16, #tpu.memory_space<vmem>>, vector<1x32x128xbf16>
    %519 = vector.shape_cast %518 : vector<1x32x128xbf16> to vector<32x128xbf16>
    %c15_236 = arith.constant 15 : index
    %c0_237 = arith.constant 0 : index
    %c0_238 = arith.constant 0 : index
    %520 = vector.load %arg1[%c15_236, %c0_237, %c0_238] : memref<28x32x128xbf16, #tpu.memory_space<vmem>>, vector<1x32x128xbf16>
    %521 = vector.shape_cast %520 : vector<1x32x128xbf16> to vector<32x128xbf16>
    %522 = tpu.concatenate %519, %521 in 1 : vector<32x128xbf16>, vector<32x128xbf16> -> vector<32x256xbf16>
    %c15_239 = arith.constant 15 : index
    %c0_240 = arith.constant 0 : index
    %c0_241 = arith.constant 0 : index
    %523 = vector.load %arg1[%c15_239, %c0_240, %c0_241] : memref<28x32x128xbf16, #tpu.memory_space<vmem>>, vector<1x32x128xbf16>
    %524 = vector.shape_cast %523 : vector<1x32x128xbf16> to vector<32x128xbf16>
    %c16_242 = arith.constant 16 : index
    %c0_243 = arith.constant 0 : index
    %c0_244 = arith.constant 0 : index
    %525 = vector.load %arg1[%c16_242, %c0_243, %c0_244] : memref<28x32x128xbf16, #tpu.memory_space<vmem>>, vector<1x32x128xbf16>
    %526 = vector.shape_cast %525 : vector<1x32x128xbf16> to vector<32x128xbf16>
    %527 = tpu.concatenate %524, %526 in 1 : vector<32x128xbf16>, vector<32x128xbf16> -> vector<32x256xbf16>
    %c16_245 = arith.constant 16 : index
    %c0_246 = arith.constant 0 : index
    %c0_247 = arith.constant 0 : index
    %528 = vector.load %arg1[%c16_245, %c0_246, %c0_247] : memref<28x32x128xbf16, #tpu.memory_space<vmem>>, vector<1x32x128xbf16>
    %529 = vector.shape_cast %528 : vector<1x32x128xbf16> to vector<32x128xbf16>
    %c17_248 = arith.constant 17 : index
    %c0_249 = arith.constant 0 : index
    %c0_250 = arith.constant 0 : index
    %530 = vector.load %arg1[%c17_248, %c0_249, %c0_250] : memref<28x32x128xbf16, #tpu.memory_space<vmem>>, vector<1x32x128xbf16>
    %531 = vector.shape_cast %530 : vector<1x32x128xbf16> to vector<32x128xbf16>
    %532 = tpu.concatenate %529, %531 in 1 : vector<32x128xbf16>, vector<32x128xbf16> -> vector<32x256xbf16>
    %c17_251 = arith.constant 17 : index
    %c0_252 = arith.constant 0 : index
    %c0_253 = arith.constant 0 : index
    %533 = vector.load %arg1[%c17_251, %c0_252, %c0_253] : memref<28x32x128xbf16, #tpu.memory_space<vmem>>, vector<1x32x128xbf16>
    %534 = vector.shape_cast %533 : vector<1x32x128xbf16> to vector<32x128xbf16>
    %c18 = arith.constant 18 : index
    %c0_254 = arith.constant 0 : index
    %c0_255 = arith.constant 0 : index
    %535 = vector.load %arg1[%c18, %c0_254, %c0_255] : memref<28x32x128xbf16, #tpu.memory_space<vmem>>, vector<1x32x128xbf16>
    %536 = vector.shape_cast %535 : vector<1x32x128xbf16> to vector<32x128xbf16>
    %537 = tpu.concatenate %534, %536 in 1 : vector<32x128xbf16>, vector<32x128xbf16> -> vector<32x256xbf16>
    %c18_256 = arith.constant 18 : index
    %c0_257 = arith.constant 0 : index
    %c0_258 = arith.constant 0 : index
    %538 = vector.load %arg1[%c18_256, %c0_257, %c0_258] : memref<28x32x128xbf16, #tpu.memory_space<vmem>>, vector<1x32x128xbf16>
    %539 = vector.shape_cast %538 : vector<1x32x128xbf16> to vector<32x128xbf16>
    %c19 = arith.constant 19 : index
    %c0_259 = arith.constant 0 : index
    %c0_260 = arith.constant 0 : index
    %540 = vector.load %arg1[%c19, %c0_259, %c0_260] : memref<28x32x128xbf16, #tpu.memory_space<vmem>>, vector<1x32x128xbf16>
    %541 = vector.shape_cast %540 : vector<1x32x128xbf16> to vector<32x128xbf16>
    %542 = tpu.concatenate %539, %541 in 1 : vector<32x128xbf16>, vector<32x128xbf16> -> vector<32x256xbf16>
    %543 = tpu.concatenate %522, %527, %532, %537, %542 in 0 : vector<32x256xbf16>, vector<32x256xbf16>, vector<32x256xbf16>, vector<32x256xbf16>, vector<32x256xbf16> -> vector<160x256xbf16>
    %c0_261 = arith.constant 0 : index
    %c0_262 = arith.constant 0 : index
    %544 = vector.load %arg2[%c0_261, %c0_262] : memref<192x160xbf16, #tpu.memory_space<vmem>>, vector<192x160xbf16>
    %cst_263 = arith.constant dense<0.000000e+00> : vector<192x256xf32>
    %545 = tpu.matmul %544, %543, %cst_263 {dimension_numbers = #tpu.dot_dimension_numbers<[1], [0], [0], [1], [0, 0, 1, 1], [], []>} : vector<192x160xbf16>, vector<160x256xbf16>, vector<192x256xf32> -> vector<192x256xf32>
    %546 = vector.extract_strided_slice %545 {offsets = [0, 0], sizes = [192, 128], strides = [1, 1]} : vector<192x256xf32> to vector<192x128xf32>
    %547 = vector.extract_strided_slice %545 {offsets = [0, 128], sizes = [192, 128], strides = [1, 1]} : vector<192x256xf32> to vector<192x128xf32>
    %548 = arith.maximumf %546, %547 : vector<192x128xf32>
    %549 = vector.extract_strided_slice %548 {offsets = [0, 0], sizes = [8, 128], strides = [1, 1]} : vector<192x128xf32> to vector<8x128xf32>
    %550 = vector.extract_strided_slice %548 {offsets = [8, 0], sizes = [8, 128], strides = [1, 1]} : vector<192x128xf32> to vector<8x128xf32>
    %551 = arith.maximumf %549, %550 : vector<8x128xf32>
    %552 = vector.extract_strided_slice %548 {offsets = [16, 0], sizes = [8, 128], strides = [1, 1]} : vector<192x128xf32> to vector<8x128xf32>
    %553 = vector.extract_strided_slice %548 {offsets = [24, 0], sizes = [8, 128], strides = [1, 1]} : vector<192x128xf32> to vector<8x128xf32>
    %554 = arith.maximumf %552, %553 : vector<8x128xf32>
    %555 = vector.extract_strided_slice %548 {offsets = [32, 0], sizes = [8, 128], strides = [1, 1]} : vector<192x128xf32> to vector<8x128xf32>
    %556 = vector.extract_strided_slice %548 {offsets = [40, 0], sizes = [8, 128], strides = [1, 1]} : vector<192x128xf32> to vector<8x128xf32>
    %557 = arith.maximumf %555, %556 : vector<8x128xf32>
    %558 = vector.extract_strided_slice %548 {offsets = [48, 0], sizes = [8, 128], strides = [1, 1]} : vector<192x128xf32> to vector<8x128xf32>
    %559 = vector.extract_strided_slice %548 {offsets = [56, 0], sizes = [8, 128], strides = [1, 1]} : vector<192x128xf32> to vector<8x128xf32>
    %560 = arith.maximumf %558, %559 : vector<8x128xf32>
    %561 = vector.extract_strided_slice %548 {offsets = [64, 0], sizes = [8, 128], strides = [1, 1]} : vector<192x128xf32> to vector<8x128xf32>
    %562 = vector.extract_strided_slice %548 {offsets = [72, 0], sizes = [8, 128], strides = [1, 1]} : vector<192x128xf32> to vector<8x128xf32>
    %563 = arith.maximumf %561, %562 : vector<8x128xf32>
    %564 = vector.extract_strided_slice %548 {offsets = [80, 0], sizes = [8, 128], strides = [1, 1]} : vector<192x128xf32> to vector<8x128xf32>
    %565 = vector.extract_strided_slice %548 {offsets = [88, 0], sizes = [8, 128], strides = [1, 1]} : vector<192x128xf32> to vector<8x128xf32>
    %566 = arith.maximumf %564, %565 : vector<8x128xf32>
    %567 = vector.extract_strided_slice %548 {offsets = [96, 0], sizes = [8, 128], strides = [1, 1]} : vector<192x128xf32> to vector<8x128xf32>
    %568 = vector.extract_strided_slice %548 {offsets = [104, 0], sizes = [8, 128], strides = [1, 1]} : vector<192x128xf32> to vector<8x128xf32>
    %569 = arith.maximumf %567, %568 : vector<8x128xf32>
    %570 = vector.extract_strided_slice %548 {offsets = [112, 0], sizes = [8, 128], strides = [1, 1]} : vector<192x128xf32> to vector<8x128xf32>
    %571 = vector.extract_strided_slice %548 {offsets = [120, 0], sizes = [8, 128], strides = [1, 1]} : vector<192x128xf32> to vector<8x128xf32>
    %572 = arith.maximumf %570, %571 : vector<8x128xf32>
    %573 = vector.extract_strided_slice %548 {offsets = [128, 0], sizes = [8, 128], strides = [1, 1]} : vector<192x128xf32> to vector<8x128xf32>
    %574 = vector.extract_strided_slice %548 {offsets = [136, 0], sizes = [8, 128], strides = [1, 1]} : vector<192x128xf32> to vector<8x128xf32>
    %575 = arith.maximumf %573, %574 : vector<8x128xf32>
    %576 = vector.extract_strided_slice %548 {offsets = [144, 0], sizes = [8, 128], strides = [1, 1]} : vector<192x128xf32> to vector<8x128xf32>
    %577 = vector.extract_strided_slice %548 {offsets = [152, 0], sizes = [8, 128], strides = [1, 1]} : vector<192x128xf32> to vector<8x128xf32>
    %578 = arith.maximumf %576, %577 : vector<8x128xf32>
    %579 = vector.extract_strided_slice %548 {offsets = [160, 0], sizes = [8, 128], strides = [1, 1]} : vector<192x128xf32> to vector<8x128xf32>
    %580 = vector.extract_strided_slice %548 {offsets = [168, 0], sizes = [8, 128], strides = [1, 1]} : vector<192x128xf32> to vector<8x128xf32>
    %581 = arith.maximumf %579, %580 : vector<8x128xf32>
    %582 = vector.extract_strided_slice %548 {offsets = [176, 0], sizes = [8, 128], strides = [1, 1]} : vector<192x128xf32> to vector<8x128xf32>
    %583 = vector.extract_strided_slice %548 {offsets = [184, 0], sizes = [8, 128], strides = [1, 1]} : vector<192x128xf32> to vector<8x128xf32>
    %584 = arith.maximumf %582, %583 : vector<8x128xf32>
    %585 = tpu.concatenate %551, %554, %557, %560, %563, %566, %569, %572, %575, %578, %581, %584 in 0 : vector<8x128xf32>, vector<8x128xf32>, vector<8x128xf32>, vector<8x128xf32>, vector<8x128xf32>, vector<8x128xf32>, vector<8x128xf32>, vector<8x128xf32>, vector<8x128xf32>, vector<8x128xf32>, vector<8x128xf32>, vector<8x128xf32> -> vector<96x128xf32>
    %c0_264 = arith.constant 0 : index
    %c0_265 = arith.constant 0 : index
    %586 = vector.load %arg3[%c0_264, %c0_265] : memref<96x1xf32, #tpu.memory_space<vmem>>, vector<96x1xf32>
    %587 = vector.broadcast %586 : vector<96x1xf32> to vector<96x128xf32>
    %588 = arith.addf %585, %587 : vector<96x128xf32>
    %cst_266 = arith.constant 0.000000e+00 : f32
    %589 = vector.broadcast %cst_266 : f32 to vector<96x128xf32>
    %590 = arith.maximumf %588, %589 : vector<96x128xf32>
    %591 = arith.truncf %590 : vector<96x128xf32> to vector<96x128xbf16>
    %c16_267 = arith.constant 16 : index
    %c0_268 = arith.constant 0 : index
    %c0_269 = arith.constant 0 : index
    %592 = vector.load %arg1[%c16_267, %c0_268, %c0_269] : memref<28x32x128xbf16, #tpu.memory_space<vmem>>, vector<1x32x128xbf16>
    %593 = vector.shape_cast %592 : vector<1x32x128xbf16> to vector<32x128xbf16>
    %c17_270 = arith.constant 17 : index
    %c0_271 = arith.constant 0 : index
    %c0_272 = arith.constant 0 : index
    %594 = vector.load %arg1[%c17_270, %c0_271, %c0_272] : memref<28x32x128xbf16, #tpu.memory_space<vmem>>, vector<1x32x128xbf16>
    %595 = vector.shape_cast %594 : vector<1x32x128xbf16> to vector<32x128xbf16>
    %596 = tpu.concatenate %593, %595 in 1 : vector<32x128xbf16>, vector<32x128xbf16> -> vector<32x256xbf16>
    %c17_273 = arith.constant 17 : index
    %c0_274 = arith.constant 0 : index
    %c0_275 = arith.constant 0 : index
    %597 = vector.load %arg1[%c17_273, %c0_274, %c0_275] : memref<28x32x128xbf16, #tpu.memory_space<vmem>>, vector<1x32x128xbf16>
    %598 = vector.shape_cast %597 : vector<1x32x128xbf16> to vector<32x128xbf16>
    %c18_276 = arith.constant 18 : index
    %c0_277 = arith.constant 0 : index
    %c0_278 = arith.constant 0 : index
    %599 = vector.load %arg1[%c18_276, %c0_277, %c0_278] : memref<28x32x128xbf16, #tpu.memory_space<vmem>>, vector<1x32x128xbf16>
    %600 = vector.shape_cast %599 : vector<1x32x128xbf16> to vector<32x128xbf16>
    %601 = tpu.concatenate %598, %600 in 1 : vector<32x128xbf16>, vector<32x128xbf16> -> vector<32x256xbf16>
    %c18_279 = arith.constant 18 : index
    %c0_280 = arith.constant 0 : index
    %c0_281 = arith.constant 0 : index
    %602 = vector.load %arg1[%c18_279, %c0_280, %c0_281] : memref<28x32x128xbf16, #tpu.memory_space<vmem>>, vector<1x32x128xbf16>
    %603 = vector.shape_cast %602 : vector<1x32x128xbf16> to vector<32x128xbf16>
    %c19_282 = arith.constant 19 : index
    %c0_283 = arith.constant 0 : index
    %c0_284 = arith.constant 0 : index
    %604 = vector.load %arg1[%c19_282, %c0_283, %c0_284] : memref<28x32x128xbf16, #tpu.memory_space<vmem>>, vector<1x32x128xbf16>
    %605 = vector.shape_cast %604 : vector<1x32x128xbf16> to vector<32x128xbf16>
    %606 = tpu.concatenate %603, %605 in 1 : vector<32x128xbf16>, vector<32x128xbf16> -> vector<32x256xbf16>
    %c19_285 = arith.constant 19 : index
    %c0_286 = arith.constant 0 : index
    %c0_287 = arith.constant 0 : index
    %607 = vector.load %arg1[%c19_285, %c0_286, %c0_287] : memref<28x32x128xbf16, #tpu.memory_space<vmem>>, vector<1x32x128xbf16>
    %608 = vector.shape_cast %607 : vector<1x32x128xbf16> to vector<32x128xbf16>
    %c20 = arith.constant 20 : index
    %c0_288 = arith.constant 0 : index
    %c0_289 = arith.constant 0 : index
    %609 = vector.load %arg1[%c20, %c0_288, %c0_289] : memref<28x32x128xbf16, #tpu.memory_space<vmem>>, vector<1x32x128xbf16>
    %610 = vector.shape_cast %609 : vector<1x32x128xbf16> to vector<32x128xbf16>
    %611 = tpu.concatenate %608, %610 in 1 : vector<32x128xbf16>, vector<32x128xbf16> -> vector<32x256xbf16>
    %c20_290 = arith.constant 20 : index
    %c0_291 = arith.constant 0 : index
    %c0_292 = arith.constant 0 : index
    %612 = vector.load %arg1[%c20_290, %c0_291, %c0_292] : memref<28x32x128xbf16, #tpu.memory_space<vmem>>, vector<1x32x128xbf16>
    %613 = vector.shape_cast %612 : vector<1x32x128xbf16> to vector<32x128xbf16>
    %c21 = arith.constant 21 : index
    %c0_293 = arith.constant 0 : index
    %c0_294 = arith.constant 0 : index
    %614 = vector.load %arg1[%c21, %c0_293, %c0_294] : memref<28x32x128xbf16, #tpu.memory_space<vmem>>, vector<1x32x128xbf16>
    %615 = vector.shape_cast %614 : vector<1x32x128xbf16> to vector<32x128xbf16>
    %616 = tpu.concatenate %613, %615 in 1 : vector<32x128xbf16>, vector<32x128xbf16> -> vector<32x256xbf16>
    %617 = tpu.concatenate %596, %601, %606, %611, %616 in 0 : vector<32x256xbf16>, vector<32x256xbf16>, vector<32x256xbf16>, vector<32x256xbf16>, vector<32x256xbf16> -> vector<160x256xbf16>
    %c0_295 = arith.constant 0 : index
    %c0_296 = arith.constant 0 : index
    %618 = vector.load %arg2[%c0_295, %c0_296] : memref<192x160xbf16, #tpu.memory_space<vmem>>, vector<192x160xbf16>
    %cst_297 = arith.constant dense<0.000000e+00> : vector<192x256xf32>
    %619 = tpu.matmul %618, %617, %cst_297 {dimension_numbers = #tpu.dot_dimension_numbers<[1], [0], [0], [1], [0, 0, 1, 1], [], []>} : vector<192x160xbf16>, vector<160x256xbf16>, vector<192x256xf32> -> vector<192x256xf32>
    %620 = vector.extract_strided_slice %619 {offsets = [0, 0], sizes = [192, 128], strides = [1, 1]} : vector<192x256xf32> to vector<192x128xf32>
    %621 = vector.extract_strided_slice %619 {offsets = [0, 128], sizes = [192, 128], strides = [1, 1]} : vector<192x256xf32> to vector<192x128xf32>
    %622 = arith.maximumf %620, %621 : vector<192x128xf32>
    %623 = vector.extract_strided_slice %622 {offsets = [0, 0], sizes = [8, 128], strides = [1, 1]} : vector<192x128xf32> to vector<8x128xf32>
    %624 = vector.extract_strided_slice %622 {offsets = [8, 0], sizes = [8, 128], strides = [1, 1]} : vector<192x128xf32> to vector<8x128xf32>
    %625 = arith.maximumf %623, %624 : vector<8x128xf32>
    %626 = vector.extract_strided_slice %622 {offsets = [16, 0], sizes = [8, 128], strides = [1, 1]} : vector<192x128xf32> to vector<8x128xf32>
    %627 = vector.extract_strided_slice %622 {offsets = [24, 0], sizes = [8, 128], strides = [1, 1]} : vector<192x128xf32> to vector<8x128xf32>
    %628 = arith.maximumf %626, %627 : vector<8x128xf32>
    %629 = vector.extract_strided_slice %622 {offsets = [32, 0], sizes = [8, 128], strides = [1, 1]} : vector<192x128xf32> to vector<8x128xf32>
    %630 = vector.extract_strided_slice %622 {offsets = [40, 0], sizes = [8, 128], strides = [1, 1]} : vector<192x128xf32> to vector<8x128xf32>
    %631 = arith.maximumf %629, %630 : vector<8x128xf32>
    %632 = vector.extract_strided_slice %622 {offsets = [48, 0], sizes = [8, 128], strides = [1, 1]} : vector<192x128xf32> to vector<8x128xf32>
    %633 = vector.extract_strided_slice %622 {offsets = [56, 0], sizes = [8, 128], strides = [1, 1]} : vector<192x128xf32> to vector<8x128xf32>
    %634 = arith.maximumf %632, %633 : vector<8x128xf32>
    %635 = vector.extract_strided_slice %622 {offsets = [64, 0], sizes = [8, 128], strides = [1, 1]} : vector<192x128xf32> to vector<8x128xf32>
    %636 = vector.extract_strided_slice %622 {offsets = [72, 0], sizes = [8, 128], strides = [1, 1]} : vector<192x128xf32> to vector<8x128xf32>
    %637 = arith.maximumf %635, %636 : vector<8x128xf32>
    %638 = vector.extract_strided_slice %622 {offsets = [80, 0], sizes = [8, 128], strides = [1, 1]} : vector<192x128xf32> to vector<8x128xf32>
    %639 = vector.extract_strided_slice %622 {offsets = [88, 0], sizes = [8, 128], strides = [1, 1]} : vector<192x128xf32> to vector<8x128xf32>
    %640 = arith.maximumf %638, %639 : vector<8x128xf32>
    %641 = vector.extract_strided_slice %622 {offsets = [96, 0], sizes = [8, 128], strides = [1, 1]} : vector<192x128xf32> to vector<8x128xf32>
    %642 = vector.extract_strided_slice %622 {offsets = [104, 0], sizes = [8, 128], strides = [1, 1]} : vector<192x128xf32> to vector<8x128xf32>
    %643 = arith.maximumf %641, %642 : vector<8x128xf32>
    %644 = vector.extract_strided_slice %622 {offsets = [112, 0], sizes = [8, 128], strides = [1, 1]} : vector<192x128xf32> to vector<8x128xf32>
    %645 = vector.extract_strided_slice %622 {offsets = [120, 0], sizes = [8, 128], strides = [1, 1]} : vector<192x128xf32> to vector<8x128xf32>
    %646 = arith.maximumf %644, %645 : vector<8x128xf32>
    %647 = vector.extract_strided_slice %622 {offsets = [128, 0], sizes = [8, 128], strides = [1, 1]} : vector<192x128xf32> to vector<8x128xf32>
    %648 = vector.extract_strided_slice %622 {offsets = [136, 0], sizes = [8, 128], strides = [1, 1]} : vector<192x128xf32> to vector<8x128xf32>
    %649 = arith.maximumf %647, %648 : vector<8x128xf32>
    %650 = vector.extract_strided_slice %622 {offsets = [144, 0], sizes = [8, 128], strides = [1, 1]} : vector<192x128xf32> to vector<8x128xf32>
    %651 = vector.extract_strided_slice %622 {offsets = [152, 0], sizes = [8, 128], strides = [1, 1]} : vector<192x128xf32> to vector<8x128xf32>
    %652 = arith.maximumf %650, %651 : vector<8x128xf32>
    %653 = vector.extract_strided_slice %622 {offsets = [160, 0], sizes = [8, 128], strides = [1, 1]} : vector<192x128xf32> to vector<8x128xf32>
    %654 = vector.extract_strided_slice %622 {offsets = [168, 0], sizes = [8, 128], strides = [1, 1]} : vector<192x128xf32> to vector<8x128xf32>
    %655 = arith.maximumf %653, %654 : vector<8x128xf32>
    %656 = vector.extract_strided_slice %622 {offsets = [176, 0], sizes = [8, 128], strides = [1, 1]} : vector<192x128xf32> to vector<8x128xf32>
    %657 = vector.extract_strided_slice %622 {offsets = [184, 0], sizes = [8, 128], strides = [1, 1]} : vector<192x128xf32> to vector<8x128xf32>
    %658 = arith.maximumf %656, %657 : vector<8x128xf32>
    %659 = tpu.concatenate %625, %628, %631, %634, %637, %640, %643, %646, %649, %652, %655, %658 in 0 : vector<8x128xf32>, vector<8x128xf32>, vector<8x128xf32>, vector<8x128xf32>, vector<8x128xf32>, vector<8x128xf32>, vector<8x128xf32>, vector<8x128xf32>, vector<8x128xf32>, vector<8x128xf32>, vector<8x128xf32>, vector<8x128xf32> -> vector<96x128xf32>
    %c0_298 = arith.constant 0 : index
    %c0_299 = arith.constant 0 : index
    %660 = vector.load %arg3[%c0_298, %c0_299] : memref<96x1xf32, #tpu.memory_space<vmem>>, vector<96x1xf32>
    %661 = vector.broadcast %660 : vector<96x1xf32> to vector<96x128xf32>
    %662 = arith.addf %659, %661 : vector<96x128xf32>
    %cst_300 = arith.constant 0.000000e+00 : f32
    %663 = vector.broadcast %cst_300 : f32 to vector<96x128xf32>
    %664 = arith.maximumf %662, %663 : vector<96x128xf32>
    %665 = arith.truncf %664 : vector<96x128xf32> to vector<96x128xbf16>
    %c18_301 = arith.constant 18 : index
    %c0_302 = arith.constant 0 : index
    %c0_303 = arith.constant 0 : index
    %666 = vector.load %arg1[%c18_301, %c0_302, %c0_303] : memref<28x32x128xbf16, #tpu.memory_space<vmem>>, vector<1x32x128xbf16>
    %667 = vector.shape_cast %666 : vector<1x32x128xbf16> to vector<32x128xbf16>
    %c19_304 = arith.constant 19 : index
    %c0_305 = arith.constant 0 : index
    %c0_306 = arith.constant 0 : index
    %668 = vector.load %arg1[%c19_304, %c0_305, %c0_306] : memref<28x32x128xbf16, #tpu.memory_space<vmem>>, vector<1x32x128xbf16>
    %669 = vector.shape_cast %668 : vector<1x32x128xbf16> to vector<32x128xbf16>
    %670 = tpu.concatenate %667, %669 in 1 : vector<32x128xbf16>, vector<32x128xbf16> -> vector<32x256xbf16>
    %c19_307 = arith.constant 19 : index
    %c0_308 = arith.constant 0 : index
    %c0_309 = arith.constant 0 : index
    %671 = vector.load %arg1[%c19_307, %c0_308, %c0_309] : memref<28x32x128xbf16, #tpu.memory_space<vmem>>, vector<1x32x128xbf16>
    %672 = vector.shape_cast %671 : vector<1x32x128xbf16> to vector<32x128xbf16>
    %c20_310 = arith.constant 20 : index
    %c0_311 = arith.constant 0 : index
    %c0_312 = arith.constant 0 : index
    %673 = vector.load %arg1[%c20_310, %c0_311, %c0_312] : memref<28x32x128xbf16, #tpu.memory_space<vmem>>, vector<1x32x128xbf16>
    %674 = vector.shape_cast %673 : vector<1x32x128xbf16> to vector<32x128xbf16>
    %675 = tpu.concatenate %672, %674 in 1 : vector<32x128xbf16>, vector<32x128xbf16> -> vector<32x256xbf16>
    %c20_313 = arith.constant 20 : index
    %c0_314 = arith.constant 0 : index
    %c0_315 = arith.constant 0 : index
    %676 = vector.load %arg1[%c20_313, %c0_314, %c0_315] : memref<28x32x128xbf16, #tpu.memory_space<vmem>>, vector<1x32x128xbf16>
    %677 = vector.shape_cast %676 : vector<1x32x128xbf16> to vector<32x128xbf16>
    %c21_316 = arith.constant 21 : index
    %c0_317 = arith.constant 0 : index
    %c0_318 = arith.constant 0 : index
    %678 = vector.load %arg1[%c21_316, %c0_317, %c0_318] : memref<28x32x128xbf16, #tpu.memory_space<vmem>>, vector<1x32x128xbf16>
    %679 = vector.shape_cast %678 : vector<1x32x128xbf16> to vector<32x128xbf16>
    %680 = tpu.concatenate %677, %679 in 1 : vector<32x128xbf16>, vector<32x128xbf16> -> vector<32x256xbf16>
    %c21_319 = arith.constant 21 : index
    %c0_320 = arith.constant 0 : index
    %c0_321 = arith.constant 0 : index
    %681 = vector.load %arg1[%c21_319, %c0_320, %c0_321] : memref<28x32x128xbf16, #tpu.memory_space<vmem>>, vector<1x32x128xbf16>
    %682 = vector.shape_cast %681 : vector<1x32x128xbf16> to vector<32x128xbf16>
    %c22 = arith.constant 22 : index
    %c0_322 = arith.constant 0 : index
    %c0_323 = arith.constant 0 : index
    %683 = vector.load %arg1[%c22, %c0_322, %c0_323] : memref<28x32x128xbf16, #tpu.memory_space<vmem>>, vector<1x32x128xbf16>
    %684 = vector.shape_cast %683 : vector<1x32x128xbf16> to vector<32x128xbf16>
    %685 = tpu.concatenate %682, %684 in 1 : vector<32x128xbf16>, vector<32x128xbf16> -> vector<32x256xbf16>
    %c22_324 = arith.constant 22 : index
    %c0_325 = arith.constant 0 : index
    %c0_326 = arith.constant 0 : index
    %686 = vector.load %arg1[%c22_324, %c0_325, %c0_326] : memref<28x32x128xbf16, #tpu.memory_space<vmem>>, vector<1x32x128xbf16>
    %687 = vector.shape_cast %686 : vector<1x32x128xbf16> to vector<32x128xbf16>
    %c23 = arith.constant 23 : index
    %c0_327 = arith.constant 0 : index
    %c0_328 = arith.constant 0 : index
    %688 = vector.load %arg1[%c23, %c0_327, %c0_328] : memref<28x32x128xbf16, #tpu.memory_space<vmem>>, vector<1x32x128xbf16>
    %689 = vector.shape_cast %688 : vector<1x32x128xbf16> to vector<32x128xbf16>
    %690 = tpu.concatenate %687, %689 in 1 : vector<32x128xbf16>, vector<32x128xbf16> -> vector<32x256xbf16>
    %691 = tpu.concatenate %670, %675, %680, %685, %690 in 0 : vector<32x256xbf16>, vector<32x256xbf16>, vector<32x256xbf16>, vector<32x256xbf16>, vector<32x256xbf16> -> vector<160x256xbf16>
    %c0_329 = arith.constant 0 : index
    %c0_330 = arith.constant 0 : index
    %692 = vector.load %arg2[%c0_329, %c0_330] : memref<192x160xbf16, #tpu.memory_space<vmem>>, vector<192x160xbf16>
    %cst_331 = arith.constant dense<0.000000e+00> : vector<192x256xf32>
    %693 = tpu.matmul %692, %691, %cst_331 {dimension_numbers = #tpu.dot_dimension_numbers<[1], [0], [0], [1], [0, 0, 1, 1], [], []>} : vector<192x160xbf16>, vector<160x256xbf16>, vector<192x256xf32> -> vector<192x256xf32>
    %694 = vector.extract_strided_slice %693 {offsets = [0, 0], sizes = [192, 128], strides = [1, 1]} : vector<192x256xf32> to vector<192x128xf32>
    %695 = vector.extract_strided_slice %693 {offsets = [0, 128], sizes = [192, 128], strides = [1, 1]} : vector<192x256xf32> to vector<192x128xf32>
    %696 = arith.maximumf %694, %695 : vector<192x128xf32>
    %697 = vector.extract_strided_slice %696 {offsets = [0, 0], sizes = [8, 128], strides = [1, 1]} : vector<192x128xf32> to vector<8x128xf32>
    %698 = vector.extract_strided_slice %696 {offsets = [8, 0], sizes = [8, 128], strides = [1, 1]} : vector<192x128xf32> to vector<8x128xf32>
    %699 = arith.maximumf %697, %698 : vector<8x128xf32>
    %700 = vector.extract_strided_slice %696 {offsets = [16, 0], sizes = [8, 128], strides = [1, 1]} : vector<192x128xf32> to vector<8x128xf32>
    %701 = vector.extract_strided_slice %696 {offsets = [24, 0], sizes = [8, 128], strides = [1, 1]} : vector<192x128xf32> to vector<8x128xf32>
    %702 = arith.maximumf %700, %701 : vector<8x128xf32>
    %703 = vector.extract_strided_slice %696 {offsets = [32, 0], sizes = [8, 128], strides = [1, 1]} : vector<192x128xf32> to vector<8x128xf32>
    %704 = vector.extract_strided_slice %696 {offsets = [40, 0], sizes = [8, 128], strides = [1, 1]} : vector<192x128xf32> to vector<8x128xf32>
    %705 = arith.maximumf %703, %704 : vector<8x128xf32>
    %706 = vector.extract_strided_slice %696 {offsets = [48, 0], sizes = [8, 128], strides = [1, 1]} : vector<192x128xf32> to vector<8x128xf32>
    %707 = vector.extract_strided_slice %696 {offsets = [56, 0], sizes = [8, 128], strides = [1, 1]} : vector<192x128xf32> to vector<8x128xf32>
    %708 = arith.maximumf %706, %707 : vector<8x128xf32>
    %709 = vector.extract_strided_slice %696 {offsets = [64, 0], sizes = [8, 128], strides = [1, 1]} : vector<192x128xf32> to vector<8x128xf32>
    %710 = vector.extract_strided_slice %696 {offsets = [72, 0], sizes = [8, 128], strides = [1, 1]} : vector<192x128xf32> to vector<8x128xf32>
    %711 = arith.maximumf %709, %710 : vector<8x128xf32>
    %712 = vector.extract_strided_slice %696 {offsets = [80, 0], sizes = [8, 128], strides = [1, 1]} : vector<192x128xf32> to vector<8x128xf32>
    %713 = vector.extract_strided_slice %696 {offsets = [88, 0], sizes = [8, 128], strides = [1, 1]} : vector<192x128xf32> to vector<8x128xf32>
    %714 = arith.maximumf %712, %713 : vector<8x128xf32>
    %715 = vector.extract_strided_slice %696 {offsets = [96, 0], sizes = [8, 128], strides = [1, 1]} : vector<192x128xf32> to vector<8x128xf32>
    %716 = vector.extract_strided_slice %696 {offsets = [104, 0], sizes = [8, 128], strides = [1, 1]} : vector<192x128xf32> to vector<8x128xf32>
    %717 = arith.maximumf %715, %716 : vector<8x128xf32>
    %718 = vector.extract_strided_slice %696 {offsets = [112, 0], sizes = [8, 128], strides = [1, 1]} : vector<192x128xf32> to vector<8x128xf32>
    %719 = vector.extract_strided_slice %696 {offsets = [120, 0], sizes = [8, 128], strides = [1, 1]} : vector<192x128xf32> to vector<8x128xf32>
    %720 = arith.maximumf %718, %719 : vector<8x128xf32>
    %721 = vector.extract_strided_slice %696 {offsets = [128, 0], sizes = [8, 128], strides = [1, 1]} : vector<192x128xf32> to vector<8x128xf32>
    %722 = vector.extract_strided_slice %696 {offsets = [136, 0], sizes = [8, 128], strides = [1, 1]} : vector<192x128xf32> to vector<8x128xf32>
    %723 = arith.maximumf %721, %722 : vector<8x128xf32>
    %724 = vector.extract_strided_slice %696 {offsets = [144, 0], sizes = [8, 128], strides = [1, 1]} : vector<192x128xf32> to vector<8x128xf32>
    %725 = vector.extract_strided_slice %696 {offsets = [152, 0], sizes = [8, 128], strides = [1, 1]} : vector<192x128xf32> to vector<8x128xf32>
    %726 = arith.maximumf %724, %725 : vector<8x128xf32>
    %727 = vector.extract_strided_slice %696 {offsets = [160, 0], sizes = [8, 128], strides = [1, 1]} : vector<192x128xf32> to vector<8x128xf32>
    %728 = vector.extract_strided_slice %696 {offsets = [168, 0], sizes = [8, 128], strides = [1, 1]} : vector<192x128xf32> to vector<8x128xf32>
    %729 = arith.maximumf %727, %728 : vector<8x128xf32>
    %730 = vector.extract_strided_slice %696 {offsets = [176, 0], sizes = [8, 128], strides = [1, 1]} : vector<192x128xf32> to vector<8x128xf32>
    %731 = vector.extract_strided_slice %696 {offsets = [184, 0], sizes = [8, 128], strides = [1, 1]} : vector<192x128xf32> to vector<8x128xf32>
    %732 = arith.maximumf %730, %731 : vector<8x128xf32>
    %733 = tpu.concatenate %699, %702, %705, %708, %711, %714, %717, %720, %723, %726, %729, %732 in 0 : vector<8x128xf32>, vector<8x128xf32>, vector<8x128xf32>, vector<8x128xf32>, vector<8x128xf32>, vector<8x128xf32>, vector<8x128xf32>, vector<8x128xf32>, vector<8x128xf32>, vector<8x128xf32>, vector<8x128xf32>, vector<8x128xf32> -> vector<96x128xf32>
    %c0_332 = arith.constant 0 : index
    %c0_333 = arith.constant 0 : index
    %734 = vector.load %arg3[%c0_332, %c0_333] : memref<96x1xf32, #tpu.memory_space<vmem>>, vector<96x1xf32>
    %735 = vector.broadcast %734 : vector<96x1xf32> to vector<96x128xf32>
    %736 = arith.addf %733, %735 : vector<96x128xf32>
    %cst_334 = arith.constant 0.000000e+00 : f32
    %737 = vector.broadcast %cst_334 : f32 to vector<96x128xf32>
    %738 = arith.maximumf %736, %737 : vector<96x128xf32>
    %739 = arith.truncf %738 : vector<96x128xf32> to vector<96x128xbf16>
    %c20_335 = arith.constant 20 : index
    %c0_336 = arith.constant 0 : index
    %c0_337 = arith.constant 0 : index
    %740 = vector.load %arg1[%c20_335, %c0_336, %c0_337] : memref<28x32x128xbf16, #tpu.memory_space<vmem>>, vector<1x32x128xbf16>
    %741 = vector.shape_cast %740 : vector<1x32x128xbf16> to vector<32x128xbf16>
    %c21_338 = arith.constant 21 : index
    %c0_339 = arith.constant 0 : index
    %c0_340 = arith.constant 0 : index
    %742 = vector.load %arg1[%c21_338, %c0_339, %c0_340] : memref<28x32x128xbf16, #tpu.memory_space<vmem>>, vector<1x32x128xbf16>
    %743 = vector.shape_cast %742 : vector<1x32x128xbf16> to vector<32x128xbf16>
    %744 = tpu.concatenate %741, %743 in 1 : vector<32x128xbf16>, vector<32x128xbf16> -> vector<32x256xbf16>
    %c21_341 = arith.constant 21 : index
    %c0_342 = arith.constant 0 : index
    %c0_343 = arith.constant 0 : index
    %745 = vector.load %arg1[%c21_341, %c0_342, %c0_343] : memref<28x32x128xbf16, #tpu.memory_space<vmem>>, vector<1x32x128xbf16>
    %746 = vector.shape_cast %745 : vector<1x32x128xbf16> to vector<32x128xbf16>
    %c22_344 = arith.constant 22 : index
    %c0_345 = arith.constant 0 : index
    %c0_346 = arith.constant 0 : index
    %747 = vector.load %arg1[%c22_344, %c0_345, %c0_346] : memref<28x32x128xbf16, #tpu.memory_space<vmem>>, vector<1x32x128xbf16>
    %748 = vector.shape_cast %747 : vector<1x32x128xbf16> to vector<32x128xbf16>
    %749 = tpu.concatenate %746, %748 in 1 : vector<32x128xbf16>, vector<32x128xbf16> -> vector<32x256xbf16>
    %c22_347 = arith.constant 22 : index
    %c0_348 = arith.constant 0 : index
    %c0_349 = arith.constant 0 : index
    %750 = vector.load %arg1[%c22_347, %c0_348, %c0_349] : memref<28x32x128xbf16, #tpu.memory_space<vmem>>, vector<1x32x128xbf16>
    %751 = vector.shape_cast %750 : vector<1x32x128xbf16> to vector<32x128xbf16>
    %c23_350 = arith.constant 23 : index
    %c0_351 = arith.constant 0 : index
    %c0_352 = arith.constant 0 : index
    %752 = vector.load %arg1[%c23_350, %c0_351, %c0_352] : memref<28x32x128xbf16, #tpu.memory_space<vmem>>, vector<1x32x128xbf16>
    %753 = vector.shape_cast %752 : vector<1x32x128xbf16> to vector<32x128xbf16>
    %754 = tpu.concatenate %751, %753 in 1 : vector<32x128xbf16>, vector<32x128xbf16> -> vector<32x256xbf16>
    %c23_353 = arith.constant 23 : index
    %c0_354 = arith.constant 0 : index
    %c0_355 = arith.constant 0 : index
    %755 = vector.load %arg1[%c23_353, %c0_354, %c0_355] : memref<28x32x128xbf16, #tpu.memory_space<vmem>>, vector<1x32x128xbf16>
    %756 = vector.shape_cast %755 : vector<1x32x128xbf16> to vector<32x128xbf16>
    %c24 = arith.constant 24 : index
    %c0_356 = arith.constant 0 : index
    %c0_357 = arith.constant 0 : index
    %757 = vector.load %arg1[%c24, %c0_356, %c0_357] : memref<28x32x128xbf16, #tpu.memory_space<vmem>>, vector<1x32x128xbf16>
    %758 = vector.shape_cast %757 : vector<1x32x128xbf16> to vector<32x128xbf16>
    %759 = tpu.concatenate %756, %758 in 1 : vector<32x128xbf16>, vector<32x128xbf16> -> vector<32x256xbf16>
    %c24_358 = arith.constant 24 : index
    %c0_359 = arith.constant 0 : index
    %c0_360 = arith.constant 0 : index
    %760 = vector.load %arg1[%c24_358, %c0_359, %c0_360] : memref<28x32x128xbf16, #tpu.memory_space<vmem>>, vector<1x32x128xbf16>
    %761 = vector.shape_cast %760 : vector<1x32x128xbf16> to vector<32x128xbf16>
    %c25 = arith.constant 25 : index
    %c0_361 = arith.constant 0 : index
    %c0_362 = arith.constant 0 : index
    %762 = vector.load %arg1[%c25, %c0_361, %c0_362] : memref<28x32x128xbf16, #tpu.memory_space<vmem>>, vector<1x32x128xbf16>
    %763 = vector.shape_cast %762 : vector<1x32x128xbf16> to vector<32x128xbf16>
    %764 = tpu.concatenate %761, %763 in 1 : vector<32x128xbf16>, vector<32x128xbf16> -> vector<32x256xbf16>
    %765 = tpu.concatenate %744, %749, %754, %759, %764 in 0 : vector<32x256xbf16>, vector<32x256xbf16>, vector<32x256xbf16>, vector<32x256xbf16>, vector<32x256xbf16> -> vector<160x256xbf16>
    %c0_363 = arith.constant 0 : index
    %c0_364 = arith.constant 0 : index
    %766 = vector.load %arg2[%c0_363, %c0_364] : memref<192x160xbf16, #tpu.memory_space<vmem>>, vector<192x160xbf16>
    %cst_365 = arith.constant dense<0.000000e+00> : vector<192x256xf32>
    %767 = tpu.matmul %766, %765, %cst_365 {dimension_numbers = #tpu.dot_dimension_numbers<[1], [0], [0], [1], [0, 0, 1, 1], [], []>} : vector<192x160xbf16>, vector<160x256xbf16>, vector<192x256xf32> -> vector<192x256xf32>
    %768 = vector.extract_strided_slice %767 {offsets = [0, 0], sizes = [192, 128], strides = [1, 1]} : vector<192x256xf32> to vector<192x128xf32>
    %769 = vector.extract_strided_slice %767 {offsets = [0, 128], sizes = [192, 128], strides = [1, 1]} : vector<192x256xf32> to vector<192x128xf32>
    %770 = arith.maximumf %768, %769 : vector<192x128xf32>
    %771 = vector.extract_strided_slice %770 {offsets = [0, 0], sizes = [8, 128], strides = [1, 1]} : vector<192x128xf32> to vector<8x128xf32>
    %772 = vector.extract_strided_slice %770 {offsets = [8, 0], sizes = [8, 128], strides = [1, 1]} : vector<192x128xf32> to vector<8x128xf32>
    %773 = arith.maximumf %771, %772 : vector<8x128xf32>
    %774 = vector.extract_strided_slice %770 {offsets = [16, 0], sizes = [8, 128], strides = [1, 1]} : vector<192x128xf32> to vector<8x128xf32>
    %775 = vector.extract_strided_slice %770 {offsets = [24, 0], sizes = [8, 128], strides = [1, 1]} : vector<192x128xf32> to vector<8x128xf32>
    %776 = arith.maximumf %774, %775 : vector<8x128xf32>
    %777 = vector.extract_strided_slice %770 {offsets = [32, 0], sizes = [8, 128], strides = [1, 1]} : vector<192x128xf32> to vector<8x128xf32>
    %778 = vector.extract_strided_slice %770 {offsets = [40, 0], sizes = [8, 128], strides = [1, 1]} : vector<192x128xf32> to vector<8x128xf32>
    %779 = arith.maximumf %777, %778 : vector<8x128xf32>
    %780 = vector.extract_strided_slice %770 {offsets = [48, 0], sizes = [8, 128], strides = [1, 1]} : vector<192x128xf32> to vector<8x128xf32>
    %781 = vector.extract_strided_slice %770 {offsets = [56, 0], sizes = [8, 128], strides = [1, 1]} : vector<192x128xf32> to vector<8x128xf32>
    %782 = arith.maximumf %780, %781 : vector<8x128xf32>
    %783 = vector.extract_strided_slice %770 {offsets = [64, 0], sizes = [8, 128], strides = [1, 1]} : vector<192x128xf32> to vector<8x128xf32>
    %784 = vector.extract_strided_slice %770 {offsets = [72, 0], sizes = [8, 128], strides = [1, 1]} : vector<192x128xf32> to vector<8x128xf32>
    %785 = arith.maximumf %783, %784 : vector<8x128xf32>
    %786 = vector.extract_strided_slice %770 {offsets = [80, 0], sizes = [8, 128], strides = [1, 1]} : vector<192x128xf32> to vector<8x128xf32>
    %787 = vector.extract_strided_slice %770 {offsets = [88, 0], sizes = [8, 128], strides = [1, 1]} : vector<192x128xf32> to vector<8x128xf32>
    %788 = arith.maximumf %786, %787 : vector<8x128xf32>
    %789 = vector.extract_strided_slice %770 {offsets = [96, 0], sizes = [8, 128], strides = [1, 1]} : vector<192x128xf32> to vector<8x128xf32>
    %790 = vector.extract_strided_slice %770 {offsets = [104, 0], sizes = [8, 128], strides = [1, 1]} : vector<192x128xf32> to vector<8x128xf32>
    %791 = arith.maximumf %789, %790 : vector<8x128xf32>
    %792 = vector.extract_strided_slice %770 {offsets = [112, 0], sizes = [8, 128], strides = [1, 1]} : vector<192x128xf32> to vector<8x128xf32>
    %793 = vector.extract_strided_slice %770 {offsets = [120, 0], sizes = [8, 128], strides = [1, 1]} : vector<192x128xf32> to vector<8x128xf32>
    %794 = arith.maximumf %792, %793 : vector<8x128xf32>
    %795 = vector.extract_strided_slice %770 {offsets = [128, 0], sizes = [8, 128], strides = [1, 1]} : vector<192x128xf32> to vector<8x128xf32>
    %796 = vector.extract_strided_slice %770 {offsets = [136, 0], sizes = [8, 128], strides = [1, 1]} : vector<192x128xf32> to vector<8x128xf32>
    %797 = arith.maximumf %795, %796 : vector<8x128xf32>
    %798 = vector.extract_strided_slice %770 {offsets = [144, 0], sizes = [8, 128], strides = [1, 1]} : vector<192x128xf32> to vector<8x128xf32>
    %799 = vector.extract_strided_slice %770 {offsets = [152, 0], sizes = [8, 128], strides = [1, 1]} : vector<192x128xf32> to vector<8x128xf32>
    %800 = arith.maximumf %798, %799 : vector<8x128xf32>
    %801 = vector.extract_strided_slice %770 {offsets = [160, 0], sizes = [8, 128], strides = [1, 1]} : vector<192x128xf32> to vector<8x128xf32>
    %802 = vector.extract_strided_slice %770 {offsets = [168, 0], sizes = [8, 128], strides = [1, 1]} : vector<192x128xf32> to vector<8x128xf32>
    %803 = arith.maximumf %801, %802 : vector<8x128xf32>
    %804 = vector.extract_strided_slice %770 {offsets = [176, 0], sizes = [8, 128], strides = [1, 1]} : vector<192x128xf32> to vector<8x128xf32>
    %805 = vector.extract_strided_slice %770 {offsets = [184, 0], sizes = [8, 128], strides = [1, 1]} : vector<192x128xf32> to vector<8x128xf32>
    %806 = arith.maximumf %804, %805 : vector<8x128xf32>
    %807 = tpu.concatenate %773, %776, %779, %782, %785, %788, %791, %794, %797, %800, %803, %806 in 0 : vector<8x128xf32>, vector<8x128xf32>, vector<8x128xf32>, vector<8x128xf32>, vector<8x128xf32>, vector<8x128xf32>, vector<8x128xf32>, vector<8x128xf32>, vector<8x128xf32>, vector<8x128xf32>, vector<8x128xf32>, vector<8x128xf32> -> vector<96x128xf32>
    %c0_366 = arith.constant 0 : index
    %c0_367 = arith.constant 0 : index
    %808 = vector.load %arg3[%c0_366, %c0_367] : memref<96x1xf32, #tpu.memory_space<vmem>>, vector<96x1xf32>
    %809 = vector.broadcast %808 : vector<96x1xf32> to vector<96x128xf32>
    %810 = arith.addf %807, %809 : vector<96x128xf32>
    %cst_368 = arith.constant 0.000000e+00 : f32
    %811 = vector.broadcast %cst_368 : f32 to vector<96x128xf32>
    %812 = arith.maximumf %810, %811 : vector<96x128xf32>
    %813 = arith.truncf %812 : vector<96x128xf32> to vector<96x128xbf16>
    %c22_369 = arith.constant 22 : index
    %c0_370 = arith.constant 0 : index
    %c0_371 = arith.constant 0 : index
    %814 = vector.load %arg1[%c22_369, %c0_370, %c0_371] : memref<28x32x128xbf16, #tpu.memory_space<vmem>>, vector<1x32x128xbf16>
    %815 = vector.shape_cast %814 : vector<1x32x128xbf16> to vector<32x128xbf16>
    %c23_372 = arith.constant 23 : index
    %c0_373 = arith.constant 0 : index
    %c0_374 = arith.constant 0 : index
    %816 = vector.load %arg1[%c23_372, %c0_373, %c0_374] : memref<28x32x128xbf16, #tpu.memory_space<vmem>>, vector<1x32x128xbf16>
    %817 = vector.shape_cast %816 : vector<1x32x128xbf16> to vector<32x128xbf16>
    %818 = tpu.concatenate %815, %817 in 1 : vector<32x128xbf16>, vector<32x128xbf16> -> vector<32x256xbf16>
    %c23_375 = arith.constant 23 : index
    %c0_376 = arith.constant 0 : index
    %c0_377 = arith.constant 0 : index
    %819 = vector.load %arg1[%c23_375, %c0_376, %c0_377] : memref<28x32x128xbf16, #tpu.memory_space<vmem>>, vector<1x32x128xbf16>
    %820 = vector.shape_cast %819 : vector<1x32x128xbf16> to vector<32x128xbf16>
    %c24_378 = arith.constant 24 : index
    %c0_379 = arith.constant 0 : index
    %c0_380 = arith.constant 0 : index
    %821 = vector.load %arg1[%c24_378, %c0_379, %c0_380] : memref<28x32x128xbf16, #tpu.memory_space<vmem>>, vector<1x32x128xbf16>
    %822 = vector.shape_cast %821 : vector<1x32x128xbf16> to vector<32x128xbf16>
    %823 = tpu.concatenate %820, %822 in 1 : vector<32x128xbf16>, vector<32x128xbf16> -> vector<32x256xbf16>
    %c24_381 = arith.constant 24 : index
    %c0_382 = arith.constant 0 : index
    %c0_383 = arith.constant 0 : index
    %824 = vector.load %arg1[%c24_381, %c0_382, %c0_383] : memref<28x32x128xbf16, #tpu.memory_space<vmem>>, vector<1x32x128xbf16>
    %825 = vector.shape_cast %824 : vector<1x32x128xbf16> to vector<32x128xbf16>
    %c25_384 = arith.constant 25 : index
    %c0_385 = arith.constant 0 : index
    %c0_386 = arith.constant 0 : index
    %826 = vector.load %arg1[%c25_384, %c0_385, %c0_386] : memref<28x32x128xbf16, #tpu.memory_space<vmem>>, vector<1x32x128xbf16>
    %827 = vector.shape_cast %826 : vector<1x32x128xbf16> to vector<32x128xbf16>
    %828 = tpu.concatenate %825, %827 in 1 : vector<32x128xbf16>, vector<32x128xbf16> -> vector<32x256xbf16>
    %c25_387 = arith.constant 25 : index
    %c0_388 = arith.constant 0 : index
    %c0_389 = arith.constant 0 : index
    %829 = vector.load %arg1[%c25_387, %c0_388, %c0_389] : memref<28x32x128xbf16, #tpu.memory_space<vmem>>, vector<1x32x128xbf16>
    %830 = vector.shape_cast %829 : vector<1x32x128xbf16> to vector<32x128xbf16>
    %c26 = arith.constant 26 : index
    %c0_390 = arith.constant 0 : index
    %c0_391 = arith.constant 0 : index
    %831 = vector.load %arg1[%c26, %c0_390, %c0_391] : memref<28x32x128xbf16, #tpu.memory_space<vmem>>, vector<1x32x128xbf16>
    %832 = vector.shape_cast %831 : vector<1x32x128xbf16> to vector<32x128xbf16>
    %833 = tpu.concatenate %830, %832 in 1 : vector<32x128xbf16>, vector<32x128xbf16> -> vector<32x256xbf16>
    %c26_392 = arith.constant 26 : index
    %c0_393 = arith.constant 0 : index
    %c0_394 = arith.constant 0 : index
    %834 = vector.load %arg1[%c26_392, %c0_393, %c0_394] : memref<28x32x128xbf16, #tpu.memory_space<vmem>>, vector<1x32x128xbf16>
    %835 = vector.shape_cast %834 : vector<1x32x128xbf16> to vector<32x128xbf16>
    %c27 = arith.constant 27 : index
    %c0_395 = arith.constant 0 : index
    %c0_396 = arith.constant 0 : index
    %836 = vector.load %arg1[%c27, %c0_395, %c0_396] : memref<28x32x128xbf16, #tpu.memory_space<vmem>>, vector<1x32x128xbf16>
    %837 = vector.shape_cast %836 : vector<1x32x128xbf16> to vector<32x128xbf16>
    %838 = tpu.concatenate %835, %837 in 1 : vector<32x128xbf16>, vector<32x128xbf16> -> vector<32x256xbf16>
    %839 = tpu.concatenate %818, %823, %828, %833, %838 in 0 : vector<32x256xbf16>, vector<32x256xbf16>, vector<32x256xbf16>, vector<32x256xbf16>, vector<32x256xbf16> -> vector<160x256xbf16>
    %c0_397 = arith.constant 0 : index
    %c0_398 = arith.constant 0 : index
    %840 = vector.load %arg2[%c0_397, %c0_398] : memref<192x160xbf16, #tpu.memory_space<vmem>>, vector<192x160xbf16>
    %cst_399 = arith.constant dense<0.000000e+00> : vector<192x256xf32>
    %841 = tpu.matmul %840, %839, %cst_399 {dimension_numbers = #tpu.dot_dimension_numbers<[1], [0], [0], [1], [0, 0, 1, 1], [], []>} : vector<192x160xbf16>, vector<160x256xbf16>, vector<192x256xf32> -> vector<192x256xf32>
    %842 = vector.extract_strided_slice %841 {offsets = [0, 0], sizes = [192, 128], strides = [1, 1]} : vector<192x256xf32> to vector<192x128xf32>
    %843 = vector.extract_strided_slice %841 {offsets = [0, 128], sizes = [192, 128], strides = [1, 1]} : vector<192x256xf32> to vector<192x128xf32>
    %844 = arith.maximumf %842, %843 : vector<192x128xf32>
    %845 = vector.extract_strided_slice %844 {offsets = [0, 0], sizes = [8, 128], strides = [1, 1]} : vector<192x128xf32> to vector<8x128xf32>
    %846 = vector.extract_strided_slice %844 {offsets = [8, 0], sizes = [8, 128], strides = [1, 1]} : vector<192x128xf32> to vector<8x128xf32>
    %847 = arith.maximumf %845, %846 : vector<8x128xf32>
    %848 = vector.extract_strided_slice %844 {offsets = [16, 0], sizes = [8, 128], strides = [1, 1]} : vector<192x128xf32> to vector<8x128xf32>
    %849 = vector.extract_strided_slice %844 {offsets = [24, 0], sizes = [8, 128], strides = [1, 1]} : vector<192x128xf32> to vector<8x128xf32>
    %850 = arith.maximumf %848, %849 : vector<8x128xf32>
    %851 = vector.extract_strided_slice %844 {offsets = [32, 0], sizes = [8, 128], strides = [1, 1]} : vector<192x128xf32> to vector<8x128xf32>
    %852 = vector.extract_strided_slice %844 {offsets = [40, 0], sizes = [8, 128], strides = [1, 1]} : vector<192x128xf32> to vector<8x128xf32>
    %853 = arith.maximumf %851, %852 : vector<8x128xf32>
    %854 = vector.extract_strided_slice %844 {offsets = [48, 0], sizes = [8, 128], strides = [1, 1]} : vector<192x128xf32> to vector<8x128xf32>
    %855 = vector.extract_strided_slice %844 {offsets = [56, 0], sizes = [8, 128], strides = [1, 1]} : vector<192x128xf32> to vector<8x128xf32>
    %856 = arith.maximumf %854, %855 : vector<8x128xf32>
    %857 = vector.extract_strided_slice %844 {offsets = [64, 0], sizes = [8, 128], strides = [1, 1]} : vector<192x128xf32> to vector<8x128xf32>
    %858 = vector.extract_strided_slice %844 {offsets = [72, 0], sizes = [8, 128], strides = [1, 1]} : vector<192x128xf32> to vector<8x128xf32>
    %859 = arith.maximumf %857, %858 : vector<8x128xf32>
    %860 = vector.extract_strided_slice %844 {offsets = [80, 0], sizes = [8, 128], strides = [1, 1]} : vector<192x128xf32> to vector<8x128xf32>
    %861 = vector.extract_strided_slice %844 {offsets = [88, 0], sizes = [8, 128], strides = [1, 1]} : vector<192x128xf32> to vector<8x128xf32>
    %862 = arith.maximumf %860, %861 : vector<8x128xf32>
    %863 = vector.extract_strided_slice %844 {offsets = [96, 0], sizes = [8, 128], strides = [1, 1]} : vector<192x128xf32> to vector<8x128xf32>
    %864 = vector.extract_strided_slice %844 {offsets = [104, 0], sizes = [8, 128], strides = [1, 1]} : vector<192x128xf32> to vector<8x128xf32>
    %865 = arith.maximumf %863, %864 : vector<8x128xf32>
    %866 = vector.extract_strided_slice %844 {offsets = [112, 0], sizes = [8, 128], strides = [1, 1]} : vector<192x128xf32> to vector<8x128xf32>
    %867 = vector.extract_strided_slice %844 {offsets = [120, 0], sizes = [8, 128], strides = [1, 1]} : vector<192x128xf32> to vector<8x128xf32>
    %868 = arith.maximumf %866, %867 : vector<8x128xf32>
    %869 = vector.extract_strided_slice %844 {offsets = [128, 0], sizes = [8, 128], strides = [1, 1]} : vector<192x128xf32> to vector<8x128xf32>
    %870 = vector.extract_strided_slice %844 {offsets = [136, 0], sizes = [8, 128], strides = [1, 1]} : vector<192x128xf32> to vector<8x128xf32>
    %871 = arith.maximumf %869, %870 : vector<8x128xf32>
    %872 = vector.extract_strided_slice %844 {offsets = [144, 0], sizes = [8, 128], strides = [1, 1]} : vector<192x128xf32> to vector<8x128xf32>
    %873 = vector.extract_strided_slice %844 {offsets = [152, 0], sizes = [8, 128], strides = [1, 1]} : vector<192x128xf32> to vector<8x128xf32>
    %874 = arith.maximumf %872, %873 : vector<8x128xf32>
    %875 = vector.extract_strided_slice %844 {offsets = [160, 0], sizes = [8, 128], strides = [1, 1]} : vector<192x128xf32> to vector<8x128xf32>
    %876 = vector.extract_strided_slice %844 {offsets = [168, 0], sizes = [8, 128], strides = [1, 1]} : vector<192x128xf32> to vector<8x128xf32>
    %877 = arith.maximumf %875, %876 : vector<8x128xf32>
    %878 = vector.extract_strided_slice %844 {offsets = [176, 0], sizes = [8, 128], strides = [1, 1]} : vector<192x128xf32> to vector<8x128xf32>
    %879 = vector.extract_strided_slice %844 {offsets = [184, 0], sizes = [8, 128], strides = [1, 1]} : vector<192x128xf32> to vector<8x128xf32>
    %880 = arith.maximumf %878, %879 : vector<8x128xf32>
    %881 = tpu.concatenate %847, %850, %853, %856, %859, %862, %865, %868, %871, %874, %877, %880 in 0 : vector<8x128xf32>, vector<8x128xf32>, vector<8x128xf32>, vector<8x128xf32>, vector<8x128xf32>, vector<8x128xf32>, vector<8x128xf32>, vector<8x128xf32>, vector<8x128xf32>, vector<8x128xf32>, vector<8x128xf32>, vector<8x128xf32> -> vector<96x128xf32>
    %c0_400 = arith.constant 0 : index
    %c0_401 = arith.constant 0 : index
    %882 = vector.load %arg3[%c0_400, %c0_401] : memref<96x1xf32, #tpu.memory_space<vmem>>, vector<96x1xf32>
    %883 = vector.broadcast %882 : vector<96x1xf32> to vector<96x128xf32>
    %884 = arith.addf %881, %883 : vector<96x128xf32>
    %cst_402 = arith.constant 0.000000e+00 : f32
    %885 = vector.broadcast %cst_402 : f32 to vector<96x128xf32>
    %886 = arith.maximumf %884, %885 : vector<96x128xf32>
    %887 = arith.truncf %886 : vector<96x128xf32> to vector<96x128xbf16>
    %c0_403 = arith.constant 0 : index
    %c0_404 = arith.constant 0 : index
    %888 = vector.load %arg5[%c0_403, %c0_404] : memref<16x1xf32, #tpu.memory_space<vmem>>, vector<16x1xf32>
    %889 = tpu.concatenate %73, %147 in 1 : vector<96x128xbf16>, vector<96x128xbf16> -> vector<96x256xbf16>
    %890 = tpu.concatenate %147, %221 in 1 : vector<96x128xbf16>, vector<96x128xbf16> -> vector<96x256xbf16>
    %891 = tpu.concatenate %221, %295 in 1 : vector<96x128xbf16>, vector<96x128xbf16> -> vector<96x256xbf16>
    %892 = tpu.concatenate %295, %369 in 1 : vector<96x128xbf16>, vector<96x128xbf16> -> vector<96x256xbf16>
    %893 = tpu.concatenate %369, %443 in 1 : vector<96x128xbf16>, vector<96x128xbf16> -> vector<96x256xbf16>
    %894 = tpu.concatenate %889, %890, %891, %892, %893 in 0 : vector<96x256xbf16>, vector<96x256xbf16>, vector<96x256xbf16>, vector<96x256xbf16>, vector<96x256xbf16> -> vector<480x256xbf16>
    %c0_405 = arith.constant 0 : index
    %c0_406 = arith.constant 0 : index
    %895 = vector.load %arg4[%c0_405, %c0_406] : memref<128x480xbf16, #tpu.memory_space<vmem>>, vector<128x480xbf16>
    %cst_407 = arith.constant dense<0.000000e+00> : vector<128x256xf32>
    %896 = tpu.matmul %895, %894, %cst_407 {dimension_numbers = #tpu.dot_dimension_numbers<[1], [0], [0], [1], [0, 0, 1, 1], [], []>} : vector<128x480xbf16>, vector<480x256xbf16>, vector<128x256xf32> -> vector<128x256xf32>
    %897 = vector.extract_strided_slice %896 {offsets = [0, 0], sizes = [128, 128], strides = [1, 1]} : vector<128x256xf32> to vector<128x128xf32>
    %898 = vector.extract_strided_slice %896 {offsets = [0, 128], sizes = [128, 128], strides = [1, 1]} : vector<128x256xf32> to vector<128x128xf32>
    %899 = arith.maximumf %897, %898 : vector<128x128xf32>
    %900 = vector.extract_strided_slice %899 {offsets = [0, 0], sizes = [16, 128], strides = [1, 1]} : vector<128x128xf32> to vector<16x128xf32>
    %901 = vector.extract_strided_slice %899 {offsets = [16, 0], sizes = [16, 128], strides = [1, 1]} : vector<128x128xf32> to vector<16x128xf32>
    %902 = arith.maximumf %900, %901 : vector<16x128xf32>
    %903 = vector.broadcast %888 : vector<16x1xf32> to vector<16x128xf32>
    %904 = arith.addf %902, %903 : vector<16x128xf32>
    %cst_408 = arith.constant 0.000000e+00 : f32
    %905 = vector.broadcast %cst_408 : f32 to vector<16x128xf32>
    %906 = arith.maximumf %904, %905 : vector<16x128xf32>
    %907 = arith.truncf %906 : vector<16x128xf32> to vector<16x128xbf16>
    %908 = vector.extract_strided_slice %899 {offsets = [32, 0], sizes = [16, 128], strides = [1, 1]} : vector<128x128xf32> to vector<16x128xf32>
    %909 = vector.extract_strided_slice %899 {offsets = [48, 0], sizes = [16, 128], strides = [1, 1]} : vector<128x128xf32> to vector<16x128xf32>
    %910 = arith.maximumf %908, %909 : vector<16x128xf32>
    %911 = vector.broadcast %888 : vector<16x1xf32> to vector<16x128xf32>
    %912 = arith.addf %910, %911 : vector<16x128xf32>
    %cst_409 = arith.constant 0.000000e+00 : f32
    %913 = vector.broadcast %cst_409 : f32 to vector<16x128xf32>
    %914 = arith.maximumf %912, %913 : vector<16x128xf32>
    %915 = arith.truncf %914 : vector<16x128xf32> to vector<16x128xbf16>
    %916 = vector.extract_strided_slice %899 {offsets = [64, 0], sizes = [16, 128], strides = [1, 1]} : vector<128x128xf32> to vector<16x128xf32>
    %917 = vector.extract_strided_slice %899 {offsets = [80, 0], sizes = [16, 128], strides = [1, 1]} : vector<128x128xf32> to vector<16x128xf32>
    %918 = arith.maximumf %916, %917 : vector<16x128xf32>
    %919 = vector.broadcast %888 : vector<16x1xf32> to vector<16x128xf32>
    %920 = arith.addf %918, %919 : vector<16x128xf32>
    %cst_410 = arith.constant 0.000000e+00 : f32
    %921 = vector.broadcast %cst_410 : f32 to vector<16x128xf32>
    %922 = arith.maximumf %920, %921 : vector<16x128xf32>
    %923 = arith.truncf %922 : vector<16x128xf32> to vector<16x128xbf16>
    %924 = vector.extract_strided_slice %899 {offsets = [96, 0], sizes = [16, 128], strides = [1, 1]} : vector<128x128xf32> to vector<16x128xf32>
    %925 = vector.extract_strided_slice %899 {offsets = [112, 0], sizes = [16, 128], strides = [1, 1]} : vector<128x128xf32> to vector<16x128xf32>
    %926 = arith.maximumf %924, %925 : vector<16x128xf32>
    %927 = vector.broadcast %888 : vector<16x1xf32> to vector<16x128xf32>
    %928 = arith.addf %926, %927 : vector<16x128xf32>
    %cst_411 = arith.constant 0.000000e+00 : f32
    %929 = vector.broadcast %cst_411 : f32 to vector<16x128xf32>
    %930 = arith.maximumf %928, %929 : vector<16x128xf32>
    %931 = arith.truncf %930 : vector<16x128xf32> to vector<16x128xbf16>
    %932 = tpu.concatenate %221, %295 in 1 : vector<96x128xbf16>, vector<96x128xbf16> -> vector<96x256xbf16>
    %933 = tpu.concatenate %295, %369 in 1 : vector<96x128xbf16>, vector<96x128xbf16> -> vector<96x256xbf16>
    %934 = tpu.concatenate %369, %443 in 1 : vector<96x128xbf16>, vector<96x128xbf16> -> vector<96x256xbf16>
    %935 = tpu.concatenate %443, %517 in 1 : vector<96x128xbf16>, vector<96x128xbf16> -> vector<96x256xbf16>
    %936 = tpu.concatenate %517, %591 in 1 : vector<96x128xbf16>, vector<96x128xbf16> -> vector<96x256xbf16>
    %937 = tpu.concatenate %932, %933, %934, %935, %936 in 0 : vector<96x256xbf16>, vector<96x256xbf16>, vector<96x256xbf16>, vector<96x256xbf16>, vector<96x256xbf16> -> vector<480x256xbf16>
    %c0_412 = arith.constant 0 : index
    %c0_413 = arith.constant 0 : index
    %938 = vector.load %arg4[%c0_412, %c0_413] : memref<128x480xbf16, #tpu.memory_space<vmem>>, vector<128x480xbf16>
    %cst_414 = arith.constant dense<0.000000e+00> : vector<128x256xf32>
    %939 = tpu.matmul %938, %937, %cst_414 {dimension_numbers = #tpu.dot_dimension_numbers<[1], [0], [0], [1], [0, 0, 1, 1], [], []>} : vector<128x480xbf16>, vector<480x256xbf16>, vector<128x256xf32> -> vector<128x256xf32>
    %940 = vector.extract_strided_slice %939 {offsets = [0, 0], sizes = [128, 128], strides = [1, 1]} : vector<128x256xf32> to vector<128x128xf32>
    %941 = vector.extract_strided_slice %939 {offsets = [0, 128], sizes = [128, 128], strides = [1, 1]} : vector<128x256xf32> to vector<128x128xf32>
    %942 = arith.maximumf %940, %941 : vector<128x128xf32>
    %943 = vector.extract_strided_slice %942 {offsets = [0, 0], sizes = [16, 128], strides = [1, 1]} : vector<128x128xf32> to vector<16x128xf32>
    %944 = vector.extract_strided_slice %942 {offsets = [16, 0], sizes = [16, 128], strides = [1, 1]} : vector<128x128xf32> to vector<16x128xf32>
    %945 = arith.maximumf %943, %944 : vector<16x128xf32>
    %946 = vector.broadcast %888 : vector<16x1xf32> to vector<16x128xf32>
    %947 = arith.addf %945, %946 : vector<16x128xf32>
    %cst_415 = arith.constant 0.000000e+00 : f32
    %948 = vector.broadcast %cst_415 : f32 to vector<16x128xf32>
    %949 = arith.maximumf %947, %948 : vector<16x128xf32>
    %950 = arith.truncf %949 : vector<16x128xf32> to vector<16x128xbf16>
    %951 = vector.extract_strided_slice %942 {offsets = [32, 0], sizes = [16, 128], strides = [1, 1]} : vector<128x128xf32> to vector<16x128xf32>
    %952 = vector.extract_strided_slice %942 {offsets = [48, 0], sizes = [16, 128], strides = [1, 1]} : vector<128x128xf32> to vector<16x128xf32>
    %953 = arith.maximumf %951, %952 : vector<16x128xf32>
    %954 = vector.broadcast %888 : vector<16x1xf32> to vector<16x128xf32>
    %955 = arith.addf %953, %954 : vector<16x128xf32>
    %cst_416 = arith.constant 0.000000e+00 : f32
    %956 = vector.broadcast %cst_416 : f32 to vector<16x128xf32>
    %957 = arith.maximumf %955, %956 : vector<16x128xf32>
    %958 = arith.truncf %957 : vector<16x128xf32> to vector<16x128xbf16>
    %959 = vector.extract_strided_slice %942 {offsets = [64, 0], sizes = [16, 128], strides = [1, 1]} : vector<128x128xf32> to vector<16x128xf32>
    %960 = vector.extract_strided_slice %942 {offsets = [80, 0], sizes = [16, 128], strides = [1, 1]} : vector<128x128xf32> to vector<16x128xf32>
    %961 = arith.maximumf %959, %960 : vector<16x128xf32>
    %962 = vector.broadcast %888 : vector<16x1xf32> to vector<16x128xf32>
    %963 = arith.addf %961, %962 : vector<16x128xf32>
    %cst_417 = arith.constant 0.000000e+00 : f32
    %964 = vector.broadcast %cst_417 : f32 to vector<16x128xf32>
    %965 = arith.maximumf %963, %964 : vector<16x128xf32>
    %966 = arith.truncf %965 : vector<16x128xf32> to vector<16x128xbf16>
    %967 = vector.extract_strided_slice %942 {offsets = [96, 0], sizes = [16, 128], strides = [1, 1]} : vector<128x128xf32> to vector<16x128xf32>
    %968 = vector.extract_strided_slice %942 {offsets = [112, 0], sizes = [16, 128], strides = [1, 1]} : vector<128x128xf32> to vector<16x128xf32>
    %969 = arith.maximumf %967, %968 : vector<16x128xf32>
    %970 = vector.broadcast %888 : vector<16x1xf32> to vector<16x128xf32>
    %971 = arith.addf %969, %970 : vector<16x128xf32>
    %cst_418 = arith.constant 0.000000e+00 : f32
    %972 = vector.broadcast %cst_418 : f32 to vector<16x128xf32>
    %973 = arith.maximumf %971, %972 : vector<16x128xf32>
    %974 = arith.truncf %973 : vector<16x128xf32> to vector<16x128xbf16>
    %975 = tpu.concatenate %369, %443 in 1 : vector<96x128xbf16>, vector<96x128xbf16> -> vector<96x256xbf16>
    %976 = tpu.concatenate %443, %517 in 1 : vector<96x128xbf16>, vector<96x128xbf16> -> vector<96x256xbf16>
    %977 = tpu.concatenate %517, %591 in 1 : vector<96x128xbf16>, vector<96x128xbf16> -> vector<96x256xbf16>
    %978 = tpu.concatenate %591, %665 in 1 : vector<96x128xbf16>, vector<96x128xbf16> -> vector<96x256xbf16>
    %979 = tpu.concatenate %665, %739 in 1 : vector<96x128xbf16>, vector<96x128xbf16> -> vector<96x256xbf16>
    %980 = tpu.concatenate %975, %976, %977, %978, %979 in 0 : vector<96x256xbf16>, vector<96x256xbf16>, vector<96x256xbf16>, vector<96x256xbf16>, vector<96x256xbf16> -> vector<480x256xbf16>
    %c0_419 = arith.constant 0 : index
    %c0_420 = arith.constant 0 : index
    %981 = vector.load %arg4[%c0_419, %c0_420] : memref<128x480xbf16, #tpu.memory_space<vmem>>, vector<128x480xbf16>
    %cst_421 = arith.constant dense<0.000000e+00> : vector<128x256xf32>
    %982 = tpu.matmul %981, %980, %cst_421 {dimension_numbers = #tpu.dot_dimension_numbers<[1], [0], [0], [1], [0, 0, 1, 1], [], []>} : vector<128x480xbf16>, vector<480x256xbf16>, vector<128x256xf32> -> vector<128x256xf32>
    %983 = vector.extract_strided_slice %982 {offsets = [0, 0], sizes = [128, 128], strides = [1, 1]} : vector<128x256xf32> to vector<128x128xf32>
    %984 = vector.extract_strided_slice %982 {offsets = [0, 128], sizes = [128, 128], strides = [1, 1]} : vector<128x256xf32> to vector<128x128xf32>
    %985 = arith.maximumf %983, %984 : vector<128x128xf32>
    %986 = vector.extract_strided_slice %985 {offsets = [0, 0], sizes = [16, 128], strides = [1, 1]} : vector<128x128xf32> to vector<16x128xf32>
    %987 = vector.extract_strided_slice %985 {offsets = [16, 0], sizes = [16, 128], strides = [1, 1]} : vector<128x128xf32> to vector<16x128xf32>
    %988 = arith.maximumf %986, %987 : vector<16x128xf32>
    %989 = vector.broadcast %888 : vector<16x1xf32> to vector<16x128xf32>
    %990 = arith.addf %988, %989 : vector<16x128xf32>
    %cst_422 = arith.constant 0.000000e+00 : f32
    %991 = vector.broadcast %cst_422 : f32 to vector<16x128xf32>
    %992 = arith.maximumf %990, %991 : vector<16x128xf32>
    %993 = arith.truncf %992 : vector<16x128xf32> to vector<16x128xbf16>
    %994 = vector.extract_strided_slice %985 {offsets = [32, 0], sizes = [16, 128], strides = [1, 1]} : vector<128x128xf32> to vector<16x128xf32>
    %995 = vector.extract_strided_slice %985 {offsets = [48, 0], sizes = [16, 128], strides = [1, 1]} : vector<128x128xf32> to vector<16x128xf32>
    %996 = arith.maximumf %994, %995 : vector<16x128xf32>
    %997 = vector.broadcast %888 : vector<16x1xf32> to vector<16x128xf32>
    %998 = arith.addf %996, %997 : vector<16x128xf32>
    %cst_423 = arith.constant 0.000000e+00 : f32
    %999 = vector.broadcast %cst_423 : f32 to vector<16x128xf32>
    %1000 = arith.maximumf %998, %999 : vector<16x128xf32>
    %1001 = arith.truncf %1000 : vector<16x128xf32> to vector<16x128xbf16>
    %1002 = vector.extract_strided_slice %985 {offsets = [64, 0], sizes = [16, 128], strides = [1, 1]} : vector<128x128xf32> to vector<16x128xf32>
    %1003 = vector.extract_strided_slice %985 {offsets = [80, 0], sizes = [16, 128], strides = [1, 1]} : vector<128x128xf32> to vector<16x128xf32>
    %1004 = arith.maximumf %1002, %1003 : vector<16x128xf32>
    %1005 = vector.broadcast %888 : vector<16x1xf32> to vector<16x128xf32>
    %1006 = arith.addf %1004, %1005 : vector<16x128xf32>
    %cst_424 = arith.constant 0.000000e+00 : f32
    %1007 = vector.broadcast %cst_424 : f32 to vector<16x128xf32>
    %1008 = arith.maximumf %1006, %1007 : vector<16x128xf32>
    %1009 = arith.truncf %1008 : vector<16x128xf32> to vector<16x128xbf16>
    %1010 = vector.extract_strided_slice %985 {offsets = [96, 0], sizes = [16, 128], strides = [1, 1]} : vector<128x128xf32> to vector<16x128xf32>
    %1011 = vector.extract_strided_slice %985 {offsets = [112, 0], sizes = [16, 128], strides = [1, 1]} : vector<128x128xf32> to vector<16x128xf32>
    %1012 = arith.maximumf %1010, %1011 : vector<16x128xf32>
    %1013 = vector.broadcast %888 : vector<16x1xf32> to vector<16x128xf32>
    %1014 = arith.addf %1012, %1013 : vector<16x128xf32>
    %cst_425 = arith.constant 0.000000e+00 : f32
    %1015 = vector.broadcast %cst_425 : f32 to vector<16x128xf32>
    %1016 = arith.maximumf %1014, %1015 : vector<16x128xf32>
    %1017 = arith.truncf %1016 : vector<16x128xf32> to vector<16x128xbf16>
    %1018 = tpu.concatenate %517, %591 in 1 : vector<96x128xbf16>, vector<96x128xbf16> -> vector<96x256xbf16>
    %1019 = tpu.concatenate %591, %665 in 1 : vector<96x128xbf16>, vector<96x128xbf16> -> vector<96x256xbf16>
    %1020 = tpu.concatenate %665, %739 in 1 : vector<96x128xbf16>, vector<96x128xbf16> -> vector<96x256xbf16>
    %1021 = tpu.concatenate %739, %813 in 1 : vector<96x128xbf16>, vector<96x128xbf16> -> vector<96x256xbf16>
    %1022 = tpu.concatenate %813, %887 in 1 : vector<96x128xbf16>, vector<96x128xbf16> -> vector<96x256xbf16>
    %1023 = tpu.concatenate %1018, %1019, %1020, %1021, %1022 in 0 : vector<96x256xbf16>, vector<96x256xbf16>, vector<96x256xbf16>, vector<96x256xbf16>, vector<96x256xbf16> -> vector<480x256xbf16>
    %c0_426 = arith.constant 0 : index
    %c0_427 = arith.constant 0 : index
    %1024 = vector.load %arg4[%c0_426, %c0_427] : memref<128x480xbf16, #tpu.memory_space<vmem>>, vector<128x480xbf16>
    %cst_428 = arith.constant dense<0.000000e+00> : vector<128x256xf32>
    %1025 = tpu.matmul %1024, %1023, %cst_428 {dimension_numbers = #tpu.dot_dimension_numbers<[1], [0], [0], [1], [0, 0, 1, 1], [], []>} : vector<128x480xbf16>, vector<480x256xbf16>, vector<128x256xf32> -> vector<128x256xf32>
    %1026 = vector.extract_strided_slice %1025 {offsets = [0, 0], sizes = [128, 128], strides = [1, 1]} : vector<128x256xf32> to vector<128x128xf32>
    %1027 = vector.extract_strided_slice %1025 {offsets = [0, 128], sizes = [128, 128], strides = [1, 1]} : vector<128x256xf32> to vector<128x128xf32>
    %1028 = arith.maximumf %1026, %1027 : vector<128x128xf32>
    %1029 = vector.extract_strided_slice %1028 {offsets = [0, 0], sizes = [16, 128], strides = [1, 1]} : vector<128x128xf32> to vector<16x128xf32>
    %1030 = vector.extract_strided_slice %1028 {offsets = [16, 0], sizes = [16, 128], strides = [1, 1]} : vector<128x128xf32> to vector<16x128xf32>
    %1031 = arith.maximumf %1029, %1030 : vector<16x128xf32>
    %1032 = vector.broadcast %888 : vector<16x1xf32> to vector<16x128xf32>
    %1033 = arith.addf %1031, %1032 : vector<16x128xf32>
    %cst_429 = arith.constant 0.000000e+00 : f32
    %1034 = vector.broadcast %cst_429 : f32 to vector<16x128xf32>
    %1035 = arith.maximumf %1033, %1034 : vector<16x128xf32>
    %1036 = arith.truncf %1035 : vector<16x128xf32> to vector<16x128xbf16>
    %1037 = vector.extract_strided_slice %1028 {offsets = [32, 0], sizes = [16, 128], strides = [1, 1]} : vector<128x128xf32> to vector<16x128xf32>
    %1038 = vector.extract_strided_slice %1028 {offsets = [48, 0], sizes = [16, 128], strides = [1, 1]} : vector<128x128xf32> to vector<16x128xf32>
    %1039 = arith.maximumf %1037, %1038 : vector<16x128xf32>
    %1040 = vector.broadcast %888 : vector<16x1xf32> to vector<16x128xf32>
    %1041 = arith.addf %1039, %1040 : vector<16x128xf32>
    %cst_430 = arith.constant 0.000000e+00 : f32
    %1042 = vector.broadcast %cst_430 : f32 to vector<16x128xf32>
    %1043 = arith.maximumf %1041, %1042 : vector<16x128xf32>
    %1044 = arith.truncf %1043 : vector<16x128xf32> to vector<16x128xbf16>
    %1045 = vector.extract_strided_slice %1028 {offsets = [64, 0], sizes = [16, 128], strides = [1, 1]} : vector<128x128xf32> to vector<16x128xf32>
    %1046 = vector.extract_strided_slice %1028 {offsets = [80, 0], sizes = [16, 128], strides = [1, 1]} : vector<128x128xf32> to vector<16x128xf32>
    %1047 = arith.maximumf %1045, %1046 : vector<16x128xf32>
    %1048 = vector.broadcast %888 : vector<16x1xf32> to vector<16x128xf32>
    %1049 = arith.addf %1047, %1048 : vector<16x128xf32>
    %cst_431 = arith.constant 0.000000e+00 : f32
    %1050 = vector.broadcast %cst_431 : f32 to vector<16x128xf32>
    %1051 = arith.maximumf %1049, %1050 : vector<16x128xf32>
    %1052 = arith.truncf %1051 : vector<16x128xf32> to vector<16x128xbf16>
    %1053 = vector.extract_strided_slice %1028 {offsets = [96, 0], sizes = [16, 128], strides = [1, 1]} : vector<128x128xf32> to vector<16x128xf32>
    %1054 = vector.extract_strided_slice %1028 {offsets = [112, 0], sizes = [16, 128], strides = [1, 1]} : vector<128x128xf32> to vector<16x128xf32>
    %1055 = arith.maximumf %1053, %1054 : vector<16x128xf32>
    %1056 = vector.broadcast %888 : vector<16x1xf32> to vector<16x128xf32>
    %1057 = arith.addf %1055, %1056 : vector<16x128xf32>
    %cst_432 = arith.constant 0.000000e+00 : f32
    %1058 = vector.broadcast %cst_432 : f32 to vector<16x128xf32>
    %1059 = arith.maximumf %1057, %1058 : vector<16x128xf32>
    %1060 = arith.truncf %1059 : vector<16x128xf32> to vector<16x128xbf16>
    %1061 = tpu.concatenate %907, %915, %923, %931, %950, %958, %966, %974, %993, %1001, %1009, %1017, %1036, %1044, %1052, %1060 in 0 : vector<16x128xbf16>, vector<16x128xbf16>, vector<16x128xbf16>, vector<16x128xbf16>, vector<16x128xbf16>, vector<16x128xbf16>, vector<16x128xbf16>, vector<16x128xbf16>, vector<16x128xbf16>, vector<16x128xbf16>, vector<16x128xbf16>, vector<16x128xbf16>, vector<16x128xbf16>, vector<16x128xbf16>, vector<16x128xbf16>, vector<16x128xbf16> -> vector<256x128xbf16>
    %c0_433 = arith.constant 0 : index
    %c0_434 = arith.constant 0 : index
    %1062 = vector.load %arg6[%c0_433, %c0_434] : memref<128x256xbf16, #tpu.memory_space<vmem>>, vector<128x256xbf16>
    %cst_435 = arith.constant dense<0.000000e+00> : vector<128x128xf32>
    %1063 = tpu.matmul %1062, %1061, %cst_435 {dimension_numbers = #tpu.dot_dimension_numbers<[1], [0], [0], [1], [0, 0, 1, 1], [], []>} : vector<128x256xbf16>, vector<256x128xbf16>, vector<128x128xf32> -> vector<128x128xf32>
    %c0_436 = arith.constant 0 : index
    %c0_437 = arith.constant 0 : index
    %1064 = vector.load %arg7[%c0_436, %c0_437] : memref<128x1xf32, #tpu.memory_space<vmem>>, vector<128x1xf32>
    %1065 = vector.broadcast %1064 : vector<128x1xf32> to vector<128x128xf32>
    %1066 = arith.addf %1063, %1065 : vector<128x128xf32>
    %cst_438 = arith.constant 0.000000e+00 : f32
    %1067 = vector.broadcast %cst_438 : f32 to vector<128x128xf32>
    %1068 = arith.maximumf %1066, %1067 : vector<128x128xf32>
    %1069 = arith.truncf %1068 : vector<128x128xf32> to vector<128x128xbf16>
    %c0_439 = arith.constant 0 : index
    %c0_440 = arith.constant 0 : index
    %1070 = vector.load %arg8[%c0_439, %c0_440] : memref<128x128xbf16, #tpu.memory_space<vmem>>, vector<128x128xbf16>
    %cst_441 = arith.constant dense<0.000000e+00> : vector<128x128xf32>
    %1071 = tpu.matmul %1070, %1069, %cst_441 {dimension_numbers = #tpu.dot_dimension_numbers<[1], [0], [0], [1], [0, 0, 1, 1], [], []>} : vector<128x128xbf16>, vector<128x128xbf16>, vector<128x128xf32> -> vector<128x128xf32>
    %c0_442 = arith.constant 0 : index
    %c0_443 = arith.constant 0 : index
    %1072 = vector.load %arg9[%c0_442, %c0_443] : memref<128x1xf32, #tpu.memory_space<vmem>>, vector<128x1xf32>
    %1073 = vector.broadcast %1072 : vector<128x1xf32> to vector<128x128xf32>
    %1074 = arith.addf %1071, %1073 : vector<128x128xf32>
    %cst_444 = arith.constant 0.000000e+00 : f32
    %1075 = vector.broadcast %cst_444 : f32 to vector<128x128xf32>
    %1076 = arith.maximumf %1074, %1075 : vector<128x128xf32>
    %1077 = arith.truncf %1076 : vector<128x128xf32> to vector<128x128xbf16>
    %c0_445 = arith.constant 0 : index
    %c0_446 = arith.constant 0 : index
    %1078 = vector.load %arg10[%c0_445, %c0_446] : memref<16x128xbf16, #tpu.memory_space<vmem>>, vector<16x128xbf16>
    %cst_447 = arith.constant dense<0.000000e+00> : vector<16x128xf32>
    %1079 = tpu.matmul %1078, %1077, %cst_447 {dimension_numbers = #tpu.dot_dimension_numbers<[1], [0], [0], [1], [0, 0, 1, 1], [], []>} : vector<16x128xbf16>, vector<128x128xbf16>, vector<16x128xf32> -> vector<16x128xf32>
    %c0_448 = arith.constant 0 : index
    %c0_449 = arith.constant 0 : index
    %1080 = vector.load %arg11[%c0_448, %c0_449] : memref<16x1xf32, #tpu.memory_space<vmem>>, vector<16x1xf32>
    %1081 = vector.broadcast %1080 : vector<16x1xf32> to vector<16x128xf32>
    %1082 = arith.addf %1079, %1081 : vector<16x128xf32>
    %c0_450 = arith.constant 0 : index
    %c0_451 = arith.constant 0 : index
    %1083 = vector.load %arg12[%c0_450, %c0_451] : memref<16x128xf32, #tpu.memory_space<vmem>>, vector<16x128xf32>
    tpu.vector_store %arg12[%c0_450, %c0_451], %1082 {strides = array<i32>} : memref<16x128xf32, #tpu.memory_space<vmem>>, vector<16x128xf32>,
    return
  }
  func.func @transform_0(%arg0: i32) -> (i32, i32, i32) {
    %c0_i32 = arith.constant 0 : i32
    %c0_i32_0 = arith.constant 0 : i32
    %c0_i32_1 = arith.constant 0 : i32
    return %c0_i32, %c0_i32_0, %arg0 : i32, i32, i32
  }
  func.func @transform_1(%arg0: i32) -> (i32, i32) {
    %c0_i32 = arith.constant 0 : i32
    %c0_i32_0 = arith.constant 0 : i32
    %c0_i32_1 = arith.constant 0 : i32
    return %c0_i32, %c0_i32_0 : i32, i32
  }
  func.func @transform_2(%arg0: i32) -> (i32, i32) {
    %c0_i32 = arith.constant 0 : i32
    %c0_i32_0 = arith.constant 0 : i32
    %c0_i32_1 = arith.constant 0 : i32
    return %c0_i32, %c0_i32_0 : i32, i32
  }
  func.func @transform_3(%arg0: i32) -> (i32, i32) {
    %c0_i32 = arith.constant 0 : i32
    %c0_i32_0 = arith.constant 0 : i32
    %c0_i32_1 = arith.constant 0 : i32
    return %c0_i32, %c0_i32_0 : i32, i32
  }
  func.func @transform_4(%arg0: i32) -> (i32, i32) {
    %c0_i32 = arith.constant 0 : i32
    %c0_i32_0 = arith.constant 0 : i32
    %c0_i32_1 = arith.constant 0 : i32
    return %c0_i32, %c0_i32_0 : i32, i32
  }
  func.func @transform_5(%arg0: i32) -> (i32, i32) {
    %c0_i32 = arith.constant 0 : i32
    %c0_i32_0 = arith.constant 0 : i32
    %c0_i32_1 = arith.constant 0 : i32
    return %c0_i32, %c0_i32_0 : i32, i32
  }
  func.func @transform_6(%arg0: i32) -> (i32, i32) {
    %c0_i32 = arith.constant 0 : i32
    %c0_i32_0 = arith.constant 0 : i32
    %c0_i32_1 = arith.constant 0 : i32
    return %c0_i32, %c0_i32_0 : i32, i32
  }
  func.func @transform_7(%arg0: i32) -> (i32, i32) {
    %c0_i32 = arith.constant 0 : i32
    %c0_i32_0 = arith.constant 0 : i32
    %c0_i32_1 = arith.constant 0 : i32
    return %c0_i32, %c0_i32_0 : i32, i32
  }
  func.func @transform_8(%arg0: i32) -> (i32, i32) {
    %c0_i32 = arith.constant 0 : i32
    %c0_i32_0 = arith.constant 0 : i32
    %c0_i32_1 = arith.constant 0 : i32
    return %c0_i32, %c0_i32_0 : i32, i32
  }
  func.func @transform_9(%arg0: i32) -> (i32, i32) {
    %c0_i32 = arith.constant 0 : i32
    %c0_i32_0 = arith.constant 0 : i32
    %c0_i32_1 = arith.constant 0 : i32
    return %c0_i32, %c0_i32_0 : i32, i32
  }
  func.func @transform_10(%arg0: i32) -> (i32, i32) {
    %c0_i32 = arith.constant 0 : i32
    %c0_i32_0 = arith.constant 0 : i32
    %c0_i32_1 = arith.constant 0 : i32
    return %c0_i32, %c0_i32_0 : i32, i32
  }
  func.func @transform_11(%arg0: i32) -> (i32, i32) {
    %c0_i32 = arith.constant 0 : i32
    %c0_i32_0 = arith.constant 0 : i32
    return %c0_i32, %arg0 : i32, i32
  }
}

</mosaic_0001>

<llo_original>
// kernel: network_forward.1
$region0: #{network_forward.1}
  #allocation0 [shape = 'u32[]', space=smem, size = 0x4, offset = 0x4, fixed_abs, tag = 'smem constant byte address 0x4 - core index']
  #allocation1 [shape = 'u32[144,128]{1,0:T(1,128)}', space=vmem, size = 0x12000, scoped, tag = 'internal scratch']
  %s0 = inlined_call_operand.vmem [shape: bf16[28,32,128], index: 0, kind: input, shape index: {}]
  %s1 = inlined_call_operand.vmem [shape: bf16[192,160], index: 1, kind: input, shape index: {}]
  %s2 = inlined_call_operand.vmem [shape: f32[96,1], index: 2, kind: input, shape index: {}]
  %s3 = inlined_call_operand.vmem [shape: bf16[128,480], index: 3, kind: input, shape index: {}]
  %s4 = inlined_call_operand.vmem [shape: f32[16,1], index: 4, kind: input, shape index: {}]
  %s5 = inlined_call_operand.vmem [shape: bf16[128,256], index: 5, kind: input, shape index: {}]
  %s6 = inlined_call_operand.vmem [shape: f32[128,1], index: 6, kind: input, shape index: {}]
  %s7 = inlined_call_operand.vmem [shape: bf16[128,128], index: 7, kind: input, shape index: {}]
  %s8 = inlined_call_operand.vmem [shape: f32[128,1], index: 8, kind: input, shape index: {}]
  %s9 = inlined_call_operand.vmem [shape: bf16[16,128], index: 9, kind: input, shape index: {}]
  %s10 = inlined_call_operand.vmem [shape: f32[16,1], index: 10, kind: input, shape index: {}]
  %s11 = inlined_call_operand.vmem [shape: f32[16,128], index: 11, kind: output, shape index: {}]
  %s12 = sld [smem:[#allocation0]]
  $region54: #{network_forward.1} parent=0
    _
  %s14 = ssub.s32 1, %s12
  %s15 = scalar_select 0, %s14, %s12
  // Predicated region
  $region2: #{network_forward.1} parent=0 // pred_check
    _
  $region3: #{network_forward.1} parent=0 // pred_check_branch
    %17 = sbr.rel (0) target = $region5
  $region4: #{network_forward.1} parent=0 // pred_region
    _
  $region5: #{network_forward.1} parent=0 // pred_fallthru
    _
  // Predicated region
  $region6: #{network_forward.1} parent=0 // pred_check
    _
  $region7: #{network_forward.1} parent=0 // pred_check_branch
    %19 = sbr.rel (0) target = $region9
  $region8: #{network_forward.1} parent=0 // pred_region
    _
  $region9: #{network_forward.1} parent=0 // pred_fallthru
    _
  // Predicated region
  $region10: #{network_forward.1} parent=0 // pred_check
    _
  $region11: #{network_forward.1} parent=0 // pred_check_branch
    %21 = sbr.rel (0) target = $region13
  $region12: #{network_forward.1} parent=0 // pred_region
    _
  $region13: #{network_forward.1} parent=0 // pred_fallthru
    _
  // Predicated region
  $region14: #{network_forward.1} parent=0 // pred_check
    _
  $region15: #{network_forward.1} parent=0 // pred_check_branch
    %23 = sbr.rel (0) target = $region17
  $region16: #{network_forward.1} parent=0 // pred_region
    _
  $region17: #{network_forward.1} parent=0 // pred_fallthru
    _
  // Predicated region
  $region18: #{network_forward.1} parent=0 // pred_check
    _
  $region19: #{network_forward.1} parent=0 // pred_check_branch
    %25 = sbr.rel (0) target = $region21
  $region20: #{network_forward.1} parent=0 // pred_region
    _
  $region21: #{network_forward.1} parent=0 // pred_fallthru
    _
  // Predicated region
  $region22: #{network_forward.1} parent=0 // pred_check
    _
  $region23: #{network_forward.1} parent=0 // pred_check_branch
    %27 = sbr.rel (0) target = $region25
  $region24: #{network_forward.1} parent=0 // pred_region
    _
  $region25: #{network_forward.1} parent=0 // pred_fallthru
    _
  // Predicated region
  $region26: #{network_forward.1} parent=0 // pred_check
    _
  $region27: #{network_forward.1} parent=0 // pred_check_branch
    %29 = sbr.rel (0) target = $region29
  $region28: #{network_forward.1} parent=0 // pred_region
    _
  $region29: #{network_forward.1} parent=0 // pred_fallthru
    _
  // Predicated region
  $region30: #{network_forward.1} parent=0 // pred_check
    _
  $region31: #{network_forward.1} parent=0 // pred_check_branch
    %31 = sbr.rel (0) target = $region33
  $region32: #{network_forward.1} parent=0 // pred_region
    _
  $region33: #{network_forward.1} parent=0 // pred_fallthru
    _
  // Predicated region
  $region34: #{network_forward.1} parent=0 // pred_check
    _
  $region35: #{network_forward.1} parent=0 // pred_check_branch
    %33 = sbr.rel (0) target = $region37
  $region36: #{network_forward.1} parent=0 // pred_region
    _
  $region37: #{network_forward.1} parent=0 // pred_fallthru
    _
  // Predicated region
  $region38: #{network_forward.1} parent=0 // pred_check
    _
  $region39: #{network_forward.1} parent=0 // pred_check_branch
    %35 = sbr.rel (0) target = $region41
  $region40: #{network_forward.1} parent=0 // pred_region
    _
  $region41: #{network_forward.1} parent=0 // pred_fallthru
    _
  // Predicated region
  $region42: #{network_forward.1} parent=0 // pred_check
    _
  $region43: #{network_forward.1} parent=0 // pred_check_branch
    %37 = sbr.rel (0) target = $region45
  $region44: #{network_forward.1} parent=0 // pred_region
    _
  $region45: #{network_forward.1} parent=0 // pred_fallthru
    _
  %v39 = vld [vmem:[%s0] sm:$0xf]
  %v40 = vld [vmem:[%s0 + $0x4] sm:$0xf]
  %v41 = vld [vmem:[%s0 + $0x8] sm:$0xf]
  %v42 = vld [vmem:[%s0 + $0xc] sm:$0xf]
  %s43 = scalar_lea.vmem %s0, 16
  %v44 = vld [vmem:[%s43] sm:$0xf]
  %v45 = vld [vmem:[%s43 + $0x4] sm:$0xf]
  %v46 = vld [vmem:[%s43 + $0x8] sm:$0xf]
  %v47 = vld [vmem:[%s43 + $0xc] sm:$0xf]
  %v52 = vunpack.c.l.b16 %v39
  %v53 = vunpack.c.l.b16 %v40
  %v54 = vunpack.c.l.b16 %v41
  %v55 = vunpack.c.l.b16 %v42
  %v56 = vpack.c.b16 %v53, %v52
  %v57 = vpack.c.b16 %v55, %v54
  %v64 = vunpack.c.l.b16 %v44
  %v65 = vunpack.c.l.b16 %v45
  %v66 = vunpack.c.l.b16 %v46
  %v67 = vunpack.c.l.b16 %v47
  %v68 = vpack.c.b16 %v65, %v64
  %v69 = vpack.c.b16 %v67, %v66
  %s72 = scalar_lea.vmem %s0, 32
  %v73 = vld [vmem:[%s72] sm:$0xf]
  %v74 = vld [vmem:[%s72 + $0x4] sm:$0xf]
  %v75 = vld [vmem:[%s72 + $0x8] sm:$0xf]
  %v76 = vld [vmem:[%s72 + $0xc] sm:$0xf]
  %v81 = vunpack.c.l.b16 %v73
  %v82 = vunpack.c.l.b16 %v74
  %v83 = vunpack.c.l.b16 %v75
  %v84 = vunpack.c.l.b16 %v76
  %v85 = vpack.c.b16 %v82, %v81
  %v86 = vpack.c.b16 %v84, %v83
  %s89 = scalar_lea.vmem %s0, 48
  %v90 = vld [vmem:[%s89] sm:$0xf]
  %v91 = vld [vmem:[%s89 + $0x4] sm:$0xf]
  %v92 = vld [vmem:[%s89 + $0x8] sm:$0xf]
  %v93 = vld [vmem:[%s89 + $0xc] sm:$0xf]
  %v98 = vunpack.c.l.b16 %v90
  %v99 = vunpack.c.l.b16 %v91
  %v100 = vunpack.c.l.b16 %v92
  %v101 = vunpack.c.l.b16 %v93
  %v102 = vpack.c.b16 %v99, %v98
  %v103 = vpack.c.b16 %v101, %v100
  %s106 = scalar_lea.vmem %s0, 64
  %v107 = vld [vmem:[%s106] sm:$0xf]
  %v108 = vld [vmem:[%s106 + $0x4] sm:$0xf]
  %v109 = vld [vmem:[%s106 + $0x8] sm:$0xf]
  %v110 = vld [vmem:[%s106 + $0xc] sm:$0xf]
  %v115 = vunpack.c.l.b16 %v107
  %v116 = vunpack.c.l.b16 %v108
  %v117 = vunpack.c.l.b16 %v109
  %v118 = vunpack.c.l.b16 %v110
  %v119 = vpack.c.b16 %v116, %v115
  %v120 = vpack.c.b16 %v118, %v117
  %s123 = scalar_lea.vmem %s0, 80
  %v124 = vld [vmem:[%s123] sm:$0xf]
  %v125 = vld [vmem:[%s123 + $0x4] sm:$0xf]
  %v126 = vld [vmem:[%s123 + $0x8] sm:$0xf]
  %v127 = vld [vmem:[%s123 + $0xc] sm:$0xf]
  %v132 = vunpack.c.l.b16 %v124
  %v133 = vunpack.c.l.b16 %v125
  %v134 = vunpack.c.l.b16 %v126
  %v135 = vunpack.c.l.b16 %v127
  %v136 = vpack.c.b16 %v133, %v132
  %v137 = vpack.c.b16 %v135, %v134
  %v140 = vld [vmem:[%s1] sm:$0xff]
  %v141 = vld [vmem:[%s1 + $0x8] sm:$0xff]
  %v142 = vld [vmem:[%s1 + $0x10] sm:$0xff]
  %v143 = vld [vmem:[%s1 + $0x18] sm:$0xff]
  %v144 = vld [vmem:[%s1 + $0x20] sm:$0xff]
  %v145 = vld [vmem:[%s1 + $0x28] sm:$0xff]
  %v146 = vld [vmem:[%s1 + $0x30] sm:$0xff]
  %v147 = vld [vmem:[%s1 + $0x38] sm:$0xff]
  %v148 = vld [vmem:[%s1 + $0x40] sm:$0xff]
  %v149 = vld [vmem:[%s1 + $0x48] sm:$0xff]
  %v150 = vld [vmem:[%s1 + $0x50] sm:$0xff]
  %v151 = vld [vmem:[%s1 + $0x58] sm:$0xff]
  %v152 = vld [vmem:[%s1 + $0x60] sm:$0xff]
  %v153 = vld [vmem:[%s1 + $0x68] sm:$0xff]
  %v154 = vld [vmem:[%s1 + $0x70] sm:$0xff]
  %v155 = vld [vmem:[%s1 + $0x78] sm:$0xff]
  %v156 = vld [vmem:[%s1 + $0x80] sm:$0xff]
  %v157 = vld [vmem:[%s1 + $0x88] sm:$0xff]
  %v158 = vld [vmem:[%s1 + $0x90] sm:$0xff]
  %v159 = vld [vmem:[%s1 + $0x98] sm:$0xff]
  %v160 = vld [vmem:[%s1 + $0xa0] sm:$0xff]
  %v161 = vld [vmem:[%s1 + $0xa8] sm:$0xff]
  %v162 = vld [vmem:[%s1 + $0xb0] sm:$0xff]
  %v163 = vld [vmem:[%s1 + $0xb8] sm:$0xff]
  %v188 = vunpack.c.l.b16 %v140
  %v189 = vunpack.c.h.b16 %v140
  %v190 = vunpack.c.l.b16 %v141
  %v191 = vunpack.c.h.b16 %v141
  %v192 = vunpack.c.l.b16 %v142
  %v193 = vunpack.c.h.b16 %v142
  %v194 = vunpack.c.l.b16 %v143
  %v195 = vunpack.c.h.b16 %v143
  %v196 = vunpack.c.l.b16 %v144
  %v197 = vunpack.c.h.b16 %v144
  %v198 = vunpack.c.l.b16 %v145
  %v199 = vunpack.c.h.b16 %v145
  %v200 = vunpack.c.l.b16 %v146
  %v201 = vunpack.c.h.b16 %v146
  %v202 = vunpack.c.l.b16 %v147
  %v203 = vunpack.c.h.b16 %v147
  %v204 = vunpack.c.l.b16 %v148
  %v205 = vunpack.c.h.b16 %v148
  %v206 = vunpack.c.l.b16 %v149
  %v207 = vunpack.c.h.b16 %v149
  %v208 = vunpack.c.l.b16 %v150
  %v209 = vunpack.c.h.b16 %v150
  %v210 = vunpack.c.l.b16 %v151
  %v211 = vunpack.c.h.b16 %v151
  %v212 = vunpack.c.l.b16 %v152
  %v213 = vunpack.c.h.b16 %v152
  %v214 = vunpack.c.l.b16 %v153
  %v215 = vunpack.c.h.b16 %v153
  %v216 = vunpack.c.l.b16 %v154
  %v217 = vunpack.c.h.b16 %v154
  %v218 = vunpack.c.l.b16 %v155
  %v219 = vunpack.c.h.b16 %v155
  %v220 = vunpack.c.l.b16 %v156
  %v221 = vunpack.c.h.b16 %v156
  %v222 = vunpack.c.l.b16 %v157
  %v223 = vunpack.c.h.b16 %v157
  %v224 = vunpack.c.l.b16 %v158
  %v225 = vunpack.c.h.b16 %v158
  %v226 = vunpack.c.l.b16 %v159
  %v227 = vunpack.c.h.b16 %v159
  %v228 = vunpack.c.l.b16 %v160
  %v229 = vunpack.c.h.b16 %v160
  %v230 = vunpack.c.l.b16 %v161
  %v231 = vunpack.c.h.b16 %v161
  %v232 = vunpack.c.l.b16 %v162
  %v233 = vunpack.c.h.b16 %v162
  %v234 = vunpack.c.l.b16 %v163
  %v235 = vunpack.c.h.b16 %v163
  %v236 = vpack.c.b16 %v190, %v188
  %v237 = vpack.c.b16 %v191, %v189
  %v238 = vpack.c.b16 %v194, %v192
  %v239 = vpack.c.b16 %v195, %v193
  %v240 = vpack.c.b16 %v198, %v196
  %v241 = vpack.c.b16 %v199, %v197
  %v242 = vpack.c.b16 %v202, %v200
  %v243 = vpack.c.b16 %v203, %v201
  %v244 = vpack.c.b16 %v206, %v204
  %v245 = vpack.c.b16 %v207, %v205
  %v246 = vpack.c.b16 %v210, %v208
  %v247 = vpack.c.b16 %v211, %v209
  %v248 = vpack.c.b16 %v214, %v212
  %v249 = vpack.c.b16 %v215, %v213
  %v250 = vpack.c.b16 %v218, %v216
  %v251 = vpack.c.b16 %v219, %v217
  %v252 = vpack.c.b16 %v222, %v220
  %v253 = vpack.c.b16 %v223, %v221
  %v254 = vpack.c.b16 %v226, %v224
  %v255 = vpack.c.b16 %v227, %v225
  %v256 = vpack.c.b16 %v230, %v228
  %v257 = vpack.c.b16 %v231, %v229
  %v258 = vpack.c.b16 %v234, %v232
  %v259 = vpack.c.b16 %v235, %v233
  %vm272 = vcmask 261120
  %v274 = vsel %vm272, %v237, 0
  %v277 = vsel %vm272, %v239, 0
  %v280 = vsel %vm272, %v241, 0
  %v283 = vsel %vm272, %v243, 0
  %v286 = vsel %vm272, %v245, 0
  %v289 = vsel %vm272, %v247, 0
  %v292 = vsel %vm272, %v249, 0
  %v295 = vsel %vm272, %v251, 0
  %v298 = vsel %vm272, %v253, 0
  %v301 = vsel %vm272, %v255, 0
  %v304 = vsel %vm272, %v257, 0
  %v307 = vsel %vm272, %v259, 0
  %309 = vmatprep.subr.bf16.mxu0 %v120
  %310 = vmatpush1.bf16.msra.mxu0 %v103
  %311 = vmatprep.subr.bf16.mxu0 %v119
  %312 = vmatpush1.bf16.msra.mxu0 %v102
  %313 = vmatprep.subr.bf16.mxu0 %v103
  %314 = vmatpush1.bf16.msra.mxu0 %v86
  %315 = vmatprep.subr.bf16.mxu0 %v102
  %316 = vmatpush1.bf16.msra.mxu0 %v85
  %317 = vmatprep.subr.bf16.mxu0 %v86
  %318 = vmatpush1.bf16.msra.mxu0 %v69
  %319 = vmatprep.subr.bf16.mxu0 %v85
  %320 = vmatpush1.bf16.msra.mxu0 %v68
  %321 = vmatprep.subr.bf16.mxu0 %v69
  %322 = vmatpush1.bf16.msra.mxu0 %v57
  %323 = vmatprep.subr.bf16.mxu0 %v68
  %324 = vmatpush1.bf16.msra.mxu0 %v56
  %325 = vmatprep.subr.bf16.mxu0 0
  %326 = vmatpush2.bf16.msra.mxu0 0
  %327 = vmatprep.subr.bf16.mxu0 0
  %328 = vmatpush2.bf16.msra.mxu0 0
  %329 = vmatprep.subr.bf16.mxu0 0
  %330 = vmatpush2.bf16.msra.mxu0 0
  %331 = vmatprep.subr.bf16.mxu0 0
  %332 = vmatpush2.bf16.msra.mxu0 0
  %333 = vmatprep.subr.bf16.mxu0 0
  %334 = vmatpush2.bf16.msra.mxu0 0
  %335 = vmatprep.subr.bf16.mxu0 0
  %336 = vmatpush2.bf16.msra.mxu0 0
  %337 = vmatprep.subr.bf16.mxu0 %v137
  %338 = vmatpush2.bf16.msra.mxu0 %v120
  %339 = vmatprep.subr.bf16.mxu0 %v136
  %340 = vmatpush2.bf16.msra.mxu0 %v119
  %341 = vmatprep.mubr.bf16.mxu0 %v274
  %342 = vmatmul.mubr.bf16.gmra.mxu0 %v236
  %v343 = vpop.f32.mrf.mxu0
  %v344 = vadd.f32 0.0, %v343
  %v345 = vpop.f32.mrf.mxu0
  %v346 = vadd.f32 0.0, %v345
  %v347 = vpop.f32.mrf.mxu0
  %v348 = vadd.f32 0.0, %v347
  %v349 = vpop.f32.mrf.mxu0
  %v350 = vadd.f32 0.0, %v349
  %351 = vmatprep.mubr.bf16.mxu0 %v277
  %352 = vmatmul.mubr.bf16.gmra.mxu0 %v238
  %v353 = vpop.f32.mrf.mxu0
  %v354 = vadd.f32 0.0, %v353
  %v355 = vpop.f32.mrf.mxu0
  %v356 = vadd.f32 0.0, %v355
  %v357 = vpop.f32.mrf.mxu0
  %v358 = vadd.f32 0.0, %v357
  %v359 = vpop.f32.mrf.mxu0
  %v360 = vadd.f32 0.0, %v359
  %361 = vmatprep.mubr.bf16.mxu0 %v280
  %362 = vmatmul.mubr.bf16.gmra.mxu0 %v240
  %v363 = vpop.f32.mrf.mxu0
  %v364 = vadd.f32 0.0, %v363
  %v365 = vpop.f32.mrf.mxu0
  %v366 = vadd.f32 0.0, %v365
  %v367 = vpop.f32.mrf.mxu0
  %v368 = vadd.f32 0.0, %v367
  %v369 = vpop.f32.mrf.mxu0
  %v370 = vadd.f32 0.0, %v369
  %371 = vmatprep.mubr.bf16.mxu0 %v283
  %372 = vmatmul.mubr.bf16.gmra.mxu0 %v242
  %v373 = vpop.f32.mrf.mxu0
  %v374 = vadd.f32 0.0, %v373
  %v375 = vpop.f32.mrf.mxu0
  %v376 = vadd.f32 0.0, %v375
  %v377 = vpop.f32.mrf.mxu0
  %v378 = vadd.f32 0.0, %v377
  %v379 = vpop.f32.mrf.mxu0
  %v380 = vadd.f32 0.0, %v379
  %381 = vmatprep.mubr.bf16.mxu0 %v286
  %382 = vmatmul.mubr.bf16.gmra.mxu0 %v244
  %v383 = vpop.f32.mrf.mxu0
  %v384 = vadd.f32 0.0, %v383
  %v385 = vpop.f32.mrf.mxu0
  %v386 = vadd.f32 0.0, %v385
  %v387 = vpop.f32.mrf.mxu0
  %v388 = vadd.f32 0.0, %v387
  %v389 = vpop.f32.mrf.mxu0
  %v390 = vadd.f32 0.0, %v389
  %391 = vmatprep.mubr.bf16.mxu0 %v289
  %392 = vmatmul.mubr.bf16.gmra.mxu0 %v246
  %v393 = vpop.f32.mrf.mxu0
  %v394 = vadd.f32 0.0, %v393
  %v395 = vpop.f32.mrf.mxu0
  %v396 = vadd.f32 0.0, %v395
  %v397 = vpop.f32.mrf.mxu0
  %v398 = vadd.f32 0.0, %v397
  %v399 = vpop.f32.mrf.mxu0
  %v400 = vadd.f32 0.0, %v399
  %401 = vmatprep.mubr.bf16.mxu0 %v292
  %402 = vmatmul.mubr.bf16.gmra.mxu0 %v248
  %v403 = vpop.f32.mrf.mxu0
  %v404 = vadd.f32 0.0, %v403
  %v405 = vpop.f32.mrf.mxu0
  %v406 = vadd.f32 0.0, %v405
  %v407 = vpop.f32.mrf.mxu0
  %v408 = vadd.f32 0.0, %v407
  %v409 = vpop.f32.mrf.mxu0
  %v410 = vadd.f32 0.0, %v409
  %411 = vmatprep.mubr.bf16.mxu0 %v295
  %412 = vmatmul.mubr.bf16.gmra.mxu0 %v250
  %v413 = vpop.f32.mrf.mxu0
  %v414 = vadd.f32 0.0, %v413
  %v415 = vpop.f32.mrf.mxu0
  %v416 = vadd.f32 0.0, %v415
  %v417 = vpop.f32.mrf.mxu0
  %v418 = vadd.f32 0.0, %v417
  %v419 = vpop.f32.mrf.mxu0
  %v420 = vadd.f32 0.0, %v419
  %421 = vmatprep.mubr.bf16.mxu0 %v298
  %422 = vmatmul.mubr.bf16.gmra.mxu0 %v252
  %v423 = vpop.f32.mrf.mxu0
  %v424 = vadd.f32 0.0, %v423
  %v425 = vpop.f32.mrf.mxu0
  %v426 = vadd.f32 0.0, %v425
  %v427 = vpop.f32.mrf.mxu0
  %v428 = vadd.f32 0.0, %v427
  %v429 = vpop.f32.mrf.mxu0
  %v430 = vadd.f32 0.0, %v429
  %431 = vmatprep.mubr.bf16.mxu0 %v301
  %432 = vmatmul.mubr.bf16.gmra.mxu0 %v254
  %v433 = vpop.f32.mrf.mxu0
  %v434 = vadd.f32 0.0, %v433
  %v435 = vpop.f32.mrf.mxu0
  %v436 = vadd.f32 0.0, %v435
  %v437 = vpop.f32.mrf.mxu0
  %v438 = vadd.f32 0.0, %v437
  %v439 = vpop.f32.mrf.mxu0
  %v440 = vadd.f32 0.0, %v439
  %441 = vmatprep.mubr.bf16.mxu0 %v304
  %442 = vmatmul.mubr.bf16.gmra.mxu0 %v256
  %v443 = vpop.f32.mrf.mxu0
  %v444 = vadd.f32 0.0, %v443
  %v445 = vpop.f32.mrf.mxu0
  %v446 = vadd.f32 0.0, %v445
  %v447 = vpop.f32.mrf.mxu0
  %v448 = vadd.f32 0.0, %v447
  %v449 = vpop.f32.mrf.mxu0
  %v450 = vadd.f32 0.0, %v449
  %451 = vmatprep.mubr.bf16.mxu0 %v307
  %452 = vmatmul.mubr.bf16.gmra.mxu0 %v258
  %v453 = vpop.f32.mrf.mxu0
  %v454 = vadd.f32 0.0, %v453
  %v455 = vpop.f32.mrf.mxu0
  %v456 = vadd.f32 0.0, %v455
  %v457 = vpop.f32.mrf.mxu0
  %v458 = vadd.f32 0.0, %v457
  %v459 = vpop.f32.mrf.mxu0
  %v460 = vadd.f32 0.0, %v459
  %461 = vdwg.mxu0
  %v462 = vmax.f32 %v344, %v346
  %v463 = vmax.f32 %v348, %v350
  %v464 = vmax.f32 %v354, %v356
  %v465 = vmax.f32 %v358, %v360
  %v466 = vmax.f32 %v364, %v366
  %v467 = vmax.f32 %v368, %v370
  %v468 = vmax.f32 %v374, %v376
  %v469 = vmax.f32 %v378, %v380
  %v470 = vmax.f32 %v384, %v386
  %v471 = vmax.f32 %v388, %v390
  %v472 = vmax.f32 %v394, %v396
  %v473 = vmax.f32 %v398, %v400
  %v474 = vmax.f32 %v404, %v406
  %v475 = vmax.f32 %v408, %v410
  %v476 = vmax.f32 %v414, %v416
  %v477 = vmax.f32 %v418, %v420
  %v478 = vmax.f32 %v424, %v426
  %v479 = vmax.f32 %v428, %v430
  %v480 = vmax.f32 %v434, %v436
  %v481 = vmax.f32 %v438, %v440
  %v482 = vmax.f32 %v444, %v446
  %v483 = vmax.f32 %v448, %v450
  %v484 = vmax.f32 %v454, %v456
  %v485 = vmax.f32 %v458, %v460
  %v486 = vmax.f32 %v462, %v463
  %v487 = vmax.f32 %v464, %v465
  %v488 = vmax.f32 %v466, %v467
  %v489 = vmax.f32 %v468, %v469
  %v490 = vmax.f32 %v470, %v471
  %v491 = vmax.f32 %v472, %v473
  %v492 = vmax.f32 %v474, %v475
  %v493 = vmax.f32 %v476, %v477
  %v494 = vmax.f32 %v478, %v479
  %v495 = vmax.f32 %v480, %v481
  %v496 = vmax.f32 %v482, %v483
  %v497 = vmax.f32 %v484, %v485
  %v498 = vld [vmem:[%s2] sm:$0xff]
  %v499 = vld [vmem:[%s2 + $0x8] sm:$0xff]
  %v500 = vld [vmem:[%s2 + $0x10] sm:$0xff]
  %v501 = vld [vmem:[%s2 + $0x18] sm:$0xff]
  %v502 = vld [vmem:[%s2 + $0x20] sm:$0xff]
  %v503 = vld [vmem:[%s2 + $0x28] sm:$0xff]
  %v504 = vld [vmem:[%s2 + $0x30] sm:$0xff]
  %v505 = vld [vmem:[%s2 + $0x38] sm:$0xff]
  %v506 = vld [vmem:[%s2 + $0x40] sm:$0xff]
  %v507 = vld [vmem:[%s2 + $0x48] sm:$0xff]
  %v508 = vld [vmem:[%s2 + $0x50] sm:$0xff]
  %v509 = vld [vmem:[%s2 + $0x58] sm:$0xff]
  %511 = vset.pattern.permute.xlu0 0
  %512 = vperm.xlu0 %511, %v498
  %v513 = vpop.permute.xlu0 %512
  %516 = vset.pattern.permute.xlu0 0
  %517 = vperm.xlu0 %516, %v499
  %v518 = vpop.permute.xlu0 %517
  %521 = vset.pattern.permute.xlu0 0
  %522 = vperm.xlu0 %521, %v500
  %v523 = vpop.permute.xlu0 %522
  %526 = vset.pattern.permute.xlu0 0
  %527 = vperm.xlu0 %526, %v501
  %v528 = vpop.permute.xlu0 %527
  %531 = vset.pattern.permute.xlu0 0
  %532 = vperm.xlu0 %531, %v502
  %v533 = vpop.permute.xlu0 %532
  %536 = vset.pattern.permute.xlu0 0
  %537 = vperm.xlu0 %536, %v503
  %v538 = vpop.permute.xlu0 %537
  %541 = vset.pattern.permute.xlu0 0
  %542 = vperm.xlu0 %541, %v504
  %v543 = vpop.permute.xlu0 %542
  %546 = vset.pattern.permute.xlu0 0
  %547 = vperm.xlu0 %546, %v505
  %v548 = vpop.permute.xlu0 %547
  %551 = vset.pattern.permute.xlu0 0
  %552 = vperm.xlu0 %551, %v506
  %v553 = vpop.permute.xlu0 %552
  %556 = vset.pattern.permute.xlu0 0
  %557 = vperm.xlu0 %556, %v507
  %v558 = vpop.permute.xlu0 %557
  %561 = vset.pattern.permute.xlu0 0
  %562 = vperm.xlu0 %561, %v508
  %v563 = vpop.permute.xlu0 %562
  %566 = vset.pattern.permute.xlu0 0
  %567 = vperm.xlu0 %566, %v509
  %v568 = vpop.permute.xlu0 %567
  %v570 = vadd.f32 %v486, %v513
  %v571 = vadd.f32 %v487, %v518
  %v572 = vadd.f32 %v488, %v523
  %v573 = vadd.f32 %v489, %v528
  %v574 = vadd.f32 %v490, %v533
  %v575 = vadd.f32 %v491, %v538
  %v576 = vadd.f32 %v492, %v543
  %v577 = vadd.f32 %v493, %v548
  %v578 = vadd.f32 %v494, %v553
  %v579 = vadd.f32 %v495, %v558
  %v580 = vadd.f32 %v496, %v563
  %v581 = vadd.f32 %v497, %v568
  %v582 = vmax.f32 %v570, 0.0
  %v583 = vmax.f32 %v571, 0.0
  %v584 = vmax.f32 %v572, 0.0
  %v585 = vmax.f32 %v573, 0.0
  %v586 = vmax.f32 %v574, 0.0
  %v587 = vmax.f32 %v575, 0.0
  %v588 = vmax.f32 %v576, 0.0
  %v589 = vmax.f32 %v577, 0.0
  %v590 = vmax.f32 %v578, 0.0
  %v591 = vmax.f32 %v579, 0.0
  %v592 = vmax.f32 %v580, 0.0
  %v593 = vmax.f32 %v581, 0.0
  %v594 = vpack.c.bf16 %v583, %v582
  %v595 = vpack.c.bf16 %v585, %v584
  %v596 = vpack.c.bf16 %v587, %v586
  %v597 = vpack.c.bf16 %v589, %v588
  %v598 = vpack.c.bf16 %v591, %v590
  %v599 = vpack.c.bf16 %v593, %v592
  %s600 = scalar_lea.vmem %s0, 96
  %v601 = vld [vmem:[%s600] sm:$0xf]
  %v602 = vld [vmem:[%s600 + $0x4] sm:$0xf]
  %v603 = vld [vmem:[%s600 + $0x8] sm:$0xf]
  %v604 = vld [vmem:[%s600 + $0xc] sm:$0xf]
  %v609 = vunpack.c.l.b16 %v601
  %v610 = vunpack.c.l.b16 %v602
  %v611 = vunpack.c.l.b16 %v603
  %v612 = vunpack.c.l.b16 %v604
  %v613 = vpack.c.b16 %v610, %v609
  %v614 = vpack.c.b16 %v612, %v611
  %s617 = scalar_lea.vmem %s0, 112
  %v618 = vld [vmem:[%s617] sm:$0xf]
  %v619 = vld [vmem:[%s617 + $0x4] sm:$0xf]
  %v620 = vld [vmem:[%s617 + $0x8] sm:$0xf]
  %v621 = vld [vmem:[%s617 + $0xc] sm:$0xf]
  %v626 = vunpack.c.l.b16 %v618
  %v627 = vunpack.c.l.b16 %v619
  %v628 = vunpack.c.l.b16 %v620
  %v629 = vunpack.c.l.b16 %v621
  %v630 = vpack.c.b16 %v627, %v626
  %v631 = vpack.c.b16 %v629, %v628
  %634 = vmatprep.subr.bf16.mxu0 %v614
  %635 = vmatpush1.bf16.msra.mxu0 %v137
  %636 = vmatprep.subr.bf16.mxu0 %v613
  %637 = vmatpush1.bf16.msra.mxu0 %v136
  %638 = vmatprep.subr.bf16.mxu0 %v137
  %639 = vmatpush1.bf16.msra.mxu0 %v120
  %640 = vmatprep.subr.bf16.mxu0 %v136
  %641 = vmatpush1.bf16.msra.mxu0 %v119
  %642 = vmatprep.subr.bf16.mxu0 %v120
  %643 = vmatpush1.bf16.msra.mxu0 %v103
  %644 = vmatprep.subr.bf16.mxu0 %v119
  %645 = vmatpush1.bf16.msra.mxu0 %v102
  %646 = vmatprep.subr.bf16.mxu0 %v103
  %647 = vmatpush1.bf16.msra.mxu0 %v86
  %648 = vmatprep.subr.bf16.mxu0 %v102
  %649 = vmatpush1.bf16.msra.mxu0 %v85
  %650 = vmatprep.subr.bf16.mxu0 0
  %651 = vmatpush2.bf16.msra.mxu0 0
  %652 = vmatprep.subr.bf16.mxu0 0
  %653 = vmatpush2.bf16.msra.mxu0 0
  %654 = vmatprep.subr.bf16.mxu0 0
  %655 = vmatpush2.bf16.msra.mxu0 0
  %656 = vmatprep.subr.bf16.mxu0 0
  %657 = vmatpush2.bf16.msra.mxu0 0
  %658 = vmatprep.subr.bf16.mxu0 0
  %659 = vmatpush2.bf16.msra.mxu0 0
  %660 = vmatprep.subr.bf16.mxu0 0
  %661 = vmatpush2.bf16.msra.mxu0 0
  %662 = vmatprep.subr.bf16.mxu0 %v631
  %663 = vmatpush2.bf16.msra.mxu0 %v614
  %664 = vmatprep.subr.bf16.mxu0 %v630
  %665 = vmatpush2.bf16.msra.mxu0 %v613
  %666 = vmatprep.mubr.bf16.mxu0 %v274
  %667 = vmatmul.mubr.bf16.gmra.mxu0 %v236
  %v668 = vpop.f32.mrf.mxu0
  %v669 = vadd.f32 0.0, %v668
  %v670 = vpop.f32.mrf.mxu0
  %v671 = vadd.f32 0.0, %v670
  %v672 = vpop.f32.mrf.mxu0
  %v673 = vadd.f32 0.0, %v672
  %v674 = vpop.f32.mrf.mxu0
  %v675 = vadd.f32 0.0, %v674
  %676 = vmatprep.mubr.bf16.mxu0 %v277
  %677 = vmatmul.mubr.bf16.gmra.mxu0 %v238
  %v678 = vpop.f32.mrf.mxu0
  %v679 = vadd.f32 0.0, %v678
  %v680 = vpop.f32.mrf.mxu0
  %v681 = vadd.f32 0.0, %v680
  %v682 = vpop.f32.mrf.mxu0
  %v683 = vadd.f32 0.0, %v682
  %v684 = vpop.f32.mrf.mxu0
  %v685 = vadd.f32 0.0, %v684
  %686 = vmatprep.mubr.bf16.mxu0 %v280
  %687 = vmatmul.mubr.bf16.gmra.mxu0 %v240
  %v688 = vpop.f32.mrf.mxu0
  %v689 = vadd.f32 0.0, %v688
  %v690 = vpop.f32.mrf.mxu0
  %v691 = vadd.f32 0.0, %v690
  %v692 = vpop.f32.mrf.mxu0
  %v693 = vadd.f32 0.0, %v692
  %v694 = vpop.f32.mrf.mxu0
  %v695 = vadd.f32 0.0, %v694
  %696 = vmatprep.mubr.bf16.mxu0 %v283
  %697 = vmatmul.mubr.bf16.gmra.mxu0 %v242
  %v698 = vpop.f32.mrf.mxu0
  %v699 = vadd.f32 0.0, %v698
  %v700 = vpop.f32.mrf.mxu0
  %v701 = vadd.f32 0.0, %v700
  %v702 = vpop.f32.mrf.mxu0
  %v703 = vadd.f32 0.0, %v702
  %v704 = vpop.f32.mrf.mxu0
  %v705 = vadd.f32 0.0, %v704
  %706 = vmatprep.mubr.bf16.mxu0 %v286
  %707 = vmatmul.mubr.bf16.gmra.mxu0 %v244
  %v708 = vpop.f32.mrf.mxu0
  %v709 = vadd.f32 0.0, %v708
  %v710 = vpop.f32.mrf.mxu0
  %v711 = vadd.f32 0.0, %v710
  %v712 = vpop.f32.mrf.mxu0
  %v713 = vadd.f32 0.0, %v712
  %v714 = vpop.f32.mrf.mxu0
  %v715 = vadd.f32 0.0, %v714
  %716 = vmatprep.mubr.bf16.mxu0 %v289
  %717 = vmatmul.mubr.bf16.gmra.mxu0 %v246
  %v718 = vpop.f32.mrf.mxu0
  %v719 = vadd.f32 0.0, %v718
  %v720 = vpop.f32.mrf.mxu0
  %v721 = vadd.f32 0.0, %v720
  %v722 = vpop.f32.mrf.mxu0
  %v723 = vadd.f32 0.0, %v722
  %v724 = vpop.f32.mrf.mxu0
  %v725 = vadd.f32 0.0, %v724
  %726 = vmatprep.mubr.bf16.mxu0 %v292
  %727 = vmatmul.mubr.bf16.gmra.mxu0 %v248
  %v728 = vpop.f32.mrf.mxu0
  %v729 = vadd.f32 0.0, %v728
  %v730 = vpop.f32.mrf.mxu0
  %v731 = vadd.f32 0.0, %v730
  %v732 = vpop.f32.mrf.mxu0
  %v733 = vadd.f32 0.0, %v732
  %v734 = vpop.f32.mrf.mxu0
  %v735 = vadd.f32 0.0, %v734
  %736 = vmatprep.mubr.bf16.mxu0 %v295
  %737 = vmatmul.mubr.bf16.gmra.mxu0 %v250
  %v738 = vpop.f32.mrf.mxu0
  %v739 = vadd.f32 0.0, %v738
  %v740 = vpop.f32.mrf.mxu0
  %v741 = vadd.f32 0.0, %v740
  %v742 = vpop.f32.mrf.mxu0
  %v743 = vadd.f32 0.0, %v742
  %v744 = vpop.f32.mrf.mxu0
  %v745 = vadd.f32 0.0, %v744
  %746 = vmatprep.mubr.bf16.mxu0 %v298
  %747 = vmatmul.mubr.bf16.gmra.mxu0 %v252
  %v748 = vpop.f32.mrf.mxu0
  %v749 = vadd.f32 0.0, %v748
  %v750 = vpop.f32.mrf.mxu0
  %v751 = vadd.f32 0.0, %v750
  %v752 = vpop.f32.mrf.mxu0
  %v753 = vadd.f32 0.0, %v752
  %v754 = vpop.f32.mrf.mxu0
  %v755 = vadd.f32 0.0, %v754
  %756 = vmatprep.mubr.bf16.mxu0 %v301
  %757 = vmatmul.mubr.bf16.gmra.mxu0 %v254
  %v758 = vpop.f32.mrf.mxu0
  %v759 = vadd.f32 0.0, %v758
  %v760 = vpop.f32.mrf.mxu0
  %v761 = vadd.f32 0.0, %v760
  %v762 = vpop.f32.mrf.mxu0
  %v763 = vadd.f32 0.0, %v762
  %v764 = vpop.f32.mrf.mxu0
  %v765 = vadd.f32 0.0, %v764
  %766 = vmatprep.mubr.bf16.mxu0 %v304
  %767 = vmatmul.mubr.bf16.gmra.mxu0 %v256
  %v768 = vpop.f32.mrf.mxu0
  %v769 = vadd.f32 0.0, %v768
  %v770 = vpop.f32.mrf.mxu0
  %v771 = vadd.f32 0.0, %v770
  %v772 = vpop.f32.mrf.mxu0
  %v773 = vadd.f32 0.0, %v772
  %v774 = vpop.f32.mrf.mxu0
  %v775 = vadd.f32 0.0, %v774
  %776 = vmatprep.mubr.bf16.mxu0 %v307
  %777 = vmatmul.mubr.bf16.gmra.mxu0 %v258
  %v778 = vpop.f32.mrf.mxu0
  %v779 = vadd.f32 0.0, %v778
  %v780 = vpop.f32.mrf.mxu0
  %v781 = vadd.f32 0.0, %v780
  %v782 = vpop.f32.mrf.mxu0
  %v783 = vadd.f32 0.0, %v782
  %v784 = vpop.f32.mrf.mxu0
  %v785 = vadd.f32 0.0, %v784
  %786 = vdwg.mxu0
  %v787 = vmax.f32 %v669, %v671
  %v788 = vmax.f32 %v673, %v675
  %v789 = vmax.f32 %v679, %v681
  %v790 = vmax.f32 %v683, %v685
  %v791 = vmax.f32 %v689, %v691
  %v792 = vmax.f32 %v693, %v695
  %v793 = vmax.f32 %v699, %v701
  %v794 = vmax.f32 %v703, %v705
  %v795 = vmax.f32 %v709, %v711
  %v796 = vmax.f32 %v713, %v715
  %v797 = vmax.f32 %v719, %v721
  %v798 = vmax.f32 %v723, %v725
  %v799 = vmax.f32 %v729, %v731
  %v800 = vmax.f32 %v733, %v735
  %v801 = vmax.f32 %v739, %v741
  %v802 = vmax.f32 %v743, %v745
  %v803 = vmax.f32 %v749, %v751
  %v804 = vmax.f32 %v753, %v755
  %v805 = vmax.f32 %v759, %v761
  %v806 = vmax.f32 %v763, %v765
  %v807 = vmax.f32 %v769, %v771
  %v808 = vmax.f32 %v773, %v775
  %v809 = vmax.f32 %v779, %v781
  %v810 = vmax.f32 %v783, %v785
  %v811 = vmax.f32 %v787, %v788
  %v812 = vmax.f32 %v789, %v790
  %v813 = vmax.f32 %v791, %v792
  %v814 = vmax.f32 %v793, %v794
  %v815 = vmax.f32 %v795, %v796
  %v816 = vmax.f32 %v797, %v798
  %v817 = vmax.f32 %v799, %v800
  %v818 = vmax.f32 %v801, %v802
  %v819 = vmax.f32 %v803, %v804
  %v820 = vmax.f32 %v805, %v806
  %v821 = vmax.f32 %v807, %v808
  %v822 = vmax.f32 %v809, %v810
  %v823 = vadd.f32 %v811, %v513
  %v824 = vadd.f32 %v812, %v518
  %v825 = vadd.f32 %v813, %v523
  %v826 = vadd.f32 %v814, %v528
  %v827 = vadd.f32 %v815, %v533
  %v828 = vadd.f32 %v816, %v538
  %v829 = vadd.f32 %v817, %v543
  %v830 = vadd.f32 %v818, %v548
  %v831 = vadd.f32 %v819, %v553
  %v832 = vadd.f32 %v820, %v558
  %v833 = vadd.f32 %v821, %v563
  %v834 = vadd.f32 %v822, %v568
  %v835 = vmax.f32 %v823, 0.0
  %v836 = vmax.f32 %v824, 0.0
  %v837 = vmax.f32 %v825, 0.0
  %v838 = vmax.f32 %v826, 0.0
  %v839 = vmax.f32 %v827, 0.0
  %v840 = vmax.f32 %v828, 0.0
  %v841 = vmax.f32 %v829, 0.0
  %v842 = vmax.f32 %v830, 0.0
  %v843 = vmax.f32 %v831, 0.0
  %v844 = vmax.f32 %v832, 0.0
  %v845 = vmax.f32 %v833, 0.0
  %v846 = vmax.f32 %v834, 0.0
  %v847 = vpack.c.bf16 %v836, %v835
  %v848 = vpack.c.bf16 %v838, %v837
  %v849 = vpack.c.bf16 %v840, %v839
  %v850 = vpack.c.bf16 %v842, %v841
  %v851 = vpack.c.bf16 %v844, %v843
  %v852 = vpack.c.bf16 %v846, %v845
  %s853 = scalar_lea.vmem %s0, 128
  %v854 = vld [vmem:[%s853] sm:$0xf]
  %v855 = vld [vmem:[%s853 + $0x4] sm:$0xf]
  %v856 = vld [vmem:[%s853 + $0x8] sm:$0xf]
  %v857 = vld [vmem:[%s853 + $0xc] sm:$0xf]
  %v862 = vunpack.c.l.b16 %v854
  %v863 = vunpack.c.l.b16 %v855
  %v864 = vunpack.c.l.b16 %v856
  %v865 = vunpack.c.l.b16 %v857
  %v866 = vpack.c.b16 %v863, %v862
  %v867 = vpack.c.b16 %v865, %v864
  %s870 = scalar_lea.vmem %s0, 144
  %v871 = vld [vmem:[%s870] sm:$0xf]
  %v872 = vld [vmem:[%s870 + $0x4] sm:$0xf]
  %v873 = vld [vmem:[%s870 + $0x8] sm:$0xf]
  %v874 = vld [vmem:[%s870 + $0xc] sm:$0xf]
  %v879 = vunpack.c.l.b16 %v871
  %v880 = vunpack.c.l.b16 %v872
  %v881 = vunpack.c.l.b16 %v873
  %v882 = vunpack.c.l.b16 %v874
  %v883 = vpack.c.b16 %v880, %v879
  %v884 = vpack.c.b16 %v882, %v881
  %887 = vmatprep.subr.bf16.mxu0 %v867
  %888 = vmatpush1.bf16.msra.mxu0 %v631
  %889 = vmatprep.subr.bf16.mxu0 %v866
  %890 = vmatpush1.bf16.msra.mxu0 %v630
  %891 = vmatprep.subr.bf16.mxu0 %v631
  %892 = vmatpush1.bf16.msra.mxu0 %v614
  %893 = vmatprep.subr.bf16.mxu0 %v630
  %894 = vmatpush1.bf16.msra.mxu0 %v613
  %895 = vmatprep.subr.bf16.mxu0 %v614
  %896 = vmatpush1.bf16.msra.mxu0 %v137
  %897 = vmatprep.subr.bf16.mxu0 %v613
  %898 = vmatpush1.bf16.msra.mxu0 %v136
  %899 = vmatprep.subr.bf16.mxu0 %v137
  %900 = vmatpush1.bf16.msra.mxu0 %v120
  %901 = vmatprep.subr.bf16.mxu0 %v136
  %902 = vmatpush1.bf16.msra.mxu0 %v119
  %903 = vmatprep.subr.bf16.mxu0 0
  %904 = vmatpush2.bf16.msra.mxu0 0
  %905 = vmatprep.subr.bf16.mxu0 0
  %906 = vmatpush2.bf16.msra.mxu0 0
  %907 = vmatprep.subr.bf16.mxu0 0
  %908 = vmatpush2.bf16.msra.mxu0 0
  %909 = vmatprep.subr.bf16.mxu0 0
  %910 = vmatpush2.bf16.msra.mxu0 0
  %911 = vmatprep.subr.bf16.mxu0 0
  %912 = vmatpush2.bf16.msra.mxu0 0
  %913 = vmatprep.subr.bf16.mxu0 0
  %914 = vmatpush2.bf16.msra.mxu0 0
  %915 = vmatprep.subr.bf16.mxu0 %v884
  %916 = vmatpush2.bf16.msra.mxu0 %v867
  %917 = vmatprep.subr.bf16.mxu0 %v883
  %918 = vmatpush2.bf16.msra.mxu0 %v866
  %919 = vmatprep.mubr.bf16.mxu0 %v274
  %920 = vmatmul.mubr.bf16.gmra.mxu0 %v236
  %v921 = vpop.f32.mrf.mxu0
  %v922 = vadd.f32 0.0, %v921
  %v923 = vpop.f32.mrf.mxu0
  %v924 = vadd.f32 0.0, %v923
  %v925 = vpop.f32.mrf.mxu0
  %v926 = vadd.f32 0.0, %v925
  %v927 = vpop.f32.mrf.mxu0
  %v928 = vadd.f32 0.0, %v927
  %929 = vmatprep.mubr.bf16.mxu0 %v277
  %930 = vmatmul.mubr.bf16.gmra.mxu0 %v238
  %v931 = vpop.f32.mrf.mxu0
  %v932 = vadd.f32 0.0, %v931
  %v933 = vpop.f32.mrf.mxu0
  %v934 = vadd.f32 0.0, %v933
  %v935 = vpop.f32.mrf.mxu0
  %v936 = vadd.f32 0.0, %v935
  %v937 = vpop.f32.mrf.mxu0
  %v938 = vadd.f32 0.0, %v937
  %939 = vmatprep.mubr.bf16.mxu0 %v280
  %940 = vmatmul.mubr.bf16.gmra.mxu0 %v240
  %v941 = vpop.f32.mrf.mxu0
  %v942 = vadd.f32 0.0, %v941
  %v943 = vpop.f32.mrf.mxu0
  %v944 = vadd.f32 0.0, %v943
  %v945 = vpop.f32.mrf.mxu0
  %v946 = vadd.f32 0.0, %v945
  %v947 = vpop.f32.mrf.mxu0
  %v948 = vadd.f32 0.0, %v947
  %949 = vmatprep.mubr.bf16.mxu0 %v283
  %950 = vmatmul.mubr.bf16.gmra.mxu0 %v242
  %v951 = vpop.f32.mrf.mxu0
  %v952 = vadd.f32 0.0, %v951
  %v953 = vpop.f32.mrf.mxu0
  %v954 = vadd.f32 0.0, %v953
  %v955 = vpop.f32.mrf.mxu0
  %v956 = vadd.f32 0.0, %v955
  %v957 = vpop.f32.mrf.mxu0
  %v958 = vadd.f32 0.0, %v957
  %959 = vmatprep.mubr.bf16.mxu0 %v286
  %960 = vmatmul.mubr.bf16.gmra.mxu0 %v244
  %v961 = vpop.f32.mrf.mxu0
  %v962 = vadd.f32 0.0, %v961
  %v963 = vpop.f32.mrf.mxu0
  %v964 = vadd.f32 0.0, %v963
  %v965 = vpop.f32.mrf.mxu0
  %v966 = vadd.f32 0.0, %v965
  %v967 = vpop.f32.mrf.mxu0
  %v968 = vadd.f32 0.0, %v967
  %969 = vmatprep.mubr.bf16.mxu0 %v289
  %970 = vmatmul.mubr.bf16.gmra.mxu0 %v246
  %v971 = vpop.f32.mrf.mxu0
  %v972 = vadd.f32 0.0, %v971
  %v973 = vpop.f32.mrf.mxu0
  %v974 = vadd.f32 0.0, %v973
  %v975 = vpop.f32.mrf.mxu0
  %v976 = vadd.f32 0.0, %v975
  %v977 = vpop.f32.mrf.mxu0
  %v978 = vadd.f32 0.0, %v977
  %979 = vmatprep.mubr.bf16.mxu0 %v292
  %980 = vmatmul.mubr.bf16.gmra.mxu0 %v248
  %v981 = vpop.f32.mrf.mxu0
  %v982 = vadd.f32 0.0, %v981
  %v983 = vpop.f32.mrf.mxu0
  %v984 = vadd.f32 0.0, %v983
  %v985 = vpop.f32.mrf.mxu0
  %v986 = vadd.f32 0.0, %v985
  %v987 = vpop.f32.mrf.mxu0
  %v988 = vadd.f32 0.0, %v987
  %989 = vmatprep.mubr.bf16.mxu0 %v295
  %990 = vmatmul.mubr.bf16.gmra.mxu0 %v250
  %v991 = vpop.f32.mrf.mxu0
  %v992 = vadd.f32 0.0, %v991
  %v993 = vpop.f32.mrf.mxu0
  %v994 = vadd.f32 0.0, %v993
  %v995 = vpop.f32.mrf.mxu0
  %v996 = vadd.f32 0.0, %v995
  %v997 = vpop.f32.mrf.mxu0
  %v998 = vadd.f32 0.0, %v997
  %999 = vmatprep.mubr.bf16.mxu0 %v298
  %1000 = vmatmul.mubr.bf16.gmra.mxu0 %v252
  %v1001 = vpop.f32.mrf.mxu0
  %v1002 = vadd.f32 0.0, %v1001
  %v1003 = vpop.f32.mrf.mxu0
  %v1004 = vadd.f32 0.0, %v1003
  %v1005 = vpop.f32.mrf.mxu0
  %v1006 = vadd.f32 0.0, %v1005
  %v1007 = vpop.f32.mrf.mxu0
  %v1008 = vadd.f32 0.0, %v1007
  %1009 = vmatprep.mubr.bf16.mxu0 %v301
  %1010 = vmatmul.mubr.bf16.gmra.mxu0 %v254
  %v1011 = vpop.f32.mrf.mxu0
  %v1012 = vadd.f32 0.0, %v1011
  %v1013 = vpop.f32.mrf.mxu0
  %v1014 = vadd.f32 0.0, %v1013
  %v1015 = vpop.f32.mrf.mxu0
  %v1016 = vadd.f32 0.0, %v1015
  %v1017 = vpop.f32.mrf.mxu0
  %v1018 = vadd.f32 0.0, %v1017
  %1019 = vmatprep.mubr.bf16.mxu0 %v304
  %1020 = vmatmul.mubr.bf16.gmra.mxu0 %v256
  %v1021 = vpop.f32.mrf.mxu0
  %v1022 = vadd.f32 0.0, %v1021
  %v1023 = vpop.f32.mrf.mxu0
  %v1024 = vadd.f32 0.0, %v1023
  %v1025 = vpop.f32.mrf.mxu0
  %v1026 = vadd.f32 0.0, %v1025
  %v1027 = vpop.f32.mrf.mxu0
  %v1028 = vadd.f32 0.0, %v1027
  %1029 = vmatprep.mubr.bf16.mxu0 %v307
  %1030 = vmatmul.mubr.bf16.gmra.mxu0 %v258
  %v1031 = vpop.f32.mrf.mxu0
  %v1032 = vadd.f32 0.0, %v1031
  %v1033 = vpop.f32.mrf.mxu0
  %v1034 = vadd.f32 0.0, %v1033
  %v1035 = vpop.f32.mrf.mxu0
  %v1036 = vadd.f32 0.0, %v1035
  %v1037 = vpop.f32.mrf.mxu0
  %v1038 = vadd.f32 0.0, %v1037
  %1039 = vdwg.mxu0
  %v1040 = vmax.f32 %v922, %v924
  %v1041 = vmax.f32 %v926, %v928
  %v1042 = vmax.f32 %v932, %v934
  %v1043 = vmax.f32 %v936, %v938
  %v1044 = vmax.f32 %v942, %v944
  %v1045 = vmax.f32 %v946, %v948
  %v1046 = vmax.f32 %v952, %v954
  %v1047 = vmax.f32 %v956, %v958
  %v1048 = vmax.f32 %v962, %v964
  %v1049 = vmax.f32 %v966, %v968
  %v1050 = vmax.f32 %v972, %v974
  %v1051 = vmax.f32 %v976, %v978
  %v1052 = vmax.f32 %v982, %v984
  %v1053 = vmax.f32 %v986, %v988
  %v1054 = vmax.f32 %v992, %v994
  %v1055 = vmax.f32 %v996, %v998
  %v1056 = vmax.f32 %v1002, %v1004
  %v1057 = vmax.f32 %v1006, %v1008
  %v1058 = vmax.f32 %v1012, %v1014
  %v1059 = vmax.f32 %v1016, %v1018
  %v1060 = vmax.f32 %v1022, %v1024
  %v1061 = vmax.f32 %v1026, %v1028
  %v1062 = vmax.f32 %v1032, %v1034
  %v1063 = vmax.f32 %v1036, %v1038
  %v1064 = vmax.f32 %v1040, %v1041
  %v1065 = vmax.f32 %v1042, %v1043
  %v1066 = vmax.f32 %v1044, %v1045
  %v1067 = vmax.f32 %v1046, %v1047
  %v1068 = vmax.f32 %v1048, %v1049
  %v1069 = vmax.f32 %v1050, %v1051
  %v1070 = vmax.f32 %v1052, %v1053
  %v1071 = vmax.f32 %v1054, %v1055
  %v1072 = vmax.f32 %v1056, %v1057
  %v1073 = vmax.f32 %v1058, %v1059
  %v1074 = vmax.f32 %v1060, %v1061
  %v1075 = vmax.f32 %v1062, %v1063
  %v1076 = vadd.f32 %v1064, %v513
  %v1077 = vadd.f32 %v1065, %v518
  %v1078 = vadd.f32 %v1066, %v523
  %v1079 = vadd.f32 %v1067, %v528
  %v1080 = vadd.f32 %v1068, %v533
  %v1081 = vadd.f32 %v1069, %v538
  %v1082 = vadd.f32 %v1070, %v543
  %v1083 = vadd.f32 %v1071, %v548
  %v1084 = vadd.f32 %v1072, %v553
  %v1085 = vadd.f32 %v1073, %v558
  %v1086 = vadd.f32 %v1074, %v563
  %v1087 = vadd.f32 %v1075, %v568
  %v1088 = vmax.f32 %v1076, 0.0
  %v1089 = vmax.f32 %v1077, 0.0
  %v1090 = vmax.f32 %v1078, 0.0
  %v1091 = vmax.f32 %v1079, 0.0
  %v1092 = vmax.f32 %v1080, 0.0
  %v1093 = vmax.f32 %v1081, 0.0
  %v1094 = vmax.f32 %v1082, 0.0
  %v1095 = vmax.f32 %v1083, 0.0
  %v1096 = vmax.f32 %v1084, 0.0
  %v1097 = vmax.f32 %v1085, 0.0
  %v1098 = vmax.f32 %v1086, 0.0
  %v1099 = vmax.f32 %v1087, 0.0
  %v1100 = vpack.c.bf16 %v1089, %v1088
  %v1101 = vpack.c.bf16 %v1091, %v1090
  %v1102 = vpack.c.bf16 %v1093, %v1092
  %v1103 = vpack.c.bf16 %v1095, %v1094
  %v1104 = vpack.c.bf16 %v1097, %v1096
  %v1105 = vpack.c.bf16 %v1099, %v1098
  %s1106 = scalar_lea.vmem %s0, 160
  %v1107 = vld [vmem:[%s1106] sm:$0xf]
  %v1108 = vld [vmem:[%s1106 + $0x4] sm:$0xf]
  %v1109 = vld [vmem:[%s1106 + $0x8] sm:$0xf]
  %v1110 = vld [vmem:[%s1106 + $0xc] sm:$0xf]
  %v1115 = vunpack.c.l.b16 %v1107
  %v1116 = vunpack.c.l.b16 %v1108
  %v1117 = vunpack.c.l.b16 %v1109
  %v1118 = vunpack.c.l.b16 %v1110
  %v1119 = vpack.c.b16 %v1116, %v1115
  %v1120 = vpack.c.b16 %v1118, %v1117
  %s1123 = scalar_lea.vmem %s0, 176
  %v1124 = vld [vmem:[%s1123] sm:$0xf]
  %v1125 = vld [vmem:[%s1123 + $0x4] sm:$0xf]
  %v1126 = vld [vmem:[%s1123 + $0x8] sm:$0xf]
  %v1127 = vld [vmem:[%s1123 + $0xc] sm:$0xf]
  %v1132 = vunpack.c.l.b16 %v1124
  %v1133 = vunpack.c.l.b16 %v1125
  %v1134 = vunpack.c.l.b16 %v1126
  %v1135 = vunpack.c.l.b16 %v1127
  %v1136 = vpack.c.b16 %v1133, %v1132
  %v1137 = vpack.c.b16 %v1135, %v1134
  %1140 = vmatprep.subr.bf16.mxu0 %v1120
  %1141 = vmatpush1.bf16.msra.mxu0 %v884
  %1142 = vmatprep.subr.bf16.mxu0 %v1119
  %1143 = vmatpush1.bf16.msra.mxu0 %v883
  %1144 = vmatprep.subr.bf16.mxu0 %v884
  %1145 = vmatpush1.bf16.msra.mxu0 %v867
  %1146 = vmatprep.subr.bf16.mxu0 %v883
  %1147 = vmatpush1.bf16.msra.mxu0 %v866
  %1148 = vmatprep.subr.bf16.mxu0 %v867
  %1149 = vmatpush1.bf16.msra.mxu0 %v631
  %1150 = vmatprep.subr.bf16.mxu0 %v866
  %1151 = vmatpush1.bf16.msra.mxu0 %v630
  %1152 = vmatprep.subr.bf16.mxu0 %v631
  %1153 = vmatpush1.bf16.msra.mxu0 %v614
  %1154 = vmatprep.subr.bf16.mxu0 %v630
  %1155 = vmatpush1.bf16.msra.mxu0 %v613
  %1156 = vmatprep.subr.bf16.mxu0 0
  %1157 = vmatpush2.bf16.msra.mxu0 0
  %1158 = vmatprep.subr.bf16.mxu0 0
  %1159 = vmatpush2.bf16.msra.mxu0 0
  %1160 = vmatprep.subr.bf16.mxu0 0
  %1161 = vmatpush2.bf16.msra.mxu0 0
  %1162 = vmatprep.subr.bf16.mxu0 0
  %1163 = vmatpush2.bf16.msra.mxu0 0
  %1164 = vmatprep.subr.bf16.mxu0 0
  %1165 = vmatpush2.bf16.msra.mxu0 0
  %1166 = vmatprep.subr.bf16.mxu0 0
  %1167 = vmatpush2.bf16.msra.mxu0 0
  %1168 = vmatprep.subr.bf16.mxu0 %v1137
  %1169 = vmatpush2.bf16.msra.mxu0 %v1120
  %1170 = vmatprep.subr.bf16.mxu0 %v1136
  %1171 = vmatpush2.bf16.msra.mxu0 %v1119
  %1172 = vmatprep.mubr.bf16.mxu0 %v274
  %1173 = vmatmul.mubr.bf16.gmra.mxu0 %v236
  %v1174 = vpop.f32.mrf.mxu0
  %v1175 = vadd.f32 0.0, %v1174
  %v1176 = vpop.f32.mrf.mxu0
  %v1177 = vadd.f32 0.0, %v1176
  %v1178 = vpop.f32.mrf.mxu0
  %v1179 = vadd.f32 0.0, %v1178
  %v1180 = vpop.f32.mrf.mxu0
  %v1181 = vadd.f32 0.0, %v1180
  %1182 = vmatprep.mubr.bf16.mxu0 %v277
  %1183 = vmatmul.mubr.bf16.gmra.mxu0 %v238
  %v1184 = vpop.f32.mrf.mxu0
  %v1185 = vadd.f32 0.0, %v1184
  %v1186 = vpop.f32.mrf.mxu0
  %v1187 = vadd.f32 0.0, %v1186
  %v1188 = vpop.f32.mrf.mxu0
  %v1189 = vadd.f32 0.0, %v1188
  %v1190 = vpop.f32.mrf.mxu0
  %v1191 = vadd.f32 0.0, %v1190
  %1192 = vmatprep.mubr.bf16.mxu0 %v280
  %1193 = vmatmul.mubr.bf16.gmra.mxu0 %v240
  %v1194 = vpop.f32.mrf.mxu0
  %v1195 = vadd.f32 0.0, %v1194
  %v1196 = vpop.f32.mrf.mxu0
  %v1197 = vadd.f32 0.0, %v1196
  %v1198 = vpop.f32.mrf.mxu0
  %v1199 = vadd.f32 0.0, %v1198
  %v1200 = vpop.f32.mrf.mxu0
  %v1201 = vadd.f32 0.0, %v1200
  %1202 = vmatprep.mubr.bf16.mxu0 %v283
  %1203 = vmatmul.mubr.bf16.gmra.mxu0 %v242
  %v1204 = vpop.f32.mrf.mxu0
  %v1205 = vadd.f32 0.0, %v1204
  %v1206 = vpop.f32.mrf.mxu0
  %v1207 = vadd.f32 0.0, %v1206
  %v1208 = vpop.f32.mrf.mxu0
  %v1209 = vadd.f32 0.0, %v1208
  %v1210 = vpop.f32.mrf.mxu0
  %v1211 = vadd.f32 0.0, %v1210
  %1212 = vmatprep.mubr.bf16.mxu0 %v286
  %1213 = vmatmul.mubr.bf16.gmra.mxu0 %v244
  %v1214 = vpop.f32.mrf.mxu0
  %v1215 = vadd.f32 0.0, %v1214
  %v1216 = vpop.f32.mrf.mxu0
  %v1217 = vadd.f32 0.0, %v1216
  %v1218 = vpop.f32.mrf.mxu0
  %v1219 = vadd.f32 0.0, %v1218
  %v1220 = vpop.f32.mrf.mxu0
  %v1221 = vadd.f32 0.0, %v1220
  %1222 = vmatprep.mubr.bf16.mxu0 %v289
  %1223 = vmatmul.mubr.bf16.gmra.mxu0 %v246
  %v1224 = vpop.f32.mrf.mxu0
  %v1225 = vadd.f32 0.0, %v1224
  %v1226 = vpop.f32.mrf.mxu0
  %v1227 = vadd.f32 0.0, %v1226
  %v1228 = vpop.f32.mrf.mxu0
  %v1229 = vadd.f32 0.0, %v1228
  %v1230 = vpop.f32.mrf.mxu0
  %v1231 = vadd.f32 0.0, %v1230
  %1232 = vmatprep.mubr.bf16.mxu0 %v292
  %1233 = vmatmul.mubr.bf16.gmra.mxu0 %v248
  %v1234 = vpop.f32.mrf.mxu0
  %v1235 = vadd.f32 0.0, %v1234
  %v1236 = vpop.f32.mrf.mxu0
  %v1237 = vadd.f32 0.0, %v1236
  %v1238 = vpop.f32.mrf.mxu0
  %v1239 = vadd.f32 0.0, %v1238
  %v1240 = vpop.f32.mrf.mxu0
  %v1241 = vadd.f32 0.0, %v1240
  %1242 = vmatprep.mubr.bf16.mxu0 %v295
  %1243 = vmatmul.mubr.bf16.gmra.mxu0 %v250
  %v1244 = vpop.f32.mrf.mxu0
  %v1245 = vadd.f32 0.0, %v1244
  %v1246 = vpop.f32.mrf.mxu0
  %v1247 = vadd.f32 0.0, %v1246
  %v1248 = vpop.f32.mrf.mxu0
  %v1249 = vadd.f32 0.0, %v1248
  %v1250 = vpop.f32.mrf.mxu0
  %v1251 = vadd.f32 0.0, %v1250
  %1252 = vmatprep.mubr.bf16.mxu0 %v298
  %1253 = vmatmul.mubr.bf16.gmra.mxu0 %v252
  %v1254 = vpop.f32.mrf.mxu0
  %v1255 = vadd.f32 0.0, %v1254
  %v1256 = vpop.f32.mrf.mxu0
  %v1257 = vadd.f32 0.0, %v1256
  %v1258 = vpop.f32.mrf.mxu0
  %v1259 = vadd.f32 0.0, %v1258
  %v1260 = vpop.f32.mrf.mxu0
  %v1261 = vadd.f32 0.0, %v1260
  %1262 = vmatprep.mubr.bf16.mxu0 %v301
  %1263 = vmatmul.mubr.bf16.gmra.mxu0 %v254
  %v1264 = vpop.f32.mrf.mxu0
  %v1265 = vadd.f32 0.0, %v1264
  %v1266 = vpop.f32.mrf.mxu0
  %v1267 = vadd.f32 0.0, %v1266
  %v1268 = vpop.f32.mrf.mxu0
  %v1269 = vadd.f32 0.0, %v1268
  %v1270 = vpop.f32.mrf.mxu0
  %v1271 = vadd.f32 0.0, %v1270
  %1272 = vmatprep.mubr.bf16.mxu0 %v304
  %1273 = vmatmul.mubr.bf16.gmra.mxu0 %v256
  %v1274 = vpop.f32.mrf.mxu0
  %v1275 = vadd.f32 0.0, %v1274
  %v1276 = vpop.f32.mrf.mxu0
  %v1277 = vadd.f32 0.0, %v1276
  %v1278 = vpop.f32.mrf.mxu0
  %v1279 = vadd.f32 0.0, %v1278
  %v1280 = vpop.f32.mrf.mxu0
  %v1281 = vadd.f32 0.0, %v1280
  %1282 = vmatprep.mubr.bf16.mxu0 %v307
  %1283 = vmatmul.mubr.bf16.gmra.mxu0 %v258
  %v1284 = vpop.f32.mrf.mxu0
  %v1285 = vadd.f32 0.0, %v1284
  %v1286 = vpop.f32.mrf.mxu0
  %v1287 = vadd.f32 0.0, %v1286
  %v1288 = vpop.f32.mrf.mxu0
  %v1289 = vadd.f32 0.0, %v1288
  %v1290 = vpop.f32.mrf.mxu0
  %v1291 = vadd.f32 0.0, %v1290
  %1292 = vdwg.mxu0
  %v1293 = vmax.f32 %v1175, %v1177
  %v1294 = vmax.f32 %v1179, %v1181
  %v1295 = vmax.f32 %v1185, %v1187
  %v1296 = vmax.f32 %v1189, %v1191
  %v1297 = vmax.f32 %v1195, %v1197
  %v1298 = vmax.f32 %v1199, %v1201
  %v1299 = vmax.f32 %v1205, %v1207
  %v1300 = vmax.f32 %v1209, %v1211
  %v1301 = vmax.f32 %v1215, %v1217
  %v1302 = vmax.f32 %v1219, %v1221
  %v1303 = vmax.f32 %v1225, %v1227
  %v1304 = vmax.f32 %v1229, %v1231
  %v1305 = vmax.f32 %v1235, %v1237
  %v1306 = vmax.f32 %v1239, %v1241
  %v1307 = vmax.f32 %v1245, %v1247
  %v1308 = vmax.f32 %v1249, %v1251
  %v1309 = vmax.f32 %v1255, %v1257
  %v1310 = vmax.f32 %v1259, %v1261
  %v1311 = vmax.f32 %v1265, %v1267
  %v1312 = vmax.f32 %v1269, %v1271
  %v1313 = vmax.f32 %v1275, %v1277
  %v1314 = vmax.f32 %v1279, %v1281
  %v1315 = vmax.f32 %v1285, %v1287
  %v1316 = vmax.f32 %v1289, %v1291
  %v1317 = vmax.f32 %v1293, %v1294
  %v1318 = vmax.f32 %v1295, %v1296
  %v1319 = vmax.f32 %v1297, %v1298
  %v1320 = vmax.f32 %v1299, %v1300
  %v1321 = vmax.f32 %v1301, %v1302
  %v1322 = vmax.f32 %v1303, %v1304
  %v1323 = vmax.f32 %v1305, %v1306
  %v1324 = vmax.f32 %v1307, %v1308
  %v1325 = vmax.f32 %v1309, %v1310
  %v1326 = vmax.f32 %v1311, %v1312
  %v1327 = vmax.f32 %v1313, %v1314
  %v1328 = vmax.f32 %v1315, %v1316
  %v1329 = vadd.f32 %v1317, %v513
  %v1330 = vadd.f32 %v1318, %v518
  %v1331 = vadd.f32 %v1319, %v523
  %v1332 = vadd.f32 %v1320, %v528
  %v1333 = vadd.f32 %v1321, %v533
  %v1334 = vadd.f32 %v1322, %v538
  %v1335 = vadd.f32 %v1323, %v543
  %v1336 = vadd.f32 %v1324, %v548
  %v1337 = vadd.f32 %v1325, %v553
  %v1338 = vadd.f32 %v1326, %v558
  %v1339 = vadd.f32 %v1327, %v563
  %v1340 = vadd.f32 %v1328, %v568
  %v1341 = vmax.f32 %v1329, 0.0
  %v1342 = vmax.f32 %v1330, 0.0
  %v1343 = vmax.f32 %v1331, 0.0
  %v1344 = vmax.f32 %v1332, 0.0
  %v1345 = vmax.f32 %v1333, 0.0
  %v1346 = vmax.f32 %v1334, 0.0
  %v1347 = vmax.f32 %v1335, 0.0
  %v1348 = vmax.f32 %v1336, 0.0
  %v1349 = vmax.f32 %v1337, 0.0
  %v1350 = vmax.f32 %v1338, 0.0
  %v1351 = vmax.f32 %v1339, 0.0
  %v1352 = vmax.f32 %v1340, 0.0
  %v1353 = vpack.c.bf16 %v1342, %v1341
  %v1354 = vpack.c.bf16 %v1344, %v1343
  %v1355 = vpack.c.bf16 %v1346, %v1345
  %v1356 = vpack.c.bf16 %v1348, %v1347
  %v1357 = vpack.c.bf16 %v1350, %v1349
  %v1358 = vpack.c.bf16 %v1352, %v1351
  %s1359 = scalar_lea.vmem %s0, 192
  %v1360 = vld [vmem:[%s1359] sm:$0xf]
  %v1361 = vld [vmem:[%s1359 + $0x4] sm:$0xf]
  %v1362 = vld [vmem:[%s1359 + $0x8] sm:$0xf]
  %v1363 = vld [vmem:[%s1359 + $0xc] sm:$0xf]
  %v1368 = vunpack.c.l.b16 %v1360
  %v1369 = vunpack.c.l.b16 %v1361
  %v1370 = vunpack.c.l.b16 %v1362
  %v1371 = vunpack.c.l.b16 %v1363
  %v1372 = vpack.c.b16 %v1369, %v1368
  %v1373 = vpack.c.b16 %v1371, %v1370
  %s1376 = scalar_lea.vmem %s0, 208
  %v1377 = vld [vmem:[%s1376] sm:$0xf]
  %v1378 = vld [vmem:[%s1376 + $0x4] sm:$0xf]
  %v1379 = vld [vmem:[%s1376 + $0x8] sm:$0xf]
  %v1380 = vld [vmem:[%s1376 + $0xc] sm:$0xf]
  %v1385 = vunpack.c.l.b16 %v1377
  %v1386 = vunpack.c.l.b16 %v1378
  %v1387 = vunpack.c.l.b16 %v1379
  %v1388 = vunpack.c.l.b16 %v1380
  %v1389 = vpack.c.b16 %v1386, %v1385
  %v1390 = vpack.c.b16 %v1388, %v1387
  %1393 = vmatprep.subr.bf16.mxu0 %v1373
  %1394 = vmatpush1.bf16.msra.mxu0 %v1137
  %1395 = vmatprep.subr.bf16.mxu0 %v1372
  %1396 = vmatpush1.bf16.msra.mxu0 %v1136
  %1397 = vmatprep.subr.bf16.mxu0 %v1137
  %1398 = vmatpush1.bf16.msra.mxu0 %v1120
  %1399 = vmatprep.subr.bf16.mxu0 %v1136
  %1400 = vmatpush1.bf16.msra.mxu0 %v1119
  %1401 = vmatprep.subr.bf16.mxu0 %v1120
  %1402 = vmatpush1.bf16.msra.mxu0 %v884
  %1403 = vmatprep.subr.bf16.mxu0 %v1119
  %1404 = vmatpush1.bf16.msra.mxu0 %v883
  %1405 = vmatprep.subr.bf16.mxu0 %v884
  %1406 = vmatpush1.bf16.msra.mxu0 %v867
  %1407 = vmatprep.subr.bf16.mxu0 %v883
  %1408 = vmatpush1.bf16.msra.mxu0 %v866
  %1409 = vmatprep.subr.bf16.mxu0 0
  %1410 = vmatpush2.bf16.msra.mxu0 0
  %1411 = vmatprep.subr.bf16.mxu0 0
  %1412 = vmatpush2.bf16.msra.mxu0 0
  %1413 = vmatprep.subr.bf16.mxu0 0
  %1414 = vmatpush2.bf16.msra.mxu0 0
  %1415 = vmatprep.subr.bf16.mxu0 0
  %1416 = vmatpush2.bf16.msra.mxu0 0
  %1417 = vmatprep.subr.bf16.mxu0 0
  %1418 = vmatpush2.bf16.msra.mxu0 0
  %1419 = vmatprep.subr.bf16.mxu0 0
  %1420 = vmatpush2.bf16.msra.mxu0 0
  %1421 = vmatprep.subr.bf16.mxu0 %v1390
  %1422 = vmatpush2.bf16.msra.mxu0 %v1373
  %1423 = vmatprep.subr.bf16.mxu0 %v1389
  %1424 = vmatpush2.bf16.msra.mxu0 %v1372
  %1425 = vmatprep.mubr.bf16.mxu0 %v274
  %1426 = vmatmul.mubr.bf16.gmra.mxu0 %v236
  %v1427 = vpop.f32.mrf.mxu0
  %v1428 = vadd.f32 0.0, %v1427
  %v1429 = vpop.f32.mrf.mxu0
  %v1430 = vadd.f32 0.0, %v1429
  %v1431 = vpop.f32.mrf.mxu0
  %v1432 = vadd.f32 0.0, %v1431
  %v1433 = vpop.f32.mrf.mxu0
  %v1434 = vadd.f32 0.0, %v1433
  %1435 = vmatprep.mubr.bf16.mxu0 %v277
  %1436 = vmatmul.mubr.bf16.gmra.mxu0 %v238
  %v1437 = vpop.f32.mrf.mxu0
  %v1438 = vadd.f32 0.0, %v1437
  %v1439 = vpop.f32.mrf.mxu0
  %v1440 = vadd.f32 0.0, %v1439
  %v1441 = vpop.f32.mrf.mxu0
  %v1442 = vadd.f32 0.0, %v1441
  %v1443 = vpop.f32.mrf.mxu0
  %v1444 = vadd.f32 0.0, %v1443
  %1445 = vmatprep.mubr.bf16.mxu0 %v280
  %1446 = vmatmul.mubr.bf16.gmra.mxu0 %v240
  %v1447 = vpop.f32.mrf.mxu0
  %v1448 = vadd.f32 0.0, %v1447
  %v1449 = vpop.f32.mrf.mxu0
  %v1450 = vadd.f32 0.0, %v1449
  %v1451 = vpop.f32.mrf.mxu0
  %v1452 = vadd.f32 0.0, %v1451
  %v1453 = vpop.f32.mrf.mxu0
  %v1454 = vadd.f32 0.0, %v1453
  %1455 = vmatprep.mubr.bf16.mxu0 %v283
  %1456 = vmatmul.mubr.bf16.gmra.mxu0 %v242
  %v1457 = vpop.f32.mrf.mxu0
  %v1458 = vadd.f32 0.0, %v1457
  %v1459 = vpop.f32.mrf.mxu0
  %v1460 = vadd.f32 0.0, %v1459
  %v1461 = vpop.f32.mrf.mxu0
  %v1462 = vadd.f32 0.0, %v1461
  %v1463 = vpop.f32.mrf.mxu0
  %v1464 = vadd.f32 0.0, %v1463
  %1465 = vmatprep.mubr.bf16.mxu0 %v286
  %1466 = vmatmul.mubr.bf16.gmra.mxu0 %v244
  %v1467 = vpop.f32.mrf.mxu0
  %v1468 = vadd.f32 0.0, %v1467
  %v1469 = vpop.f32.mrf.mxu0
  %v1470 = vadd.f32 0.0, %v1469
  %v1471 = vpop.f32.mrf.mxu0
  %v1472 = vadd.f32 0.0, %v1471
  %v1473 = vpop.f32.mrf.mxu0
  %v1474 = vadd.f32 0.0, %v1473
  %1475 = vmatprep.mubr.bf16.mxu0 %v289
  %1476 = vmatmul.mubr.bf16.gmra.mxu0 %v246
  %v1477 = vpop.f32.mrf.mxu0
  %v1478 = vadd.f32 0.0, %v1477
  %v1479 = vpop.f32.mrf.mxu0
  %v1480 = vadd.f32 0.0, %v1479
  %v1481 = vpop.f32.mrf.mxu0
  %v1482 = vadd.f32 0.0, %v1481
  %v1483 = vpop.f32.mrf.mxu0
  %v1484 = vadd.f32 0.0, %v1483
  %1485 = vmatprep.mubr.bf16.mxu0 %v292
  %1486 = vmatmul.mubr.bf16.gmra.mxu0 %v248
  %v1487 = vpop.f32.mrf.mxu0
  %v1488 = vadd.f32 0.0, %v1487
  %v1489 = vpop.f32.mrf.mxu0
  %v1490 = vadd.f32 0.0, %v1489
  %v1491 = vpop.f32.mrf.mxu0
  %v1492 = vadd.f32 0.0, %v1491
  %v1493 = vpop.f32.mrf.mxu0
  %v1494 = vadd.f32 0.0, %v1493
  %1495 = vmatprep.mubr.bf16.mxu0 %v295
  %1496 = vmatmul.mubr.bf16.gmra.mxu0 %v250
  %v1497 = vpop.f32.mrf.mxu0
  %v1498 = vadd.f32 0.0, %v1497
  %v1499 = vpop.f32.mrf.mxu0
  %v1500 = vadd.f32 0.0, %v1499
  %v1501 = vpop.f32.mrf.mxu0
  %v1502 = vadd.f32 0.0, %v1501
  %v1503 = vpop.f32.mrf.mxu0
  %v1504 = vadd.f32 0.0, %v1503
  %1505 = vmatprep.mubr.bf16.mxu0 %v298
  %1506 = vmatmul.mubr.bf16.gmra.mxu0 %v252
  %v1507 = vpop.f32.mrf.mxu0
  %v1508 = vadd.f32 0.0, %v1507
  %v1509 = vpop.f32.mrf.mxu0
  %v1510 = vadd.f32 0.0, %v1509
  %v1511 = vpop.f32.mrf.mxu0
  %v1512 = vadd.f32 0.0, %v1511
  %v1513 = vpop.f32.mrf.mxu0
  %v1514 = vadd.f32 0.0, %v1513
  %1515 = vmatprep.mubr.bf16.mxu0 %v301
  %1516 = vmatmul.mubr.bf16.gmra.mxu0 %v254
  %v1517 = vpop.f32.mrf.mxu0
  %v1518 = vadd.f32 0.0, %v1517
  %v1519 = vpop.f32.mrf.mxu0
  %v1520 = vadd.f32 0.0, %v1519
  %v1521 = vpop.f32.mrf.mxu0
  %v1522 = vadd.f32 0.0, %v1521
  %v1523 = vpop.f32.mrf.mxu0
  %v1524 = vadd.f32 0.0, %v1523
  %1525 = vmatprep.mubr.bf16.mxu0 %v304
  %1526 = vmatmul.mubr.bf16.gmra.mxu0 %v256
  %v1527 = vpop.f32.mrf.mxu0
  %v1528 = vadd.f32 0.0, %v1527
  %v1529 = vpop.f32.mrf.mxu0
  %v1530 = vadd.f32 0.0, %v1529
  %v1531 = vpop.f32.mrf.mxu0
  %v1532 = vadd.f32 0.0, %v1531
  %v1533 = vpop.f32.mrf.mxu0
  %v1534 = vadd.f32 0.0, %v1533
  %1535 = vmatprep.mubr.bf16.mxu0 %v307
  %1536 = vmatmul.mubr.bf16.gmra.mxu0 %v258
  %v1537 = vpop.f32.mrf.mxu0
  %v1538 = vadd.f32 0.0, %v1537
  %v1539 = vpop.f32.mrf.mxu0
  %v1540 = vadd.f32 0.0, %v1539
  %v1541 = vpop.f32.mrf.mxu0
  %v1542 = vadd.f32 0.0, %v1541
  %v1543 = vpop.f32.mrf.mxu0
  %v1544 = vadd.f32 0.0, %v1543
  %1545 = vdwg.mxu0
  %v1546 = vmax.f32 %v1428, %v1430
  %v1547 = vmax.f32 %v1432, %v1434
  %v1548 = vmax.f32 %v1438, %v1440
  %v1549 = vmax.f32 %v1442, %v1444
  %v1550 = vmax.f32 %v1448, %v1450
  %v1551 = vmax.f32 %v1452, %v1454
  %v1552 = vmax.f32 %v1458, %v1460
  %v1553 = vmax.f32 %v1462, %v1464
  %v1554 = vmax.f32 %v1468, %v1470
  %v1555 = vmax.f32 %v1472, %v1474
  %v1556 = vmax.f32 %v1478, %v1480
  %v1557 = vmax.f32 %v1482, %v1484
  %v1558 = vmax.f32 %v1488, %v1490
  %v1559 = vmax.f32 %v1492, %v1494
  %v1560 = vmax.f32 %v1498, %v1500
  %v1561 = vmax.f32 %v1502, %v1504
  %v1562 = vmax.f32 %v1508, %v1510
  %v1563 = vmax.f32 %v1512, %v1514
  %v1564 = vmax.f32 %v1518, %v1520
  %v1565 = vmax.f32 %v1522, %v1524
  %v1566 = vmax.f32 %v1528, %v1530
  %v1567 = vmax.f32 %v1532, %v1534
  %v1568 = vmax.f32 %v1538, %v1540
  %v1569 = vmax.f32 %v1542, %v1544
  %v1570 = vmax.f32 %v1546, %v1547
  %v1571 = vmax.f32 %v1548, %v1549
  %v1572 = vmax.f32 %v1550, %v1551
  %v1573 = vmax.f32 %v1552, %v1553
  %v1574 = vmax.f32 %v1554, %v1555
  %v1575 = vmax.f32 %v1556, %v1557
  %v1576 = vmax.f32 %v1558, %v1559
  %v1577 = vmax.f32 %v1560, %v1561
  %v1578 = vmax.f32 %v1562, %v1563
  %v1579 = vmax.f32 %v1564, %v1565
  %v1580 = vmax.f32 %v1566, %v1567
  %v1581 = vmax.f32 %v1568, %v1569
  %v1582 = vadd.f32 %v1570, %v513
  %v1583 = vadd.f32 %v1571, %v518
  %v1584 = vadd.f32 %v1572, %v523
  %v1585 = vadd.f32 %v1573, %v528
  %v1586 = vadd.f32 %v1574, %v533
  %v1587 = vadd.f32 %v1575, %v538
  %v1588 = vadd.f32 %v1576, %v543
  %v1589 = vadd.f32 %v1577, %v548
  %v1590 = vadd.f32 %v1578, %v553
  %v1591 = vadd.f32 %v1579, %v558
  %v1592 = vadd.f32 %v1580, %v563
  %v1593 = vadd.f32 %v1581, %v568
  %v1594 = vmax.f32 %v1582, 0.0
  %v1595 = vmax.f32 %v1583, 0.0
  %v1596 = vmax.f32 %v1584, 0.0
  %v1597 = vmax.f32 %v1585, 0.0
  %v1598 = vmax.f32 %v1586, 0.0
  %v1599 = vmax.f32 %v1587, 0.0
  %v1600 = vmax.f32 %v1588, 0.0
  %v1601 = vmax.f32 %v1589, 0.0
  %v1602 = vmax.f32 %v1590, 0.0
  %v1603 = vmax.f32 %v1591, 0.0
  %v1604 = vmax.f32 %v1592, 0.0
  %v1605 = vmax.f32 %v1593, 0.0
  %v1606 = vpack.c.bf16 %v1595, %v1594
  %v1607 = vpack.c.bf16 %v1597, %v1596
  %v1608 = vpack.c.bf16 %v1599, %v1598
  %v1609 = vpack.c.bf16 %v1601, %v1600
  %v1610 = vpack.c.bf16 %v1603, %v1602
  %v1611 = vpack.c.bf16 %v1605, %v1604
  %s1612 = scalar_lea.vmem %s0, 224
  %v1613 = vld [vmem:[%s1612] sm:$0xf]
  %v1614 = vld [vmem:[%s1612 + $0x4] sm:$0xf]
  %v1615 = vld [vmem:[%s1612 + $0x8] sm:$0xf]
  %v1616 = vld [vmem:[%s1612 + $0xc] sm:$0xf]
  %v1621 = vunpack.c.l.b16 %v1613
  %v1622 = vunpack.c.l.b16 %v1614
  %v1623 = vunpack.c.l.b16 %v1615
  %v1624 = vunpack.c.l.b16 %v1616
  %v1625 = vpack.c.b16 %v1622, %v1621
  %v1626 = vpack.c.b16 %v1624, %v1623
  %s1629 = scalar_lea.vmem %s0, 240
  %v1630 = vld [vmem:[%s1629] sm:$0xf]
  %v1631 = vld [vmem:[%s1629 + $0x4] sm:$0xf]
  %v1632 = vld [vmem:[%s1629 + $0x8] sm:$0xf]
  %v1633 = vld [vmem:[%s1629 + $0xc] sm:$0xf]
  %v1638 = vunpack.c.l.b16 %v1630
  %v1639 = vunpack.c.l.b16 %v1631
  %v1640 = vunpack.c.l.b16 %v1632
  %v1641 = vunpack.c.l.b16 %v1633
  %v1642 = vpack.c.b16 %v1639, %v1638
  %v1643 = vpack.c.b16 %v1641, %v1640
  %1646 = vmatprep.subr.bf16.mxu0 %v1626
  %1647 = vmatpush1.bf16.msra.mxu0 %v1390
  %1648 = vmatprep.subr.bf16.mxu0 %v1625
  %1649 = vmatpush1.bf16.msra.mxu0 %v1389
  %1650 = vmatprep.subr.bf16.mxu0 %v1390
  %1651 = vmatpush1.bf16.msra.mxu0 %v1373
  %1652 = vmatprep.subr.bf16.mxu0 %v1389
  %1653 = vmatpush1.bf16.msra.mxu0 %v1372
  %1654 = vmatprep.subr.bf16.mxu0 %v1373
  %1655 = vmatpush1.bf16.msra.mxu0 %v1137
  %1656 = vmatprep.subr.bf16.mxu0 %v1372
  %1657 = vmatpush1.bf16.msra.mxu0 %v1136
  %1658 = vmatprep.subr.bf16.mxu0 %v1137
  %1659 = vmatpush1.bf16.msra.mxu0 %v1120
  %1660 = vmatprep.subr.bf16.mxu0 %v1136
  %1661 = vmatpush1.bf16.msra.mxu0 %v1119
  %1662 = vmatprep.subr.bf16.mxu0 0
  %1663 = vmatpush2.bf16.msra.mxu0 0
  %1664 = vmatprep.subr.bf16.mxu0 0
  %1665 = vmatpush2.bf16.msra.mxu0 0
  %1666 = vmatprep.subr.bf16.mxu0 0
  %1667 = vmatpush2.bf16.msra.mxu0 0
  %1668 = vmatprep.subr.bf16.mxu0 0
  %1669 = vmatpush2.bf16.msra.mxu0 0
  %1670 = vmatprep.subr.bf16.mxu0 0
  %1671 = vmatpush2.bf16.msra.mxu0 0
  %1672 = vmatprep.subr.bf16.mxu0 0
  %1673 = vmatpush2.bf16.msra.mxu0 0
  %1674 = vmatprep.subr.bf16.mxu0 %v1643
  %1675 = vmatpush2.bf16.msra.mxu0 %v1626
  %1676 = vmatprep.subr.bf16.mxu0 %v1642
  %1677 = vmatpush2.bf16.msra.mxu0 %v1625
  %1678 = vmatprep.mubr.bf16.mxu0 %v274
  %1679 = vmatmul.mubr.bf16.gmra.mxu0 %v236
  %v1680 = vpop.f32.mrf.mxu0
  %v1681 = vadd.f32 0.0, %v1680
  %v1682 = vpop.f32.mrf.mxu0
  %v1683 = vadd.f32 0.0, %v1682
  %v1684 = vpop.f32.mrf.mxu0
  %v1685 = vadd.f32 0.0, %v1684
  %v1686 = vpop.f32.mrf.mxu0
  %v1687 = vadd.f32 0.0, %v1686
  %1688 = vmatprep.mubr.bf16.mxu0 %v277
  %1689 = vmatmul.mubr.bf16.gmra.mxu0 %v238
  %v1690 = vpop.f32.mrf.mxu0
  %v1691 = vadd.f32 0.0, %v1690
  %v1692 = vpop.f32.mrf.mxu0
  %v1693 = vadd.f32 0.0, %v1692
  %v1694 = vpop.f32.mrf.mxu0
  %v1695 = vadd.f32 0.0, %v1694
  %v1696 = vpop.f32.mrf.mxu0
  %v1697 = vadd.f32 0.0, %v1696
  %1698 = vmatprep.mubr.bf16.mxu0 %v280
  %1699 = vmatmul.mubr.bf16.gmra.mxu0 %v240
  %v1700 = vpop.f32.mrf.mxu0
  %v1701 = vadd.f32 0.0, %v1700
  %v1702 = vpop.f32.mrf.mxu0
  %v1703 = vadd.f32 0.0, %v1702
  %v1704 = vpop.f32.mrf.mxu0
  %v1705 = vadd.f32 0.0, %v1704
  %v1706 = vpop.f32.mrf.mxu0
  %v1707 = vadd.f32 0.0, %v1706
  %1708 = vmatprep.mubr.bf16.mxu0 %v283
  %1709 = vmatmul.mubr.bf16.gmra.mxu0 %v242
  %v1710 = vpop.f32.mrf.mxu0
  %v1711 = vadd.f32 0.0, %v1710
  %v1712 = vpop.f32.mrf.mxu0
  %v1713 = vadd.f32 0.0, %v1712
  %v1714 = vpop.f32.mrf.mxu0
  %v1715 = vadd.f32 0.0, %v1714
  %v1716 = vpop.f32.mrf.mxu0
  %v1717 = vadd.f32 0.0, %v1716
  %1718 = vmatprep.mubr.bf16.mxu0 %v286
  %1719 = vmatmul.mubr.bf16.gmra.mxu0 %v244
  %v1720 = vpop.f32.mrf.mxu0
  %v1721 = vadd.f32 0.0, %v1720
  %v1722 = vpop.f32.mrf.mxu0
  %v1723 = vadd.f32 0.0, %v1722
  %v1724 = vpop.f32.mrf.mxu0
  %v1725 = vadd.f32 0.0, %v1724
  %v1726 = vpop.f32.mrf.mxu0
  %v1727 = vadd.f32 0.0, %v1726
  %1728 = vmatprep.mubr.bf16.mxu0 %v289
  %1729 = vmatmul.mubr.bf16.gmra.mxu0 %v246
  %v1730 = vpop.f32.mrf.mxu0
  %v1731 = vadd.f32 0.0, %v1730
  %v1732 = vpop.f32.mrf.mxu0
  %v1733 = vadd.f32 0.0, %v1732
  %v1734 = vpop.f32.mrf.mxu0
  %v1735 = vadd.f32 0.0, %v1734
  %v1736 = vpop.f32.mrf.mxu0
  %v1737 = vadd.f32 0.0, %v1736
  %1738 = vmatprep.mubr.bf16.mxu0 %v292
  %1739 = vmatmul.mubr.bf16.gmra.mxu0 %v248
  %v1740 = vpop.f32.mrf.mxu0
  %v1741 = vadd.f32 0.0, %v1740
  %v1742 = vpop.f32.mrf.mxu0
  %v1743 = vadd.f32 0.0, %v1742
  %v1744 = vpop.f32.mrf.mxu0
  %v1745 = vadd.f32 0.0, %v1744
  %v1746 = vpop.f32.mrf.mxu0
  %v1747 = vadd.f32 0.0, %v1746
  %1748 = vmatprep.mubr.bf16.mxu0 %v295
  %1749 = vmatmul.mubr.bf16.gmra.mxu0 %v250
  %v1750 = vpop.f32.mrf.mxu0
  %v1751 = vadd.f32 0.0, %v1750
  %v1752 = vpop.f32.mrf.mxu0
  %v1753 = vadd.f32 0.0, %v1752
  %v1754 = vpop.f32.mrf.mxu0
  %v1755 = vadd.f32 0.0, %v1754
  %v1756 = vpop.f32.mrf.mxu0
  %v1757 = vadd.f32 0.0, %v1756
  %1758 = vmatprep.mubr.bf16.mxu0 %v298
  %1759 = vmatmul.mubr.bf16.gmra.mxu0 %v252
  %v1760 = vpop.f32.mrf.mxu0
  %v1761 = vadd.f32 0.0, %v1760
  %v1762 = vpop.f32.mrf.mxu0
  %v1763 = vadd.f32 0.0, %v1762
  %v1764 = vpop.f32.mrf.mxu0
  %v1765 = vadd.f32 0.0, %v1764
  %v1766 = vpop.f32.mrf.mxu0
  %v1767 = vadd.f32 0.0, %v1766
  %1768 = vmatprep.mubr.bf16.mxu0 %v301
  %1769 = vmatmul.mubr.bf16.gmra.mxu0 %v254
  %v1770 = vpop.f32.mrf.mxu0
  %v1771 = vadd.f32 0.0, %v1770
  %v1772 = vpop.f32.mrf.mxu0
  %v1773 = vadd.f32 0.0, %v1772
  %v1774 = vpop.f32.mrf.mxu0
  %v1775 = vadd.f32 0.0, %v1774
  %v1776 = vpop.f32.mrf.mxu0
  %v1777 = vadd.f32 0.0, %v1776
  %1778 = vmatprep.mubr.bf16.mxu0 %v304
  %1779 = vmatmul.mubr.bf16.gmra.mxu0 %v256
  %v1780 = vpop.f32.mrf.mxu0
  %v1781 = vadd.f32 0.0, %v1780
  %v1782 = vpop.f32.mrf.mxu0
  %v1783 = vadd.f32 0.0, %v1782
  %v1784 = vpop.f32.mrf.mxu0
  %v1785 = vadd.f32 0.0, %v1784
  %v1786 = vpop.f32.mrf.mxu0
  %v1787 = vadd.f32 0.0, %v1786
  %1788 = vmatprep.mubr.bf16.mxu0 %v307
  %1789 = vmatmul.mubr.bf16.gmra.mxu0 %v258
  %v1790 = vpop.f32.mrf.mxu0
  %v1791 = vadd.f32 0.0, %v1790
  %v1792 = vpop.f32.mrf.mxu0
  %v1793 = vadd.f32 0.0, %v1792
  %v1794 = vpop.f32.mrf.mxu0
  %v1795 = vadd.f32 0.0, %v1794
  %v1796 = vpop.f32.mrf.mxu0
  %v1797 = vadd.f32 0.0, %v1796
  %1798 = vdwg.mxu0
  %v1799 = vmax.f32 %v1681, %v1683
  %v1800 = vmax.f32 %v1685, %v1687
  %v1801 = vmax.f32 %v1691, %v1693
  %v1802 = vmax.f32 %v1695, %v1697
  %v1803 = vmax.f32 %v1701, %v1703
  %v1804 = vmax.f32 %v1705, %v1707
  %v1805 = vmax.f32 %v1711, %v1713
  %v1806 = vmax.f32 %v1715, %v1717
  %v1807 = vmax.f32 %v1721, %v1723
  %v1808 = vmax.f32 %v1725, %v1727
  %v1809 = vmax.f32 %v1731, %v1733
  %v1810 = vmax.f32 %v1735, %v1737
  %v1811 = vmax.f32 %v1741, %v1743
  %v1812 = vmax.f32 %v1745, %v1747
  %v1813 = vmax.f32 %v1751, %v1753
  %v1814 = vmax.f32 %v1755, %v1757
  %v1815 = vmax.f32 %v1761, %v1763
  %v1816 = vmax.f32 %v1765, %v1767
  %v1817 = vmax.f32 %v1771, %v1773
  %v1818 = vmax.f32 %v1775, %v1777
  %v1819 = vmax.f32 %v1781, %v1783
  %v1820 = vmax.f32 %v1785, %v1787
  %v1821 = vmax.f32 %v1791, %v1793
  %v1822 = vmax.f32 %v1795, %v1797
  %v1823 = vmax.f32 %v1799, %v1800
  %v1824 = vmax.f32 %v1801, %v1802
  %v1825 = vmax.f32 %v1803, %v1804
  %v1826 = vmax.f32 %v1805, %v1806
  %v1827 = vmax.f32 %v1807, %v1808
  %v1828 = vmax.f32 %v1809, %v1810
  %v1829 = vmax.f32 %v1811, %v1812
  %v1830 = vmax.f32 %v1813, %v1814
  %v1831 = vmax.f32 %v1815, %v1816
  %v1832 = vmax.f32 %v1817, %v1818
  %v1833 = vmax.f32 %v1819, %v1820
  %v1834 = vmax.f32 %v1821, %v1822
  %v1835 = vadd.f32 %v1823, %v513
  %v1836 = vadd.f32 %v1824, %v518
  %v1837 = vadd.f32 %v1825, %v523
  %v1838 = vadd.f32 %v1826, %v528
  %v1839 = vadd.f32 %v1827, %v533
  %v1840 = vadd.f32 %v1828, %v538
  %v1841 = vadd.f32 %v1829, %v543
  %v1842 = vadd.f32 %v1830, %v548
  %v1843 = vadd.f32 %v1831, %v553
  %v1844 = vadd.f32 %v1832, %v558
  %v1845 = vadd.f32 %v1833, %v563
  %v1846 = vadd.f32 %v1834, %v568
  %v1847 = vmax.f32 %v1835, 0.0
  %v1848 = vmax.f32 %v1836, 0.0
  %v1849 = vmax.f32 %v1837, 0.0
  %v1850 = vmax.f32 %v1838, 0.0
  %v1851 = vmax.f32 %v1839, 0.0
  %v1852 = vmax.f32 %v1840, 0.0
  %v1853 = vmax.f32 %v1841, 0.0
  %v1854 = vmax.f32 %v1842, 0.0
  %v1855 = vmax.f32 %v1843, 0.0
  %v1856 = vmax.f32 %v1844, 0.0
  %v1857 = vmax.f32 %v1845, 0.0
  %v1858 = vmax.f32 %v1846, 0.0
  %v1859 = vpack.c.bf16 %v1848, %v1847
  %v1860 = vpack.c.bf16 %v1850, %v1849
  %v1861 = vpack.c.bf16 %v1852, %v1851
  %v1862 = vpack.c.bf16 %v1854, %v1853
  %v1863 = vpack.c.bf16 %v1856, %v1855
  %v1864 = vpack.c.bf16 %v1858, %v1857
  %s1865 = scalar_lea.vmem %s0, 256
  %v1866 = vld [vmem:[%s1865] sm:$0xf]
  %v1867 = vld [vmem:[%s1865 + $0x4] sm:$0xf]
  %v1868 = vld [vmem:[%s1865 + $0x8] sm:$0xf]
  %v1869 = vld [vmem:[%s1865 + $0xc] sm:$0xf]
  %v1874 = vunpack.c.l.b16 %v1866
  %v1875 = vunpack.c.l.b16 %v1867
  %v1876 = vunpack.c.l.b16 %v1868
  %v1877 = vunpack.c.l.b16 %v1869
  %v1878 = vpack.c.b16 %v1875, %v1874
  %v1879 = vpack.c.b16 %v1877, %v1876
  %s1882 = scalar_lea.vmem %s0, 272
  %v1883 = vld [vmem:[%s1882] sm:$0xf]
  %v1884 = vld [vmem:[%s1882 + $0x4] sm:$0xf]
  %v1885 = vld [vmem:[%s1882 + $0x8] sm:$0xf]
  %v1886 = vld [vmem:[%s1882 + $0xc] sm:$0xf]
  %v1891 = vunpack.c.l.b16 %v1883
  %v1892 = vunpack.c.l.b16 %v1884
  %v1893 = vunpack.c.l.b16 %v1885
  %v1894 = vunpack.c.l.b16 %v1886
  %v1895 = vpack.c.b16 %v1892, %v1891
  %v1896 = vpack.c.b16 %v1894, %v1893
  %1899 = vmatprep.subr.bf16.mxu0 %v1879
  %1900 = vmatpush1.bf16.msra.mxu0 %v1643
  %1901 = vmatprep.subr.bf16.mxu0 %v1878
  %1902 = vmatpush1.bf16.msra.mxu0 %v1642
  %1903 = vmatprep.subr.bf16.mxu0 %v1643
  %1904 = vmatpush1.bf16.msra.mxu0 %v1626
  %1905 = vmatprep.subr.bf16.mxu0 %v1642
  %1906 = vmatpush1.bf16.msra.mxu0 %v1625
  %1907 = vmatprep.subr.bf16.mxu0 %v1626
  %1908 = vmatpush1.bf16.msra.mxu0 %v1390
  %1909 = vmatprep.subr.bf16.mxu0 %v1625
  %1910 = vmatpush1.bf16.msra.mxu0 %v1389
  %1911 = vmatprep.subr.bf16.mxu0 %v1390
  %1912 = vmatpush1.bf16.msra.mxu0 %v1373
  %1913 = vmatprep.subr.bf16.mxu0 %v1389
  %1914 = vmatpush1.bf16.msra.mxu0 %v1372
  %1915 = vmatprep.subr.bf16.mxu0 0
  %1916 = vmatpush2.bf16.msra.mxu0 0
  %1917 = vmatprep.subr.bf16.mxu0 0
  %1918 = vmatpush2.bf16.msra.mxu0 0
  %1919 = vmatprep.subr.bf16.mxu0 0
  %1920 = vmatpush2.bf16.msra.mxu0 0
  %1921 = vmatprep.subr.bf16.mxu0 0
  %1922 = vmatpush2.bf16.msra.mxu0 0
  %1923 = vmatprep.subr.bf16.mxu0 0
  %1924 = vmatpush2.bf16.msra.mxu0 0
  %1925 = vmatprep.subr.bf16.mxu0 0
  %1926 = vmatpush2.bf16.msra.mxu0 0
  %1927 = vmatprep.subr.bf16.mxu0 %v1896
  %1928 = vmatpush2.bf16.msra.mxu0 %v1879
  %1929 = vmatprep.subr.bf16.mxu0 %v1895
  %1930 = vmatpush2.bf16.msra.mxu0 %v1878
  %1931 = vmatprep.mubr.bf16.mxu0 %v274
  %1932 = vmatmul.mubr.bf16.gmra.mxu0 %v236
  %v1933 = vpop.f32.mrf.mxu0
  %v1934 = vadd.f32 0.0, %v1933
  %v1935 = vpop.f32.mrf.mxu0
  %v1936 = vadd.f32 0.0, %v1935
  %v1937 = vpop.f32.mrf.mxu0
  %v1938 = vadd.f32 0.0, %v1937
  %v1939 = vpop.f32.mrf.mxu0
  %v1940 = vadd.f32 0.0, %v1939
  %1941 = vmatprep.mubr.bf16.mxu0 %v277
  %1942 = vmatmul.mubr.bf16.gmra.mxu0 %v238
  %v1943 = vpop.f32.mrf.mxu0
  %v1944 = vadd.f32 0.0, %v1943
  %v1945 = vpop.f32.mrf.mxu0
  %v1946 = vadd.f32 0.0, %v1945
  %v1947 = vpop.f32.mrf.mxu0
  %v1948 = vadd.f32 0.0, %v1947
  %v1949 = vpop.f32.mrf.mxu0
  %v1950 = vadd.f32 0.0, %v1949
  %1951 = vmatprep.mubr.bf16.mxu0 %v280
  %1952 = vmatmul.mubr.bf16.gmra.mxu0 %v240
  %v1953 = vpop.f32.mrf.mxu0
  %v1954 = vadd.f32 0.0, %v1953
  %v1955 = vpop.f32.mrf.mxu0
  %v1956 = vadd.f32 0.0, %v1955
  %v1957 = vpop.f32.mrf.mxu0
  %v1958 = vadd.f32 0.0, %v1957
  %v1959 = vpop.f32.mrf.mxu0
  %v1960 = vadd.f32 0.0, %v1959
  %1961 = vmatprep.mubr.bf16.mxu0 %v283
  %1962 = vmatmul.mubr.bf16.gmra.mxu0 %v242
  %v1963 = vpop.f32.mrf.mxu0
  %v1964 = vadd.f32 0.0, %v1963
  %v1965 = vpop.f32.mrf.mxu0
  %v1966 = vadd.f32 0.0, %v1965
  %v1967 = vpop.f32.mrf.mxu0
  %v1968 = vadd.f32 0.0, %v1967
  %v1969 = vpop.f32.mrf.mxu0
  %v1970 = vadd.f32 0.0, %v1969
  %1971 = vmatprep.mubr.bf16.mxu0 %v286
  %1972 = vmatmul.mubr.bf16.gmra.mxu0 %v244
  %v1973 = vpop.f32.mrf.mxu0
  %v1974 = vadd.f32 0.0, %v1973
  %v1975 = vpop.f32.mrf.mxu0
  %v1976 = vadd.f32 0.0, %v1975
  %v1977 = vpop.f32.mrf.mxu0
  %v1978 = vadd.f32 0.0, %v1977
  %v1979 = vpop.f32.mrf.mxu0
  %v1980 = vadd.f32 0.0, %v1979
  %1981 = vmatprep.mubr.bf16.mxu0 %v289
  %1982 = vmatmul.mubr.bf16.gmra.mxu0 %v246
  %v1983 = vpop.f32.mrf.mxu0
  %v1984 = vadd.f32 0.0, %v1983
  %v1985 = vpop.f32.mrf.mxu0
  %v1986 = vadd.f32 0.0, %v1985
  %v1987 = vpop.f32.mrf.mxu0
  %v1988 = vadd.f32 0.0, %v1987
  %v1989 = vpop.f32.mrf.mxu0
  %v1990 = vadd.f32 0.0, %v1989
  %1991 = vmatprep.mubr.bf16.mxu0 %v292
  %1992 = vmatmul.mubr.bf16.gmra.mxu0 %v248
  %v1993 = vpop.f32.mrf.mxu0
  %v1994 = vadd.f32 0.0, %v1993
  %v1995 = vpop.f32.mrf.mxu0
  %v1996 = vadd.f32 0.0, %v1995
  %v1997 = vpop.f32.mrf.mxu0
  %v1998 = vadd.f32 0.0, %v1997
  %v1999 = vpop.f32.mrf.mxu0
  %v2000 = vadd.f32 0.0, %v1999
  %2001 = vmatprep.mubr.bf16.mxu0 %v295
  %2002 = vmatmul.mubr.bf16.gmra.mxu0 %v250
  %v2003 = vpop.f32.mrf.mxu0
  %v2004 = vadd.f32 0.0, %v2003
  %v2005 = vpop.f32.mrf.mxu0
  %v2006 = vadd.f32 0.0, %v2005
  %v2007 = vpop.f32.mrf.mxu0
  %v2008 = vadd.f32 0.0, %v2007
  %v2009 = vpop.f32.mrf.mxu0
  %v2010 = vadd.f32 0.0, %v2009
  %2011 = vmatprep.mubr.bf16.mxu0 %v298
  %2012 = vmatmul.mubr.bf16.gmra.mxu0 %v252
  %v2013 = vpop.f32.mrf.mxu0
  %v2014 = vadd.f32 0.0, %v2013
  %v2015 = vpop.f32.mrf.mxu0
  %v2016 = vadd.f32 0.0, %v2015
  %v2017 = vpop.f32.mrf.mxu0
  %v2018 = vadd.f32 0.0, %v2017
  %v2019 = vpop.f32.mrf.mxu0
  %v2020 = vadd.f32 0.0, %v2019
  %2021 = vmatprep.mubr.bf16.mxu0 %v301
  %2022 = vmatmul.mubr.bf16.gmra.mxu0 %v254
  %v2023 = vpop.f32.mrf.mxu0
  %v2024 = vadd.f32 0.0, %v2023
  %v2025 = vpop.f32.mrf.mxu0
  %v2026 = vadd.f32 0.0, %v2025
  %v2027 = vpop.f32.mrf.mxu0
  %v2028 = vadd.f32 0.0, %v2027
  %v2029 = vpop.f32.mrf.mxu0
  %v2030 = vadd.f32 0.0, %v2029
  %2031 = vmatprep.mubr.bf16.mxu0 %v304
  %2032 = vmatmul.mubr.bf16.gmra.mxu0 %v256
  %v2033 = vpop.f32.mrf.mxu0
  %v2034 = vadd.f32 0.0, %v2033
  %v2035 = vpop.f32.mrf.mxu0
  %v2036 = vadd.f32 0.0, %v2035
  %v2037 = vpop.f32.mrf.mxu0
  %v2038 = vadd.f32 0.0, %v2037
  %v2039 = vpop.f32.mrf.mxu0
  %v2040 = vadd.f32 0.0, %v2039
  %2041 = vmatprep.mubr.bf16.mxu0 %v307
  %2042 = vmatmul.mubr.bf16.gmra.mxu0 %v258
  %v2043 = vpop.f32.mrf.mxu0
  %v2044 = vadd.f32 0.0, %v2043
  %v2045 = vpop.f32.mrf.mxu0
  %v2046 = vadd.f32 0.0, %v2045
  %v2047 = vpop.f32.mrf.mxu0
  %v2048 = vadd.f32 0.0, %v2047
  %v2049 = vpop.f32.mrf.mxu0
  %v2050 = vadd.f32 0.0, %v2049
  %2051 = vdwg.mxu0
  %v2052 = vmax.f32 %v1934, %v1936
  %v2053 = vmax.f32 %v1938, %v1940
  %v2054 = vmax.f32 %v1944, %v1946
  %v2055 = vmax.f32 %v1948, %v1950
  %v2056 = vmax.f32 %v1954, %v1956
  %v2057 = vmax.f32 %v1958, %v1960
  %v2058 = vmax.f32 %v1964, %v1966
  %v2059 = vmax.f32 %v1968, %v1970
  %v2060 = vmax.f32 %v1974, %v1976
  %v2061 = vmax.f32 %v1978, %v1980
  %v2062 = vmax.f32 %v1984, %v1986
  %v2063 = vmax.f32 %v1988, %v1990
  %v2064 = vmax.f32 %v1994, %v1996
  %v2065 = vmax.f32 %v1998, %v2000
  %v2066 = vmax.f32 %v2004, %v2006
  %v2067 = vmax.f32 %v2008, %v2010
  %v2068 = vmax.f32 %v2014, %v2016
  %v2069 = vmax.f32 %v2018, %v2020
  %v2070 = vmax.f32 %v2024, %v2026
  %v2071 = vmax.f32 %v2028, %v2030
  %v2072 = vmax.f32 %v2034, %v2036
  %v2073 = vmax.f32 %v2038, %v2040
  %v2074 = vmax.f32 %v2044, %v2046
  %v2075 = vmax.f32 %v2048, %v2050
  %v2076 = vmax.f32 %v2052, %v2053
  %v2077 = vmax.f32 %v2054, %v2055
  %v2078 = vmax.f32 %v2056, %v2057
  %v2079 = vmax.f32 %v2058, %v2059
  %v2080 = vmax.f32 %v2060, %v2061
  %v2081 = vmax.f32 %v2062, %v2063
  %v2082 = vmax.f32 %v2064, %v2065
  %v2083 = vmax.f32 %v2066, %v2067
  %v2084 = vmax.f32 %v2068, %v2069
  %v2085 = vmax.f32 %v2070, %v2071
  %v2086 = vmax.f32 %v2072, %v2073
  %v2087 = vmax.f32 %v2074, %v2075
  %v2088 = vadd.f32 %v2076, %v513
  %v2089 = vadd.f32 %v2077, %v518
  %v2090 = vadd.f32 %v2078, %v523
  %v2091 = vadd.f32 %v2079, %v528
  %v2092 = vadd.f32 %v2080, %v533
  %v2093 = vadd.f32 %v2081, %v538
  %v2094 = vadd.f32 %v2082, %v543
  %v2095 = vadd.f32 %v2083, %v548
  %v2096 = vadd.f32 %v2084, %v553
  %v2097 = vadd.f32 %v2085, %v558
  %v2098 = vadd.f32 %v2086, %v563
  %v2099 = vadd.f32 %v2087, %v568
  %v2100 = vmax.f32 %v2088, 0.0
  %v2101 = vmax.f32 %v2089, 0.0
  %v2102 = vmax.f32 %v2090, 0.0
  %v2103 = vmax.f32 %v2091, 0.0
  %v2104 = vmax.f32 %v2092, 0.0
  %v2105 = vmax.f32 %v2093, 0.0
  %v2106 = vmax.f32 %v2094, 0.0
  %v2107 = vmax.f32 %v2095, 0.0
  %v2108 = vmax.f32 %v2096, 0.0
  %v2109 = vmax.f32 %v2097, 0.0
  %v2110 = vmax.f32 %v2098, 0.0
  %v2111 = vmax.f32 %v2099, 0.0
  %v2112 = vpack.c.bf16 %v2101, %v2100
  %v2113 = vpack.c.bf16 %v2103, %v2102
  %v2114 = vpack.c.bf16 %v2105, %v2104
  %v2115 = vpack.c.bf16 %v2107, %v2106
  %v2116 = vpack.c.bf16 %v2109, %v2108
  %v2117 = vpack.c.bf16 %v2111, %v2110
  %s2118 = scalar_lea.vmem %s0, 288
  %v2119 = vld [vmem:[%s2118] sm:$0xf]
  %v2120 = vld [vmem:[%s2118 + $0x4] sm:$0xf]
  %v2121 = vld [vmem:[%s2118 + $0x8] sm:$0xf]
  %v2122 = vld [vmem:[%s2118 + $0xc] sm:$0xf]
  %v2127 = vunpack.c.l.b16 %v2119
  %v2128 = vunpack.c.l.b16 %v2120
  %v2129 = vunpack.c.l.b16 %v2121
  %v2130 = vunpack.c.l.b16 %v2122
  %v2131 = vpack.c.b16 %v2128, %v2127
  %v2132 = vpack.c.b16 %v2130, %v2129
  %s2135 = scalar_lea.vmem %s0, 304
  %v2136 = vld [vmem:[%s2135] sm:$0xf]
  %v2137 = vld [vmem:[%s2135 + $0x4] sm:$0xf]
  %v2138 = vld [vmem:[%s2135 + $0x8] sm:$0xf]
  %v2139 = vld [vmem:[%s2135 + $0xc] sm:$0xf]
  %v2144 = vunpack.c.l.b16 %v2136
  %v2145 = vunpack.c.l.b16 %v2137
  %v2146 = vunpack.c.l.b16 %v2138
  %v2147 = vunpack.c.l.b16 %v2139
  %v2148 = vpack.c.b16 %v2145, %v2144
  %v2149 = vpack.c.b16 %v2147, %v2146
  %2152 = vmatprep.subr.bf16.mxu0 %v2132
  %2153 = vmatpush1.bf16.msra.mxu0 %v1896
  %2154 = vmatprep.subr.bf16.mxu0 %v2131
  %2155 = vmatpush1.bf16.msra.mxu0 %v1895
  %2156 = vmatprep.subr.bf16.mxu0 %v1896
  %2157 = vmatpush1.bf16.msra.mxu0 %v1879
  %2158 = vmatprep.subr.bf16.mxu0 %v1895
  %2159 = vmatpush1.bf16.msra.mxu0 %v1878
  %2160 = vmatprep.subr.bf16.mxu0 %v1879
  %2161 = vmatpush1.bf16.msra.mxu0 %v1643
  %2162 = vmatprep.subr.bf16.mxu0 %v1878
  %2163 = vmatpush1.bf16.msra.mxu0 %v1642
  %2164 = vmatprep.subr.bf16.mxu0 %v1643
  %2165 = vmatpush1.bf16.msra.mxu0 %v1626
  %2166 = vmatprep.subr.bf16.mxu0 %v1642
  %2167 = vmatpush1.bf16.msra.mxu0 %v1625
  %2168 = vmatprep.subr.bf16.mxu0 0
  %2169 = vmatpush2.bf16.msra.mxu0 0
  %2170 = vmatprep.subr.bf16.mxu0 0
  %2171 = vmatpush2.bf16.msra.mxu0 0
  %2172 = vmatprep.subr.bf16.mxu0 0
  %2173 = vmatpush2.bf16.msra.mxu0 0
  %2174 = vmatprep.subr.bf16.mxu0 0
  %2175 = vmatpush2.bf16.msra.mxu0 0
  %2176 = vmatprep.subr.bf16.mxu0 0
  %2177 = vmatpush2.bf16.msra.mxu0 0
  %2178 = vmatprep.subr.bf16.mxu0 0
  %2179 = vmatpush2.bf16.msra.mxu0 0
  %2180 = vmatprep.subr.bf16.mxu0 %v2149
  %2181 = vmatpush2.bf16.msra.mxu0 %v2132
  %2182 = vmatprep.subr.bf16.mxu0 %v2148
  %2183 = vmatpush2.bf16.msra.mxu0 %v2131
  %2184 = vmatprep.mubr.bf16.mxu0 %v274
  %2185 = vmatmul.mubr.bf16.gmra.mxu0 %v236
  %v2186 = vpop.f32.mrf.mxu0
  %v2187 = vadd.f32 0.0, %v2186
  %v2188 = vpop.f32.mrf.mxu0
  %v2189 = vadd.f32 0.0, %v2188
  %v2190 = vpop.f32.mrf.mxu0
  %v2191 = vadd.f32 0.0, %v2190
  %v2192 = vpop.f32.mrf.mxu0
  %v2193 = vadd.f32 0.0, %v2192
  %2194 = vmatprep.mubr.bf16.mxu0 %v277
  %2195 = vmatmul.mubr.bf16.gmra.mxu0 %v238
  %v2196 = vpop.f32.mrf.mxu0
  %v2197 = vadd.f32 0.0, %v2196
  %v2198 = vpop.f32.mrf.mxu0
  %v2199 = vadd.f32 0.0, %v2198
  %v2200 = vpop.f32.mrf.mxu0
  %v2201 = vadd.f32 0.0, %v2200
  %v2202 = vpop.f32.mrf.mxu0
  %v2203 = vadd.f32 0.0, %v2202
  %2204 = vmatprep.mubr.bf16.mxu0 %v280
  %2205 = vmatmul.mubr.bf16.gmra.mxu0 %v240
  %v2206 = vpop.f32.mrf.mxu0
  %v2207 = vadd.f32 0.0, %v2206
  %v2208 = vpop.f32.mrf.mxu0
  %v2209 = vadd.f32 0.0, %v2208
  %v2210 = vpop.f32.mrf.mxu0
  %v2211 = vadd.f32 0.0, %v2210
  %v2212 = vpop.f32.mrf.mxu0
  %v2213 = vadd.f32 0.0, %v2212
  %2214 = vmatprep.mubr.bf16.mxu0 %v283
  %2215 = vmatmul.mubr.bf16.gmra.mxu0 %v242
  %v2216 = vpop.f32.mrf.mxu0
  %v2217 = vadd.f32 0.0, %v2216
  %v2218 = vpop.f32.mrf.mxu0
  %v2219 = vadd.f32 0.0, %v2218
  %v2220 = vpop.f32.mrf.mxu0
  %v2221 = vadd.f32 0.0, %v2220
  %v2222 = vpop.f32.mrf.mxu0
  %v2223 = vadd.f32 0.0, %v2222
  %2224 = vmatprep.mubr.bf16.mxu0 %v286
  %2225 = vmatmul.mubr.bf16.gmra.mxu0 %v244
  %v2226 = vpop.f32.mrf.mxu0
  %v2227 = vadd.f32 0.0, %v2226
  %v2228 = vpop.f32.mrf.mxu0
  %v2229 = vadd.f32 0.0, %v2228
  %v2230 = vpop.f32.mrf.mxu0
  %v2231 = vadd.f32 0.0, %v2230
  %v2232 = vpop.f32.mrf.mxu0
  %v2233 = vadd.f32 0.0, %v2232
  %2234 = vmatprep.mubr.bf16.mxu0 %v289
  %2235 = vmatmul.mubr.bf16.gmra.mxu0 %v246
  %v2236 = vpop.f32.mrf.mxu0
  %v2237 = vadd.f32 0.0, %v2236
  %v2238 = vpop.f32.mrf.mxu0
  %v2239 = vadd.f32 0.0, %v2238
  %v2240 = vpop.f32.mrf.mxu0
  %v2241 = vadd.f32 0.0, %v2240
  %v2242 = vpop.f32.mrf.mxu0
  %v2243 = vadd.f32 0.0, %v2242
  %2244 = vmatprep.mubr.bf16.mxu0 %v292
  %2245 = vmatmul.mubr.bf16.gmra.mxu0 %v248
  %v2246 = vpop.f32.mrf.mxu0
  %v2247 = vadd.f32 0.0, %v2246
  %v2248 = vpop.f32.mrf.mxu0
  %v2249 = vadd.f32 0.0, %v2248
  %v2250 = vpop.f32.mrf.mxu0
  %v2251 = vadd.f32 0.0, %v2250
  %v2252 = vpop.f32.mrf.mxu0
  %v2253 = vadd.f32 0.0, %v2252
  %2254 = vmatprep.mubr.bf16.mxu0 %v295
  %2255 = vmatmul.mubr.bf16.gmra.mxu0 %v250
  %v2256 = vpop.f32.mrf.mxu0
  %v2257 = vadd.f32 0.0, %v2256
  %v2258 = vpop.f32.mrf.mxu0
  %v2259 = vadd.f32 0.0, %v2258
  %v2260 = vpop.f32.mrf.mxu0
  %v2261 = vadd.f32 0.0, %v2260
  %v2262 = vpop.f32.mrf.mxu0
  %v2263 = vadd.f32 0.0, %v2262
  %2264 = vmatprep.mubr.bf16.mxu0 %v298
  %2265 = vmatmul.mubr.bf16.gmra.mxu0 %v252
  %v2266 = vpop.f32.mrf.mxu0
  %v2267 = vadd.f32 0.0, %v2266
  %v2268 = vpop.f32.mrf.mxu0
  %v2269 = vadd.f32 0.0, %v2268
  %v2270 = vpop.f32.mrf.mxu0
  %v2271 = vadd.f32 0.0, %v2270
  %v2272 = vpop.f32.mrf.mxu0
  %v2273 = vadd.f32 0.0, %v2272
  %2274 = vmatprep.mubr.bf16.mxu0 %v301
  %2275 = vmatmul.mubr.bf16.gmra.mxu0 %v254
  %v2276 = vpop.f32.mrf.mxu0
  %v2277 = vadd.f32 0.0, %v2276
  %v2278 = vpop.f32.mrf.mxu0
  %v2279 = vadd.f32 0.0, %v2278
  %v2280 = vpop.f32.mrf.mxu0
  %v2281 = vadd.f32 0.0, %v2280
  %v2282 = vpop.f32.mrf.mxu0
  %v2283 = vadd.f32 0.0, %v2282
  %2284 = vmatprep.mubr.bf16.mxu0 %v304
  %2285 = vmatmul.mubr.bf16.gmra.mxu0 %v256
  %v2286 = vpop.f32.mrf.mxu0
  %v2287 = vadd.f32 0.0, %v2286
  %v2288 = vpop.f32.mrf.mxu0
  %v2289 = vadd.f32 0.0, %v2288
  %v2290 = vpop.f32.mrf.mxu0
  %v2291 = vadd.f32 0.0, %v2290
  %v2292 = vpop.f32.mrf.mxu0
  %v2293 = vadd.f32 0.0, %v2292
  %2294 = vmatprep.mubr.bf16.mxu0 %v307
  %2295 = vmatmul.mubr.bf16.gmra.mxu0 %v258
  %v2296 = vpop.f32.mrf.mxu0
  %v2297 = vadd.f32 0.0, %v2296
  %v2298 = vpop.f32.mrf.mxu0
  %v2299 = vadd.f32 0.0, %v2298
  %v2300 = vpop.f32.mrf.mxu0
  %v2301 = vadd.f32 0.0, %v2300
  %v2302 = vpop.f32.mrf.mxu0
  %v2303 = vadd.f32 0.0, %v2302
  %2304 = vdwg.mxu0
  %v2305 = vmax.f32 %v2187, %v2189
  %v2306 = vmax.f32 %v2191, %v2193
  %v2307 = vmax.f32 %v2197, %v2199
  %v2308 = vmax.f32 %v2201, %v2203
  %v2309 = vmax.f32 %v2207, %v2209
  %v2310 = vmax.f32 %v2211, %v2213
  %v2311 = vmax.f32 %v2217, %v2219
  %v2312 = vmax.f32 %v2221, %v2223
  %v2313 = vmax.f32 %v2227, %v2229
  %v2314 = vmax.f32 %v2231, %v2233
  %v2315 = vmax.f32 %v2237, %v2239
  %v2316 = vmax.f32 %v2241, %v2243
  %v2317 = vmax.f32 %v2247, %v2249
  %v2318 = vmax.f32 %v2251, %v2253
  %v2319 = vmax.f32 %v2257, %v2259
  %v2320 = vmax.f32 %v2261, %v2263
  %v2321 = vmax.f32 %v2267, %v2269
  %v2322 = vmax.f32 %v2271, %v2273
  %v2323 = vmax.f32 %v2277, %v2279
  %v2324 = vmax.f32 %v2281, %v2283
  %v2325 = vmax.f32 %v2287, %v2289
  %v2326 = vmax.f32 %v2291, %v2293
  %v2327 = vmax.f32 %v2297, %v2299
  %v2328 = vmax.f32 %v2301, %v2303
  %v2329 = vmax.f32 %v2305, %v2306
  %v2330 = vmax.f32 %v2307, %v2308
  %v2331 = vmax.f32 %v2309, %v2310
  %v2332 = vmax.f32 %v2311, %v2312
  %v2333 = vmax.f32 %v2313, %v2314
  %v2334 = vmax.f32 %v2315, %v2316
  %v2335 = vmax.f32 %v2317, %v2318
  %v2336 = vmax.f32 %v2319, %v2320
  %v2337 = vmax.f32 %v2321, %v2322
  %v2338 = vmax.f32 %v2323, %v2324
  %v2339 = vmax.f32 %v2325, %v2326
  %v2340 = vmax.f32 %v2327, %v2328
  %v2341 = vadd.f32 %v2329, %v513
  %v2342 = vadd.f32 %v2330, %v518
  %v2343 = vadd.f32 %v2331, %v523
  %v2344 = vadd.f32 %v2332, %v528
  %v2345 = vadd.f32 %v2333, %v533
  %v2346 = vadd.f32 %v2334, %v538
  %v2347 = vadd.f32 %v2335, %v543
  %v2348 = vadd.f32 %v2336, %v548
  %v2349 = vadd.f32 %v2337, %v553
  %v2350 = vadd.f32 %v2338, %v558
  %v2351 = vadd.f32 %v2339, %v563
  %v2352 = vadd.f32 %v2340, %v568
  %v2353 = vmax.f32 %v2341, 0.0
  %v2354 = vmax.f32 %v2342, 0.0
  %v2355 = vmax.f32 %v2343, 0.0
  %v2356 = vmax.f32 %v2344, 0.0
  %v2357 = vmax.f32 %v2345, 0.0
  %v2358 = vmax.f32 %v2346, 0.0
  %v2359 = vmax.f32 %v2347, 0.0
  %v2360 = vmax.f32 %v2348, 0.0
  %v2361 = vmax.f32 %v2349, 0.0
  %v2362 = vmax.f32 %v2350, 0.0
  %v2363 = vmax.f32 %v2351, 0.0
  %v2364 = vmax.f32 %v2352, 0.0
  %v2365 = vpack.c.bf16 %v2354, %v2353
  %v2366 = vpack.c.bf16 %v2356, %v2355
  %v2367 = vpack.c.bf16 %v2358, %v2357
  %v2368 = vpack.c.bf16 %v2360, %v2359
  %v2369 = vpack.c.bf16 %v2362, %v2361
  %v2370 = vpack.c.bf16 %v2364, %v2363
  %s2371 = scalar_lea.vmem %s0, 320
  %v2372 = vld [vmem:[%s2371] sm:$0xf]
  %v2373 = vld [vmem:[%s2371 + $0x4] sm:$0xf]
  %v2374 = vld [vmem:[%s2371 + $0x8] sm:$0xf]
  %v2375 = vld [vmem:[%s2371 + $0xc] sm:$0xf]
  %v2380 = vunpack.c.l.b16 %v2372
  %v2381 = vunpack.c.l.b16 %v2373
  %v2382 = vunpack.c.l.b16 %v2374
  %v2383 = vunpack.c.l.b16 %v2375
  %v2384 = vpack.c.b16 %v2381, %v2380
  %v2385 = vpack.c.b16 %v2383, %v2382
  %s2388 = scalar_lea.vmem %s0, 336
  %v2389 = vld [vmem:[%s2388] sm:$0xf]
  %v2390 = vld [vmem:[%s2388 + $0x4] sm:$0xf]
  %v2391 = vld [vmem:[%s2388 + $0x8] sm:$0xf]
  %v2392 = vld [vmem:[%s2388 + $0xc] sm:$0xf]
  %v2397 = vunpack.c.l.b16 %v2389
  %v2398 = vunpack.c.l.b16 %v2390
  %v2399 = vunpack.c.l.b16 %v2391
  %v2400 = vunpack.c.l.b16 %v2392
  %v2401 = vpack.c.b16 %v2398, %v2397
  %v2402 = vpack.c.b16 %v2400, %v2399
  %2405 = vmatprep.subr.bf16.mxu0 %v2385
  %2406 = vmatpush1.bf16.msra.mxu0 %v2149
  %2407 = vmatprep.subr.bf16.mxu0 %v2384
  %2408 = vmatpush1.bf16.msra.mxu0 %v2148
  %2409 = vmatprep.subr.bf16.mxu0 %v2149
  %2410 = vmatpush1.bf16.msra.mxu0 %v2132
  %2411 = vmatprep.subr.bf16.mxu0 %v2148
  %2412 = vmatpush1.bf16.msra.mxu0 %v2131
  %2413 = vmatprep.subr.bf16.mxu0 %v2132
  %2414 = vmatpush1.bf16.msra.mxu0 %v1896
  %2415 = vmatprep.subr.bf16.mxu0 %v2131
  %2416 = vmatpush1.bf16.msra.mxu0 %v1895
  %2417 = vmatprep.subr.bf16.mxu0 %v1896
  %2418 = vmatpush1.bf16.msra.mxu0 %v1879
  %2419 = vmatprep.subr.bf16.mxu0 %v1895
  %2420 = vmatpush1.bf16.msra.mxu0 %v1878
  %2421 = vmatprep.subr.bf16.mxu0 0
  %2422 = vmatpush2.bf16.msra.mxu0 0
  %2423 = vmatprep.subr.bf16.mxu0 0
  %2424 = vmatpush2.bf16.msra.mxu0 0
  %2425 = vmatprep.subr.bf16.mxu0 0
  %2426 = vmatpush2.bf16.msra.mxu0 0
  %2427 = vmatprep.subr.bf16.mxu0 0
  %2428 = vmatpush2.bf16.msra.mxu0 0
  %2429 = vmatprep.subr.bf16.mxu0 0
  %2430 = vmatpush2.bf16.msra.mxu0 0
  %2431 = vmatprep.subr.bf16.mxu0 0
  %2432 = vmatpush2.bf16.msra.mxu0 0
  %2433 = vmatprep.subr.bf16.mxu0 %v2402
  %2434 = vmatpush2.bf16.msra.mxu0 %v2385
  %2435 = vmatprep.subr.bf16.mxu0 %v2401
  %2436 = vmatpush2.bf16.msra.mxu0 %v2384
  %2437 = vmatprep.mubr.bf16.mxu0 %v274
  %2438 = vmatmul.mubr.bf16.gmra.mxu0 %v236
  %v2439 = vpop.f32.mrf.mxu0
  %v2440 = vadd.f32 0.0, %v2439
  %v2441 = vpop.f32.mrf.mxu0
  %v2442 = vadd.f32 0.0, %v2441
  %v2443 = vpop.f32.mrf.mxu0
  %v2444 = vadd.f32 0.0, %v2443
  %v2445 = vpop.f32.mrf.mxu0
  %v2446 = vadd.f32 0.0, %v2445
  %2447 = vmatprep.mubr.bf16.mxu0 %v277
  %2448 = vmatmul.mubr.bf16.gmra.mxu0 %v238
  %v2449 = vpop.f32.mrf.mxu0
  %v2450 = vadd.f32 0.0, %v2449
  %v2451 = vpop.f32.mrf.mxu0
  %v2452 = vadd.f32 0.0, %v2451
  %v2453 = vpop.f32.mrf.mxu0
  %v2454 = vadd.f32 0.0, %v2453
  %v2455 = vpop.f32.mrf.mxu0
  %v2456 = vadd.f32 0.0, %v2455
  %2457 = vmatprep.mubr.bf16.mxu0 %v280
  %2458 = vmatmul.mubr.bf16.gmra.mxu0 %v240
  %v2459 = vpop.f32.mrf.mxu0
  %v2460 = vadd.f32 0.0, %v2459
  %v2461 = vpop.f32.mrf.mxu0
  %v2462 = vadd.f32 0.0, %v2461
  %v2463 = vpop.f32.mrf.mxu0
  %v2464 = vadd.f32 0.0, %v2463
  %v2465 = vpop.f32.mrf.mxu0
  %v2466 = vadd.f32 0.0, %v2465
  %2467 = vmatprep.mubr.bf16.mxu0 %v283
  %2468 = vmatmul.mubr.bf16.gmra.mxu0 %v242
  %v2469 = vpop.f32.mrf.mxu0
  %v2470 = vadd.f32 0.0, %v2469
  %v2471 = vpop.f32.mrf.mxu0
  %v2472 = vadd.f32 0.0, %v2471
  %v2473 = vpop.f32.mrf.mxu0
  %v2474 = vadd.f32 0.0, %v2473
  %v2475 = vpop.f32.mrf.mxu0
  %v2476 = vadd.f32 0.0, %v2475
  %2477 = vmatprep.mubr.bf16.mxu0 %v286
  %2478 = vmatmul.mubr.bf16.gmra.mxu0 %v244
  %v2479 = vpop.f32.mrf.mxu0
  %v2480 = vadd.f32 0.0, %v2479
  %v2481 = vpop.f32.mrf.mxu0
  %v2482 = vadd.f32 0.0, %v2481
  %v2483 = vpop.f32.mrf.mxu0
  %v2484 = vadd.f32 0.0, %v2483
  %v2485 = vpop.f32.mrf.mxu0
  %v2486 = vadd.f32 0.0, %v2485
  %2487 = vmatprep.mubr.bf16.mxu0 %v289
  %2488 = vmatmul.mubr.bf16.gmra.mxu0 %v246
  %v2489 = vpop.f32.mrf.mxu0
  %v2490 = vadd.f32 0.0, %v2489
  %v2491 = vpop.f32.mrf.mxu0
  %v2492 = vadd.f32 0.0, %v2491
  %v2493 = vpop.f32.mrf.mxu0
  %v2494 = vadd.f32 0.0, %v2493
  %v2495 = vpop.f32.mrf.mxu0
  %v2496 = vadd.f32 0.0, %v2495
  %2497 = vmatprep.mubr.bf16.mxu0 %v292
  %2498 = vmatmul.mubr.bf16.gmra.mxu0 %v248
  %v2499 = vpop.f32.mrf.mxu0
  %v2500 = vadd.f32 0.0, %v2499
  %v2501 = vpop.f32.mrf.mxu0
  %v2502 = vadd.f32 0.0, %v2501
  %v2503 = vpop.f32.mrf.mxu0
  %v2504 = vadd.f32 0.0, %v2503
  %v2505 = vpop.f32.mrf.mxu0
  %v2506 = vadd.f32 0.0, %v2505
  %2507 = vmatprep.mubr.bf16.mxu0 %v295
  %2508 = vmatmul.mubr.bf16.gmra.mxu0 %v250
  %v2509 = vpop.f32.mrf.mxu0
  %v2510 = vadd.f32 0.0, %v2509
  %v2511 = vpop.f32.mrf.mxu0
  %v2512 = vadd.f32 0.0, %v2511
  %v2513 = vpop.f32.mrf.mxu0
  %v2514 = vadd.f32 0.0, %v2513
  %v2515 = vpop.f32.mrf.mxu0
  %v2516 = vadd.f32 0.0, %v2515
  %2517 = vmatprep.mubr.bf16.mxu0 %v298
  %2518 = vmatmul.mubr.bf16.gmra.mxu0 %v252
  %v2519 = vpop.f32.mrf.mxu0
  %v2520 = vadd.f32 0.0, %v2519
  %v2521 = vpop.f32.mrf.mxu0
  %v2522 = vadd.f32 0.0, %v2521
  %v2523 = vpop.f32.mrf.mxu0
  %v2524 = vadd.f32 0.0, %v2523
  %v2525 = vpop.f32.mrf.mxu0
  %v2526 = vadd.f32 0.0, %v2525
  %2527 = vmatprep.mubr.bf16.mxu0 %v301
  %2528 = vmatmul.mubr.bf16.gmra.mxu0 %v254
  %v2529 = vpop.f32.mrf.mxu0
  %v2530 = vadd.f32 0.0, %v2529
  %v2531 = vpop.f32.mrf.mxu0
  %v2532 = vadd.f32 0.0, %v2531
  %v2533 = vpop.f32.mrf.mxu0
  %v2534 = vadd.f32 0.0, %v2533
  %v2535 = vpop.f32.mrf.mxu0
  %v2536 = vadd.f32 0.0, %v2535
  %2537 = vmatprep.mubr.bf16.mxu0 %v304
  %2538 = vmatmul.mubr.bf16.gmra.mxu0 %v256
  %v2539 = vpop.f32.mrf.mxu0
  %v2540 = vadd.f32 0.0, %v2539
  %v2541 = vpop.f32.mrf.mxu0
  %v2542 = vadd.f32 0.0, %v2541
  %v2543 = vpop.f32.mrf.mxu0
  %v2544 = vadd.f32 0.0, %v2543
  %v2545 = vpop.f32.mrf.mxu0
  %v2546 = vadd.f32 0.0, %v2545
  %2547 = vmatprep.mubr.bf16.mxu0 %v307
  %2548 = vmatmul.mubr.bf16.gmra.mxu0 %v258
  %v2549 = vpop.f32.mrf.mxu0
  %v2550 = vadd.f32 0.0, %v2549
  %v2551 = vpop.f32.mrf.mxu0
  %v2552 = vadd.f32 0.0, %v2551
  %v2553 = vpop.f32.mrf.mxu0
  %v2554 = vadd.f32 0.0, %v2553
  %v2555 = vpop.f32.mrf.mxu0
  %v2556 = vadd.f32 0.0, %v2555
  %2557 = vdwg.mxu0
  %v2558 = vmax.f32 %v2440, %v2442
  %v2559 = vmax.f32 %v2444, %v2446
  %v2560 = vmax.f32 %v2450, %v2452
  %v2561 = vmax.f32 %v2454, %v2456
  %v2562 = vmax.f32 %v2460, %v2462
  %v2563 = vmax.f32 %v2464, %v2466
  %v2564 = vmax.f32 %v2470, %v2472
  %v2565 = vmax.f32 %v2474, %v2476
  %v2566 = vmax.f32 %v2480, %v2482
  %v2567 = vmax.f32 %v2484, %v2486
  %v2568 = vmax.f32 %v2490, %v2492
  %v2569 = vmax.f32 %v2494, %v2496
  %v2570 = vmax.f32 %v2500, %v2502
  %v2571 = vmax.f32 %v2504, %v2506
  %v2572 = vmax.f32 %v2510, %v2512
  %v2573 = vmax.f32 %v2514, %v2516
  %v2574 = vmax.f32 %v2520, %v2522
  %v2575 = vmax.f32 %v2524, %v2526
  %v2576 = vmax.f32 %v2530, %v2532
  %v2577 = vmax.f32 %v2534, %v2536
  %v2578 = vmax.f32 %v2540, %v2542
  %v2579 = vmax.f32 %v2544, %v2546
  %v2580 = vmax.f32 %v2550, %v2552
  %v2581 = vmax.f32 %v2554, %v2556
  %v2582 = vmax.f32 %v2558, %v2559
  %v2583 = vmax.f32 %v2560, %v2561
  %v2584 = vmax.f32 %v2562, %v2563
  %v2585 = vmax.f32 %v2564, %v2565
  %v2586 = vmax.f32 %v2566, %v2567
  %v2587 = vmax.f32 %v2568, %v2569
  %v2588 = vmax.f32 %v2570, %v2571
  %v2589 = vmax.f32 %v2572, %v2573
  %v2590 = vmax.f32 %v2574, %v2575
  %v2591 = vmax.f32 %v2576, %v2577
  %v2592 = vmax.f32 %v2578, %v2579
  %v2593 = vmax.f32 %v2580, %v2581
  %v2594 = vadd.f32 %v2582, %v513
  %v2595 = vadd.f32 %v2583, %v518
  %v2596 = vadd.f32 %v2584, %v523
  %v2597 = vadd.f32 %v2585, %v528
  %v2598 = vadd.f32 %v2586, %v533
  %v2599 = vadd.f32 %v2587, %v538
  %v2600 = vadd.f32 %v2588, %v543
  %v2601 = vadd.f32 %v2589, %v548
  %v2602 = vadd.f32 %v2590, %v553
  %v2603 = vadd.f32 %v2591, %v558
  %v2604 = vadd.f32 %v2592, %v563
  %v2605 = vadd.f32 %v2593, %v568
  %v2606 = vmax.f32 %v2594, 0.0
  %v2607 = vmax.f32 %v2595, 0.0
  %v2608 = vmax.f32 %v2596, 0.0
  %v2609 = vmax.f32 %v2597, 0.0
  %v2610 = vmax.f32 %v2598, 0.0
  %v2611 = vmax.f32 %v2599, 0.0
  %v2612 = vmax.f32 %v2600, 0.0
  %v2613 = vmax.f32 %v2601, 0.0
  %v2614 = vmax.f32 %v2602, 0.0
  %v2615 = vmax.f32 %v2603, 0.0
  %v2616 = vmax.f32 %v2604, 0.0
  %v2617 = vmax.f32 %v2605, 0.0
  %v2618 = vpack.c.bf16 %v2607, %v2606
  %v2619 = vpack.c.bf16 %v2609, %v2608
  %v2620 = vpack.c.bf16 %v2611, %v2610
  %v2621 = vpack.c.bf16 %v2613, %v2612
  %v2622 = vpack.c.bf16 %v2615, %v2614
  %v2623 = vpack.c.bf16 %v2617, %v2616
  %s2624 = scalar_lea.vmem %s0, 352
  %v2625 = vld [vmem:[%s2624] sm:$0xf]
  %v2626 = vld [vmem:[%s2624 + $0x4] sm:$0xf]
  %v2627 = vld [vmem:[%s2624 + $0x8] sm:$0xf]
  %v2628 = vld [vmem:[%s2624 + $0xc] sm:$0xf]
  %v2633 = vunpack.c.l.b16 %v2625
  %v2634 = vunpack.c.l.b16 %v2626
  %v2635 = vunpack.c.l.b16 %v2627
  %v2636 = vunpack.c.l.b16 %v2628
  %v2637 = vpack.c.b16 %v2634, %v2633
  %v2638 = vpack.c.b16 %v2636, %v2635
  %s2641 = scalar_lea.vmem %s0, 368
  %v2642 = vld [vmem:[%s2641] sm:$0xf]
  %v2643 = vld [vmem:[%s2641 + $0x4] sm:$0xf]
  %v2644 = vld [vmem:[%s2641 + $0x8] sm:$0xf]
  %v2645 = vld [vmem:[%s2641 + $0xc] sm:$0xf]
  %v2650 = vunpack.c.l.b16 %v2642
  %v2651 = vunpack.c.l.b16 %v2643
  %v2652 = vunpack.c.l.b16 %v2644
  %v2653 = vunpack.c.l.b16 %v2645
  %v2654 = vpack.c.b16 %v2651, %v2650
  %v2655 = vpack.c.b16 %v2653, %v2652
  %2658 = vmatprep.subr.bf16.mxu0 %v2638
  %2659 = vmatpush1.bf16.msra.mxu0 %v2402
  %2660 = vmatprep.subr.bf16.mxu0 %v2637
  %2661 = vmatpush1.bf16.msra.mxu0 %v2401
  %2662 = vmatprep.subr.bf16.mxu0 %v2402
  %2663 = vmatpush1.bf16.msra.mxu0 %v2385
  %2664 = vmatprep.subr.bf16.mxu0 %v2401
  %2665 = vmatpush1.bf16.msra.mxu0 %v2384
  %2666 = vmatprep.subr.bf16.mxu0 %v2385
  %2667 = vmatpush1.bf16.msra.mxu0 %v2149
  %2668 = vmatprep.subr.bf16.mxu0 %v2384
  %2669 = vmatpush1.bf16.msra.mxu0 %v2148
  %2670 = vmatprep.subr.bf16.mxu0 %v2149
  %2671 = vmatpush1.bf16.msra.mxu0 %v2132
  %2672 = vmatprep.subr.bf16.mxu0 %v2148
  %2673 = vmatpush1.bf16.msra.mxu0 %v2131
  %2674 = vmatprep.subr.bf16.mxu0 0
  %2675 = vmatpush2.bf16.msra.mxu0 0
  %2676 = vmatprep.subr.bf16.mxu0 0
  %2677 = vmatpush2.bf16.msra.mxu0 0
  %2678 = vmatprep.subr.bf16.mxu0 0
  %2679 = vmatpush2.bf16.msra.mxu0 0
  %2680 = vmatprep.subr.bf16.mxu0 0
  %2681 = vmatpush2.bf16.msra.mxu0 0
  %2682 = vmatprep.subr.bf16.mxu0 0
  %2683 = vmatpush2.bf16.msra.mxu0 0
  %2684 = vmatprep.subr.bf16.mxu0 0
  %2685 = vmatpush2.bf16.msra.mxu0 0
  %2686 = vmatprep.subr.bf16.mxu0 %v2655
  %2687 = vmatpush2.bf16.msra.mxu0 %v2638
  %2688 = vmatprep.subr.bf16.mxu0 %v2654
  %2689 = vmatpush2.bf16.msra.mxu0 %v2637
  %2690 = vmatprep.mubr.bf16.mxu0 %v274
  %2691 = vmatmul.mubr.bf16.gmra.mxu0 %v236
  %v2692 = vpop.f32.mrf.mxu0
  %v2693 = vadd.f32 0.0, %v2692
  %v2694 = vpop.f32.mrf.mxu0
  %v2695 = vadd.f32 0.0, %v2694
  %v2696 = vpop.f32.mrf.mxu0
  %v2697 = vadd.f32 0.0, %v2696
  %v2698 = vpop.f32.mrf.mxu0
  %v2699 = vadd.f32 0.0, %v2698
  %2700 = vmatprep.mubr.bf16.mxu0 %v277
  %2701 = vmatmul.mubr.bf16.gmra.mxu0 %v238
  %v2702 = vpop.f32.mrf.mxu0
  %v2703 = vadd.f32 0.0, %v2702
  %v2704 = vpop.f32.mrf.mxu0
  %v2705 = vadd.f32 0.0, %v2704
  %v2706 = vpop.f32.mrf.mxu0
  %v2707 = vadd.f32 0.0, %v2706
  %v2708 = vpop.f32.mrf.mxu0
  %v2709 = vadd.f32 0.0, %v2708
  %2710 = vmatprep.mubr.bf16.mxu0 %v280
  %2711 = vmatmul.mubr.bf16.gmra.mxu0 %v240
  %v2712 = vpop.f32.mrf.mxu0
  %v2713 = vadd.f32 0.0, %v2712
  %v2714 = vpop.f32.mrf.mxu0
  %v2715 = vadd.f32 0.0, %v2714
  %v2716 = vpop.f32.mrf.mxu0
  %v2717 = vadd.f32 0.0, %v2716
  %v2718 = vpop.f32.mrf.mxu0
  %v2719 = vadd.f32 0.0, %v2718
  %2720 = vmatprep.mubr.bf16.mxu0 %v283
  %2721 = vmatmul.mubr.bf16.gmra.mxu0 %v242
  %v2722 = vpop.f32.mrf.mxu0
  %v2723 = vadd.f32 0.0, %v2722
  %v2724 = vpop.f32.mrf.mxu0
  %v2725 = vadd.f32 0.0, %v2724
  %v2726 = vpop.f32.mrf.mxu0
  %v2727 = vadd.f32 0.0, %v2726
  %v2728 = vpop.f32.mrf.mxu0
  %v2729 = vadd.f32 0.0, %v2728
  %2730 = vmatprep.mubr.bf16.mxu0 %v286
  %2731 = vmatmul.mubr.bf16.gmra.mxu0 %v244
  %v2732 = vpop.f32.mrf.mxu0
  %v2733 = vadd.f32 0.0, %v2732
  %v2734 = vpop.f32.mrf.mxu0
  %v2735 = vadd.f32 0.0, %v2734
  %v2736 = vpop.f32.mrf.mxu0
  %v2737 = vadd.f32 0.0, %v2736
  %v2738 = vpop.f32.mrf.mxu0
  %v2739 = vadd.f32 0.0, %v2738
  %2740 = vmatprep.mubr.bf16.mxu0 %v289
  %2741 = vmatmul.mubr.bf16.gmra.mxu0 %v246
  %v2742 = vpop.f32.mrf.mxu0
  %v2743 = vadd.f32 0.0, %v2742
  %v2744 = vpop.f32.mrf.mxu0
  %v2745 = vadd.f32 0.0, %v2744
  %v2746 = vpop.f32.mrf.mxu0
  %v2747 = vadd.f32 0.0, %v2746
  %v2748 = vpop.f32.mrf.mxu0
  %v2749 = vadd.f32 0.0, %v2748
  %2750 = vmatprep.mubr.bf16.mxu0 %v292
  %2751 = vmatmul.mubr.bf16.gmra.mxu0 %v248
  %v2752 = vpop.f32.mrf.mxu0
  %v2753 = vadd.f32 0.0, %v2752
  %v2754 = vpop.f32.mrf.mxu0
  %v2755 = vadd.f32 0.0, %v2754
  %v2756 = vpop.f32.mrf.mxu0
  %v2757 = vadd.f32 0.0, %v2756
  %v2758 = vpop.f32.mrf.mxu0
  %v2759 = vadd.f32 0.0, %v2758
  %2760 = vmatprep.mubr.bf16.mxu0 %v295
  %2761 = vmatmul.mubr.bf16.gmra.mxu0 %v250
  %v2762 = vpop.f32.mrf.mxu0
  %v2763 = vadd.f32 0.0, %v2762
  %v2764 = vpop.f32.mrf.mxu0
  %v2765 = vadd.f32 0.0, %v2764
  %v2766 = vpop.f32.mrf.mxu0
  %v2767 = vadd.f32 0.0, %v2766
  %v2768 = vpop.f32.mrf.mxu0
  %v2769 = vadd.f32 0.0, %v2768
  %2770 = vmatprep.mubr.bf16.mxu0 %v298
  %2771 = vmatmul.mubr.bf16.gmra.mxu0 %v252
  %v2772 = vpop.f32.mrf.mxu0
  %v2773 = vadd.f32 0.0, %v2772
  %v2774 = vpop.f32.mrf.mxu0
  %v2775 = vadd.f32 0.0, %v2774
  %v2776 = vpop.f32.mrf.mxu0
  %v2777 = vadd.f32 0.0, %v2776
  %v2778 = vpop.f32.mrf.mxu0
  %v2779 = vadd.f32 0.0, %v2778
  %2780 = vmatprep.mubr.bf16.mxu0 %v301
  %2781 = vmatmul.mubr.bf16.gmra.mxu0 %v254
  %v2782 = vpop.f32.mrf.mxu0
  %v2783 = vadd.f32 0.0, %v2782
  %v2784 = vpop.f32.mrf.mxu0
  %v2785 = vadd.f32 0.0, %v2784
  %v2786 = vpop.f32.mrf.mxu0
  %v2787 = vadd.f32 0.0, %v2786
  %v2788 = vpop.f32.mrf.mxu0
  %v2789 = vadd.f32 0.0, %v2788
  %2790 = vmatprep.mubr.bf16.mxu0 %v304
  %2791 = vmatmul.mubr.bf16.gmra.mxu0 %v256
  %v2792 = vpop.f32.mrf.mxu0
  %v2793 = vadd.f32 0.0, %v2792
  %v2794 = vpop.f32.mrf.mxu0
  %v2795 = vadd.f32 0.0, %v2794
  %v2796 = vpop.f32.mrf.mxu0
  %v2797 = vadd.f32 0.0, %v2796
  %v2798 = vpop.f32.mrf.mxu0
  %v2799 = vadd.f32 0.0, %v2798
  %2800 = vmatprep.mubr.bf16.mxu0 %v307
  %2801 = vmatmul.mubr.bf16.gmra.mxu0 %v258
  %v2802 = vpop.f32.mrf.mxu0
  %v2803 = vadd.f32 0.0, %v2802
  %v2804 = vpop.f32.mrf.mxu0
  %v2805 = vadd.f32 0.0, %v2804
  %v2806 = vpop.f32.mrf.mxu0
  %v2807 = vadd.f32 0.0, %v2806
  %v2808 = vpop.f32.mrf.mxu0
  %v2809 = vadd.f32 0.0, %v2808
  %2810 = vdwg.mxu0
  %v2811 = vmax.f32 %v2693, %v2695
  %v2812 = vmax.f32 %v2697, %v2699
  %v2813 = vmax.f32 %v2703, %v2705
  %v2814 = vmax.f32 %v2707, %v2709
  %v2815 = vmax.f32 %v2713, %v2715
  %v2816 = vmax.f32 %v2717, %v2719
  %v2817 = vmax.f32 %v2723, %v2725
  %v2818 = vmax.f32 %v2727, %v2729
  %v2819 = vmax.f32 %v2733, %v2735
  %v2820 = vmax.f32 %v2737, %v2739
  %v2821 = vmax.f32 %v2743, %v2745
  %v2822 = vmax.f32 %v2747, %v2749
  %v2823 = vmax.f32 %v2753, %v2755
  %v2824 = vmax.f32 %v2757, %v2759
  %v2825 = vmax.f32 %v2763, %v2765
  %v2826 = vmax.f32 %v2767, %v2769
  %v2827 = vmax.f32 %v2773, %v2775
  %v2828 = vmax.f32 %v2777, %v2779
  %v2829 = vmax.f32 %v2783, %v2785
  %v2830 = vmax.f32 %v2787, %v2789
  %v2831 = vmax.f32 %v2793, %v2795
  %v2832 = vmax.f32 %v2797, %v2799
  %v2833 = vmax.f32 %v2803, %v2805
  %v2834 = vmax.f32 %v2807, %v2809
  %v2835 = vmax.f32 %v2811, %v2812
  %v2836 = vmax.f32 %v2813, %v2814
  %v2837 = vmax.f32 %v2815, %v2816
  %v2838 = vmax.f32 %v2817, %v2818
  %v2839 = vmax.f32 %v2819, %v2820
  %v2840 = vmax.f32 %v2821, %v2822
  %v2841 = vmax.f32 %v2823, %v2824
  %v2842 = vmax.f32 %v2825, %v2826
  %v2843 = vmax.f32 %v2827, %v2828
  %v2844 = vmax.f32 %v2829, %v2830
  %v2845 = vmax.f32 %v2831, %v2832
  %v2846 = vmax.f32 %v2833, %v2834
  %v2847 = vadd.f32 %v2835, %v513
  %v2848 = vadd.f32 %v2836, %v518
  %v2849 = vadd.f32 %v2837, %v523
  %v2850 = vadd.f32 %v2838, %v528
  %v2851 = vadd.f32 %v2839, %v533
  %v2852 = vadd.f32 %v2840, %v538
  %v2853 = vadd.f32 %v2841, %v543
  %v2854 = vadd.f32 %v2842, %v548
  %v2855 = vadd.f32 %v2843, %v553
  %v2856 = vadd.f32 %v2844, %v558
  %v2857 = vadd.f32 %v2845, %v563
  %v2858 = vadd.f32 %v2846, %v568
  %v2859 = vmax.f32 %v2847, 0.0
  %v2860 = vmax.f32 %v2848, 0.0
  %v2861 = vmax.f32 %v2849, 0.0
  %v2862 = vmax.f32 %v2850, 0.0
  %v2863 = vmax.f32 %v2851, 0.0
  %v2864 = vmax.f32 %v2852, 0.0
  %v2865 = vmax.f32 %v2853, 0.0
  %v2866 = vmax.f32 %v2854, 0.0
  %v2867 = vmax.f32 %v2855, 0.0
  %v2868 = vmax.f32 %v2856, 0.0
  %v2869 = vmax.f32 %v2857, 0.0
  %v2870 = vmax.f32 %v2858, 0.0
  %v2871 = vpack.c.bf16 %v2860, %v2859
  %v2872 = vpack.c.bf16 %v2862, %v2861
  %v2873 = vpack.c.bf16 %v2864, %v2863
  %v2874 = vpack.c.bf16 %v2866, %v2865
  %v2875 = vpack.c.bf16 %v2868, %v2867
  %v2876 = vpack.c.bf16 %v2870, %v2869
  %s2877 = scalar_lea.vmem %s0, 384
  %v2878 = vld [vmem:[%s2877] sm:$0xf]
  %v2879 = vld [vmem:[%s2877 + $0x4] sm:$0xf]
  %v2880 = vld [vmem:[%s2877 + $0x8] sm:$0xf]
  %v2881 = vld [vmem:[%s2877 + $0xc] sm:$0xf]
  %v2886 = vunpack.c.l.b16 %v2878
  %v2887 = vunpack.c.l.b16 %v2879
  %v2888 = vunpack.c.l.b16 %v2880
  %v2889 = vunpack.c.l.b16 %v2881
  %v2890 = vpack.c.b16 %v2887, %v2886
  %v2891 = vpack.c.b16 %v2889, %v2888
  %s2894 = scalar_lea.vmem %s0, 400
  %v2895 = vld [vmem:[%s2894] sm:$0xf]
  %v2896 = vld [vmem:[%s2894 + $0x4] sm:$0xf]
  %v2897 = vld [vmem:[%s2894 + $0x8] sm:$0xf]
  %v2898 = vld [vmem:[%s2894 + $0xc] sm:$0xf]
  %v2903 = vunpack.c.l.b16 %v2895
  %v2904 = vunpack.c.l.b16 %v2896
  %v2905 = vunpack.c.l.b16 %v2897
  %v2906 = vunpack.c.l.b16 %v2898
  %v2907 = vpack.c.b16 %v2904, %v2903
  %v2908 = vpack.c.b16 %v2906, %v2905
  %2911 = vmatprep.subr.bf16.mxu0 %v2891
  %2912 = vmatpush1.bf16.msra.mxu0 %v2655
  %2913 = vmatprep.subr.bf16.mxu0 %v2890
  %2914 = vmatpush1.bf16.msra.mxu0 %v2654
  %2915 = vmatprep.subr.bf16.mxu0 %v2655
  %2916 = vmatpush1.bf16.msra.mxu0 %v2638
  %2917 = vmatprep.subr.bf16.mxu0 %v2654
  %2918 = vmatpush1.bf16.msra.mxu0 %v2637
  %2919 = vmatprep.subr.bf16.mxu0 %v2638
  %2920 = vmatpush1.bf16.msra.mxu0 %v2402
  %2921 = vmatprep.subr.bf16.mxu0 %v2637
  %2922 = vmatpush1.bf16.msra.mxu0 %v2401
  %2923 = vmatprep.subr.bf16.mxu0 %v2402
  %2924 = vmatpush1.bf16.msra.mxu0 %v2385
  %2925 = vmatprep.subr.bf16.mxu0 %v2401
  %2926 = vmatpush1.bf16.msra.mxu0 %v2384
  %2927 = vmatprep.subr.bf16.mxu0 0
  %2928 = vmatpush2.bf16.msra.mxu0 0
  %2929 = vmatprep.subr.bf16.mxu0 0
  %2930 = vmatpush2.bf16.msra.mxu0 0
  %2931 = vmatprep.subr.bf16.mxu0 0
  %2932 = vmatpush2.bf16.msra.mxu0 0
  %2933 = vmatprep.subr.bf16.mxu0 0
  %2934 = vmatpush2.bf16.msra.mxu0 0
  %2935 = vmatprep.subr.bf16.mxu0 0
  %2936 = vmatpush2.bf16.msra.mxu0 0
  %2937 = vmatprep.subr.bf16.mxu0 0
  %2938 = vmatpush2.bf16.msra.mxu0 0
  %2939 = vmatprep.subr.bf16.mxu0 %v2908
  %2940 = vmatpush2.bf16.msra.mxu0 %v2891
  %2941 = vmatprep.subr.bf16.mxu0 %v2907
  %2942 = vmatpush2.bf16.msra.mxu0 %v2890
  %2943 = vmatprep.mubr.bf16.mxu0 %v274
  %2944 = vmatmul.mubr.bf16.gmra.mxu0 %v236
  %v2945 = vpop.f32.mrf.mxu0
  %v2946 = vadd.f32 0.0, %v2945
  %v2947 = vpop.f32.mrf.mxu0
  %v2948 = vadd.f32 0.0, %v2947
  %v2949 = vpop.f32.mrf.mxu0
  %v2950 = vadd.f32 0.0, %v2949
  %v2951 = vpop.f32.mrf.mxu0
  %v2952 = vadd.f32 0.0, %v2951
  %2953 = vmatprep.mubr.bf16.mxu0 %v277
  %2954 = vmatmul.mubr.bf16.gmra.mxu0 %v238
  %v2955 = vpop.f32.mrf.mxu0
  %v2956 = vadd.f32 0.0, %v2955
  %v2957 = vpop.f32.mrf.mxu0
  %v2958 = vadd.f32 0.0, %v2957
  %v2959 = vpop.f32.mrf.mxu0
  %v2960 = vadd.f32 0.0, %v2959
  %v2961 = vpop.f32.mrf.mxu0
  %v2962 = vadd.f32 0.0, %v2961
  %2963 = vmatprep.mubr.bf16.mxu0 %v280
  %2964 = vmatmul.mubr.bf16.gmra.mxu0 %v240
  %v2965 = vpop.f32.mrf.mxu0
  %v2966 = vadd.f32 0.0, %v2965
  %v2967 = vpop.f32.mrf.mxu0
  %v2968 = vadd.f32 0.0, %v2967
  %v2969 = vpop.f32.mrf.mxu0
  %v2970 = vadd.f32 0.0, %v2969
  %v2971 = vpop.f32.mrf.mxu0
  %v2972 = vadd.f32 0.0, %v2971
  %2973 = vmatprep.mubr.bf16.mxu0 %v283
  %2974 = vmatmul.mubr.bf16.gmra.mxu0 %v242
  %v2975 = vpop.f32.mrf.mxu0
  %v2976 = vadd.f32 0.0, %v2975
  %v2977 = vpop.f32.mrf.mxu0
  %v2978 = vadd.f32 0.0, %v2977
  %v2979 = vpop.f32.mrf.mxu0
  %v2980 = vadd.f32 0.0, %v2979
  %v2981 = vpop.f32.mrf.mxu0
  %v2982 = vadd.f32 0.0, %v2981
  %2983 = vmatprep.mubr.bf16.mxu0 %v286
  %2984 = vmatmul.mubr.bf16.gmra.mxu0 %v244
  %v2985 = vpop.f32.mrf.mxu0
  %v2986 = vadd.f32 0.0, %v2985
  %v2987 = vpop.f32.mrf.mxu0
  %v2988 = vadd.f32 0.0, %v2987
  %v2989 = vpop.f32.mrf.mxu0
  %v2990 = vadd.f32 0.0, %v2989
  %v2991 = vpop.f32.mrf.mxu0
  %v2992 = vadd.f32 0.0, %v2991
  %2993 = vmatprep.mubr.bf16.mxu0 %v289
  %2994 = vmatmul.mubr.bf16.gmra.mxu0 %v246
  %v2995 = vpop.f32.mrf.mxu0
  %v2996 = vadd.f32 0.0, %v2995
  %v2997 = vpop.f32.mrf.mxu0
  %v2998 = vadd.f32 0.0, %v2997
  %v2999 = vpop.f32.mrf.mxu0
  %v3000 = vadd.f32 0.0, %v2999
  %v3001 = vpop.f32.mrf.mxu0
  %v3002 = vadd.f32 0.0, %v3001
  %3003 = vmatprep.mubr.bf16.mxu0 %v292
  %3004 = vmatmul.mubr.bf16.gmra.mxu0 %v248
  %v3005 = vpop.f32.mrf.mxu0
  %v3006 = vadd.f32 0.0, %v3005
  %v3007 = vpop.f32.mrf.mxu0
  %v3008 = vadd.f32 0.0, %v3007
  %v3009 = vpop.f32.mrf.mxu0
  %v3010 = vadd.f32 0.0, %v3009
  %v3011 = vpop.f32.mrf.mxu0
  %v3012 = vadd.f32 0.0, %v3011
  %3013 = vmatprep.mubr.bf16.mxu0 %v295
  %3014 = vmatmul.mubr.bf16.gmra.mxu0 %v250
  %v3015 = vpop.f32.mrf.mxu0
  %v3016 = vadd.f32 0.0, %v3015
  %v3017 = vpop.f32.mrf.mxu0
  %v3018 = vadd.f32 0.0, %v3017
  %v3019 = vpop.f32.mrf.mxu0
  %v3020 = vadd.f32 0.0, %v3019
  %v3021 = vpop.f32.mrf.mxu0
  %v3022 = vadd.f32 0.0, %v3021
  %3023 = vmatprep.mubr.bf16.mxu0 %v298
  %3024 = vmatmul.mubr.bf16.gmra.mxu0 %v252
  %v3025 = vpop.f32.mrf.mxu0
  %v3026 = vadd.f32 0.0, %v3025
  %v3027 = vpop.f32.mrf.mxu0
  %v3028 = vadd.f32 0.0, %v3027
  %v3029 = vpop.f32.mrf.mxu0
  %v3030 = vadd.f32 0.0, %v3029
  %v3031 = vpop.f32.mrf.mxu0
  %v3032 = vadd.f32 0.0, %v3031
  %3033 = vmatprep.mubr.bf16.mxu0 %v301
  %3034 = vmatmul.mubr.bf16.gmra.mxu0 %v254
  %v3035 = vpop.f32.mrf.mxu0
  %v3036 = vadd.f32 0.0, %v3035
  %v3037 = vpop.f32.mrf.mxu0
  %v3038 = vadd.f32 0.0, %v3037
  %v3039 = vpop.f32.mrf.mxu0
  %v3040 = vadd.f32 0.0, %v3039
  %v3041 = vpop.f32.mrf.mxu0
  %v3042 = vadd.f32 0.0, %v3041
  %3043 = vmatprep.mubr.bf16.mxu0 %v304
  %3044 = vmatmul.mubr.bf16.gmra.mxu0 %v256
  %v3045 = vpop.f32.mrf.mxu0
  %v3046 = vadd.f32 0.0, %v3045
  %v3047 = vpop.f32.mrf.mxu0
  %v3048 = vadd.f32 0.0, %v3047
  %v3049 = vpop.f32.mrf.mxu0
  %v3050 = vadd.f32 0.0, %v3049
  %v3051 = vpop.f32.mrf.mxu0
  %v3052 = vadd.f32 0.0, %v3051
  %3053 = vmatprep.mubr.bf16.mxu0 %v307
  %3054 = vmatmul.mubr.bf16.gmra.mxu0 %v258
  %v3055 = vpop.f32.mrf.mxu0
  %v3056 = vadd.f32 0.0, %v3055
  %v3057 = vpop.f32.mrf.mxu0
  %v3058 = vadd.f32 0.0, %v3057
  %v3059 = vpop.f32.mrf.mxu0
  %v3060 = vadd.f32 0.0, %v3059
  %v3061 = vpop.f32.mrf.mxu0
  %v3062 = vadd.f32 0.0, %v3061
  %3063 = vdwg.mxu0
  %v3064 = vmax.f32 %v2946, %v2948
  %v3065 = vmax.f32 %v2950, %v2952
  %v3066 = vmax.f32 %v2956, %v2958
  %v3067 = vmax.f32 %v2960, %v2962
  %v3068 = vmax.f32 %v2966, %v2968
  %v3069 = vmax.f32 %v2970, %v2972
  %v3070 = vmax.f32 %v2976, %v2978
  %v3071 = vmax.f32 %v2980, %v2982
  %v3072 = vmax.f32 %v2986, %v2988
  %v3073 = vmax.f32 %v2990, %v2992
  %v3074 = vmax.f32 %v2996, %v2998
  %v3075 = vmax.f32 %v3000, %v3002
  %v3076 = vmax.f32 %v3006, %v3008
  %v3077 = vmax.f32 %v3010, %v3012
  %v3078 = vmax.f32 %v3016, %v3018
  %v3079 = vmax.f32 %v3020, %v3022
  %v3080 = vmax.f32 %v3026, %v3028
  %v3081 = vmax.f32 %v3030, %v3032
  %v3082 = vmax.f32 %v3036, %v3038
  %v3083 = vmax.f32 %v3040, %v3042
  %v3084 = vmax.f32 %v3046, %v3048
  %v3085 = vmax.f32 %v3050, %v3052
  %v3086 = vmax.f32 %v3056, %v3058
  %v3087 = vmax.f32 %v3060, %v3062
  %v3088 = vmax.f32 %v3064, %v3065
  %v3089 = vmax.f32 %v3066, %v3067
  %v3090 = vmax.f32 %v3068, %v3069
  %v3091 = vmax.f32 %v3070, %v3071
  %v3092 = vmax.f32 %v3072, %v3073
  %v3093 = vmax.f32 %v3074, %v3075
  %v3094 = vmax.f32 %v3076, %v3077
  %v3095 = vmax.f32 %v3078, %v3079
  %v3096 = vmax.f32 %v3080, %v3081
  %v3097 = vmax.f32 %v3082, %v3083
  %v3098 = vmax.f32 %v3084, %v3085
  %v3099 = vmax.f32 %v3086, %v3087
  %v3100 = vadd.f32 %v3088, %v513
  %v3101 = vadd.f32 %v3089, %v518
  %v3102 = vadd.f32 %v3090, %v523
  %v3103 = vadd.f32 %v3091, %v528
  %v3104 = vadd.f32 %v3092, %v533
  %v3105 = vadd.f32 %v3093, %v538
  %v3106 = vadd.f32 %v3094, %v543
  %v3107 = vadd.f32 %v3095, %v548
  %v3108 = vadd.f32 %v3096, %v553
  %v3109 = vadd.f32 %v3097, %v558
  %v3110 = vadd.f32 %v3098, %v563
  %v3111 = vadd.f32 %v3099, %v568
  %v3112 = vmax.f32 %v3100, 0.0
  %v3113 = vmax.f32 %v3101, 0.0
  %v3114 = vmax.f32 %v3102, 0.0
  %v3115 = vmax.f32 %v3103, 0.0
  %v3116 = vmax.f32 %v3104, 0.0
  %v3117 = vmax.f32 %v3105, 0.0
  %v3118 = vmax.f32 %v3106, 0.0
  %v3119 = vmax.f32 %v3107, 0.0
  %v3120 = vmax.f32 %v3108, 0.0
  %v3121 = vmax.f32 %v3109, 0.0
  %v3122 = vmax.f32 %v3110, 0.0
  %v3123 = vmax.f32 %v3111, 0.0
  %v3124 = vpack.c.bf16 %v3113, %v3112
  %v3125 = vpack.c.bf16 %v3115, %v3114
  %v3126 = vpack.c.bf16 %v3117, %v3116
  %v3127 = vpack.c.bf16 %v3119, %v3118
  %v3128 = vpack.c.bf16 %v3121, %v3120
  %v3129 = vpack.c.bf16 %v3123, %v3122
  %s3130 = scalar_lea.vmem %s0, 416
  %v3131 = vld [vmem:[%s3130] sm:$0xf]
  %v3132 = vld [vmem:[%s3130 + $0x4] sm:$0xf]
  %v3133 = vld [vmem:[%s3130 + $0x8] sm:$0xf]
  %v3134 = vld [vmem:[%s3130 + $0xc] sm:$0xf]
  %v3139 = vunpack.c.l.b16 %v3131
  %v3140 = vunpack.c.l.b16 %v3132
  %v3141 = vunpack.c.l.b16 %v3133
  %v3142 = vunpack.c.l.b16 %v3134
  %v3143 = vpack.c.b16 %v3140, %v3139
  %v3144 = vpack.c.b16 %v3142, %v3141
  %s3147 = scalar_lea.vmem %s0, 432
  %v3148 = vld [vmem:[%s3147] sm:$0xf]
  %v3149 = vld [vmem:[%s3147 + $0x4] sm:$0xf]
  %v3150 = vld [vmem:[%s3147 + $0x8] sm:$0xf]
  %v3151 = vld [vmem:[%s3147 + $0xc] sm:$0xf]
  %v3156 = vunpack.c.l.b16 %v3148
  %v3157 = vunpack.c.l.b16 %v3149
  %v3158 = vunpack.c.l.b16 %v3150
  %v3159 = vunpack.c.l.b16 %v3151
  %v3160 = vpack.c.b16 %v3157, %v3156
  %v3161 = vpack.c.b16 %v3159, %v3158
  %3164 = vmatprep.subr.bf16.mxu0 %v3144
  %3165 = vmatpush1.bf16.msra.mxu0 %v2908
  %3166 = vmatprep.subr.bf16.mxu0 %v3143
  %3167 = vmatpush1.bf16.msra.mxu0 %v2907
  %3168 = vmatprep.subr.bf16.mxu0 %v2908
  %3169 = vmatpush1.bf16.msra.mxu0 %v2891
  %3170 = vmatprep.subr.bf16.mxu0 %v2907
  %3171 = vmatpush1.bf16.msra.mxu0 %v2890
  %3172 = vmatprep.subr.bf16.mxu0 %v2891
  %3173 = vmatpush1.bf16.msra.mxu0 %v2655
  %3174 = vmatprep.subr.bf16.mxu0 %v2890
  %3175 = vmatpush1.bf16.msra.mxu0 %v2654
  %3176 = vmatprep.subr.bf16.mxu0 %v2655
  %3177 = vmatpush1.bf16.msra.mxu0 %v2638
  %3178 = vmatprep.subr.bf16.mxu0 %v2654
  %3179 = vmatpush1.bf16.msra.mxu0 %v2637
  %3180 = vmatprep.subr.bf16.mxu0 0
  %3181 = vmatpush2.bf16.msra.mxu0 0
  %3182 = vmatprep.subr.bf16.mxu0 0
  %3183 = vmatpush2.bf16.msra.mxu0 0
  %3184 = vmatprep.subr.bf16.mxu0 0
  %3185 = vmatpush2.bf16.msra.mxu0 0
  %3186 = vmatprep.subr.bf16.mxu0 0
  %3187 = vmatpush2.bf16.msra.mxu0 0
  %3188 = vmatprep.subr.bf16.mxu0 0
  %3189 = vmatpush2.bf16.msra.mxu0 0
  %3190 = vmatprep.subr.bf16.mxu0 0
  %3191 = vmatpush2.bf16.msra.mxu0 0
  %3192 = vmatprep.subr.bf16.mxu0 %v3161
  %3193 = vmatpush2.bf16.msra.mxu0 %v3144
  %3194 = vmatprep.subr.bf16.mxu0 %v3160
  %3195 = vmatpush2.bf16.msra.mxu0 %v3143
  %3196 = vmatprep.mubr.bf16.mxu0 %v274
  %3197 = vmatmul.mubr.bf16.gmra.mxu0 %v236
  %v3198 = vpop.f32.mrf.mxu0
  %v3199 = vadd.f32 0.0, %v3198
  %v3200 = vpop.f32.mrf.mxu0
  %v3201 = vadd.f32 0.0, %v3200
  %v3202 = vpop.f32.mrf.mxu0
  %v3203 = vadd.f32 0.0, %v3202
  %v3204 = vpop.f32.mrf.mxu0
  %v3205 = vadd.f32 0.0, %v3204
  %3206 = vmatprep.mubr.bf16.mxu0 %v277
  %3207 = vmatmul.mubr.bf16.gmra.mxu0 %v238
  %v3208 = vpop.f32.mrf.mxu0
  %v3209 = vadd.f32 0.0, %v3208
  %v3210 = vpop.f32.mrf.mxu0
  %v3211 = vadd.f32 0.0, %v3210
  %v3212 = vpop.f32.mrf.mxu0
  %v3213 = vadd.f32 0.0, %v3212
  %v3214 = vpop.f32.mrf.mxu0
  %v3215 = vadd.f32 0.0, %v3214
  %3216 = vmatprep.mubr.bf16.mxu0 %v280
  %3217 = vmatmul.mubr.bf16.gmra.mxu0 %v240
  %v3218 = vpop.f32.mrf.mxu0
  %v3219 = vadd.f32 0.0, %v3218
  %v3220 = vpop.f32.mrf.mxu0
  %v3221 = vadd.f32 0.0, %v3220
  %v3222 = vpop.f32.mrf.mxu0
  %v3223 = vadd.f32 0.0, %v3222
  %v3224 = vpop.f32.mrf.mxu0
  %v3225 = vadd.f32 0.0, %v3224
  %3226 = vmatprep.mubr.bf16.mxu0 %v283
  %3227 = vmatmul.mubr.bf16.gmra.mxu0 %v242
  %v3228 = vpop.f32.mrf.mxu0
  %v3229 = vadd.f32 0.0, %v3228
  %v3230 = vpop.f32.mrf.mxu0
  %v3231 = vadd.f32 0.0, %v3230
  %v3232 = vpop.f32.mrf.mxu0
  %v3233 = vadd.f32 0.0, %v3232
  %v3234 = vpop.f32.mrf.mxu0
  %v3235 = vadd.f32 0.0, %v3234
  %3236 = vmatprep.mubr.bf16.mxu0 %v286
  %3237 = vmatmul.mubr.bf16.gmra.mxu0 %v244
  %v3238 = vpop.f32.mrf.mxu0
  %v3239 = vadd.f32 0.0, %v3238
  %v3240 = vpop.f32.mrf.mxu0
  %v3241 = vadd.f32 0.0, %v3240
  %v3242 = vpop.f32.mrf.mxu0
  %v3243 = vadd.f32 0.0, %v3242
  %v3244 = vpop.f32.mrf.mxu0
  %v3245 = vadd.f32 0.0, %v3244
  %3246 = vmatprep.mubr.bf16.mxu0 %v289
  %3247 = vmatmul.mubr.bf16.gmra.mxu0 %v246
  %v3248 = vpop.f32.mrf.mxu0
  %v3249 = vadd.f32 0.0, %v3248
  %v3250 = vpop.f32.mrf.mxu0
  %v3251 = vadd.f32 0.0, %v3250
  %v3252 = vpop.f32.mrf.mxu0
  %v3253 = vadd.f32 0.0, %v3252
  %v3254 = vpop.f32.mrf.mxu0
  %v3255 = vadd.f32 0.0, %v3254
  %3256 = vmatprep.mubr.bf16.mxu0 %v292
  %3257 = vmatmul.mubr.bf16.gmra.mxu0 %v248
  %v3258 = vpop.f32.mrf.mxu0
  %v3259 = vadd.f32 0.0, %v3258
  %v3260 = vpop.f32.mrf.mxu0
  %v3261 = vadd.f32 0.0, %v3260
  %v3262 = vpop.f32.mrf.mxu0
  %v3263 = vadd.f32 0.0, %v3262
  %v3264 = vpop.f32.mrf.mxu0
  %v3265 = vadd.f32 0.0, %v3264
  %3266 = vmatprep.mubr.bf16.mxu0 %v295
  %3267 = vmatmul.mubr.bf16.gmra.mxu0 %v250
  %v3268 = vpop.f32.mrf.mxu0
  %v3269 = vadd.f32 0.0, %v3268
  %v3270 = vpop.f32.mrf.mxu0
  %v3271 = vadd.f32 0.0, %v3270
  %v3272 = vpop.f32.mrf.mxu0
  %v3273 = vadd.f32 0.0, %v3272
  %v3274 = vpop.f32.mrf.mxu0
  %v3275 = vadd.f32 0.0, %v3274
  %3276 = vmatprep.mubr.bf16.mxu0 %v298
  %3277 = vmatmul.mubr.bf16.gmra.mxu0 %v252
  %v3278 = vpop.f32.mrf.mxu0
  %v3279 = vadd.f32 0.0, %v3278
  %v3280 = vpop.f32.mrf.mxu0
  %v3281 = vadd.f32 0.0, %v3280
  %v3282 = vpop.f32.mrf.mxu0
  %v3283 = vadd.f32 0.0, %v3282
  %v3284 = vpop.f32.mrf.mxu0
  %v3285 = vadd.f32 0.0, %v3284
  %3286 = vmatprep.mubr.bf16.mxu0 %v301
  %3287 = vmatmul.mubr.bf16.gmra.mxu0 %v254
  %v3288 = vpop.f32.mrf.mxu0
  %v3289 = vadd.f32 0.0, %v3288
  %v3290 = vpop.f32.mrf.mxu0
  %v3291 = vadd.f32 0.0, %v3290
  %v3292 = vpop.f32.mrf.mxu0
  %v3293 = vadd.f32 0.0, %v3292
  %v3294 = vpop.f32.mrf.mxu0
  %v3295 = vadd.f32 0.0, %v3294
  %3296 = vmatprep.mubr.bf16.mxu0 %v304
  %3297 = vmatmul.mubr.bf16.gmra.mxu0 %v256
  %v3298 = vpop.f32.mrf.mxu0
  %v3299 = vadd.f32 0.0, %v3298
  %v3300 = vpop.f32.mrf.mxu0
  %v3301 = vadd.f32 0.0, %v3300
  %v3302 = vpop.f32.mrf.mxu0
  %v3303 = vadd.f32 0.0, %v3302
  %v3304 = vpop.f32.mrf.mxu0
  %v3305 = vadd.f32 0.0, %v3304
  %3306 = vmatprep.mubr.bf16.mxu0 %v307
  %3307 = vmatmul.mubr.bf16.gmra.mxu0 %v258
  %v3308 = vpop.f32.mrf.mxu0
  %v3309 = vadd.f32 0.0, %v3308
  %v3310 = vpop.f32.mrf.mxu0
  %v3311 = vadd.f32 0.0, %v3310
  %v3312 = vpop.f32.mrf.mxu0
  %v3313 = vadd.f32 0.0, %v3312
  %v3314 = vpop.f32.mrf.mxu0
  %v3315 = vadd.f32 0.0, %v3314
  %3316 = vdwg.mxu0
  %v3317 = vmax.f32 %v3199, %v3201
  %v3318 = vmax.f32 %v3203, %v3205
  %v3319 = vmax.f32 %v3209, %v3211
  %v3320 = vmax.f32 %v3213, %v3215
  %v3321 = vmax.f32 %v3219, %v3221
  %v3322 = vmax.f32 %v3223, %v3225
  %v3323 = vmax.f32 %v3229, %v3231
  %v3324 = vmax.f32 %v3233, %v3235
  %v3325 = vmax.f32 %v3239, %v3241
  %v3326 = vmax.f32 %v3243, %v3245
  %v3327 = vmax.f32 %v3249, %v3251
  %v3328 = vmax.f32 %v3253, %v3255
  %v3329 = vmax.f32 %v3259, %v3261
  %v3330 = vmax.f32 %v3263, %v3265
  %v3331 = vmax.f32 %v3269, %v3271
  %v3332 = vmax.f32 %v3273, %v3275
  %v3333 = vmax.f32 %v3279, %v3281
  %v3334 = vmax.f32 %v3283, %v3285
  %v3335 = vmax.f32 %v3289, %v3291
  %v3336 = vmax.f32 %v3293, %v3295
  %v3337 = vmax.f32 %v3299, %v3301
  %v3338 = vmax.f32 %v3303, %v3305
  %v3339 = vmax.f32 %v3309, %v3311
  %v3340 = vmax.f32 %v3313, %v3315
  %v3341 = vmax.f32 %v3317, %v3318
  %v3342 = vmax.f32 %v3319, %v3320
  %v3343 = vmax.f32 %v3321, %v3322
  %v3344 = vmax.f32 %v3323, %v3324
  %v3345 = vmax.f32 %v3325, %v3326
  %v3346 = vmax.f32 %v3327, %v3328
  %v3347 = vmax.f32 %v3329, %v3330
  %v3348 = vmax.f32 %v3331, %v3332
  %v3349 = vmax.f32 %v3333, %v3334
  %v3350 = vmax.f32 %v3335, %v3336
  %v3351 = vmax.f32 %v3337, %v3338
  %v3352 = vmax.f32 %v3339, %v3340
  %v3353 = vadd.f32 %v3341, %v513
  %v3354 = vadd.f32 %v3342, %v518
  %v3355 = vadd.f32 %v3343, %v523
  %v3356 = vadd.f32 %v3344, %v528
  %v3357 = vadd.f32 %v3345, %v533
  %v3358 = vadd.f32 %v3346, %v538
  %v3359 = vadd.f32 %v3347, %v543
  %v3360 = vadd.f32 %v3348, %v548
  %v3361 = vadd.f32 %v3349, %v553
  %v3362 = vadd.f32 %v3350, %v558
  %v3363 = vadd.f32 %v3351, %v563
  %v3364 = vadd.f32 %v3352, %v568
  %v3365 = vmax.f32 %v3353, 0.0
  %v3366 = vmax.f32 %v3354, 0.0
  %v3367 = vmax.f32 %v3355, 0.0
  %v3368 = vmax.f32 %v3356, 0.0
  %v3369 = vmax.f32 %v3357, 0.0
  %v3370 = vmax.f32 %v3358, 0.0
  %v3371 = vmax.f32 %v3359, 0.0
  %v3372 = vmax.f32 %v3360, 0.0
  %v3373 = vmax.f32 %v3361, 0.0
  %v3374 = vmax.f32 %v3362, 0.0
  %v3375 = vmax.f32 %v3363, 0.0
  %v3376 = vmax.f32 %v3364, 0.0
  %v3377 = vpack.c.bf16 %v3366, %v3365
  %v3378 = vpack.c.bf16 %v3368, %v3367
  %v3379 = vpack.c.bf16 %v3370, %v3369
  %v3380 = vpack.c.bf16 %v3372, %v3371
  %v3381 = vpack.c.bf16 %v3374, %v3373
  %v3382 = vpack.c.bf16 %v3376, %v3375
  %v3383 = vld [vmem:[%s4] sm:$0xff]
  %v3384 = vld [vmem:[%s4 + $0x8] sm:$0xff]
  %v3385 = vld [vmem:[%s3] sm:$0xff]
  %v3386 = vld [vmem:[%s3 + $0x8] sm:$0xff]
  %v3387 = vld [vmem:[%s3 + $0x10] sm:$0xff]
  %v3388 = vld [vmem:[%s3 + $0x18] sm:$0xff]
  %v3389 = vld [vmem:[%s3 + $0x20] sm:$0xff]
  %v3390 = vld [vmem:[%s3 + $0x28] sm:$0xff]
  %v3391 = vld [vmem:[%s3 + $0x30] sm:$0xff]
  %v3392 = vld [vmem:[%s3 + $0x38] sm:$0xff]
  %v3393 = vld [vmem:[%s3 + $0x40] sm:$0xff]
  %v3394 = vld [vmem:[%s3 + $0x48] sm:$0xff]
  %v3395 = vld [vmem:[%s3 + $0x50] sm:$0xff]
  %v3396 = vld [vmem:[%s3 + $0x58] sm:$0xff]
  %v3397 = vld [vmem:[%s3 + $0x60] sm:$0xff]
  %v3398 = vld [vmem:[%s3 + $0x68] sm:$0xff]
  %v3399 = vld [vmem:[%s3 + $0x70] sm:$0xff]
  %v3400 = vld [vmem:[%s3 + $0x78] sm:$0xff]
  %v3401 = vld [vmem:[%s3 + $0x80] sm:$0xff]
  %v3402 = vld [vmem:[%s3 + $0x88] sm:$0xff]
  %v3403 = vld [vmem:[%s3 + $0x90] sm:$0xff]
  %v3404 = vld [vmem:[%s3 + $0x98] sm:$0xff]
  %v3405 = vld [vmem:[%s3 + $0xa0] sm:$0xff]
  %v3406 = vld [vmem:[%s3 + $0xa8] sm:$0xff]
  %v3407 = vld [vmem:[%s3 + $0xb0] sm:$0xff]
  %v3408 = vld [vmem:[%s3 + $0xb8] sm:$0xff]
  %v3409 = vld [vmem:[%s3 + $0xc0] sm:$0xff]
  %v3410 = vld [vmem:[%s3 + $0xc8] sm:$0xff]
  %v3411 = vld [vmem:[%s3 + $0xd0] sm:$0xff]
  %v3412 = vld [vmem:[%s3 + $0xd8] sm:$0xff]
  %v3413 = vld [vmem:[%s3 + $0xe0] sm:$0xff]
  %v3414 = vld [vmem:[%s3 + $0xe8] sm:$0xff]
  %v3415 = vld [vmem:[%s3 + $0xf0] sm:$0xff]
  %v3416 = vld [vmem:[%s3 + $0xf8] sm:$0xff]
  %v3449 = vunpack.c.l.b16 %v3385
  %v3450 = vunpack.c.h.b16 %v3385
  %v3451 = vunpack.c.l.b16 %v3386
  %v3452 = vunpack.c.h.b16 %v3386
  %v3453 = vunpack.c.l.b16 %v3387
  %v3454 = vunpack.c.h.b16 %v3387
  %v3455 = vunpack.c.l.b16 %v3388
  %v3456 = vunpack.c.h.b16 %v3388
  %v3457 = vunpack.c.l.b16 %v3389
  %v3458 = vunpack.c.h.b16 %v3389
  %v3459 = vunpack.c.l.b16 %v3390
  %v3460 = vunpack.c.h.b16 %v3390
  %v3461 = vunpack.c.l.b16 %v3391
  %v3462 = vunpack.c.h.b16 %v3391
  %v3463 = vunpack.c.l.b16 %v3392
  %v3464 = vunpack.c.h.b16 %v3392
  %v3465 = vunpack.c.l.b16 %v3393
  %v3466 = vunpack.c.h.b16 %v3393
  %v3467 = vunpack.c.l.b16 %v3394
  %v3468 = vunpack.c.h.b16 %v3394
  %v3469 = vunpack.c.l.b16 %v3395
  %v3470 = vunpack.c.h.b16 %v3395
  %v3471 = vunpack.c.l.b16 %v3396
  %v3472 = vunpack.c.h.b16 %v3396
  %v3473 = vunpack.c.l.b16 %v3397
  %v3474 = vunpack.c.h.b16 %v3397
  %v3475 = vunpack.c.l.b16 %v3398
  %v3476 = vunpack.c.h.b16 %v3398
  %v3477 = vunpack.c.l.b16 %v3399
  %v3478 = vunpack.c.h.b16 %v3399
  %v3479 = vunpack.c.l.b16 %v3400
  %v3480 = vunpack.c.h.b16 %v3400
  %v3481 = vunpack.c.l.b16 %v3401
  %v3482 = vunpack.c.h.b16 %v3401
  %v3483 = vunpack.c.l.b16 %v3402
  %v3484 = vunpack.c.h.b16 %v3402
  %v3485 = vunpack.c.l.b16 %v3403
  %v3486 = vunpack.c.h.b16 %v3403
  %v3487 = vunpack.c.l.b16 %v3404
  %v3488 = vunpack.c.h.b16 %v3404
  %v3489 = vunpack.c.l.b16 %v3405
  %v3490 = vunpack.c.h.b16 %v3405
  %v3491 = vunpack.c.l.b16 %v3406
  %v3492 = vunpack.c.h.b16 %v3406
  %v3493 = vunpack.c.l.b16 %v3407
  %v3494 = vunpack.c.h.b16 %v3407
  %v3495 = vunpack.c.l.b16 %v3408
  %v3496 = vunpack.c.h.b16 %v3408
  %v3497 = vunpack.c.l.b16 %v3409
  %v3498 = vunpack.c.h.b16 %v3409
  %v3499 = vunpack.c.l.b16 %v3410
  %v3500 = vunpack.c.h.b16 %v3410
  %v3501 = vunpack.c.l.b16 %v3411
  %v3502 = vunpack.c.h.b16 %v3411
  %v3503 = vunpack.c.l.b16 %v3412
  %v3504 = vunpack.c.h.b16 %v3412
  %v3505 = vunpack.c.l.b16 %v3413
  %v3506 = vunpack.c.h.b16 %v3413
  %v3507 = vunpack.c.l.b16 %v3414
  %v3508 = vunpack.c.h.b16 %v3414
  %v3509 = vunpack.c.l.b16 %v3415
  %v3510 = vunpack.c.h.b16 %v3415
  %v3511 = vunpack.c.l.b16 %v3416
  %v3512 = vunpack.c.h.b16 %v3416
  %v3513 = vpack.c.b16 %v3453, %v3449
  %v3514 = vpack.c.b16 %v3454, %v3450
  %v3515 = vpack.c.b16 %v3455, %v3451
  %v3516 = vpack.c.b16 %v3456, %v3452
  %v3517 = vpack.c.b16 %v3461, %v3457
  %v3518 = vpack.c.b16 %v3462, %v3458
  %v3519 = vpack.c.b16 %v3463, %v3459
  %v3520 = vpack.c.b16 %v3464, %v3460
  %v3521 = vpack.c.b16 %v3469, %v3465
  %v3522 = vpack.c.b16 %v3470, %v3466
  %v3523 = vpack.c.b16 %v3471, %v3467
  %v3524 = vpack.c.b16 %v3472, %v3468
  %v3525 = vpack.c.b16 %v3477, %v3473
  %v3526 = vpack.c.b16 %v3478, %v3474
  %v3527 = vpack.c.b16 %v3479, %v3475
  %v3528 = vpack.c.b16 %v3480, %v3476
  %v3529 = vpack.c.b16 %v3485, %v3481
  %v3530 = vpack.c.b16 %v3486, %v3482
  %v3531 = vpack.c.b16 %v3487, %v3483
  %v3532 = vpack.c.b16 %v3488, %v3484
  %v3533 = vpack.c.b16 %v3493, %v3489
  %v3534 = vpack.c.b16 %v3494, %v3490
  %v3535 = vpack.c.b16 %v3495, %v3491
  %v3536 = vpack.c.b16 %v3496, %v3492
  %v3537 = vpack.c.b16 %v3501, %v3497
  %v3538 = vpack.c.b16 %v3502, %v3498
  %v3539 = vpack.c.b16 %v3503, %v3499
  %v3540 = vpack.c.b16 %v3504, %v3500
  %v3541 = vpack.c.b16 %v3509, %v3505
  %v3542 = vpack.c.b16 %v3510, %v3506
  %v3543 = vpack.c.b16 %v3511, %v3507
  %v3544 = vpack.c.b16 %v3512, %v3508
  %vm3569 = vcmask 785408
  %v3571 = vsel %vm3569, %v3516, 0
  %v3574 = vsel %vm3569, %v3520, 0
  %v3577 = vsel %vm3569, %v3524, 0
  %v3580 = vsel %vm3569, %v3528, 0
  %v3583 = vsel %vm3569, %v3532, 0
  %v3586 = vsel %vm3569, %v3536, 0
  %v3589 = vsel %vm3569, %v3540, 0
  %v3592 = vsel %vm3569, %v3544, 0
  %3594 = vmatprep.subr.bf16.mxu0 %v1101
  %3595 = vmatpush1.bf16.msra.mxu0 %v848
  %3596 = vmatprep.subr.bf16.mxu0 %v1100
  %3597 = vmatpush1.bf16.msra.mxu0 %v847
  %3598 = vmatprep.subr.bf16.mxu0 %v852
  %3599 = vmatpush1.bf16.msra.mxu0 %v599
  %3600 = vmatprep.subr.bf16.mxu0 %v851
  %3601 = vmatpush1.bf16.msra.mxu0 %v598
  %3602 = vmatprep.subr.bf16.mxu0 %v850
  %3603 = vmatpush1.bf16.msra.mxu0 %v597
  %3604 = vmatprep.subr.bf16.mxu0 %v849
  %3605 = vmatpush1.bf16.msra.mxu0 %v596
  %3606 = vmatprep.subr.bf16.mxu0 %v848
  %3607 = vmatpush1.bf16.msra.mxu0 %v595
  %3608 = vmatprep.subr.bf16.mxu0 %v847
  %3609 = vmatpush1.bf16.msra.mxu0 %v594
  %3610 = vmatprep.subr.bf16.mxu0 %v1356
  %3611 = vmatpush2.bf16.msra.mxu0 %v1103
  %3612 = vmatprep.subr.bf16.mxu0 %v1355
  %3613 = vmatpush2.bf16.msra.mxu0 %v1102
  %3614 = vmatprep.subr.bf16.mxu0 %v1354
  %3615 = vmatpush2.bf16.msra.mxu0 %v1101
  %3616 = vmatprep.subr.bf16.mxu0 %v1353
  %3617 = vmatpush2.bf16.msra.mxu0 %v1100
  %3618 = vmatprep.subr.bf16.mxu0 %v1105
  %3619 = vmatpush2.bf16.msra.mxu0 %v852
  %3620 = vmatprep.subr.bf16.mxu0 %v1104
  %3621 = vmatpush2.bf16.msra.mxu0 %v851
  %3622 = vmatprep.subr.bf16.mxu0 %v1103
  %3623 = vmatpush2.bf16.msra.mxu0 %v850
  %3624 = vmatprep.subr.bf16.mxu0 %v1102
  %3625 = vmatpush2.bf16.msra.mxu0 %v849
  %3626 = vmatprep.mubr.bf16.mxu0 %v3514
  %3627 = vmatmul.mubr.bf16.gmra.mxu0 %v3513
  %v3628 = vpop.f32.mrf.mxu0
  %v3629 = vadd.f32 0.0, %v3628
  %v3630 = vpop.f32.mrf.mxu0
  %v3631 = vadd.f32 0.0, %v3630
  %v3632 = vpop.f32.mrf.mxu0
  %v3633 = vadd.f32 0.0, %v3632
  %v3634 = vpop.f32.mrf.mxu0
  %v3635 = vadd.f32 0.0, %v3634
  %3636 = vmatprep.mubr.bf16.mxu0 %v3518
  %3637 = vmatmul.mubr.bf16.gmra.mxu0 %v3517
  %v3638 = vpop.f32.mrf.mxu0
  %v3639 = vadd.f32 0.0, %v3638
  %v3640 = vpop.f32.mrf.mxu0
  %v3641 = vadd.f32 0.0, %v3640
  %v3642 = vpop.f32.mrf.mxu0
  %v3643 = vadd.f32 0.0, %v3642
  %v3644 = vpop.f32.mrf.mxu0
  %v3645 = vadd.f32 0.0, %v3644
  %3646 = vmatprep.mubr.bf16.mxu0 %v3522
  %3647 = vmatmul.mubr.bf16.gmra.mxu0 %v3521
  %v3648 = vpop.f32.mrf.mxu0
  %v3649 = vadd.f32 0.0, %v3648
  %v3650 = vpop.f32.mrf.mxu0
  %v3651 = vadd.f32 0.0, %v3650
  %v3652 = vpop.f32.mrf.mxu0
  %v3653 = vadd.f32 0.0, %v3652
  %v3654 = vpop.f32.mrf.mxu0
  %v3655 = vadd.f32 0.0, %v3654
  %3656 = vmatprep.mubr.bf16.mxu0 %v3526
  %3657 = vmatmul.mubr.bf16.gmra.mxu0 %v3525
  %v3658 = vpop.f32.mrf.mxu0
  %v3659 = vadd.f32 0.0, %v3658
  %v3660 = vpop.f32.mrf.mxu0
  %v3661 = vadd.f32 0.0, %v3660
  %v3662 = vpop.f32.mrf.mxu0
  %v3663 = vadd.f32 0.0, %v3662
  %v3664 = vpop.f32.mrf.mxu0
  %v3665 = vadd.f32 0.0, %v3664
  %3666 = vmatprep.mubr.bf16.mxu0 %v3530
  %3667 = vmatmul.mubr.bf16.gmra.mxu0 %v3529
  %v3668 = vpop.f32.mrf.mxu0
  %v3669 = vadd.f32 0.0, %v3668
  %v3670 = vpop.f32.mrf.mxu0
  %v3671 = vadd.f32 0.0, %v3670
  %v3672 = vpop.f32.mrf.mxu0
  %v3673 = vadd.f32 0.0, %v3672
  %v3674 = vpop.f32.mrf.mxu0
  %v3675 = vadd.f32 0.0, %v3674
  %3676 = vmatprep.mubr.bf16.mxu0 %v3534
  %3677 = vmatmul.mubr.bf16.gmra.mxu0 %v3533
  %v3678 = vpop.f32.mrf.mxu0
  %v3679 = vadd.f32 0.0, %v3678
  %v3680 = vpop.f32.mrf.mxu0
  %v3681 = vadd.f32 0.0, %v3680
  %v3682 = vpop.f32.mrf.mxu0
  %v3683 = vadd.f32 0.0, %v3682
  %v3684 = vpop.f32.mrf.mxu0
  %v3685 = vadd.f32 0.0, %v3684
  %3686 = vmatprep.mubr.bf16.mxu0 %v3538
  %3687 = vmatmul.mubr.bf16.gmra.mxu0 %v3537
  %v3688 = vpop.f32.mrf.mxu0
  %v3689 = vadd.f32 0.0, %v3688
  %v3690 = vpop.f32.mrf.mxu0
  %v3691 = vadd.f32 0.0, %v3690
  %v3692 = vpop.f32.mrf.mxu0
  %v3693 = vadd.f32 0.0, %v3692
  %v3694 = vpop.f32.mrf.mxu0
  %v3695 = vadd.f32 0.0, %v3694
  %3696 = vmatprep.mubr.bf16.mxu0 %v3542
  %3697 = vmatmul.mubr.bf16.gmra.mxu0 %v3541
  %v3698 = vpop.f32.mrf.mxu0
  %v3699 = vadd.f32 0.0, %v3698
  %v3700 = vpop.f32.mrf.mxu0
  %v3701 = vadd.f32 0.0, %v3700
  %v3702 = vpop.f32.mrf.mxu0
  %v3703 = vadd.f32 0.0, %v3702
  %v3704 = vpop.f32.mrf.mxu0
  %v3705 = vadd.f32 0.0, %v3704
  %3706 = vdwg.mxu0
  %3707 = vmatprep.subr.bf16.mxu0 %v1611
  %3708 = vmatpush1.bf16.msra.mxu0 %v1358
  %3709 = vmatprep.subr.bf16.mxu0 %v1610
  %3710 = vmatpush1.bf16.msra.mxu0 %v1357
  %3711 = vmatprep.subr.bf16.mxu0 %v1609
  %3712 = vmatpush1.bf16.msra.mxu0 %v1356
  %3713 = vmatprep.subr.bf16.mxu0 %v1608
  %3714 = vmatpush1.bf16.msra.mxu0 %v1355
  %3715 = vmatprep.subr.bf16.mxu0 %v1607
  %3716 = vmatpush1.bf16.msra.mxu0 %v1354
  %3717 = vmatprep.subr.bf16.mxu0 %v1606
  %3718 = vmatpush1.bf16.msra.mxu0 %v1353
  %3719 = vmatprep.subr.bf16.mxu0 %v1358
  %3720 = vmatpush1.bf16.msra.mxu0 %v1105
  %3721 = vmatprep.subr.bf16.mxu0 %v1357
  %3722 = vmatpush1.bf16.msra.mxu0 %v1104
  %3723 = vmatprep.subr.bf16.mxu0 0
  %3724 = vmatpush2.bf16.msra.mxu0 0
  %3725 = vmatprep.subr.bf16.mxu0 0
  %3726 = vmatpush2.bf16.msra.mxu0 0
  %3727 = vmatprep.subr.bf16.mxu0 %v1864
  %3728 = vmatpush2.bf16.msra.mxu0 %v1611
  %3729 = vmatprep.subr.bf16.mxu0 %v1863
  %3730 = vmatpush2.bf16.msra.mxu0 %v1610
  %3731 = vmatprep.subr.bf16.mxu0 %v1862
  %3732 = vmatpush2.bf16.msra.mxu0 %v1609
  %3733 = vmatprep.subr.bf16.mxu0 %v1861
  %3734 = vmatpush2.bf16.msra.mxu0 %v1608
  %3735 = vmatprep.subr.bf16.mxu0 %v1860
  %3736 = vmatpush2.bf16.msra.mxu0 %v1607
  %3737 = vmatprep.subr.bf16.mxu0 %v1859
  %3738 = vmatpush2.bf16.msra.mxu0 %v1606
  %3739 = vmatprep.mubr.bf16.mxu0 %v3571
  %3740 = vmatmul.mubr.bf16.gmra.mxu0 %v3515
  %v3741 = vpop.f32.mrf.mxu0
  %v3742 = vadd.f32 %v3629, %v3741
  %v3743 = vpop.f32.mrf.mxu0
  %v3744 = vadd.f32 %v3631, %v3743
  %v3745 = vpop.f32.mrf.mxu0
  %v3746 = vadd.f32 %v3633, %v3745
  %v3747 = vpop.f32.mrf.mxu0
  %v3748 = vadd.f32 %v3635, %v3747
  %3749 = vmatprep.mubr.bf16.mxu0 %v3574
  %3750 = vmatmul.mubr.bf16.gmra.mxu0 %v3519
  %v3751 = vpop.f32.mrf.mxu0
  %v3752 = vadd.f32 %v3639, %v3751
  %v3753 = vpop.f32.mrf.mxu0
  %v3754 = vadd.f32 %v3641, %v3753
  %v3755 = vpop.f32.mrf.mxu0
  %v3756 = vadd.f32 %v3643, %v3755
  %v3757 = vpop.f32.mrf.mxu0
  %v3758 = vadd.f32 %v3645, %v3757
  %3759 = vmatprep.mubr.bf16.mxu0 %v3577
  %3760 = vmatmul.mubr.bf16.gmra.mxu0 %v3523
  %v3761 = vpop.f32.mrf.mxu0
  %v3762 = vadd.f32 %v3649, %v3761
  %v3763 = vpop.f32.mrf.mxu0
  %v3764 = vadd.f32 %v3651, %v3763
  %v3765 = vpop.f32.mrf.mxu0
  %v3766 = vadd.f32 %v3653, %v3765
  %v3767 = vpop.f32.mrf.mxu0
  %v3768 = vadd.f32 %v3655, %v3767
  %3769 = vmatprep.mubr.bf16.mxu0 %v3580
  %3770 = vmatmul.mubr.bf16.gmra.mxu0 %v3527
  %v3771 = vpop.f32.mrf.mxu0
  %v3772 = vadd.f32 %v3659, %v3771
  %v3773 = vpop.f32.mrf.mxu0
  %v3774 = vadd.f32 %v3661, %v3773
  %v3775 = vpop.f32.mrf.mxu0
  %v3776 = vadd.f32 %v3663, %v3775
  %v3777 = vpop.f32.mrf.mxu0
  %v3778 = vadd.f32 %v3665, %v3777
  %3779 = vmatprep.mubr.bf16.mxu0 %v3583
  %3780 = vmatmul.mubr.bf16.gmra.mxu0 %v3531
  %v3781 = vpop.f32.mrf.mxu0
  %v3782 = vadd.f32 %v3669, %v3781
  %v3783 = vpop.f32.mrf.mxu0
  %v3784 = vadd.f32 %v3671, %v3783
  %v3785 = vpop.f32.mrf.mxu0
  %v3786 = vadd.f32 %v3673, %v3785
  %v3787 = vpop.f32.mrf.mxu0
  %v3788 = vadd.f32 %v3675, %v3787
  %3789 = vmatprep.mubr.bf16.mxu0 %v3586
  %3790 = vmatmul.mubr.bf16.gmra.mxu0 %v3535
  %v3791 = vpop.f32.mrf.mxu0
  %v3792 = vadd.f32 %v3679, %v3791
  %v3793 = vpop.f32.mrf.mxu0
  %v3794 = vadd.f32 %v3681, %v3793
  %v3795 = vpop.f32.mrf.mxu0
  %v3796 = vadd.f32 %v3683, %v3795
  %v3797 = vpop.f32.mrf.mxu0
  %v3798 = vadd.f32 %v3685, %v3797
  %3799 = vmatprep.mubr.bf16.mxu0 %v3589
  %3800 = vmatmul.mubr.bf16.gmra.mxu0 %v3539
  %v3801 = vpop.f32.mrf.mxu0
  %v3802 = vadd.f32 %v3689, %v3801
  %v3803 = vpop.f32.mrf.mxu0
  %v3804 = vadd.f32 %v3691, %v3803
  %v3805 = vpop.f32.mrf.mxu0
  %v3806 = vadd.f32 %v3693, %v3805
  %v3807 = vpop.f32.mrf.mxu0
  %v3808 = vadd.f32 %v3695, %v3807
  %3809 = vmatprep.mubr.bf16.mxu0 %v3592
  %3810 = vmatmul.mubr.bf16.gmra.mxu0 %v3543
  %v3811 = vpop.f32.mrf.mxu0
  %v3812 = vadd.f32 %v3699, %v3811
  %v3813 = vpop.f32.mrf.mxu0
  %v3814 = vadd.f32 %v3701, %v3813
  %v3815 = vpop.f32.mrf.mxu0
  %v3816 = vadd.f32 %v3703, %v3815
  %v3817 = vpop.f32.mrf.mxu0
  %v3818 = vadd.f32 %v3705, %v3817
  %3819 = vdwg.mxu0
  %v3820 = vmax.f32 %v3742, %v3744
  %v3821 = vmax.f32 %v3746, %v3748
  %v3822 = vmax.f32 %v3752, %v3754
  %v3823 = vmax.f32 %v3756, %v3758
  %v3824 = vmax.f32 %v3762, %v3764
  %v3825 = vmax.f32 %v3766, %v3768
  %v3826 = vmax.f32 %v3772, %v3774
  %v3827 = vmax.f32 %v3776, %v3778
  %v3828 = vmax.f32 %v3782, %v3784
  %v3829 = vmax.f32 %v3786, %v3788
  %v3830 = vmax.f32 %v3792, %v3794
  %v3831 = vmax.f32 %v3796, %v3798
  %v3832 = vmax.f32 %v3802, %v3804
  %v3833 = vmax.f32 %v3806, %v3808
  %v3834 = vmax.f32 %v3812, %v3814
  %v3835 = vmax.f32 %v3816, %v3818
  %v3836 = vmax.f32 %v3820, %v3822
  %v3837 = vmax.f32 %v3821, %v3823
  %3839 = vset.pattern.permute.xlu0 0
  %3840 = vperm.xlu0 %3839, %v3383
  %v3841 = vpop.permute.xlu0 %3840
  %3844 = vset.pattern.permute.xlu0 0
  %3845 = vperm.xlu0 %3844, %v3384
  %v3846 = vpop.permute.xlu0 %3845
  %v3848 = vadd.f32 %v3836, %v3841
  %v3849 = vadd.f32 %v3837, %v3846
  %v3850 = vmax.f32 %v3848, 0.0
  %v3851 = vmax.f32 %v3849, 0.0
  %v3852 = vpack.c.bf16 %v3851, %v3850
  %v3853 = vmax.f32 %v3824, %v3826
  %v3854 = vmax.f32 %v3825, %v3827
  %v3855 = vadd.f32 %v3853, %v3841
  %v3856 = vadd.f32 %v3854, %v3846
  %v3857 = vmax.f32 %v3855, 0.0
  %v3858 = vmax.f32 %v3856, 0.0
  %v3859 = vpack.c.bf16 %v3858, %v3857
  %v3860 = vmax.f32 %v3828, %v3830
  %v3861 = vmax.f32 %v3829, %v3831
  %v3862 = vadd.f32 %v3860, %v3841
  %v3863 = vadd.f32 %v3861, %v3846
  %v3864 = vmax.f32 %v3862, 0.0
  %v3865 = vmax.f32 %v3863, 0.0
  %v3866 = vpack.c.bf16 %v3865, %v3864
  %v3867 = vmax.f32 %v3832, %v3834
  %v3868 = vmax.f32 %v3833, %v3835
  %v3869 = vadd.f32 %v3867, %v3841
  %v3870 = vadd.f32 %v3868, %v3846
  %v3871 = vmax.f32 %v3869, 0.0
  %v3872 = vmax.f32 %v3870, 0.0
  %v3873 = vpack.c.bf16 %v3872, %v3871
  %3874 = vmatprep.subr.bf16.mxu0 %v1607
  %3875 = vmatpush1.bf16.msra.mxu0 %v1354
  %3876 = vmatprep.subr.bf16.mxu0 %v1606
  %3877 = vmatpush1.bf16.msra.mxu0 %v1353
  %3878 = vmatprep.subr.bf16.mxu0 %v1358
  %3879 = vmatpush1.bf16.msra.mxu0 %v1105
  %3880 = vmatprep.subr.bf16.mxu0 %v1357
  %3881 = vmatpush1.bf16.msra.mxu0 %v1104
  %3882 = vmatprep.subr.bf16.mxu0 %v1356
  %3883 = vmatpush1.bf16.msra.mxu0 %v1103
  %3884 = vmatprep.subr.bf16.mxu0 %v1355
  %3885 = vmatpush1.bf16.msra.mxu0 %v1102
  %3886 = vmatprep.subr.bf16.mxu0 %v1354
  %3887 = vmatpush1.bf16.msra.mxu0 %v1101
  %3888 = vmatprep.subr.bf16.mxu0 %v1353
  %3889 = vmatpush1.bf16.msra.mxu0 %v1100
  %3890 = vmatprep.subr.bf16.mxu0 %v1862
  %3891 = vmatpush2.bf16.msra.mxu0 %v1609
  %3892 = vmatprep.subr.bf16.mxu0 %v1861
  %3893 = vmatpush2.bf16.msra.mxu0 %v1608
  %3894 = vmatprep.subr.bf16.mxu0 %v1860
  %3895 = vmatpush2.bf16.msra.mxu0 %v1607
  %3896 = vmatprep.subr.bf16.mxu0 %v1859
  %3897 = vmatpush2.bf16.msra.mxu0 %v1606
  %3898 = vmatprep.subr.bf16.mxu0 %v1611
  %3899 = vmatpush2.bf16.msra.mxu0 %v1358
  %3900 = vmatprep.subr.bf16.mxu0 %v1610
  %3901 = vmatpush2.bf16.msra.mxu0 %v1357
  %3902 = vmatprep.subr.bf16.mxu0 %v1609
  %3903 = vmatpush2.bf16.msra.mxu0 %v1356
  %3904 = vmatprep.subr.bf16.mxu0 %v1608
  %3905 = vmatpush2.bf16.msra.mxu0 %v1355
  %3906 = vmatprep.mubr.bf16.mxu0 %v3514
  %3907 = vmatmul.mubr.bf16.gmra.mxu0 %v3513
  %v3908 = vpop.f32.mrf.mxu0
  %v3909 = vadd.f32 0.0, %v3908
  %v3910 = vpop.f32.mrf.mxu0
  %v3911 = vadd.f32 0.0, %v3910
  %v3912 = vpop.f32.mrf.mxu0
  %v3913 = vadd.f32 0.0, %v3912
  %v3914 = vpop.f32.mrf.mxu0
  %v3915 = vadd.f32 0.0, %v3914
  %3916 = vmatprep.mubr.bf16.mxu0 %v3518
  %3917 = vmatmul.mubr.bf16.gmra.mxu0 %v3517
  %v3918 = vpop.f32.mrf.mxu0
  %v3919 = vadd.f32 0.0, %v3918
  %v3920 = vpop.f32.mrf.mxu0
  %v3921 = vadd.f32 0.0, %v3920
  %v3922 = vpop.f32.mrf.mxu0
  %v3923 = vadd.f32 0.0, %v3922
  %v3924 = vpop.f32.mrf.mxu0
  %v3925 = vadd.f32 0.0, %v3924
  %3926 = vmatprep.mubr.bf16.mxu0 %v3522
  %3927 = vmatmul.mubr.bf16.gmra.mxu0 %v3521
  %v3928 = vpop.f32.mrf.mxu0
  %v3929 = vadd.f32 0.0, %v3928
  %v3930 = vpop.f32.mrf.mxu0
  %v3931 = vadd.f32 0.0, %v3930
  %v3932 = vpop.f32.mrf.mxu0
  %v3933 = vadd.f32 0.0, %v3932
  %v3934 = vpop.f32.mrf.mxu0
  %v3935 = vadd.f32 0.0, %v3934
  %3936 = vmatprep.mubr.bf16.mxu0 %v3526
  %3937 = vmatmul.mubr.bf16.gmra.mxu0 %v3525
  %v3938 = vpop.f32.mrf.mxu0
  %v3939 = vadd.f32 0.0, %v3938
  %v3940 = vpop.f32.mrf.mxu0
  %v3941 = vadd.f32 0.0, %v3940
  %v3942 = vpop.f32.mrf.mxu0
  %v3943 = vadd.f32 0.0, %v3942
  %v3944 = vpop.f32.mrf.mxu0
  %v3945 = vadd.f32 0.0, %v3944
  %3946 = vmatprep.mubr.bf16.mxu0 %v3530
  %3947 = vmatmul.mubr.bf16.gmra.mxu0 %v3529
  %v3948 = vpop.f32.mrf.mxu0
  %v3949 = vadd.f32 0.0, %v3948
  %v3950 = vpop.f32.mrf.mxu0
  %v3951 = vadd.f32 0.0, %v3950
  %v3952 = vpop.f32.mrf.mxu0
  %v3953 = vadd.f32 0.0, %v3952
  %v3954 = vpop.f32.mrf.mxu0
  %v3955 = vadd.f32 0.0, %v3954
  %3956 = vmatprep.mubr.bf16.mxu0 %v3534
  %3957 = vmatmul.mubr.bf16.gmra.mxu0 %v3533
  %v3958 = vpop.f32.mrf.mxu0
  %v3959 = vadd.f32 0.0, %v3958
  %v3960 = vpop.f32.mrf.mxu0
  %v3961 = vadd.f32 0.0, %v3960
  %v3962 = vpop.f32.mrf.mxu0
  %v3963 = vadd.f32 0.0, %v3962
  %v3964 = vpop.f32.mrf.mxu0
  %v3965 = vadd.f32 0.0, %v3964
  %3966 = vmatprep.mubr.bf16.mxu0 %v3538
  %3967 = vmatmul.mubr.bf16.gmra.mxu0 %v3537
  %v3968 = vpop.f32.mrf.mxu0
  %v3969 = vadd.f32 0.0, %v3968
  %v3970 = vpop.f32.mrf.mxu0
  %v3971 = vadd.f32 0.0, %v3970
  %v3972 = vpop.f32.mrf.mxu0
  %v3973 = vadd.f32 0.0, %v3972
  %v3974 = vpop.f32.mrf.mxu0
  %v3975 = vadd.f32 0.0, %v3974
  %3976 = vmatprep.mubr.bf16.mxu0 %v3542
  %3977 = vmatmul.mubr.bf16.gmra.mxu0 %v3541
  %v3978 = vpop.f32.mrf.mxu0
  %v3979 = vadd.f32 0.0, %v3978
  %v3980 = vpop.f32.mrf.mxu0
  %v3981 = vadd.f32 0.0, %v3980
  %v3982 = vpop.f32.mrf.mxu0
  %v3983 = vadd.f32 0.0, %v3982
  %v3984 = vpop.f32.mrf.mxu0
  %v3985 = vadd.f32 0.0, %v3984
  %3986 = vdwg.mxu0
  %3987 = vmatprep.subr.bf16.mxu0 %v2117
  %3988 = vmatpush1.bf16.msra.mxu0 %v1864
  %3989 = vmatprep.subr.bf16.mxu0 %v2116
  %3990 = vmatpush1.bf16.msra.mxu0 %v1863
  %3991 = vmatprep.subr.bf16.mxu0 %v2115
  %3992 = vmatpush1.bf16.msra.mxu0 %v1862
  %3993 = vmatprep.subr.bf16.mxu0 %v2114
  %3994 = vmatpush1.bf16.msra.mxu0 %v1861
  %3995 = vmatprep.subr.bf16.mxu0 %v2113
  %3996 = vmatpush1.bf16.msra.mxu0 %v1860
  %3997 = vmatprep.subr.bf16.mxu0 %v2112
  %3998 = vmatpush1.bf16.msra.mxu0 %v1859
  %3999 = vmatprep.subr.bf16.mxu0 %v1864
  %4000 = vmatpush1.bf16.msra.mxu0 %v1611
  %4001 = vmatprep.subr.bf16.mxu0 %v1863
  %4002 = vmatpush1.bf16.msra.mxu0 %v1610
  %4003 = vmatprep.subr.bf16.mxu0 0
  %4004 = vmatpush2.bf16.msra.mxu0 0
  %4005 = vmatprep.subr.bf16.mxu0 0
  %4006 = vmatpush2.bf16.msra.mxu0 0
  %4007 = vmatprep.subr.bf16.mxu0 %v2370
  %4008 = vmatpush2.bf16.msra.mxu0 %v2117
  %4009 = vmatprep.subr.bf16.mxu0 %v2369
  %4010 = vmatpush2.bf16.msra.mxu0 %v2116
  %4011 = vmatprep.subr.bf16.mxu0 %v2368
  %4012 = vmatpush2.bf16.msra.mxu0 %v2115
  %4013 = vmatprep.subr.bf16.mxu0 %v2367
  %4014 = vmatpush2.bf16.msra.mxu0 %v2114
  %4015 = vmatprep.subr.bf16.mxu0 %v2366
  %4016 = vmatpush2.bf16.msra.mxu0 %v2113
  %4017 = vmatprep.subr.bf16.mxu0 %v2365
  %4018 = vmatpush2.bf16.msra.mxu0 %v2112
  %4019 = vmatprep.mubr.bf16.mxu0 %v3571
  %4020 = vmatmul.mubr.bf16.gmra.mxu0 %v3515
  %v4021 = vpop.f32.mrf.mxu0
  %v4022 = vadd.f32 %v3909, %v4021
  %v4023 = vpop.f32.mrf.mxu0
  %v4024 = vadd.f32 %v3911, %v4023
  %v4025 = vpop.f32.mrf.mxu0
  %v4026 = vadd.f32 %v3913, %v4025
  %v4027 = vpop.f32.mrf.mxu0
  %v4028 = vadd.f32 %v3915, %v4027
  %4029 = vmatprep.mubr.bf16.mxu0 %v3574
  %4030 = vmatmul.mubr.bf16.gmra.mxu0 %v3519
  %v4031 = vpop.f32.mrf.mxu0
  %v4032 = vadd.f32 %v3919, %v4031
  %v4033 = vpop.f32.mrf.mxu0
  %v4034 = vadd.f32 %v3921, %v4033
  %v4035 = vpop.f32.mrf.mxu0
  %v4036 = vadd.f32 %v3923, %v4035
  %v4037 = vpop.f32.mrf.mxu0
  %v4038 = vadd.f32 %v3925, %v4037
  %4039 = vmatprep.mubr.bf16.mxu0 %v3577
  %4040 = vmatmul.mubr.bf16.gmra.mxu0 %v3523
  %v4041 = vpop.f32.mrf.mxu0
  %v4042 = vadd.f32 %v3929, %v4041
  %v4043 = vpop.f32.mrf.mxu0
  %v4044 = vadd.f32 %v3931, %v4043
  %v4045 = vpop.f32.mrf.mxu0
  %v4046 = vadd.f32 %v3933, %v4045
  %v4047 = vpop.f32.mrf.mxu0
  %v4048 = vadd.f32 %v3935, %v4047
  %4049 = vmatprep.mubr.bf16.mxu0 %v3580
  %4050 = vmatmul.mubr.bf16.gmra.mxu0 %v3527
  %v4051 = vpop.f32.mrf.mxu0
  %v4052 = vadd.f32 %v3939, %v4051
  %v4053 = vpop.f32.mrf.mxu0
  %v4054 = vadd.f32 %v3941, %v4053
  %v4055 = vpop.f32.mrf.mxu0
  %v4056 = vadd.f32 %v3943, %v4055
  %v4057 = vpop.f32.mrf.mxu0
  %v4058 = vadd.f32 %v3945, %v4057
  %4059 = vmatprep.mubr.bf16.mxu0 %v3583
  %4060 = vmatmul.mubr.bf16.gmra.mxu0 %v3531
  %v4061 = vpop.f32.mrf.mxu0
  %v4062 = vadd.f32 %v3949, %v4061
  %v4063 = vpop.f32.mrf.mxu0
  %v4064 = vadd.f32 %v3951, %v4063
  %v4065 = vpop.f32.mrf.mxu0
  %v4066 = vadd.f32 %v3953, %v4065
  %v4067 = vpop.f32.mrf.mxu0
  %v4068 = vadd.f32 %v3955, %v4067
  %4069 = vmatprep.mubr.bf16.mxu0 %v3586
  %4070 = vmatmul.mubr.bf16.gmra.mxu0 %v3535
  %v4071 = vpop.f32.mrf.mxu0
  %v4072 = vadd.f32 %v3959, %v4071
  %v4073 = vpop.f32.mrf.mxu0
  %v4074 = vadd.f32 %v3961, %v4073
  %v4075 = vpop.f32.mrf.mxu0
  %v4076 = vadd.f32 %v3963, %v4075
  %v4077 = vpop.f32.mrf.mxu0
  %v4078 = vadd.f32 %v3965, %v4077
  %4079 = vmatprep.mubr.bf16.mxu0 %v3589
  %4080 = vmatmul.mubr.bf16.gmra.mxu0 %v3539
  %v4081 = vpop.f32.mrf.mxu0
  %v4082 = vadd.f32 %v3969, %v4081
  %v4083 = vpop.f32.mrf.mxu0
  %v4084 = vadd.f32 %v3971, %v4083
  %v4085 = vpop.f32.mrf.mxu0
  %v4086 = vadd.f32 %v3973, %v4085
  %v4087 = vpop.f32.mrf.mxu0
  %v4088 = vadd.f32 %v3975, %v4087
  %4089 = vmatprep.mubr.bf16.mxu0 %v3592
  %4090 = vmatmul.mubr.bf16.gmra.mxu0 %v3543
  %v4091 = vpop.f32.mrf.mxu0
  %v4092 = vadd.f32 %v3979, %v4091
  %v4093 = vpop.f32.mrf.mxu0
  %v4094 = vadd.f32 %v3981, %v4093
  %v4095 = vpop.f32.mrf.mxu0
  %v4096 = vadd.f32 %v3983, %v4095
  %v4097 = vpop.f32.mrf.mxu0
  %v4098 = vadd.f32 %v3985, %v4097
  %4099 = vdwg.mxu0
  %v4100 = vmax.f32 %v4022, %v4024
  %v4101 = vmax.f32 %v4026, %v4028
  %v4102 = vmax.f32 %v4032, %v4034
  %v4103 = vmax.f32 %v4036, %v4038
  %v4104 = vmax.f32 %v4042, %v4044
  %v4105 = vmax.f32 %v4046, %v4048
  %v4106 = vmax.f32 %v4052, %v4054
  %v4107 = vmax.f32 %v4056, %v4058
  %v4108 = vmax.f32 %v4062, %v4064
  %v4109 = vmax.f32 %v4066, %v4068
  %v4110 = vmax.f32 %v4072, %v4074
  %v4111 = vmax.f32 %v4076, %v4078
  %v4112 = vmax.f32 %v4082, %v4084
  %v4113 = vmax.f32 %v4086, %v4088
  %v4114 = vmax.f32 %v4092, %v4094
  %v4115 = vmax.f32 %v4096, %v4098
  %v4116 = vmax.f32 %v4100, %v4102
  %v4117 = vmax.f32 %v4101, %v4103
  %v4118 = vadd.f32 %v4116, %v3841
  %v4119 = vadd.f32 %v4117, %v3846
  %v4120 = vmax.f32 %v4118, 0.0
  %v4121 = vmax.f32 %v4119, 0.0
  %v4122 = vpack.c.bf16 %v4121, %v4120
  %v4123 = vmax.f32 %v4104, %v4106
  %v4124 = vmax.f32 %v4105, %v4107
  %v4125 = vadd.f32 %v4123, %v3841
  %v4126 = vadd.f32 %v4124, %v3846
  %v4127 = vmax.f32 %v4125, 0.0
  %v4128 = vmax.f32 %v4126, 0.0
  %v4129 = vpack.c.bf16 %v4128, %v4127
  %v4130 = vmax.f32 %v4108, %v4110
  %v4131 = vmax.f32 %v4109, %v4111
  %v4132 = vadd.f32 %v4130, %v3841
  %v4133 = vadd.f32 %v4131, %v3846
  %v4134 = vmax.f32 %v4132, 0.0
  %v4135 = vmax.f32 %v4133, 0.0
  %v4136 = vpack.c.bf16 %v4135, %v4134
  %v4137 = vmax.f32 %v4112, %v4114
  %v4138 = vmax.f32 %v4113, %v4115
  %v4139 = vadd.f32 %v4137, %v3841
  %v4140 = vadd.f32 %v4138, %v3846
  %v4141 = vmax.f32 %v4139, 0.0
  %v4142 = vmax.f32 %v4140, 0.0
  %v4143 = vpack.c.bf16 %v4142, %v4141
  %4144 = vmatprep.subr.bf16.mxu0 %v2113
  %4145 = vmatpush1.bf16.msra.mxu0 %v1860
  %4146 = vmatprep.subr.bf16.mxu0 %v2112
  %4147 = vmatpush1.bf16.msra.mxu0 %v1859
  %4148 = vmatprep.subr.bf16.mxu0 %v1864
  %4149 = vmatpush1.bf16.msra.mxu0 %v1611
  %4150 = vmatprep.subr.bf16.mxu0 %v1863
  %4151 = vmatpush1.bf16.msra.mxu0 %v1610
  %4152 = vmatprep.subr.bf16.mxu0 %v1862
  %4153 = vmatpush1.bf16.msra.mxu0 %v1609
  %4154 = vmatprep.subr.bf16.mxu0 %v1861
  %4155 = vmatpush1.bf16.msra.mxu0 %v1608
  %4156 = vmatprep.subr.bf16.mxu0 %v1860
  %4157 = vmatpush1.bf16.msra.mxu0 %v1607
  %4158 = vmatprep.subr.bf16.mxu0 %v1859
  %4159 = vmatpush1.bf16.msra.mxu0 %v1606
  %4160 = vmatprep.subr.bf16.mxu0 %v2368
  %4161 = vmatpush2.bf16.msra.mxu0 %v2115
  %4162 = vmatprep.subr.bf16.mxu0 %v2367
  %4163 = vmatpush2.bf16.msra.mxu0 %v2114
  %4164 = vmatprep.subr.bf16.mxu0 %v2366
  %4165 = vmatpush2.bf16.msra.mxu0 %v2113
  %4166 = vmatprep.subr.bf16.mxu0 %v2365
  %4167 = vmatpush2.bf16.msra.mxu0 %v2112
  %4168 = vmatprep.subr.bf16.mxu0 %v2117
  %4169 = vmatpush2.bf16.msra.mxu0 %v1864
  %4170 = vmatprep.subr.bf16.mxu0 %v2116
  %4171 = vmatpush2.bf16.msra.mxu0 %v1863
  %4172 = vmatprep.subr.bf16.mxu0 %v2115
  %4173 = vmatpush2.bf16.msra.mxu0 %v1862
  %4174 = vmatprep.subr.bf16.mxu0 %v2114
  %4175 = vmatpush2.bf16.msra.mxu0 %v1861
  %4176 = vmatprep.mubr.bf16.mxu0 %v3514
  %4177 = vmatmul.mubr.bf16.gmra.mxu0 %v3513
  %v4178 = vpop.f32.mrf.mxu0
  %v4179 = vadd.f32 0.0, %v4178
  %v4180 = vpop.f32.mrf.mxu0
  %v4181 = vadd.f32 0.0, %v4180
  %v4182 = vpop.f32.mrf.mxu0
  %v4183 = vadd.f32 0.0, %v4182
  %v4184 = vpop.f32.mrf.mxu0
  %v4185 = vadd.f32 0.0, %v4184
  %4186 = vmatprep.mubr.bf16.mxu0 %v3518
  %4187 = vmatmul.mubr.bf16.gmra.mxu0 %v3517
  %v4188 = vpop.f32.mrf.mxu0
  %v4189 = vadd.f32 0.0, %v4188
  %v4190 = vpop.f32.mrf.mxu0
  %v4191 = vadd.f32 0.0, %v4190
  %v4192 = vpop.f32.mrf.mxu0
  %v4193 = vadd.f32 0.0, %v4192
  %v4194 = vpop.f32.mrf.mxu0
  %v4195 = vadd.f32 0.0, %v4194
  %4196 = vmatprep.mubr.bf16.mxu0 %v3522
  %4197 = vmatmul.mubr.bf16.gmra.mxu0 %v3521
  %v4198 = vpop.f32.mrf.mxu0
  %v4199 = vadd.f32 0.0, %v4198
  %v4200 = vpop.f32.mrf.mxu0
  %v4201 = vadd.f32 0.0, %v4200
  %v4202 = vpop.f32.mrf.mxu0
  %v4203 = vadd.f32 0.0, %v4202
  %v4204 = vpop.f32.mrf.mxu0
  %v4205 = vadd.f32 0.0, %v4204
  %4206 = vmatprep.mubr.bf16.mxu0 %v3526
  %4207 = vmatmul.mubr.bf16.gmra.mxu0 %v3525
  %v4208 = vpop.f32.mrf.mxu0
  %v4209 = vadd.f32 0.0, %v4208
  %v4210 = vpop.f32.mrf.mxu0
  %v4211 = vadd.f32 0.0, %v4210
  %v4212 = vpop.f32.mrf.mxu0
  %v4213 = vadd.f32 0.0, %v4212
  %v4214 = vpop.f32.mrf.mxu0
  %v4215 = vadd.f32 0.0, %v4214
  %4216 = vmatprep.mubr.bf16.mxu0 %v3530
  %4217 = vmatmul.mubr.bf16.gmra.mxu0 %v3529
  %v4218 = vpop.f32.mrf.mxu0
  %v4219 = vadd.f32 0.0, %v4218
  %v4220 = vpop.f32.mrf.mxu0
  %v4221 = vadd.f32 0.0, %v4220
  %v4222 = vpop.f32.mrf.mxu0
  %v4223 = vadd.f32 0.0, %v4222
  %v4224 = vpop.f32.mrf.mxu0
  %v4225 = vadd.f32 0.0, %v4224
  %4226 = vmatprep.mubr.bf16.mxu0 %v3534
  %4227 = vmatmul.mubr.bf16.gmra.mxu0 %v3533
  %v4228 = vpop.f32.mrf.mxu0
  %v4229 = vadd.f32 0.0, %v4228
  %v4230 = vpop.f32.mrf.mxu0
  %v4231 = vadd.f32 0.0, %v4230
  %v4232 = vpop.f32.mrf.mxu0
  %v4233 = vadd.f32 0.0, %v4232
  %v4234 = vpop.f32.mrf.mxu0
  %v4235 = vadd.f32 0.0, %v4234
  %4236 = vmatprep.mubr.bf16.mxu0 %v3538
  %4237 = vmatmul.mubr.bf16.gmra.mxu0 %v3537
  %v4238 = vpop.f32.mrf.mxu0
  %v4239 = vadd.f32 0.0, %v4238
  %v4240 = vpop.f32.mrf.mxu0
  %v4241 = vadd.f32 0.0, %v4240
  %v4242 = vpop.f32.mrf.mxu0
  %v4243 = vadd.f32 0.0, %v4242
  %v4244 = vpop.f32.mrf.mxu0
  %v4245 = vadd.f32 0.0, %v4244
  %4246 = vmatprep.mubr.bf16.mxu0 %v3542
  %4247 = vmatmul.mubr.bf16.gmra.mxu0 %v3541
  %v4248 = vpop.f32.mrf.mxu0
  %v4249 = vadd.f32 0.0, %v4248
  %v4250 = vpop.f32.mrf.mxu0
  %v4251 = vadd.f32 0.0, %v4250
  %v4252 = vpop.f32.mrf.mxu0
  %v4253 = vadd.f32 0.0, %v4252
  %v4254 = vpop.f32.mrf.mxu0
  %v4255 = vadd.f32 0.0, %v4254
  %4256 = vdwg.mxu0
  %4257 = vmatprep.subr.bf16.mxu0 %v2623
  %4258 = vmatpush1.bf16.msra.mxu0 %v2370
  %4259 = vmatprep.subr.bf16.mxu0 %v2622
  %4260 = vmatpush1.bf16.msra.mxu0 %v2369
  %4261 = vmatprep.subr.bf16.mxu0 %v2621
  %4262 = vmatpush1.bf16.msra.mxu0 %v2368
  %4263 = vmatprep.subr.bf16.mxu0 %v2620
  %4264 = vmatpush1.bf16.msra.mxu0 %v2367
  %4265 = vmatprep.subr.bf16.mxu0 %v2619
  %4266 = vmatpush1.bf16.msra.mxu0 %v2366
  %4267 = vmatprep.subr.bf16.mxu0 %v2618
  %4268 = vmatpush1.bf16.msra.mxu0 %v2365
  %4269 = vmatprep.subr.bf16.mxu0 %v2370
  %4270 = vmatpush1.bf16.msra.mxu0 %v2117
  %4271 = vmatprep.subr.bf16.mxu0 %v2369
  %4272 = vmatpush1.bf16.msra.mxu0 %v2116
  %4273 = vmatprep.subr.bf16.mxu0 0
  %4274 = vmatpush2.bf16.msra.mxu0 0
  %4275 = vmatprep.subr.bf16.mxu0 0
  %4276 = vmatpush2.bf16.msra.mxu0 0
  %4277 = vmatprep.subr.bf16.mxu0 %v2876
  %4278 = vmatpush2.bf16.msra.mxu0 %v2623
  %4279 = vmatprep.subr.bf16.mxu0 %v2875
  %4280 = vmatpush2.bf16.msra.mxu0 %v2622
  %4281 = vmatprep.subr.bf16.mxu0 %v2874
  %4282 = vmatpush2.bf16.msra.mxu0 %v2621
  %4283 = vmatprep.subr.bf16.mxu0 %v2873
  %4284 = vmatpush2.bf16.msra.mxu0 %v2620
  %4285 = vmatprep.subr.bf16.mxu0 %v2872
  %4286 = vmatpush2.bf16.msra.mxu0 %v2619
  %4287 = vmatprep.subr.bf16.mxu0 %v2871
  %4288 = vmatpush2.bf16.msra.mxu0 %v2618
  %4289 = vmatprep.mubr.bf16.mxu0 %v3571
  %4290 = vmatmul.mubr.bf16.gmra.mxu0 %v3515
  %v4291 = vpop.f32.mrf.mxu0
  %v4292 = vadd.f32 %v4179, %v4291
  %v4293 = vpop.f32.mrf.mxu0
  %v4294 = vadd.f32 %v4181, %v4293
  %v4295 = vpop.f32.mrf.mxu0
  %v4296 = vadd.f32 %v4183, %v4295
  %v4297 = vpop.f32.mrf.mxu0
  %v4298 = vadd.f32 %v4185, %v4297
  %4299 = vmatprep.mubr.bf16.mxu0 %v3574
  %4300 = vmatmul.mubr.bf16.gmra.mxu0 %v3519
  %v4301 = vpop.f32.mrf.mxu0
  %v4302 = vadd.f32 %v4189, %v4301
  %v4303 = vpop.f32.mrf.mxu0
  %v4304 = vadd.f32 %v4191, %v4303
  %v4305 = vpop.f32.mrf.mxu0
  %v4306 = vadd.f32 %v4193, %v4305
  %v4307 = vpop.f32.mrf.mxu0
  %v4308 = vadd.f32 %v4195, %v4307
  %4309 = vmatprep.mubr.bf16.mxu0 %v3577
  %4310 = vmatmul.mubr.bf16.gmra.mxu0 %v3523
  %v4311 = vpop.f32.mrf.mxu0
  %v4312 = vadd.f32 %v4199, %v4311
  %v4313 = vpop.f32.mrf.mxu0
  %v4314 = vadd.f32 %v4201, %v4313
  %v4315 = vpop.f32.mrf.mxu0
  %v4316 = vadd.f32 %v4203, %v4315
  %v4317 = vpop.f32.mrf.mxu0
  %v4318 = vadd.f32 %v4205, %v4317
  %4319 = vmatprep.mubr.bf16.mxu0 %v3580
  %4320 = vmatmul.mubr.bf16.gmra.mxu0 %v3527
  %v4321 = vpop.f32.mrf.mxu0
  %v4322 = vadd.f32 %v4209, %v4321
  %v4323 = vpop.f32.mrf.mxu0
  %v4324 = vadd.f32 %v4211, %v4323
  %v4325 = vpop.f32.mrf.mxu0
  %v4326 = vadd.f32 %v4213, %v4325
  %v4327 = vpop.f32.mrf.mxu0
  %v4328 = vadd.f32 %v4215, %v4327
  %4329 = vmatprep.mubr.bf16.mxu0 %v3583
  %4330 = vmatmul.mubr.bf16.gmra.mxu0 %v3531
  %v4331 = vpop.f32.mrf.mxu0
  %v4332 = vadd.f32 %v4219, %v4331
  %v4333 = vpop.f32.mrf.mxu0
  %v4334 = vadd.f32 %v4221, %v4333
  %v4335 = vpop.f32.mrf.mxu0
  %v4336 = vadd.f32 %v4223, %v4335
  %v4337 = vpop.f32.mrf.mxu0
  %v4338 = vadd.f32 %v4225, %v4337
  %4339 = vmatprep.mubr.bf16.mxu0 %v3586
  %4340 = vmatmul.mubr.bf16.gmra.mxu0 %v3535
  %v4341 = vpop.f32.mrf.mxu0
  %v4342 = vadd.f32 %v4229, %v4341
  %v4343 = vpop.f32.mrf.mxu0
  %v4344 = vadd.f32 %v4231, %v4343
  %v4345 = vpop.f32.mrf.mxu0
  %v4346 = vadd.f32 %v4233, %v4345
  %v4347 = vpop.f32.mrf.mxu0
  %v4348 = vadd.f32 %v4235, %v4347
  %4349 = vmatprep.mubr.bf16.mxu0 %v3589
  %4350 = vmatmul.mubr.bf16.gmra.mxu0 %v3539
  %v4351 = vpop.f32.mrf.mxu0
  %v4352 = vadd.f32 %v4239, %v4351
  %v4353 = vpop.f32.mrf.mxu0
  %v4354 = vadd.f32 %v4241, %v4353
  %v4355 = vpop.f32.mrf.mxu0
  %v4356 = vadd.f32 %v4243, %v4355
  %v4357 = vpop.f32.mrf.mxu0
  %v4358 = vadd.f32 %v4245, %v4357
  %4359 = vmatprep.mubr.bf16.mxu0 %v3592
  %4360 = vmatmul.mubr.bf16.gmra.mxu0 %v3543
  %v4361 = vpop.f32.mrf.mxu0
  %v4362 = vadd.f32 %v4249, %v4361
  %v4363 = vpop.f32.mrf.mxu0
  %v4364 = vadd.f32 %v4251, %v4363
  %v4365 = vpop.f32.mrf.mxu0
  %v4366 = vadd.f32 %v4253, %v4365
  %v4367 = vpop.f32.mrf.mxu0
  %v4368 = vadd.f32 %v4255, %v4367
  %4369 = vdwg.mxu0
  %v4370 = vmax.f32 %v4292, %v4294
  %v4371 = vmax.f32 %v4296, %v4298
  %v4372 = vmax.f32 %v4302, %v4304
  %v4373 = vmax.f32 %v4306, %v4308
  %v4374 = vmax.f32 %v4312, %v4314
  %v4375 = vmax.f32 %v4316, %v4318
  %v4376 = vmax.f32 %v4322, %v4324
  %v4377 = vmax.f32 %v4326, %v4328
  %v4378 = vmax.f32 %v4332, %v4334
  %v4379 = vmax.f32 %v4336, %v4338
  %v4380 = vmax.f32 %v4342, %v4344
  %v4381 = vmax.f32 %v4346, %v4348
  %v4382 = vmax.f32 %v4352, %v4354
  %v4383 = vmax.f32 %v4356, %v4358
  %v4384 = vmax.f32 %v4362, %v4364
  %v4385 = vmax.f32 %v4366, %v4368
  %v4386 = vmax.f32 %v4370, %v4372
  %v4387 = vmax.f32 %v4371, %v4373
  %v4388 = vadd.f32 %v4386, %v3841
  %v4389 = vadd.f32 %v4387, %v3846
  %v4390 = vmax.f32 %v4388, 0.0
  %v4391 = vmax.f32 %v4389, 0.0
  %v4392 = vpack.c.bf16 %v4391, %v4390
  %v4393 = vmax.f32 %v4374, %v4376
  %v4394 = vmax.f32 %v4375, %v4377
  %v4395 = vadd.f32 %v4393, %v3841
  %v4396 = vadd.f32 %v4394, %v3846
  %v4397 = vmax.f32 %v4395, 0.0
  %v4398 = vmax.f32 %v4396, 0.0
  %v4399 = vpack.c.bf16 %v4398, %v4397
  %v4400 = vmax.f32 %v4378, %v4380
  %v4401 = vmax.f32 %v4379, %v4381
  %v4402 = vadd.f32 %v4400, %v3841
  %v4403 = vadd.f32 %v4401, %v3846
  %v4404 = vmax.f32 %v4402, 0.0
  %v4405 = vmax.f32 %v4403, 0.0
  %v4406 = vpack.c.bf16 %v4405, %v4404
  %v4407 = vmax.f32 %v4382, %v4384
  %v4408 = vmax.f32 %v4383, %v4385
  %v4409 = vadd.f32 %v4407, %v3841
  %v4410 = vadd.f32 %v4408, %v3846
  %v4411 = vmax.f32 %v4409, 0.0
  %v4412 = vmax.f32 %v4410, 0.0
  %v4413 = vpack.c.bf16 %v4412, %v4411
  %4414 = vmatprep.subr.bf16.mxu0 %v2619
  %4415 = vmatpush1.bf16.msra.mxu0 %v2366
  %4416 = vmatprep.subr.bf16.mxu0 %v2618
  %4417 = vmatpush1.bf16.msra.mxu0 %v2365
  %4418 = vmatprep.subr.bf16.mxu0 %v2370
  %4419 = vmatpush1.bf16.msra.mxu0 %v2117
  %4420 = vmatprep.subr.bf16.mxu0 %v2369
  %4421 = vmatpush1.bf16.msra.mxu0 %v2116
  %4422 = vmatprep.subr.bf16.mxu0 %v2368
  %4423 = vmatpush1.bf16.msra.mxu0 %v2115
  %4424 = vmatprep.subr.bf16.mxu0 %v2367
  %4425 = vmatpush1.bf16.msra.mxu0 %v2114
  %4426 = vmatprep.subr.bf16.mxu0 %v2366
  %4427 = vmatpush1.bf16.msra.mxu0 %v2113
  %4428 = vmatprep.subr.bf16.mxu0 %v2365
  %4429 = vmatpush1.bf16.msra.mxu0 %v2112
  %4430 = vmatprep.subr.bf16.mxu0 %v2874
  %4431 = vmatpush2.bf16.msra.mxu0 %v2621
  %4432 = vmatprep.subr.bf16.mxu0 %v2873
  %4433 = vmatpush2.bf16.msra.mxu0 %v2620
  %4434 = vmatprep.subr.bf16.mxu0 %v2872
  %4435 = vmatpush2.bf16.msra.mxu0 %v2619
  %4436 = vmatprep.subr.bf16.mxu0 %v2871
  %4437 = vmatpush2.bf16.msra.mxu0 %v2618
  %4438 = vmatprep.subr.bf16.mxu0 %v2623
  %4439 = vmatpush2.bf16.msra.mxu0 %v2370
  %4440 = vmatprep.subr.bf16.mxu0 %v2622
  %4441 = vmatpush2.bf16.msra.mxu0 %v2369
  %4442 = vmatprep.subr.bf16.mxu0 %v2621
  %4443 = vmatpush2.bf16.msra.mxu0 %v2368
  %4444 = vmatprep.subr.bf16.mxu0 %v2620
  %4445 = vmatpush2.bf16.msra.mxu0 %v2367
  %4446 = vmatprep.mubr.bf16.mxu0 %v3514
  %4447 = vmatmul.mubr.bf16.gmra.mxu0 %v3513
  %v4448 = vpop.f32.mrf.mxu0
  %v4449 = vadd.f32 0.0, %v4448
  %v4450 = vpop.f32.mrf.mxu0
  %v4451 = vadd.f32 0.0, %v4450
  %v4452 = vpop.f32.mrf.mxu0
  %v4453 = vadd.f32 0.0, %v4452
  %v4454 = vpop.f32.mrf.mxu0
  %v4455 = vadd.f32 0.0, %v4454
  %4456 = vmatprep.mubr.bf16.mxu0 %v3518
  %4457 = vmatmul.mubr.bf16.gmra.mxu0 %v3517
  %v4458 = vpop.f32.mrf.mxu0
  %v4459 = vadd.f32 0.0, %v4458
  %v4460 = vpop.f32.mrf.mxu0
  %v4461 = vadd.f32 0.0, %v4460
  %v4462 = vpop.f32.mrf.mxu0
  %v4463 = vadd.f32 0.0, %v4462
  %v4464 = vpop.f32.mrf.mxu0
  %v4465 = vadd.f32 0.0, %v4464
  %4466 = vmatprep.mubr.bf16.mxu0 %v3522
  %4467 = vmatmul.mubr.bf16.gmra.mxu0 %v3521
  %v4468 = vpop.f32.mrf.mxu0
  %v4469 = vadd.f32 0.0, %v4468
  %v4470 = vpop.f32.mrf.mxu0
  %v4471 = vadd.f32 0.0, %v4470
  %v4472 = vpop.f32.mrf.mxu0
  %v4473 = vadd.f32 0.0, %v4472
  %v4474 = vpop.f32.mrf.mxu0
  %v4475 = vadd.f32 0.0, %v4474
  %4476 = vmatprep.mubr.bf16.mxu0 %v3526
  %4477 = vmatmul.mubr.bf16.gmra.mxu0 %v3525
  %v4478 = vpop.f32.mrf.mxu0
  %v4479 = vadd.f32 0.0, %v4478
  %v4480 = vpop.f32.mrf.mxu0
  %v4481 = vadd.f32 0.0, %v4480
  %v4482 = vpop.f32.mrf.mxu0
  %v4483 = vadd.f32 0.0, %v4482
  %v4484 = vpop.f32.mrf.mxu0
  %v4485 = vadd.f32 0.0, %v4484
  %4486 = vmatprep.mubr.bf16.mxu0 %v3530
  %4487 = vmatmul.mubr.bf16.gmra.mxu0 %v3529
  %v4488 = vpop.f32.mrf.mxu0
  %v4489 = vadd.f32 0.0, %v4488
  %v4490 = vpop.f32.mrf.mxu0
  %v4491 = vadd.f32 0.0, %v4490
  %v4492 = vpop.f32.mrf.mxu0
  %v4493 = vadd.f32 0.0, %v4492
  %v4494 = vpop.f32.mrf.mxu0
  %v4495 = vadd.f32 0.0, %v4494
  %4496 = vmatprep.mubr.bf16.mxu0 %v3534
  %4497 = vmatmul.mubr.bf16.gmra.mxu0 %v3533
  %v4498 = vpop.f32.mrf.mxu0
  %v4499 = vadd.f32 0.0, %v4498
  %v4500 = vpop.f32.mrf.mxu0
  %v4501 = vadd.f32 0.0, %v4500
  %v4502 = vpop.f32.mrf.mxu0
  %v4503 = vadd.f32 0.0, %v4502
  %v4504 = vpop.f32.mrf.mxu0
  %v4505 = vadd.f32 0.0, %v4504
  %4506 = vmatprep.mubr.bf16.mxu0 %v3538
  %4507 = vmatmul.mubr.bf16.gmra.mxu0 %v3537
  %v4508 = vpop.f32.mrf.mxu0
  %v4509 = vadd.f32 0.0, %v4508
  %v4510 = vpop.f32.mrf.mxu0
  %v4511 = vadd.f32 0.0, %v4510
  %v4512 = vpop.f32.mrf.mxu0
  %v4513 = vadd.f32 0.0, %v4512
  %v4514 = vpop.f32.mrf.mxu0
  %v4515 = vadd.f32 0.0, %v4514
  %4516 = vmatprep.mubr.bf16.mxu0 %v3542
  %4517 = vmatmul.mubr.bf16.gmra.mxu0 %v3541
  %v4518 = vpop.f32.mrf.mxu0
  %v4519 = vadd.f32 0.0, %v4518
  %v4520 = vpop.f32.mrf.mxu0
  %v4521 = vadd.f32 0.0, %v4520
  %v4522 = vpop.f32.mrf.mxu0
  %v4523 = vadd.f32 0.0, %v4522
  %v4524 = vpop.f32.mrf.mxu0
  %v4525 = vadd.f32 0.0, %v4524
  %4526 = vdwg.mxu0
  %4527 = vmatprep.subr.bf16.mxu0 %v3129
  %4528 = vmatpush1.bf16.msra.mxu0 %v2876
  %4529 = vmatprep.subr.bf16.mxu0 %v3128
  %4530 = vmatpush1.bf16.msra.mxu0 %v2875
  %4531 = vmatprep.subr.bf16.mxu0 %v3127
  %4532 = vmatpush1.bf16.msra.mxu0 %v2874
  %4533 = vmatprep.subr.bf16.mxu0 %v3126
  %4534 = vmatpush1.bf16.msra.mxu0 %v2873
  %4535 = vmatprep.subr.bf16.mxu0 %v3125
  %4536 = vmatpush1.bf16.msra.mxu0 %v2872
  %4537 = vmatprep.subr.bf16.mxu0 %v3124
  %4538 = vmatpush1.bf16.msra.mxu0 %v2871
  %4539 = vmatprep.subr.bf16.mxu0 %v2876
  %4540 = vmatpush1.bf16.msra.mxu0 %v2623
  %4541 = vmatprep.subr.bf16.mxu0 %v2875
  %4542 = vmatpush1.bf16.msra.mxu0 %v2622
  %4543 = vmatprep.subr.bf16.mxu0 0
  %4544 = vmatpush2.bf16.msra.mxu0 0
  %4545 = vmatprep.subr.bf16.mxu0 0
  %4546 = vmatpush2.bf16.msra.mxu0 0
  %4547 = vmatprep.subr.bf16.mxu0 %v3382
  %4548 = vmatpush2.bf16.msra.mxu0 %v3129
  %4549 = vmatprep.subr.bf16.mxu0 %v3381
  %4550 = vmatpush2.bf16.msra.mxu0 %v3128
  %4551 = vmatprep.subr.bf16.mxu0 %v3380
  %4552 = vmatpush2.bf16.msra.mxu0 %v3127
  %4553 = vmatprep.subr.bf16.mxu0 %v3379
  %4554 = vmatpush2.bf16.msra.mxu0 %v3126
  %4555 = vmatprep.subr.bf16.mxu0 %v3378
  %4556 = vmatpush2.bf16.msra.mxu0 %v3125
  %4557 = vmatprep.subr.bf16.mxu0 %v3377
  %4558 = vmatpush2.bf16.msra.mxu0 %v3124
  %4559 = vmatprep.mubr.bf16.mxu0 %v3571
  %4560 = vmatmul.mubr.bf16.gmra.mxu0 %v3515
  %v4561 = vpop.f32.mrf.mxu0
  %v4562 = vadd.f32 %v4449, %v4561
  %v4563 = vpop.f32.mrf.mxu0
  %v4564 = vadd.f32 %v4451, %v4563
  %v4565 = vpop.f32.mrf.mxu0
  %v4566 = vadd.f32 %v4453, %v4565
  %v4567 = vpop.f32.mrf.mxu0
  %v4568 = vadd.f32 %v4455, %v4567
  %4569 = vmatprep.mubr.bf16.mxu0 %v3574
  %4570 = vmatmul.mubr.bf16.gmra.mxu0 %v3519
  %v4571 = vpop.f32.mrf.mxu0
  %v4572 = vadd.f32 %v4459, %v4571
  %v4573 = vpop.f32.mrf.mxu0
  %v4574 = vadd.f32 %v4461, %v4573
  %v4575 = vpop.f32.mrf.mxu0
  %v4576 = vadd.f32 %v4463, %v4575
  %v4577 = vpop.f32.mrf.mxu0
  %v4578 = vadd.f32 %v4465, %v4577
  %4579 = vmatprep.mubr.bf16.mxu0 %v3577
  %4580 = vmatmul.mubr.bf16.gmra.mxu0 %v3523
  %v4581 = vpop.f32.mrf.mxu0
  %v4582 = vadd.f32 %v4469, %v4581
  %v4583 = vpop.f32.mrf.mxu0
  %v4584 = vadd.f32 %v4471, %v4583
  %v4585 = vpop.f32.mrf.mxu0
  %v4586 = vadd.f32 %v4473, %v4585
  %v4587 = vpop.f32.mrf.mxu0
  %v4588 = vadd.f32 %v4475, %v4587
  %4589 = vmatprep.mubr.bf16.mxu0 %v3580
  %4590 = vmatmul.mubr.bf16.gmra.mxu0 %v3527
  %v4591 = vpop.f32.mrf.mxu0
  %v4592 = vadd.f32 %v4479, %v4591
  %v4593 = vpop.f32.mrf.mxu0
  %v4594 = vadd.f32 %v4481, %v4593
  %v4595 = vpop.f32.mrf.mxu0
  %v4596 = vadd.f32 %v4483, %v4595
  %v4597 = vpop.f32.mrf.mxu0
  %v4598 = vadd.f32 %v4485, %v4597
  %4599 = vmatprep.mubr.bf16.mxu0 %v3583
  %4600 = vmatmul.mubr.bf16.gmra.mxu0 %v3531
  %v4601 = vpop.f32.mrf.mxu0
  %v4602 = vadd.f32 %v4489, %v4601
  %v4603 = vpop.f32.mrf.mxu0
  %v4604 = vadd.f32 %v4491, %v4603
  %v4605 = vpop.f32.mrf.mxu0
  %v4606 = vadd.f32 %v4493, %v4605
  %v4607 = vpop.f32.mrf.mxu0
  %v4608 = vadd.f32 %v4495, %v4607
  %4609 = vmatprep.mubr.bf16.mxu0 %v3586
  %4610 = vmatmul.mubr.bf16.gmra.mxu0 %v3535
  %v4611 = vpop.f32.mrf.mxu0
  %v4612 = vadd.f32 %v4499, %v4611
  %v4613 = vpop.f32.mrf.mxu0
  %v4614 = vadd.f32 %v4501, %v4613
  %v4615 = vpop.f32.mrf.mxu0
  %v4616 = vadd.f32 %v4503, %v4615
  %v4617 = vpop.f32.mrf.mxu0
  %v4618 = vadd.f32 %v4505, %v4617
  %4619 = vmatprep.mubr.bf16.mxu0 %v3589
  %4620 = vmatmul.mubr.bf16.gmra.mxu0 %v3539
  %v4621 = vpop.f32.mrf.mxu0
  %v4622 = vadd.f32 %v4509, %v4621
  %v4623 = vpop.f32.mrf.mxu0
  %v4624 = vadd.f32 %v4511, %v4623
  %v4625 = vpop.f32.mrf.mxu0
  %v4626 = vadd.f32 %v4513, %v4625
  %v4627 = vpop.f32.mrf.mxu0
  %v4628 = vadd.f32 %v4515, %v4627
  %4629 = vmatprep.mubr.bf16.mxu0 %v3592
  %4630 = vmatmul.mubr.bf16.gmra.mxu0 %v3543
  %v4631 = vpop.f32.mrf.mxu0
  %v4632 = vadd.f32 %v4519, %v4631
  %v4633 = vpop.f32.mrf.mxu0
  %v4634 = vadd.f32 %v4521, %v4633
  %v4635 = vpop.f32.mrf.mxu0
  %v4636 = vadd.f32 %v4523, %v4635
  %v4637 = vpop.f32.mrf.mxu0
  %v4638 = vadd.f32 %v4525, %v4637
  %4639 = vdwg.mxu0
  %v4640 = vmax.f32 %v4562, %v4564
  %v4641 = vmax.f32 %v4566, %v4568
  %v4642 = vmax.f32 %v4572, %v4574
  %v4643 = vmax.f32 %v4576, %v4578
  %v4644 = vmax.f32 %v4582, %v4584
  %v4645 = vmax.f32 %v4586, %v4588
  %v4646 = vmax.f32 %v4592, %v4594
  %v4647 = vmax.f32 %v4596, %v4598
  %v4648 = vmax.f32 %v4602, %v4604
  %v4649 = vmax.f32 %v4606, %v4608
  %v4650 = vmax.f32 %v4612, %v4614
  %v4651 = vmax.f32 %v4616, %v4618
  %v4652 = vmax.f32 %v4622, %v4624
  %v4653 = vmax.f32 %v4626, %v4628
  %v4654 = vmax.f32 %v4632, %v4634
  %v4655 = vmax.f32 %v4636, %v4638
  %v4656 = vmax.f32 %v4640, %v4642
  %v4657 = vmax.f32 %v4641, %v4643
  %v4658 = vadd.f32 %v4656, %v3841
  %v4659 = vadd.f32 %v4657, %v3846
  %v4660 = vmax.f32 %v4658, 0.0
  %v4661 = vmax.f32 %v4659, 0.0
  %v4662 = vpack.c.bf16 %v4661, %v4660
  %v4663 = vmax.f32 %v4644, %v4646
  %v4664 = vmax.f32 %v4645, %v4647
  %v4665 = vadd.f32 %v4663, %v3841
  %v4666 = vadd.f32 %v4664, %v3846
  %v4667 = vmax.f32 %v4665, 0.0
  %v4668 = vmax.f32 %v4666, 0.0
  %v4669 = vpack.c.bf16 %v4668, %v4667
  %v4670 = vmax.f32 %v4648, %v4650
  %v4671 = vmax.f32 %v4649, %v4651
  %v4672 = vadd.f32 %v4670, %v3841
  %v4673 = vadd.f32 %v4671, %v3846
  %v4674 = vmax.f32 %v4672, 0.0
  %v4675 = vmax.f32 %v4673, 0.0
  %v4676 = vpack.c.bf16 %v4675, %v4674
  %v4677 = vmax.f32 %v4652, %v4654
  %v4678 = vmax.f32 %v4653, %v4655
  %v4679 = vadd.f32 %v4677, %v3841
  %v4680 = vadd.f32 %v4678, %v3846
  %v4681 = vmax.f32 %v4679, 0.0
  %v4682 = vmax.f32 %v4680, 0.0
  %v4683 = vpack.c.bf16 %v4682, %v4681
  %v4684 = vld [vmem:[%s5] sm:$0xff]
  %v4685 = vld [vmem:[%s5 + $0x8] sm:$0xff]
  %v4686 = vld [vmem:[%s5 + $0x10] sm:$0xff]
  %v4687 = vld [vmem:[%s5 + $0x18] sm:$0xff]
  %v4688 = vld [vmem:[%s5 + $0x20] sm:$0xff]
  %v4689 = vld [vmem:[%s5 + $0x28] sm:$0xff]
  %v4690 = vld [vmem:[%s5 + $0x30] sm:$0xff]
  %v4691 = vld [vmem:[%s5 + $0x38] sm:$0xff]
  %v4692 = vld [vmem:[%s5 + $0x40] sm:$0xff]
  %v4693 = vld [vmem:[%s5 + $0x48] sm:$0xff]
  %v4694 = vld [vmem:[%s5 + $0x50] sm:$0xff]
  %v4695 = vld [vmem:[%s5 + $0x58] sm:$0xff]
  %v4696 = vld [vmem:[%s5 + $0x60] sm:$0xff]
  %v4697 = vld [vmem:[%s5 + $0x68] sm:$0xff]
  %v4698 = vld [vmem:[%s5 + $0x70] sm:$0xff]
  %v4699 = vld [vmem:[%s5 + $0x78] sm:$0xff]
  %v4700 = vld [vmem:[%s6] sm:$0xff]
  %v4701 = vld [vmem:[%s6 + $0x8] sm:$0xff]
  %v4702 = vld [vmem:[%s6 + $0x10] sm:$0xff]
  %v4703 = vld [vmem:[%s6 + $0x18] sm:$0xff]
  %v4704 = vld [vmem:[%s6 + $0x20] sm:$0xff]
  %v4705 = vld [vmem:[%s6 + $0x28] sm:$0xff]
  %v4706 = vld [vmem:[%s6 + $0x30] sm:$0xff]
  %v4707 = vld [vmem:[%s6 + $0x38] sm:$0xff]
  %v4708 = vld [vmem:[%s6 + $0x40] sm:$0xff]
  %v4709 = vld [vmem:[%s6 + $0x48] sm:$0xff]
  %v4710 = vld [vmem:[%s6 + $0x50] sm:$0xff]
  %v4711 = vld [vmem:[%s6 + $0x58] sm:$0xff]
  %v4712 = vld [vmem:[%s6 + $0x60] sm:$0xff]
  %v4713 = vld [vmem:[%s6 + $0x68] sm:$0xff]
  %v4714 = vld [vmem:[%s6 + $0x70] sm:$0xff]
  %v4715 = vld [vmem:[%s6 + $0x78] sm:$0xff]
  %4717 = vset.pattern.permute.xlu0 0
  %4718 = vperm.xlu0 %4717, %v4700
  %v4719 = vpop.permute.xlu0 %4718
  %4722 = vset.pattern.permute.xlu0 0
  %4723 = vperm.xlu0 %4722, %v4701
  %v4724 = vpop.permute.xlu0 %4723
  %4727 = vset.pattern.permute.xlu0 0
  %4728 = vperm.xlu0 %4727, %v4702
  %v4729 = vpop.permute.xlu0 %4728
  %4732 = vset.pattern.permute.xlu0 0
  %4733 = vperm.xlu0 %4732, %v4703
  %v4734 = vpop.permute.xlu0 %4733
  %4737 = vset.pattern.permute.xlu0 0
  %4738 = vperm.xlu0 %4737, %v4704
  %v4739 = vpop.permute.xlu0 %4738
  %4742 = vset.pattern.permute.xlu0 0
  %4743 = vperm.xlu0 %4742, %v4705
  %v4744 = vpop.permute.xlu0 %4743
  %4747 = vset.pattern.permute.xlu0 0
  %4748 = vperm.xlu0 %4747, %v4706
  %v4749 = vpop.permute.xlu0 %4748
  %4752 = vset.pattern.permute.xlu0 0
  %4753 = vperm.xlu0 %4752, %v4707
  %v4754 = vpop.permute.xlu0 %4753
  %4757 = vset.pattern.permute.xlu0 0
  %4758 = vperm.xlu0 %4757, %v4708
  %v4759 = vpop.permute.xlu0 %4758
  %4762 = vset.pattern.permute.xlu0 0
  %4763 = vperm.xlu0 %4762, %v4709
  %v4764 = vpop.permute.xlu0 %4763
  %4767 = vset.pattern.permute.xlu0 0
  %4768 = vperm.xlu0 %4767, %v4710
  %v4769 = vpop.permute.xlu0 %4768
  %4772 = vset.pattern.permute.xlu0 0
  %4773 = vperm.xlu0 %4772, %v4711
  %v4774 = vpop.permute.xlu0 %4773
  %4777 = vset.pattern.permute.xlu0 0
  %4778 = vperm.xlu0 %4777, %v4712
  %v4779 = vpop.permute.xlu0 %4778
  %4782 = vset.pattern.permute.xlu0 0
  %4783 = vperm.xlu0 %4782, %v4713
  %v4784 = vpop.permute.xlu0 %4783
  %4787 = vset.pattern.permute.xlu0 0
  %4788 = vperm.xlu0 %4787, %v4714
  %v4789 = vpop.permute.xlu0 %4788
  %4792 = vset.pattern.permute.xlu0 0
  %4793 = vperm.xlu0 %4792, %v4715
  %v4794 = vpop.permute.xlu0 %4793
  %v4812 = vunpack.c.l.b16 %v4684
  %v4813 = vunpack.c.h.b16 %v4684
  %v4814 = vunpack.c.l.b16 %v4685
  %v4815 = vunpack.c.h.b16 %v4685
  %v4816 = vunpack.c.l.b16 %v4686
  %v4817 = vunpack.c.h.b16 %v4686
  %v4818 = vunpack.c.l.b16 %v4687
  %v4819 = vunpack.c.h.b16 %v4687
  %v4820 = vunpack.c.l.b16 %v4688
  %v4821 = vunpack.c.h.b16 %v4688
  %v4822 = vunpack.c.l.b16 %v4689
  %v4823 = vunpack.c.h.b16 %v4689
  %v4824 = vunpack.c.l.b16 %v4690
  %v4825 = vunpack.c.h.b16 %v4690
  %v4826 = vunpack.c.l.b16 %v4691
  %v4827 = vunpack.c.h.b16 %v4691
  %v4828 = vunpack.c.l.b16 %v4692
  %v4829 = vunpack.c.h.b16 %v4692
  %v4830 = vunpack.c.l.b16 %v4693
  %v4831 = vunpack.c.h.b16 %v4693
  %v4832 = vunpack.c.l.b16 %v4694
  %v4833 = vunpack.c.h.b16 %v4694
  %v4834 = vunpack.c.l.b16 %v4695
  %v4835 = vunpack.c.h.b16 %v4695
  %v4836 = vunpack.c.l.b16 %v4696
  %v4837 = vunpack.c.h.b16 %v4696
  %v4838 = vunpack.c.l.b16 %v4697
  %v4839 = vunpack.c.h.b16 %v4697
  %v4840 = vunpack.c.l.b16 %v4698
  %v4841 = vunpack.c.h.b16 %v4698
  %v4842 = vunpack.c.l.b16 %v4699
  %v4843 = vunpack.c.h.b16 %v4699
  %v4844 = vpack.c.b16 %v4814, %v4812
  %v4845 = vpack.c.b16 %v4815, %v4813
  %v4846 = vpack.c.b16 %v4818, %v4816
  %v4847 = vpack.c.b16 %v4819, %v4817
  %v4848 = vpack.c.b16 %v4822, %v4820
  %v4849 = vpack.c.b16 %v4823, %v4821
  %v4850 = vpack.c.b16 %v4826, %v4824
  %v4851 = vpack.c.b16 %v4827, %v4825
  %v4852 = vpack.c.b16 %v4830, %v4828
  %v4853 = vpack.c.b16 %v4831, %v4829
  %v4854 = vpack.c.b16 %v4834, %v4832
  %v4855 = vpack.c.b16 %v4835, %v4833
  %v4856 = vpack.c.b16 %v4838, %v4836
  %v4857 = vpack.c.b16 %v4839, %v4837
  %v4858 = vpack.c.b16 %v4842, %v4840
  %v4859 = vpack.c.b16 %v4843, %v4841
  %4876 = vmatprep.subr.bf16.mxu0 0
  %4877 = vmatpush1.bf16.msra.mxu0 %v4143
  %4878 = vmatprep.subr.bf16.mxu0 0
  %4879 = vmatpush1.bf16.msra.mxu0 %v4136
  %4880 = vmatprep.subr.bf16.mxu0 0
  %4881 = vmatpush1.bf16.msra.mxu0 %v4129
  %4882 = vmatprep.subr.bf16.mxu0 0
  %4883 = vmatpush1.bf16.msra.mxu0 %v4122
  %4884 = vmatprep.subr.bf16.mxu0 0
  %4885 = vmatpush1.bf16.msra.mxu0 %v3873
  %4886 = vmatprep.subr.bf16.mxu0 0
  %4887 = vmatpush1.bf16.msra.mxu0 %v3866
  %4888 = vmatprep.subr.bf16.mxu0 0
  %4889 = vmatpush1.bf16.msra.mxu0 %v3859
  %4890 = vmatprep.subr.bf16.mxu0 0
  %4891 = vmatpush1.bf16.msra.mxu0 %v3852
  %4892 = vmatprep.subr.bf16.mxu0 0
  %4893 = vmatpush2.bf16.msra.mxu0 %v4683
  %4894 = vmatprep.subr.bf16.mxu0 0
  %4895 = vmatpush2.bf16.msra.mxu0 %v4676
  %4896 = vmatprep.subr.bf16.mxu0 0
  %4897 = vmatpush2.bf16.msra.mxu0 %v4669
  %4898 = vmatprep.subr.bf16.mxu0 0
  %4899 = vmatpush2.bf16.msra.mxu0 %v4662
  %4900 = vmatprep.subr.bf16.mxu0 0
  %4901 = vmatpush2.bf16.msra.mxu0 %v4413
  %4902 = vmatprep.subr.bf16.mxu0 0
  %4903 = vmatpush2.bf16.msra.mxu0 %v4406
  %4904 = vmatprep.subr.bf16.mxu0 0
  %4905 = vmatpush2.bf16.msra.mxu0 %v4399
  %4906 = vmatprep.subr.bf16.mxu0 0
  %4907 = vmatpush2.bf16.msra.mxu0 %v4392
  %4908 = vmatprep.mubr.bf16.mxu0 %v4845
  %4909 = vmatmul.mubr.bf16.gmra.mxu0 %v4844
  %v4910 = vpop.f32.mrf.mxu0
  %v4911 = vadd.f32 %v4719, %v4910
  %v4912 = vpop.f32.mrf.mxu0
  %v4913 = vpop.f32.mrf.mxu0
  %v4914 = vadd.f32 %v4724, %v4913
  %v4915 = vpop.f32.mrf.mxu0
  %4916 = vmatprep.mubr.bf16.mxu0 %v4847
  %4917 = vmatmul.mubr.bf16.gmra.mxu0 %v4846
  %v4918 = vpop.f32.mrf.mxu0
  %v4919 = vadd.f32 %v4729, %v4918
  %v4920 = vpop.f32.mrf.mxu0
  %v4921 = vpop.f32.mrf.mxu0
  %v4922 = vadd.f32 %v4734, %v4921
  %v4923 = vpop.f32.mrf.mxu0
  %4924 = vmatprep.mubr.bf16.mxu0 %v4849
  %4925 = vmatmul.mubr.bf16.gmra.mxu0 %v4848
  %v4926 = vpop.f32.mrf.mxu0
  %v4927 = vadd.f32 %v4739, %v4926
  %v4928 = vpop.f32.mrf.mxu0
  %v4929 = vpop.f32.mrf.mxu0
  %v4930 = vadd.f32 %v4744, %v4929
  %v4931 = vpop.f32.mrf.mxu0
  %4932 = vmatprep.mubr.bf16.mxu0 %v4851
  %4933 = vmatmul.mubr.bf16.gmra.mxu0 %v4850
  %v4934 = vpop.f32.mrf.mxu0
  %v4935 = vadd.f32 %v4749, %v4934
  %v4936 = vpop.f32.mrf.mxu0
  %v4937 = vpop.f32.mrf.mxu0
  %v4938 = vadd.f32 %v4754, %v4937
  %v4939 = vpop.f32.mrf.mxu0
  %4940 = vmatprep.mubr.bf16.mxu0 %v4853
  %4941 = vmatmul.mubr.bf16.gmra.mxu0 %v4852
  %v4942 = vpop.f32.mrf.mxu0
  %v4943 = vadd.f32 %v4759, %v4942
  %v4944 = vpop.f32.mrf.mxu0
  %v4945 = vpop.f32.mrf.mxu0
  %v4946 = vadd.f32 %v4764, %v4945
  %v4947 = vpop.f32.mrf.mxu0
  %4948 = vmatprep.mubr.bf16.mxu0 %v4855
  %4949 = vmatmul.mubr.bf16.gmra.mxu0 %v4854
  %v4950 = vpop.f32.mrf.mxu0
  %v4951 = vadd.f32 %v4769, %v4950
  %v4952 = vpop.f32.mrf.mxu0
  %v4953 = vpop.f32.mrf.mxu0
  %v4954 = vadd.f32 %v4774, %v4953
  %v4955 = vpop.f32.mrf.mxu0
  %4956 = vmatprep.mubr.bf16.mxu0 %v4857
  %4957 = vmatmul.mubr.bf16.gmra.mxu0 %v4856
  %v4958 = vpop.f32.mrf.mxu0
  %v4959 = vadd.f32 %v4779, %v4958
  %v4960 = vpop.f32.mrf.mxu0
  %v4961 = vpop.f32.mrf.mxu0
  %v4962 = vadd.f32 %v4784, %v4961
  %v4963 = vpop.f32.mrf.mxu0
  %4964 = vmatprep.mubr.bf16.mxu0 %v4859
  %4965 = vmatmul.mubr.bf16.gmra.mxu0 %v4858
  %v4966 = vpop.f32.mrf.mxu0
  %v4967 = vadd.f32 %v4789, %v4966
  %v4968 = vpop.f32.mrf.mxu0
  %v4969 = vpop.f32.mrf.mxu0
  %v4970 = vadd.f32 %v4794, %v4969
  %v4971 = vpop.f32.mrf.mxu0
  %4972 = vdwg.mxu0
  %v4973 = vmax.f32 %v4911, 0.0
  %v4974 = vmax.f32 %v4914, 0.0
  %v4975 = vmax.f32 %v4919, 0.0
  %v4976 = vmax.f32 %v4922, 0.0
  %v4977 = vmax.f32 %v4927, 0.0
  %v4978 = vmax.f32 %v4930, 0.0
  %v4979 = vmax.f32 %v4935, 0.0
  %v4980 = vmax.f32 %v4938, 0.0
  %v4981 = vmax.f32 %v4943, 0.0
  %v4982 = vmax.f32 %v4946, 0.0
  %v4983 = vmax.f32 %v4951, 0.0
  %v4984 = vmax.f32 %v4954, 0.0
  %v4985 = vmax.f32 %v4959, 0.0
  %v4986 = vmax.f32 %v4962, 0.0
  %v4987 = vmax.f32 %v4967, 0.0
  %v4988 = vmax.f32 %v4970, 0.0
  %v4989 = vpack.c.bf16 %v4974, %v4973
  %v4990 = vpack.c.bf16 %v4976, %v4975
  %v4991 = vpack.c.bf16 %v4978, %v4977
  %v4992 = vpack.c.bf16 %v4980, %v4979
  %v4993 = vpack.c.bf16 %v4982, %v4981
  %v4994 = vpack.c.bf16 %v4984, %v4983
  %v4995 = vpack.c.bf16 %v4986, %v4985
  %v4996 = vpack.c.bf16 %v4988, %v4987
  %v4997 = vld [vmem:[%s7] sm:$0xf]
  %v4998 = vld [vmem:[%s7 + $0x4] sm:$0xf]
  %v4999 = vld [vmem:[%s7 + $0x8] sm:$0xf]
  %v5000 = vld [vmem:[%s7 + $0xc] sm:$0xf]
  %v5001 = vld [vmem:[%s7 + $0x10] sm:$0xf]
  %v5002 = vld [vmem:[%s7 + $0x14] sm:$0xf]
  %v5003 = vld [vmem:[%s7 + $0x18] sm:$0xf]
  %v5004 = vld [vmem:[%s7 + $0x1c] sm:$0xf]
  %v5005 = vld [vmem:[%s7 + $0x20] sm:$0xf]
  %v5006 = vld [vmem:[%s7 + $0x24] sm:$0xf]
  %v5007 = vld [vmem:[%s7 + $0x28] sm:$0xf]
  %v5008 = vld [vmem:[%s7 + $0x2c] sm:$0xf]
  %v5009 = vld [vmem:[%s7 + $0x30] sm:$0xf]
  %v5010 = vld [vmem:[%s7 + $0x34] sm:$0xf]
  %v5011 = vld [vmem:[%s7 + $0x38] sm:$0xf]
  %v5012 = vld [vmem:[%s7 + $0x3c] sm:$0xf]
  %v5013 = vld [vmem:[%s8] sm:$0xff]
  %v5014 = vld [vmem:[%s8 + $0x8] sm:$0xff]
  %v5015 = vld [vmem:[%s8 + $0x10] sm:$0xff]
  %v5016 = vld [vmem:[%s8 + $0x18] sm:$0xff]
  %v5017 = vld [vmem:[%s8 + $0x20] sm:$0xff]
  %v5018 = vld [vmem:[%s8 + $0x28] sm:$0xff]
  %v5019 = vld [vmem:[%s8 + $0x30] sm:$0xff]
  %v5020 = vld [vmem:[%s8 + $0x38] sm:$0xff]
  %v5021 = vld [vmem:[%s8 + $0x40] sm:$0xff]
  %v5022 = vld [vmem:[%s8 + $0x48] sm:$0xff]
  %v5023 = vld [vmem:[%s8 + $0x50] sm:$0xff]
  %v5024 = vld [vmem:[%s8 + $0x58] sm:$0xff]
  %v5025 = vld [vmem:[%s8 + $0x60] sm:$0xff]
  %v5026 = vld [vmem:[%s8 + $0x68] sm:$0xff]
  %v5027 = vld [vmem:[%s8 + $0x70] sm:$0xff]
  %v5028 = vld [vmem:[%s8 + $0x78] sm:$0xff]
  %5030 = vset.pattern.permute.xlu0 0
  %5031 = vperm.xlu0 %5030, %v5013
  %v5032 = vpop.permute.xlu0 %5031
  %5035 = vset.pattern.permute.xlu0 0
  %5036 = vperm.xlu0 %5035, %v5014
  %v5037 = vpop.permute.xlu0 %5036
  %5040 = vset.pattern.permute.xlu0 0
  %5041 = vperm.xlu0 %5040, %v5015
  %v5042 = vpop.permute.xlu0 %5041
  %5045 = vset.pattern.permute.xlu0 0
  %5046 = vperm.xlu0 %5045, %v5016
  %v5047 = vpop.permute.xlu0 %5046
  %5050 = vset.pattern.permute.xlu0 0
  %5051 = vperm.xlu0 %5050, %v5017
  %v5052 = vpop.permute.xlu0 %5051
  %5055 = vset.pattern.permute.xlu0 0
  %5056 = vperm.xlu0 %5055, %v5018
  %v5057 = vpop.permute.xlu0 %5056
  %5060 = vset.pattern.permute.xlu0 0
  %5061 = vperm.xlu0 %5060, %v5019
  %v5062 = vpop.permute.xlu0 %5061
  %5065 = vset.pattern.permute.xlu0 0
  %5066 = vperm.xlu0 %5065, %v5020
  %v5067 = vpop.permute.xlu0 %5066
  %5070 = vset.pattern.permute.xlu0 0
  %5071 = vperm.xlu0 %5070, %v5021
  %v5072 = vpop.permute.xlu0 %5071
  %5075 = vset.pattern.permute.xlu0 0
  %5076 = vperm.xlu0 %5075, %v5022
  %v5077 = vpop.permute.xlu0 %5076
  %5080 = vset.pattern.permute.xlu0 0
  %5081 = vperm.xlu0 %5080, %v5023
  %v5082 = vpop.permute.xlu0 %5081
  %5085 = vset.pattern.permute.xlu0 0
  %5086 = vperm.xlu0 %5085, %v5024
  %v5087 = vpop.permute.xlu0 %5086
  %5090 = vset.pattern.permute.xlu0 0
  %5091 = vperm.xlu0 %5090, %v5025
  %v5092 = vpop.permute.xlu0 %5091
  %5095 = vset.pattern.permute.xlu0 0
  %5096 = vperm.xlu0 %5095, %v5026
  %v5097 = vpop.permute.xlu0 %5096
  %5100 = vset.pattern.permute.xlu0 0
  %5101 = vperm.xlu0 %5100, %v5027
  %v5102 = vpop.permute.xlu0 %5101
  %5105 = vset.pattern.permute.xlu0 0
  %5106 = vperm.xlu0 %5105, %v5028
  %v5107 = vpop.permute.xlu0 %5106
  %v5125 = vunpack.c.l.b16 %v4997
  %v5126 = vunpack.c.l.b16 %v4998
  %v5127 = vunpack.c.l.b16 %v4999
  %v5128 = vunpack.c.l.b16 %v5000
  %v5129 = vunpack.c.l.b16 %v5001
  %v5130 = vunpack.c.l.b16 %v5002
  %v5131 = vunpack.c.l.b16 %v5003
  %v5132 = vunpack.c.l.b16 %v5004
  %v5133 = vunpack.c.l.b16 %v5005
  %v5134 = vunpack.c.l.b16 %v5006
  %v5135 = vunpack.c.l.b16 %v5007
  %v5136 = vunpack.c.l.b16 %v5008
  %v5137 = vunpack.c.l.b16 %v5009
  %v5138 = vunpack.c.l.b16 %v5010
  %v5139 = vunpack.c.l.b16 %v5011
  %v5140 = vunpack.c.l.b16 %v5012
  %v5141 = vpack.c.b16 %v5126, %v5125
  %v5142 = vpack.c.b16 %v5128, %v5127
  %v5143 = vpack.c.b16 %v5130, %v5129
  %v5144 = vpack.c.b16 %v5132, %v5131
  %v5145 = vpack.c.b16 %v5134, %v5133
  %v5146 = vpack.c.b16 %v5136, %v5135
  %v5147 = vpack.c.b16 %v5138, %v5137
  %v5148 = vpack.c.b16 %v5140, %v5139
  %5157 = vmatprep.subr.bf16.mxu0 0
  %5158 = vmatpush1.bf16.msra.mxu0 %v4996
  %5159 = vmatprep.subr.bf16.mxu0 0
  %5160 = vmatpush1.bf16.msra.mxu0 %v4995
  %5161 = vmatprep.subr.bf16.mxu0 0
  %5162 = vmatpush1.bf16.msra.mxu0 %v4994
  %5163 = vmatprep.subr.bf16.mxu0 0
  %5164 = vmatpush1.bf16.msra.mxu0 %v4993
  %5165 = vmatprep.subr.bf16.mxu0 0
  %5166 = vmatpush1.bf16.msra.mxu0 %v4992
  %5167 = vmatprep.subr.bf16.mxu0 0
  %5168 = vmatpush1.bf16.msra.mxu0 %v4991
  %5169 = vmatprep.subr.bf16.mxu0 0
  %5170 = vmatpush1.bf16.msra.mxu0 %v4990
  %5171 = vmatprep.subr.bf16.mxu0 0
  %5172 = vmatpush1.bf16.msra.mxu0 %v4989
  %5173 = vmatprep.subr.bf16.mxu0 0
  %5174 = vmatpush2.bf16.msra.mxu0 0
  %5175 = vmatprep.subr.bf16.mxu0 0
  %5176 = vmatpush2.bf16.msra.mxu0 0
  %5177 = vmatprep.subr.bf16.mxu0 0
  %5178 = vmatpush2.bf16.msra.mxu0 0
  %5179 = vmatprep.subr.bf16.mxu0 0
  %5180 = vmatpush2.bf16.msra.mxu0 0
  %5181 = vmatprep.subr.bf16.mxu0 0
  %5182 = vmatpush2.bf16.msra.mxu0 0
  %5183 = vmatprep.subr.bf16.mxu0 0
  %5184 = vmatpush2.bf16.msra.mxu0 0
  %5185 = vmatprep.subr.bf16.mxu0 0
  %5186 = vmatpush2.bf16.msra.mxu0 0
  %5187 = vmatprep.subr.bf16.mxu0 0
  %5188 = vmatpush2.bf16.msra.mxu0 0
  %5189 = vmatprep.mubr.bf16.mxu0 0
  %5190 = vmatmul.mubr.bf16.gmra.mxu0 %v5141
  %v5191 = vpop.f32.mrf.mxu0
  %v5192 = vadd.f32 %v5032, %v5191
  %v5193 = vpop.f32.mrf.mxu0
  %v5194 = vpop.f32.mrf.mxu0
  %v5195 = vadd.f32 %v5037, %v5194
  %v5196 = vpop.f32.mrf.mxu0
  %5197 = vmatprep.mubr.bf16.mxu0 0
  %5198 = vmatmul.mubr.bf16.gmra.mxu0 %v5142
  %v5199 = vpop.f32.mrf.mxu0
  %v5200 = vadd.f32 %v5042, %v5199
  %v5201 = vpop.f32.mrf.mxu0
  %v5202 = vpop.f32.mrf.mxu0
  %v5203 = vadd.f32 %v5047, %v5202
  %v5204 = vpop.f32.mrf.mxu0
  %5205 = vmatprep.mubr.bf16.mxu0 0
  %5206 = vmatmul.mubr.bf16.gmra.mxu0 %v5143
  %v5207 = vpop.f32.mrf.mxu0
  %v5208 = vadd.f32 %v5052, %v5207
  %v5209 = vpop.f32.mrf.mxu0
  %v5210 = vpop.f32.mrf.mxu0
  %v5211 = vadd.f32 %v5057, %v5210
  %v5212 = vpop.f32.mrf.mxu0
  %5213 = vmatprep.mubr.bf16.mxu0 0
  %5214 = vmatmul.mubr.bf16.gmra.mxu0 %v5144
  %v5215 = vpop.f32.mrf.mxu0
  %v5216 = vadd.f32 %v5062, %v5215
  %v5217 = vpop.f32.mrf.mxu0
  %v5218 = vpop.f32.mrf.mxu0
  %v5219 = vadd.f32 %v5067, %v5218
  %v5220 = vpop.f32.mrf.mxu0
  %5221 = vmatprep.mubr.bf16.mxu0 0
  %5222 = vmatmul.mubr.bf16.gmra.mxu0 %v5145
  %v5223 = vpop.f32.mrf.mxu0
  %v5224 = vadd.f32 %v5072, %v5223
  %v5225 = vpop.f32.mrf.mxu0
  %v5226 = vpop.f32.mrf.mxu0
  %v5227 = vadd.f32 %v5077, %v5226
  %v5228 = vpop.f32.mrf.mxu0
  %5229 = vmatprep.mubr.bf16.mxu0 0
  %5230 = vmatmul.mubr.bf16.gmra.mxu0 %v5146
  %v5231 = vpop.f32.mrf.mxu0
  %v5232 = vadd.f32 %v5082, %v5231
  %v5233 = vpop.f32.mrf.mxu0
  %v5234 = vpop.f32.mrf.mxu0
  %v5235 = vadd.f32 %v5087, %v5234
  %v5236 = vpop.f32.mrf.mxu0
  %5237 = vmatprep.mubr.bf16.mxu0 0
  %5238 = vmatmul.mubr.bf16.gmra.mxu0 %v5147
  %v5239 = vpop.f32.mrf.mxu0
  %v5240 = vadd.f32 %v5092, %v5239
  %v5241 = vpop.f32.mrf.mxu0
  %v5242 = vpop.f32.mrf.mxu0
  %v5243 = vadd.f32 %v5097, %v5242
  %v5244 = vpop.f32.mrf.mxu0
  %5245 = vmatprep.mubr.bf16.mxu0 0
  %5246 = vmatmul.mubr.bf16.gmra.mxu0 %v5148
  %v5247 = vpop.f32.mrf.mxu0
  %v5248 = vadd.f32 %v5102, %v5247
  %v5249 = vpop.f32.mrf.mxu0
  %v5250 = vpop.f32.mrf.mxu0
  %v5251 = vadd.f32 %v5107, %v5250
  %v5252 = vpop.f32.mrf.mxu0
  %5253 = vdwg.mxu0
  %v5254 = vmax.f32 %v5192, 0.0
  %v5255 = vmax.f32 %v5195, 0.0
  %v5256 = vmax.f32 %v5200, 0.0
  %v5257 = vmax.f32 %v5203, 0.0
  %v5258 = vmax.f32 %v5208, 0.0
  %v5259 = vmax.f32 %v5211, 0.0
  %v5260 = vmax.f32 %v5216, 0.0
  %v5261 = vmax.f32 %v5219, 0.0
  %v5262 = vmax.f32 %v5224, 0.0
  %v5263 = vmax.f32 %v5227, 0.0
  %v5264 = vmax.f32 %v5232, 0.0
  %v5265 = vmax.f32 %v5235, 0.0
  %v5266 = vmax.f32 %v5240, 0.0
  %v5267 = vmax.f32 %v5243, 0.0
  %v5268 = vmax.f32 %v5248, 0.0
  %v5269 = vmax.f32 %v5251, 0.0
  %v5270 = vpack.c.bf16 %v5255, %v5254
  %v5271 = vpack.c.bf16 %v5257, %v5256
  %v5272 = vpack.c.bf16 %v5259, %v5258
  %v5273 = vpack.c.bf16 %v5261, %v5260
  %v5274 = vpack.c.bf16 %v5263, %v5262
  %v5275 = vpack.c.bf16 %v5265, %v5264
  %v5276 = vpack.c.bf16 %v5267, %v5266
  %v5277 = vpack.c.bf16 %v5269, %v5268
  %v5278 = vld [vmem:[%s9] sm:$0xf]
  %v5279 = vld [vmem:[%s9 + $0x4] sm:$0xf]
  %v5280 = vld [vmem:[%s10] sm:$0xff]
  %v5281 = vld [vmem:[%s10 + $0x8] sm:$0xff]
  %5283 = vset.pattern.permute.xlu0 0
  %5284 = vperm.xlu0 %5283, %v5280
  %v5285 = vpop.permute.xlu0 %5284
  %5288 = vset.pattern.permute.xlu0 0
  %5289 = vperm.xlu0 %5288, %v5281
  %v5290 = vpop.permute.xlu0 %5289
  %v5294 = vunpack.c.l.b16 %v5278
  %v5295 = vunpack.c.l.b16 %v5279
  %v5296 = vpack.c.b16 %v5295, %v5294
  %5298 = vmatprep.subr.bf16.mxu0 0
  %5299 = vmatpush1.bf16.msra.mxu0 %v5277
  %5300 = vmatprep.subr.bf16.mxu0 0
  %5301 = vmatpush1.bf16.msra.mxu0 %v5276
  %5302 = vmatprep.subr.bf16.mxu0 0
  %5303 = vmatpush1.bf16.msra.mxu0 %v5275
  %5304 = vmatprep.subr.bf16.mxu0 0
  %5305 = vmatpush1.bf16.msra.mxu0 %v5274
  %5306 = vmatprep.subr.bf16.mxu0 0
  %5307 = vmatpush1.bf16.msra.mxu0 %v5273
  %5308 = vmatprep.subr.bf16.mxu0 0
  %5309 = vmatpush1.bf16.msra.mxu0 %v5272
  %5310 = vmatprep.subr.bf16.mxu0 0
  %5311 = vmatpush1.bf16.msra.mxu0 %v5271
  %5312 = vmatprep.subr.bf16.mxu0 0
  %5313 = vmatpush1.bf16.msra.mxu0 %v5270
  %5314 = vmatprep.subr.bf16.mxu0 0
  %5315 = vmatpush2.bf16.msra.mxu0 0
  %5316 = vmatprep.subr.bf16.mxu0 0
  %5317 = vmatpush2.bf16.msra.mxu0 0
  %5318 = vmatprep.subr.bf16.mxu0 0
  %5319 = vmatpush2.bf16.msra.mxu0 0
  %5320 = vmatprep.subr.bf16.mxu0 0
  %5321 = vmatpush2.bf16.msra.mxu0 0
  %5322 = vmatprep.subr.bf16.mxu0 0
  %5323 = vmatpush2.bf16.msra.mxu0 0
  %5324 = vmatprep.subr.bf16.mxu0 0
  %5325 = vmatpush2.bf16.msra.mxu0 0
  %5326 = vmatprep.subr.bf16.mxu0 0
  %5327 = vmatpush2.bf16.msra.mxu0 0
  %5328 = vmatprep.subr.bf16.mxu0 0
  %5329 = vmatpush2.bf16.msra.mxu0 0
  %5330 = vmatprep.mubr.bf16.mxu0 0
  %5331 = vmatmul.mubr.bf16.gmra.mxu0 %v5296
  %v5332 = vpop.f32.mrf.mxu0
  %v5333 = vadd.f32 %v5285, %v5332
  %v5334 = vpop.f32.mrf.mxu0
  %v5335 = vpop.f32.mrf.mxu0
  %v5336 = vadd.f32 %v5290, %v5335
  %v5337 = vpop.f32.mrf.mxu0
  %5338 = vdwg.mxu0
  %5339 = vst [vmem:[%s11] sm:$0xff] %v5333
  %5340 = vst [vmem:[%s11 + $0x8] sm:$0xff] %v5336
  // Predicated region
  $region46: #{network_forward.1} parent=0 // pred_check
    _
  $region47: #{network_forward.1} parent=0 // pred_check_branch
    %5342 = sbr.rel (0) target = $region49
  $region48: #{network_forward.1} parent=0 // pred_region
    _
  $region49: #{network_forward.1} parent=0 // pred_fallthru
    _
  // Predicated region
  $region50: #{network_forward.1} parent=0 // pred_check
    _
  $region51: #{network_forward.1} parent=0 // pred_check_branch
    %5344 = sbr.rel (0) target = $region53
  $region52: #{network_forward.1} parent=0 // pred_region
    _
  $region53: #{network_forward.1} parent=0 // pred_fallthru
    _

</llo_original>
